<compile_context>
chip_gen: v7x
topology: tpu7x:2x2x1
jax: 0.10.0
libtpu: 0.0.40
codegen_flags: <defaults>
</compile_context>

<pallas_src>
import functools

import jax
import jax.numpy as jnp
import numpy as np
from jax.experimental import pallas as pl
from jax.experimental.pallas import tpu as pltpu


# --------------------------------- kernel ------------------------------------
def _encoder_layer_kernel(num_groups, eps, compute_dtype,
                          x_ref, q_ref, be_ref, mask_ref, g_ref,
                          ln1g_ref, ln1b_ref, ln2g_ref, ln2b_ref,
                          wfuse_ref, bfuse_ref, wf1_ref, bf1_ref,
                          wf2_ref, bf2_ref, o_ref):
    B, L, D = x_ref.shape
    N = q_ref.shape[1]
    R = B * L
    inv_sqrt_d = 1.0 / (D ** 0.5)
    inv_groups = 1.0 / num_groups

    def recip(d):
        # EUP approximate reciprocal + one Newton-Raphson refinement: keeps the
        # EUP-slot win while staying accurate at the module default eps (1e-4).
        r = pl.reciprocal(d, approx=True)
        return r * (2.0 - d * r)

    x = x_ref[...]                                   # (B, L, D) f32
    x_flat = x.reshape(R, D)

    def layer_norm(v, g, b):                         # rows x D, all f32
        mu = jnp.mean(v, axis=-1, keepdims=True)
        var = jnp.mean((v - mu) ** 2, axis=-1, keepdims=True)
        return (v - mu) * jax.lax.rsqrt(var + eps) * g + b

    # ------------------- norm_1 + StaticExpansionBlock ----------------------
    x2 = layer_norm(x_flat, ln1g_ref[...], ln1b_ref[...])        # (R, D) f32
    x2c = x2.astype(compute_dtype)

    # Fused key / class_a / class_b / selector projections: one (D, 4D) matmul.
    proj = jnp.dot(x2c, wfuse_ref[...],
                   preferred_element_type=jnp.float32) + bfuse_ref[...]  # (R,4D)
    x_key = proj[:, 0 * D:1 * D].reshape(B, L, D).astype(compute_dtype)
    xa    = proj[:, 1 * D:2 * D].reshape(B, L, D).astype(compute_dtype)
    xb    = proj[:, 2 * D:3 * D].reshape(B, L, D).astype(compute_dtype)
    sel_l = proj[:, 3 * D:4 * D]
    sel   = (1.0 / (1.0 + jnp.exp(-sel_l))).reshape(B, L, D)     # sigmoid, f32

    q = q_ref[...]                                               # (B, N, D)
    # z in both layouts via feature-axis contractions (no XLU transpose; the
    # duplicate 2*R*N*D FLOPs are negligible while N << D).
    # TODO(synk): derive zT from z with an XLU transpose if N grows toward D.
    z = jax.lax.dot_general(                                     # (B, N, L)
        q, x_key, dimension_numbers=(((2,), (2,)), ((0,), (0,))),
        preferred_element_type=jnp.float32) * inv_sqrt_d
    zT = jax.lax.dot_general(                                    # (B, L, N)
        x_key, q, dimension_numbers=(((2,), (2,)), ((0,), (0,))),
        preferred_element_type=jnp.float32) * inv_sqrt_d

    # Forward weights: ReLU(+/-z), zero masked positions, normalize over L.
    keep = (mask_ref[...] != 0.0).astype(jnp.float32)            # (B, 1, L)
    a_fw = jnp.maximum(z, 0.0) * keep
    b_fw = jnp.maximum(-z, 0.0) * keep
    a_fw = a_fw * recip(jnp.sum(a_fw, -1, keepdims=True) + eps)
    b_fw = b_fw * recip(jnp.sum(b_fw, -1, keepdims=True) + eps)

    bexp = be_ref[...]                                           # (B, N, D) f32
    class_a = jax.lax.dot_general(                               # (B, N, D)
        a_fw.astype(compute_dtype), xa,
        dimension_numbers=(((2,), (1,)), ((0,), (0,))),
        preferred_element_type=jnp.float32) + bexp
    class_b = jax.lax.dot_general(
        b_fw.astype(compute_dtype), xb,
        dimension_numbers=(((2,), (1,)), ((0,), (0,))),
        preferred_element_type=jnp.float32) + bexp

    # Backward weights in (L, N) layout; per-group sums = p @ G with the static
    # group-membership matrix G (== reference slice/normalize/concat).  G is
    # kept f32 (tiny) so the denominators match the f32 numerators exactly.
    # 1/num_groups is folded into the (R, N) weights (cheaper than scaling the
    # (B, L, D) outputs).
    p_aT = jnp.maximum(zT, 0.0).reshape(R, N)                    # (R, N) f32
    p_bT = jnp.maximum(-zT, 0.0).reshape(R, N)
    den_a = jnp.dot(p_aT, g_ref[...], preferred_element_type=jnp.float32)
    den_b = jnp.dot(p_bT, g_ref[...], preferred_element_type=jnp.float32)
    w_aT = (p_aT * (inv_groups * recip(den_a + eps))
            ).astype(compute_dtype).reshape(B, L, N)
    w_bT = (p_bT * (inv_groups * recip(den_b + eps))
            ).astype(compute_dtype).reshape(B, L, N)

    out_a = jax.lax.dot_general(                                 # (B, L, D)
        w_aT, class_a.astype(compute_dtype),
        dimension_numbers=(((2,), (1,)), ((0,), (0,))),
        preferred_element_type=jnp.float32)
    out_b = jax.lax.dot_general(
        w_bT, class_b.astype(compute_dtype),
        dimension_numbers=(((2,), (1,)), ((0,), (0,))),
        preferred_element_type=jnp.float32)

    x1 = x + sel * out_a + (1.0 - sel) * out_b                   # residual 1
    x1_flat = x1.reshape(R, D)

    # ------------------------ norm_2 + FeedForward ---------------------------
    x2b = layer_norm(x1_flat, ln2g_ref[...], ln2b_ref[...]).astype(compute_dtype)
    h = jnp.maximum(
        jnp.dot(x2b, wf1_ref[...], preferred_element_type=jnp.float32)
        + bf1_ref[...], 0.0)
    ff = jnp.dot(h.astype(compute_dtype), wf2_ref[...],
                 preferred_element_type=jnp.float32) + bf2_ref[...]

    o_ref[...] = (x1_flat + ff).reshape(B, L, D)                 # residual 2


# ------------------------- one-time parameter prep ----------------------------
def prepare_encoder_layer_params(params, num_enc_exp_list,
                                 compute_dtype=jnp.bfloat16):
    """Hoisted out of the hot path: fuse / cast weights once at load time."""
    f32 = jnp.float32
    gid = np.concatenate(
        [np.full((g,), j) for j, g in enumerate(num_enc_exp_list)])
    G = jnp.asarray((gid[:, None] == gid[None, :]).astype(np.float32))  # f32

    w_fused = jnp.concatenate(
        [params["wk"], params["wa"], params["wb"], params["ws"]], axis=1
    ).astype(compute_dtype)
    b_fused = jnp.concatenate(
        [params["bk"], params["ba"], params["bb"], params["bsel"]], axis=1
    ).astype(f32)

    return {
        "compute_dtype": compute_dtype,
        "num_enc_exp_list": tuple(int(g) for g in num_enc_exp_list),
        "G": G,
        "w_fused": w_fused, "b_fused": b_fused,
        "wf1": params["wf1"].astype(compute_dtype),
        "bf1": params["bf1"].astype(f32),
        "wf2": params["wf2"].astype(compute_dtype),
        "bf2": params["bf2"].astype(f32),
        "ln1_g": params["ln1_g"].astype(f32), "ln1_b": params["ln1_b"].astype(f32),
        "ln2_g": params["ln2_g"].astype(f32), "ln2_b": params["ln2_b"].astype(f32),
        "q_table": params["q_table"].astype(compute_dtype),
        "b_table": params["b_table"].astype(f32),
    }


def _tpu_vmem_and_tc_count():
    """Best-effort hardware query; conservative (v7x-safe) fallbacks."""
    vmem_bytes = 64 * 1024 * 1024       # v7x per-TC VMEM
    num_tc = 1
    try:
        info = pltpu.get_tpu_info()
        v = getattr(info, "vmem_capacity_bytes", None)
        if v:
            vmem_bytes = int(v)
        for attr in ("num_tensorcores", "tensorcore_count", "num_cores",
                     "cores_per_chip", "core_count"):
            c = getattr(info, attr, None)
            if c:
                num_tc = int(c)
                break
    except Exception:
        pass
    return vmem_bytes, num_tc


# --------------------------------- wrapper ------------------------------------
def encoder_layer_pallas(x, n_indexes, mask, prep, eps, batch_block=None):
    compute_dtype = prep["compute_dtype"]
    num_enc_exp_list = prep["num_enc_exp_list"]
    bs, L, D = x.shape
    N = int(sum(num_enc_exp_list))
    num_groups = len(num_enc_exp_list)
    F = prep["wf1"].shape[1]
    f32 = jnp.float32
    cbytes = jnp.dtype(compute_dtype).itemsize

    vmem_cap, num_tc = _tpu_vmem_and_tc_count()
    vmem_budget = int(0.85 * vmem_cap)

    # Weight footprint (single-buffered via pl.Buffered(1)).
    weight_bytes = (D * 4 * D + D * F + F * D) * cbytes + N * N * 4 \
        + (4 * D + F + D + 8 * D) * 4
    # Per-batch-element footprint: double-buffered I/O blocks + f32 intermediates.
    io_per_elem = 2 * (L * D * 4 + N * D * cbytes + N * D * 4 + L * 4 + L * D * 4)
    inter_per_elem = L * (4 * D + F + 10 * D) * 4
    per_elem = io_per_elem + inter_per_elem

    if batch_block is None:
        # 256-512 rows per grid step feeds the 256x256 MXU; cap by VMEM budget.
        target_rows = 512
        batch_block = max(1, target_rows // max(L, 1))
        avail = max(vmem_budget - weight_bytes, per_elem)
        batch_block = max(1, min(batch_block, avail // per_elem))
        # Only split the batch across grid steps on multi-TensorCore parts
        # (v7x); on single-TC v5e/v6e keep the slab as large as VMEM allows.
        if num_tc > 1 and bs >= 2 * num_tc:
            batch_block = min(batch_block, bs // (2 * num_tc))
        batch_block = max(1, min(batch_block, bs))
        while bs % batch_block:
            batch_block -= 1
    Bblk = int(batch_block)
    steps = bs // Bblk
    grid = (steps,)

    # If the batch is too small for >=2 steps/core on a multi-TC part, deepen
    # the activation pipeline instead so prefetch/writeback still overlaps.
    act_depth = 3 if (num_tc > 1 and steps < 2 * num_tc) else 2

    # Embedding gathers (glue, plain JAX; tables were cast once in prep).
    qexp = jnp.take(prep["q_table"], n_indexes, axis=0)          # (bs, N, D)
    bexp = jnp.take(prep["b_table"], n_indexes, axis=0)          # (bs, N, D) f32

    kernel = functools.partial(_encoder_layer_kernel, num_groups, eps,
                               compute_dtype)

    operands = (x.astype(f32), qexp, bexp, mask.astype(f32), prep["G"],
                prep["ln1_g"], prep["ln1_b"], prep["ln2_g"], prep["ln2_b"],
                prep["w_fused"], prep["b_fused"], prep["wf1"], prep["bf1"],
                prep["wf2"], prep["bf2"])

    def run(use_pipeline_mode):
        def batched(shape):
            if use_pipeline_mode and act_depth != 2:
                return pl.BlockSpec(shape, lambda b: (b, 0, 0),
                                    pipeline_mode=pl.Buffered(act_depth))
            return pl.BlockSpec(shape, lambda b: (b, 0, 0))

        def shared(shape):
            # Invariant operands (constant index_map): single-buffer them so
            # the second pipeline buffer's VMEM isn't wasted.
            if use_pipeline_mode:
                return pl.BlockSpec(shape, lambda b: (0, 0),
                                    pipeline_mode=pl.Buffered(1))
            return pl.BlockSpec(shape, lambda b: (0, 0))

        in_specs = [
            batched((Bblk, L, D)),    # x
            batched((Bblk, N, D)),    # query_exp (gathered embedding)
            batched((Bblk, N, D)),    # bias_exp
            batched((Bblk, 1, L)),    # mask
            shared((N, N)),           # group-membership G (f32)
            shared((1, D)), shared((1, D)),   # norm_1 gamma / beta
            shared((1, D)), shared((1, D)),   # norm_2 gamma / beta
            shared((D, 4 * D)),       # fused wk|wa|wb|ws
            shared((1, 4 * D)),       # fused biases
            shared((D, F)),           # ff weight 1
            shared((1, F)),           # ff bias 1
            shared((F, D)),           # ff weight 2
            shared((1, D)),           # ff bias 2
        ]

        return pl.pallas_call(
            kernel,
            out_shape=jax.ShapeDtypeStruct((bs, L, D), f32),
            grid=grid,
            in_specs=in_specs,
            out_specs=pl.BlockSpec((Bblk, L, D), lambda b: (b, 0, 0)),
            compiler_params=pltpu.CompilerParams(
                dimension_semantics=("parallel",),
                vmem_limit_bytes=vmem_budget),
        )(*operands)

    try:
        return run(True)
    except Exception:
        # Fallback if this JAX version rejects pipeline_mode=pl.Buffered(k);
        # identical math, just default double-buffering.
        return run(False)


# ------------------------------ pure-JAX reference ----------------------------
def encoder_layer_ref(x, n_indexes, mask, params, num_enc_exp_list, eps):
    D = x.shape[-1]
    num_groups = len(num_enc_exp_list)
    prec = jax.lax.Precision.HIGHEST
    mm = functools.partial(jnp.matmul, precision=prec)

    def layer_norm(v, g, b):
        mu = jnp.mean(v, axis=-1, keepdims=True)
        var = jnp.mean((v - mu) ** 2, axis=-1, keepdims=True)
        return (v - mu) * jax.lax.rsqrt(var + eps) * g[0] + b[0]

    x2 = layer_norm(x, params["ln1_g"], params["ln1_b"])
    qexp = jnp.take(params["q_table"], n_indexes, axis=0)
    bexp = jnp.take(params["b_table"], n_indexes, axis=0)

    x_key = mm(x2, params["wk"]) + params["bk"][0]
    z = jnp.einsum("bnd,bld->bnl", qexp, x_key, precision=prec) / (D ** 0.5)
    keep = (mask != 0.0).astype(jnp.float32)                     # (bs, 1, L)
    a_fw = jnp.maximum(z, 0.0) * keep
    b_fw = jnp.maximum(-z, 0.0) * keep
    a_fw = a_fw / (a_fw.sum(-1, keepdims=True) + eps)
    b_fw = b_fw / (b_fw.sum(-1, keepdims=True) + eps)
    class_a = mm(a_fw, mm(x2, params["wa"]) + params["ba"][0]) + bexp
    class_b = mm(b_fw, mm(x2, params["wb"]) + params["bb"][0]) + bexp

    a_bw = jnp.maximum(jnp.swapaxes(z, -1, -2), 0.0)
    b_bw = jnp.maximum(-jnp.swapaxes(z, -1, -2), 0.0)
    acc, pa, pb = 0, [], []
    for g in num_enc_exp_list:
        sa = a_bw[:, :, acc:acc + g]
        sb = b_bw[:, :, acc:acc + g]
        pa.append(sa / (sa.sum(-1, keepdims=True) + eps))
        pb.append(sb / (sb.sum(-1, keepdims=True) + eps))
        acc += g
    a_bw = jnp.concatenate(pa, -1)
    b_bw = jnp.concatenate(pb, -1)
    class_a = mm(a_bw, class_a) / num_groups
    class_b = mm(b_bw, class_b) / num_groups
    sel = jax.nn.sigmoid(mm(x2, params["ws"]) + params["bsel"][0])
    x = x + (sel * class_a + (1.0 - sel) * class_b)

    x2 = layer_norm(x, params["ln2_g"], params["ln2_b"])
    h = jnp.maximum(mm(x2, params["wf1"]) + params["bf1"][0], 0.0)
    return x + (mm(h, params["wf2"]) + params["bf2"][0])


# ------------------------------------- main ------------------------------------
if __name__ == "__main__":
    # Lane/sublane-dense small shapes: D, F multiples of 128; N multiple of 8.
    bs, L, D, F = 4, 16, 128, 256
    num_enc_exp_list = [3, 5]          # N = 8 expansion vectors, 2 groups
    N = sum(num_enc_exp_list)
    eps = 1e-4                         # module default

    key = jax.random.PRNGKey(0)
    ks = jax.random.split(key, 24)

    def w(k, shape, scale=0.05):
        return (scale * jax.random.normal(k, shape)).astype(jnp.float32)

    params = {
        "q_table": w(ks[0], (N, D)),
        "b_table": w(ks[1], (N, D)),
        "ln1_g": (1.0 + 0.1 * jax.random.normal(ks[2], (1, D))).astype(jnp.float32),
        "ln1_b": w(ks[3], (1, D), 0.1),
        "ln2_g": (1.0 + 0.1 * jax.random.normal(ks[4], (1, D))).astype(jnp.float32),
        "ln2_b": w(ks[5], (1, D), 0.1),
        "wk": w(ks[6], (D, D)),  "bk": w(ks[7], (1, D)),
        "wa": w(ks[8], (D, D)),  "ba": w(ks[9], (1, D)),
        "wb": w(ks[10], (D, D)), "bb": w(ks[11], (1, D)),
        "ws": w(ks[12], (D, D)), "bsel": w(ks[13], (1, D)),
        "wf1": w(ks[14], (D, F)), "bf1": w(ks[15], (1, F)),
        "wf2": w(ks[16], (F, D)), "bf2": w(ks[17], (1, D)),
    }

    x = jax.random.normal(ks[18], (bs, L, D), jnp.float32)
    n_indexes = jnp.tile(jnp.arange(N, dtype=jnp.int32)[None, :], (bs, 1))
    # mask: 1 for valid encoder positions, 0 for padded positions.
    mask = jnp.ones((bs, 1, L), jnp.float32)
    mask = mask.at[1, :, L - 3:].set(0.0).at[3, :, L - 5:].set(0.0)

    ref = encoder_layer_ref(x, n_indexes, mask, params, num_enc_exp_list, eps)

    # f32 matmul path: structural / math check at the module's default eps,
    # with the Newton-refined reciprocal the tolerance can be tight.
    prep_f32 = prepare_encoder_layer_params(params, num_enc_exp_list,
                                            compute_dtype=jnp.float32)
    out_f32 = encoder_layer_pallas(x, n_indexes, mask, prep_f32, eps)
    jax.block_until_ready(out_f32)
    if not jnp.allclose(out_f32, ref, atol=1e-3, rtol=1e-3):
        raise SystemExit("MISMATCH (f32 path): max abs err = %e"
                         % float(jnp.max(jnp.abs(out_f32 - ref))))

    # bf16 MXU path (production default): error is dominated by the bf16
    # quantization of z / the normalized attention weights -- this is the
    # documented accuracy-vs-throughput knob, hence the looser tolerance.
    prep_bf16 = prepare_encoder_layer_params(params, num_enc_exp_list,
                                             compute_dtype=jnp.bfloat16)
    out_bf16 = encoder_layer_pallas(x, n_indexes, mask, prep_bf16, eps)
    jax.block_until_ready(out_bf16)
    if not jnp.allclose(out_bf16, ref, atol=5e-2, rtol=5e-2):
        raise SystemExit("MISMATCH (bf16 path): max abs err = %e"
                         % float(jnp.max(jnp.abs(out_bf16 - ref))))

    print("KERNEL_OK")
</pallas_src>

<mosaic_0001>
module attributes {stable_mosaic.version = 11 : i64} {
  func.func @_encoder_layer_kernel(%arg0: i32, %arg1: memref<4x16x128xf32, #tpu.memory_space<vmem>>, %arg2: memref<4x8x128xf32, #tpu.memory_space<vmem>>, %arg3: memref<4x8x128xf32, #tpu.memory_space<vmem>>, %arg4: memref<4x1x16xf32, #tpu.memory_space<vmem>>, %arg5: memref<8x8xf32, #tpu.memory_space<vmem>>, %arg6: memref<1x128xf32, #tpu.memory_space<vmem>>, %arg7: memref<1x128xf32, #tpu.memory_space<vmem>>, %arg8: memref<1x128xf32, #tpu.memory_space<vmem>>, %arg9: memref<1x128xf32, #tpu.memory_space<vmem>>, %arg10: memref<128x512xf32, #tpu.memory_space<vmem>>, %arg11: memref<1x512xf32, #tpu.memory_space<vmem>>, %arg12: memref<128x256xf32, #tpu.memory_space<vmem>>, %arg13: memref<1x256xf32, #tpu.memory_space<vmem>>, %arg14: memref<256x128xf32, #tpu.memory_space<vmem>>, %arg15: memref<1x128xf32, #tpu.memory_space<vmem>>, %arg16: memref<4x16x128xf32, #tpu.memory_space<vmem>>) attributes {dimension_semantics = [#tpu.dimension_semantics<parallel>], iteration_bounds = array<i64: 1>, scalar_prefetch = 0 : i64, scratch_operands = 0 : i64, tpu.core_type = #tpu.core_type<tc>, window_params = [{transform_indices = @transform_0, window_bounds = array<i64: 4, 16, 128>}, {transform_indices = @transform_1, window_bounds = array<i64: 4, 8, 128>}, {transform_indices = @transform_2, window_bounds = array<i64: 4, 8, 128>}, {transform_indices = @transform_3, window_bounds = array<i64: 4, 1, 16>}, {pipeline_mode = #tpu.pipeline_mode<synchronous>, transform_indices = @transform_4, window_bounds = array<i64: 8, 8>}, {pipeline_mode = #tpu.pipeline_mode<synchronous>, transform_indices = @transform_5, window_bounds = array<i64: 1, 128>}, {pipeline_mode = #tpu.pipeline_mode<synchronous>, transform_indices = @transform_6, window_bounds = array<i64: 1, 128>}, {pipeline_mode = #tpu.pipeline_mode<synchronous>, transform_indices = @transform_7, window_bounds = array<i64: 1, 128>}, {pipeline_mode = #tpu.pipeline_mode<synchronous>, transform_indices = @transform_8, window_bounds = array<i64: 1, 128>}, {pipeline_mode = #tpu.pipeline_mode<synchronous>, transform_indices = @transform_9, window_bounds = array<i64: 128, 512>}, {pipeline_mode = #tpu.pipeline_mode<synchronous>, transform_indices = @transform_10, window_bounds = array<i64: 1, 512>}, {pipeline_mode = #tpu.pipeline_mode<synchronous>, transform_indices = @transform_11, window_bounds = array<i64: 128, 256>}, {pipeline_mode = #tpu.pipeline_mode<synchronous>, transform_indices = @transform_12, window_bounds = array<i64: 1, 256>}, {pipeline_mode = #tpu.pipeline_mode<synchronous>, transform_indices = @transform_13, window_bounds = array<i64: 256, 128>}, {pipeline_mode = #tpu.pipeline_mode<synchronous>, transform_indices = @transform_14, window_bounds = array<i64: 1, 128>}, {transform_indices = @transform_15, window_bounds = array<i64: 4, 16, 128>}]} {
    %c0 = arith.constant 0 : index
    %c0_0 = arith.constant 0 : index
    %c0_1 = arith.constant 0 : index
    %0 = vector.load %arg1[%c0, %c0_0, %c0_1] : memref<4x16x128xf32, #tpu.memory_space<vmem>>, vector<4x16x128xf32>
    %1 = vector.shape_cast %0 : vector<4x16x128xf32> to vector<64x128xf32>
    %c0_2 = arith.constant 0 : index
    %c0_3 = arith.constant 0 : index
    %2 = vector.load %arg6[%c0_2, %c0_3] : memref<1x128xf32, #tpu.memory_space<vmem>>, vector<1x128xf32>
    %c0_4 = arith.constant 0 : index
    %c0_5 = arith.constant 0 : index
    %3 = vector.load %arg7[%c0_4, %c0_5] : memref<1x128xf32, #tpu.memory_space<vmem>>, vector<1x128xf32>
    %cst = arith.constant dense<0.000000e+00> : vector<64xf32>
    %4 = vector.multi_reduction <add>, %1, %cst [1] : vector<64x128xf32> to vector<64xf32>
    %5 = vector.shape_cast %4 : vector<64xf32> to vector<64x1xf32>
    %cst_6 = arith.constant 1.280000e+02 : f32
    %6 = vector.broadcast %cst_6 : f32 to vector<64x1xf32>
    %7 = arith.divf %5, %6 : vector<64x1xf32>
    %8 = vector.broadcast %7 : vector<64x1xf32> to vector<64x128xf32>
    %9 = arith.subf %1, %8 : vector<64x128xf32>
    %10 = arith.mulf %9, %9 : vector<64x128xf32>
    %cst_7 = arith.constant dense<0.000000e+00> : vector<64xf32>
    %11 = vector.multi_reduction <add>, %10, %cst_7 [1] : vector<64x128xf32> to vector<64xf32>
    %12 = vector.shape_cast %11 : vector<64xf32> to vector<64x1xf32>
    %cst_8 = arith.constant 1.280000e+02 : f32
    %13 = vector.broadcast %cst_8 : f32 to vector<64x1xf32>
    %14 = arith.divf %12, %13 : vector<64x1xf32>
    %15 = vector.broadcast %7 : vector<64x1xf32> to vector<64x128xf32>
    %16 = arith.subf %1, %15 : vector<64x128xf32>
    %cst_9 = arith.constant 9.99999974E-5 : f32
    %17 = vector.broadcast %cst_9 : f32 to vector<64x1xf32>
    %18 = arith.addf %14, %17 : vector<64x1xf32>
    %19 = math.rsqrt %18 : vector<64x1xf32>
    %20 = vector.broadcast %19 : vector<64x1xf32> to vector<64x128xf32>
    %21 = arith.mulf %16, %20 : vector<64x128xf32>
    %22 = vector.broadcast %2 : vector<1x128xf32> to vector<64x128xf32>
    %23 = arith.mulf %21, %22 : vector<64x128xf32>
    %24 = vector.broadcast %3 : vector<1x128xf32> to vector<64x128xf32>
    %25 = arith.addf %23, %24 : vector<64x128xf32>
    %c0_10 = arith.constant 0 : index
    %c0_11 = arith.constant 0 : index
    %26 = vector.load %arg10[%c0_10, %c0_11] : memref<128x512xf32, #tpu.memory_space<vmem>>, vector<128x512xf32>
    %cst_12 = arith.constant dense<0.000000e+00> : vector<64x512xf32>
    %27 = tpu.matmul %25, %26, %cst_12 {dimension_numbers = #tpu.dot_dimension_numbers<[1], [0], [0], [1], [0, 0, 1, 1], [], []>} : vector<64x128xf32>, vector<128x512xf32>, vector<64x512xf32> -> vector<64x512xf32>
    %c0_13 = arith.constant 0 : index
    %c0_14 = arith.constant 0 : index
    %28 = vector.load %arg11[%c0_13, %c0_14] : memref<1x512xf32, #tpu.memory_space<vmem>>, vector<1x512xf32>
    %29 = vector.broadcast %28 : vector<1x512xf32> to vector<64x512xf32>
    %30 = arith.addf %27, %29 : vector<64x512xf32>
    %31 = vector.extract_strided_slice %30 {offsets = [0, 0], sizes = [64, 128], strides = [1, 1]} : vector<64x512xf32> to vector<64x128xf32>
    %32 = vector.shape_cast %31 : vector<64x128xf32> to vector<4x16x128xf32>
    %33 = vector.extract_strided_slice %30 {offsets = [0, 128], sizes = [64, 128], strides = [1, 1]} : vector<64x512xf32> to vector<64x128xf32>
    %34 = vector.shape_cast %33 : vector<64x128xf32> to vector<4x16x128xf32>
    %35 = vector.extract_strided_slice %30 {offsets = [0, 256], sizes = [64, 128], strides = [1, 1]} : vector<64x512xf32> to vector<64x128xf32>
    %36 = vector.shape_cast %35 : vector<64x128xf32> to vector<4x16x128xf32>
    %37 = vector.extract_strided_slice %30 {offsets = [0, 384], sizes = [64, 128], strides = [1, 1]} : vector<64x512xf32> to vector<64x128xf32>
    %cst_15 = arith.constant 0.000000e+00 : f32
    %38 = vector.broadcast %cst_15 : f32 to vector<64x128xf32>
    %39 = arith.subf %38, %37 : vector<64x128xf32>
    %40 = math.exp %39 : vector<64x128xf32>
    %cst_16 = arith.constant 1.000000e+00 : f32
    %41 = vector.broadcast %cst_16 : f32 to vector<64x128xf32>
    %42 = arith.addf %41, %40 : vector<64x128xf32>
    %cst_17 = arith.constant 1.000000e+00 : f32
    %43 = vector.broadcast %cst_17 : f32 to vector<64x128xf32>
    %44 = arith.divf %43, %42 : vector<64x128xf32>
    %45 = vector.shape_cast %44 : vector<64x128xf32> to vector<4x16x128xf32>
    %c0_18 = arith.constant 0 : index
    %c0_19 = arith.constant 0 : index
    %c0_20 = arith.constant 0 : index
    %46 = vector.load %arg2[%c0_18, %c0_19, %c0_20] : memref<4x8x128xf32, #tpu.memory_space<vmem>>, vector<4x8x128xf32>
    %cst_21 = arith.constant dense<0.000000e+00> : vector<4x8x16xf32>
    %47 = tpu.matmul %46, %32, %cst_21 {dimension_numbers = #tpu.dot_dimension_numbers<[2], [2], [1], [1], [0, 0, 0, 1, 1, 1], [0], [0]>} : vector<4x8x128xf32>, vector<4x16x128xf32>, vector<4x8x16xf32> -> vector<4x8x16xf32>
    %cst_22 = arith.constant 0.0883883461 : f32
    %48 = vector.broadcast %cst_22 : f32 to vector<4x8x16xf32>
    %49 = arith.mulf %47, %48 : vector<4x8x16xf32>
    %cst_23 = arith.constant dense<0.000000e+00> : vector<4x16x8xf32>
    %50 = tpu.matmul %32, %46, %cst_23 {dimension_numbers = #tpu.dot_dimension_numbers<[2], [2], [1], [1], [0, 0, 0, 1, 1, 1], [0], [0]>} : vector<4x16x128xf32>, vector<4x8x128xf32>, vector<4x16x8xf32> -> vector<4x16x8xf32>
    %cst_24 = arith.constant 0.0883883461 : f32
    %51 = vector.broadcast %cst_24 : f32 to vector<4x16x8xf32>
    %52 = arith.mulf %50, %51 : vector<4x16x8xf32>
    %c0_25 = arith.constant 0 : index
    %c0_26 = arith.constant 0 : index
    %c0_27 = arith.constant 0 : index
    %53 = vector.load %arg4[%c0_25, %c0_26, %c0_27] : memref<4x1x16xf32, #tpu.memory_space<vmem>>, vector<4x1x16xf32>
    %cst_28 = arith.constant 0.000000e+00 : f32
    %54 = vector.broadcast %cst_28 : f32 to vector<4x1x16xf32>
    %55 = arith.cmpf one, %53, %54 : vector<4x1x16xf32>
    %56 = arith.extui %55 : vector<4x1x16xi1> to vector<4x1x16xi32>
    %57 = arith.sitofp %56 : vector<4x1x16xi32> to vector<4x1x16xf32>
    %cst_29 = arith.constant 0.000000e+00 : f32
    %58 = vector.broadcast %cst_29 : f32 to vector<4x8x16xf32>
    %59 = arith.maximumf %49, %58 : vector<4x8x16xf32>
    %60 = vector.broadcast %57 : vector<4x1x16xf32> to vector<4x8x16xf32>
    %61 = arith.mulf %59, %60 : vector<4x8x16xf32>
    %cst_30 = arith.constant 0.000000e+00 : f32
    %62 = vector.broadcast %cst_30 : f32 to vector<4x8x16xf32>
    %63 = arith.subf %62, %49 : vector<4x8x16xf32>
    %cst_31 = arith.constant 0.000000e+00 : f32
    %64 = vector.broadcast %cst_31 : f32 to vector<4x8x16xf32>
    %65 = arith.maximumf %63, %64 : vector<4x8x16xf32>
    %66 = vector.broadcast %57 : vector<4x1x16xf32> to vector<4x8x16xf32>
    %67 = arith.mulf %65, %66 : vector<4x8x16xf32>
    %cst_32 = arith.constant dense<0.000000e+00> : vector<4x8xf32>
    %68 = vector.multi_reduction <add>, %61, %cst_32 [2] : vector<4x8x16xf32> to vector<4x8xf32>
    %69 = vector.shape_cast %68 : vector<4x8xf32> to vector<4x8x1xf32>
    %cst_33 = arith.constant 9.99999974E-5 : f32
    %70 = vector.broadcast %cst_33 : f32 to vector<4x8x1xf32>
    %71 = arith.addf %69, %70 : vector<4x8x1xf32>
    %72 = tpu.reciprocal %71 {approx = true} : vector<4x8x1xf32> -> vector<4x8x1xf32>
    %73 = arith.mulf %71, %72 : vector<4x8x1xf32>
    %cst_34 = arith.constant 2.000000e+00 : f32
    %74 = vector.broadcast %cst_34 : f32 to vector<4x8x1xf32>
    %75 = arith.subf %74, %73 : vector<4x8x1xf32>
    %76 = arith.mulf %72, %75 : vector<4x8x1xf32>
    %77 = vector.broadcast %76 : vector<4x8x1xf32> to vector<4x8x16xf32>
    %78 = arith.mulf %61, %77 : vector<4x8x16xf32>
    %cst_35 = arith.constant dense<0.000000e+00> : vector<4x8xf32>
    %79 = vector.multi_reduction <add>, %67, %cst_35 [2] : vector<4x8x16xf32> to vector<4x8xf32>
    %80 = vector.shape_cast %79 : vector<4x8xf32> to vector<4x8x1xf32>
    %cst_36 = arith.constant 9.99999974E-5 : f32
    %81 = vector.broadcast %cst_36 : f32 to vector<4x8x1xf32>
    %82 = arith.addf %80, %81 : vector<4x8x1xf32>
    %83 = tpu.reciprocal %82 {approx = true} : vector<4x8x1xf32> -> vector<4x8x1xf32>
    %84 = arith.mulf %82, %83 : vector<4x8x1xf32>
    %cst_37 = arith.constant 2.000000e+00 : f32
    %85 = vector.broadcast %cst_37 : f32 to vector<4x8x1xf32>
    %86 = arith.subf %85, %84 : vector<4x8x1xf32>
    %87 = arith.mulf %83, %86 : vector<4x8x1xf32>
    %88 = vector.broadcast %87 : vector<4x8x1xf32> to vector<4x8x16xf32>
    %89 = arith.mulf %67, %88 : vector<4x8x16xf32>
    %c0_38 = arith.constant 0 : index
    %c0_39 = arith.constant 0 : index
    %c0_40 = arith.constant 0 : index
    %90 = vector.load %arg3[%c0_38, %c0_39, %c0_40] : memref<4x8x128xf32, #tpu.memory_space<vmem>>, vector<4x8x128xf32>
    %cst_41 = arith.constant dense<0.000000e+00> : vector<4x8x128xf32>
    %91 = tpu.matmul %78, %34, %cst_41 {dimension_numbers = #tpu.dot_dimension_numbers<[2], [1], [1], [2], [0, 0, 0, 1, 1, 2], [0], [0]>} : vector<4x8x16xf32>, vector<4x16x128xf32>, vector<4x8x128xf32> -> vector<4x8x128xf32>
    %92 = arith.addf %91, %90 : vector<4x8x128xf32>
    %cst_42 = arith.constant dense<0.000000e+00> : vector<4x8x128xf32>
    %93 = tpu.matmul %89, %36, %cst_42 {dimension_numbers = #tpu.dot_dimension_numbers<[2], [1], [1], [2], [0, 0, 0, 1, 1, 2], [0], [0]>} : vector<4x8x16xf32>, vector<4x16x128xf32>, vector<4x8x128xf32> -> vector<4x8x128xf32>
    %94 = arith.addf %93, %90 : vector<4x8x128xf32>
    %cst_43 = arith.constant 0.000000e+00 : f32
    %95 = vector.broadcast %cst_43 : f32 to vector<4x16x8xf32>
    %96 = arith.maximumf %52, %95 : vector<4x16x8xf32>
    %97 = vector.shape_cast %96 : vector<4x16x8xf32> to vector<64x8xf32>
    %cst_44 = arith.constant 0.000000e+00 : f32
    %98 = vector.broadcast %cst_44 : f32 to vector<4x16x8xf32>
    %99 = arith.subf %98, %52 : vector<4x16x8xf32>
    %cst_45 = arith.constant 0.000000e+00 : f32
    %100 = vector.broadcast %cst_45 : f32 to vector<4x16x8xf32>
    %101 = arith.maximumf %99, %100 : vector<4x16x8xf32>
    %102 = vector.shape_cast %101 : vector<4x16x8xf32> to vector<64x8xf32>
    %c0_46 = arith.constant 0 : index
    %c0_47 = arith.constant 0 : index
    %103 = vector.load %arg5[%c0_46, %c0_47] : memref<8x8xf32, #tpu.memory_space<vmem>>, vector<8x8xf32>
    %cst_48 = arith.constant dense<0.000000e+00> : vector<64x8xf32>
    %104 = tpu.matmul %97, %103, %cst_48 {dimension_numbers = #tpu.dot_dimension_numbers<[1], [0], [0], [1], [0, 0, 1, 1], [], []>} : vector<64x8xf32>, vector<8x8xf32>, vector<64x8xf32> -> vector<64x8xf32>
    %c0_49 = arith.constant 0 : index
    %c0_50 = arith.constant 0 : index
    %105 = vector.load %arg5[%c0_49, %c0_50] : memref<8x8xf32, #tpu.memory_space<vmem>>, vector<8x8xf32>
    %cst_51 = arith.constant dense<0.000000e+00> : vector<64x8xf32>
    %106 = tpu.matmul %102, %105, %cst_51 {dimension_numbers = #tpu.dot_dimension_numbers<[1], [0], [0], [1], [0, 0, 1, 1], [], []>} : vector<64x8xf32>, vector<8x8xf32>, vector<64x8xf32> -> vector<64x8xf32>
    %cst_52 = arith.constant 9.99999974E-5 : f32
    %107 = vector.broadcast %cst_52 : f32 to vector<64x8xf32>
    %108 = arith.addf %104, %107 : vector<64x8xf32>
    %109 = tpu.reciprocal %108 {approx = true} : vector<64x8xf32> -> vector<64x8xf32>
    %110 = arith.mulf %108, %109 : vector<64x8xf32>
    %cst_53 = arith.constant 2.000000e+00 : f32
    %111 = vector.broadcast %cst_53 : f32 to vector<64x8xf32>
    %112 = arith.subf %111, %110 : vector<64x8xf32>
    %113 = arith.mulf %109, %112 : vector<64x8xf32>
    %cst_54 = arith.constant 5.000000e-01 : f32
    %114 = vector.broadcast %cst_54 : f32 to vector<64x8xf32>
    %115 = arith.mulf %114, %113 : vector<64x8xf32>
    %116 = arith.mulf %97, %115 : vector<64x8xf32>
    %117 = vector.shape_cast %116 : vector<64x8xf32> to vector<4x16x8xf32>
    %cst_55 = arith.constant 9.99999974E-5 : f32
    %118 = vector.broadcast %cst_55 : f32 to vector<64x8xf32>
    %119 = arith.addf %106, %118 : vector<64x8xf32>
    %120 = tpu.reciprocal %119 {approx = true} : vector<64x8xf32> -> vector<64x8xf32>
    %121 = arith.mulf %119, %120 : vector<64x8xf32>
    %cst_56 = arith.constant 2.000000e+00 : f32
    %122 = vector.broadcast %cst_56 : f32 to vector<64x8xf32>
    %123 = arith.subf %122, %121 : vector<64x8xf32>
    %124 = arith.mulf %120, %123 : vector<64x8xf32>
    %cst_57 = arith.constant 5.000000e-01 : f32
    %125 = vector.broadcast %cst_57 : f32 to vector<64x8xf32>
    %126 = arith.mulf %125, %124 : vector<64x8xf32>
    %127 = arith.mulf %102, %126 : vector<64x8xf32>
    %128 = vector.shape_cast %127 : vector<64x8xf32> to vector<4x16x8xf32>
    %cst_58 = arith.constant dense<0.000000e+00> : vector<4x16x128xf32>
    %129 = tpu.matmul %117, %92, %cst_58 {dimension_numbers = #tpu.dot_dimension_numbers<[2], [1], [1], [2], [0, 0, 0, 1, 1, 2], [0], [0]>} : vector<4x16x8xf32>, vector<4x8x128xf32>, vector<4x16x128xf32> -> vector<4x16x128xf32>
    %cst_59 = arith.constant dense<0.000000e+00> : vector<4x16x128xf32>
    %130 = tpu.matmul %128, %94, %cst_59 {dimension_numbers = #tpu.dot_dimension_numbers<[2], [1], [1], [2], [0, 0, 0, 1, 1, 2], [0], [0]>} : vector<4x16x8xf32>, vector<4x8x128xf32>, vector<4x16x128xf32> -> vector<4x16x128xf32>
    %131 = arith.mulf %45, %129 : vector<4x16x128xf32>
    %132 = arith.addf %0, %131 : vector<4x16x128xf32>
    %cst_60 = arith.constant 1.000000e+00 : f32
    %133 = vector.broadcast %cst_60 : f32 to vector<4x16x128xf32>
    %134 = arith.subf %133, %45 : vector<4x16x128xf32>
    %135 = arith.mulf %134, %130 : vector<4x16x128xf32>
    %136 = arith.addf %132, %135 : vector<4x16x128xf32>
    %137 = vector.shape_cast %136 : vector<4x16x128xf32> to vector<64x128xf32>
    %c0_61 = arith.constant 0 : index
    %c0_62 = arith.constant 0 : index
    %138 = vector.load %arg8[%c0_61, %c0_62] : memref<1x128xf32, #tpu.memory_space<vmem>>, vector<1x128xf32>
    %c0_63 = arith.constant 0 : index
    %c0_64 = arith.constant 0 : index
    %139 = vector.load %arg9[%c0_63, %c0_64] : memref<1x128xf32, #tpu.memory_space<vmem>>, vector<1x128xf32>
    %cst_65 = arith.constant dense<0.000000e+00> : vector<64xf32>
    %140 = vector.multi_reduction <add>, %137, %cst_65 [1] : vector<64x128xf32> to vector<64xf32>
    %141 = vector.shape_cast %140 : vector<64xf32> to vector<64x1xf32>
    %cst_66 = arith.constant 1.280000e+02 : f32
    %142 = vector.broadcast %cst_66 : f32 to vector<64x1xf32>
    %143 = arith.divf %141, %142 : vector<64x1xf32>
    %144 = vector.broadcast %143 : vector<64x1xf32> to vector<64x128xf32>
    %145 = arith.subf %137, %144 : vector<64x128xf32>
    %146 = arith.mulf %145, %145 : vector<64x128xf32>
    %cst_67 = arith.constant dense<0.000000e+00> : vector<64xf32>
    %147 = vector.multi_reduction <add>, %146, %cst_67 [1] : vector<64x128xf32> to vector<64xf32>
    %148 = vector.shape_cast %147 : vector<64xf32> to vector<64x1xf32>
    %cst_68 = arith.constant 1.280000e+02 : f32
    %149 = vector.broadcast %cst_68 : f32 to vector<64x1xf32>
    %150 = arith.divf %148, %149 : vector<64x1xf32>
    %151 = vector.broadcast %143 : vector<64x1xf32> to vector<64x128xf32>
    %152 = arith.subf %137, %151 : vector<64x128xf32>
    %cst_69 = arith.constant 9.99999974E-5 : f32
    %153 = vector.broadcast %cst_69 : f32 to vector<64x1xf32>
    %154 = arith.addf %150, %153 : vector<64x1xf32>
    %155 = math.rsqrt %154 : vector<64x1xf32>
    %156 = vector.broadcast %155 : vector<64x1xf32> to vector<64x128xf32>
    %157 = arith.mulf %152, %156 : vector<64x128xf32>
    %158 = vector.broadcast %138 : vector<1x128xf32> to vector<64x128xf32>
    %159 = arith.mulf %157, %158 : vector<64x128xf32>
    %160 = vector.broadcast %139 : vector<1x128xf32> to vector<64x128xf32>
    %161 = arith.addf %159, %160 : vector<64x128xf32>
    %c0_70 = arith.constant 0 : index
    %c0_71 = arith.constant 0 : index
    %162 = vector.load %arg12[%c0_70, %c0_71] : memref<128x256xf32, #tpu.memory_space<vmem>>, vector<128x256xf32>
    %cst_72 = arith.constant dense<0.000000e+00> : vector<64x256xf32>
    %163 = tpu.matmul %161, %162, %cst_72 {dimension_numbers = #tpu.dot_dimension_numbers<[1], [0], [0], [1], [0, 0, 1, 1], [], []>} : vector<64x128xf32>, vector<128x256xf32>, vector<64x256xf32> -> vector<64x256xf32>
    %c0_73 = arith.constant 0 : index
    %c0_74 = arith.constant 0 : index
    %164 = vector.load %arg13[%c0_73, %c0_74] : memref<1x256xf32, #tpu.memory_space<vmem>>, vector<1x256xf32>
    %165 = vector.broadcast %164 : vector<1x256xf32> to vector<64x256xf32>
    %166 = arith.addf %163, %165 : vector<64x256xf32>
    %cst_75 = arith.constant 0.000000e+00 : f32
    %167 = vector.broadcast %cst_75 : f32 to vector<64x256xf32>
    %168 = arith.maximumf %166, %167 : vector<64x256xf32>
    %c0_76 = arith.constant 0 : index
    %c0_77 = arith.constant 0 : index
    %169 = vector.load %arg14[%c0_76, %c0_77] : memref<256x128xf32, #tpu.memory_space<vmem>>, vector<256x128xf32>
    %cst_78 = arith.constant dense<0.000000e+00> : vector<64x128xf32>
    %170 = tpu.matmul %168, %169, %cst_78 {dimension_numbers = #tpu.dot_dimension_numbers<[1], [0], [0], [1], [0, 0, 1, 1], [], []>} : vector<64x256xf32>, vector<256x128xf32>, vector<64x128xf32> -> vector<64x128xf32>
    %c0_79 = arith.constant 0 : index
    %c0_80 = arith.constant 0 : index
    %171 = vector.load %arg15[%c0_79, %c0_80] : memref<1x128xf32, #tpu.memory_space<vmem>>, vector<1x128xf32>
    %172 = vector.broadcast %171 : vector<1x128xf32> to vector<64x128xf32>
    %173 = arith.addf %170, %172 : vector<64x128xf32>
    %174 = arith.addf %137, %173 : vector<64x128xf32>
    %175 = vector.shape_cast %174 : vector<64x128xf32> to vector<4x16x128xf32>
    %c0_81 = arith.constant 0 : index
    %c0_82 = arith.constant 0 : index
    %c0_83 = arith.constant 0 : index
    %176 = vector.load %arg16[%c0_81, %c0_82, %c0_83] : memref<4x16x128xf32, #tpu.memory_space<vmem>>, vector<4x16x128xf32>
    tpu.vector_store %arg16[%c0_81, %c0_82, %c0_83], %175 {strides = array<i32>} : memref<4x16x128xf32, #tpu.memory_space<vmem>>, vector<4x16x128xf32>,
    return
  }
  func.func @transform_0(%arg0: i32) -> (i32, i32, i32) {
    %c0_i32 = arith.constant 0 : i32
    %c0_i32_0 = arith.constant 0 : i32
    %c0_i32_1 = arith.constant 0 : i32
    return %arg0, %c0_i32, %c0_i32_0 : i32, i32, i32
  }
  func.func @transform_1(%arg0: i32) -> (i32, i32, i32) {
    %c0_i32 = arith.constant 0 : i32
    %c0_i32_0 = arith.constant 0 : i32
    %c0_i32_1 = arith.constant 0 : i32
    return %arg0, %c0_i32, %c0_i32_0 : i32, i32, i32
  }
  func.func @transform_2(%arg0: i32) -> (i32, i32, i32) {
    %c0_i32 = arith.constant 0 : i32
    %c0_i32_0 = arith.constant 0 : i32
    %c0_i32_1 = arith.constant 0 : i32
    return %arg0, %c0_i32, %c0_i32_0 : i32, i32, i32
  }
  func.func @transform_3(%arg0: i32) -> (i32, i32, i32) {
    %c0_i32 = arith.constant 0 : i32
    %c0_i32_0 = arith.constant 0 : i32
    %c0_i32_1 = arith.constant 0 : i32
    return %arg0, %c0_i32, %c0_i32_0 : i32, i32, i32
  }
  func.func @transform_4(%arg0: i32) -> (i32, i32) {
    %c0_i32 = arith.constant 0 : i32
    %c0_i32_0 = arith.constant 0 : i32
    %c0_i32_1 = arith.constant 0 : i32
    return %c0_i32, %c0_i32_0 : i32, i32
  }
  func.func @transform_5(%arg0: i32) -> (i32, i32) {
    %c0_i32 = arith.constant 0 : i32
    %c0_i32_0 = arith.constant 0 : i32
    %c0_i32_1 = arith.constant 0 : i32
    return %c0_i32, %c0_i32_0 : i32, i32
  }
  func.func @transform_6(%arg0: i32) -> (i32, i32) {
    %c0_i32 = arith.constant 0 : i32
    %c0_i32_0 = arith.constant 0 : i32
    %c0_i32_1 = arith.constant 0 : i32
    return %c0_i32, %c0_i32_0 : i32, i32
  }
  func.func @transform_7(%arg0: i32) -> (i32, i32) {
    %c0_i32 = arith.constant 0 : i32
    %c0_i32_0 = arith.constant 0 : i32
    %c0_i32_1 = arith.constant 0 : i32
    return %c0_i32, %c0_i32_0 : i32, i32
  }
  func.func @transform_8(%arg0: i32) -> (i32, i32) {
    %c0_i32 = arith.constant 0 : i32
    %c0_i32_0 = arith.constant 0 : i32
    %c0_i32_1 = arith.constant 0 : i32
    return %c0_i32, %c0_i32_0 : i32, i32
  }
  func.func @transform_9(%arg0: i32) -> (i32, i32) {
    %c0_i32 = arith.constant 0 : i32
    %c0_i32_0 = arith.constant 0 : i32
    %c0_i32_1 = arith.constant 0 : i32
    return %c0_i32, %c0_i32_0 : i32, i32
  }
  func.func @transform_10(%arg0: i32) -> (i32, i32) {
    %c0_i32 = arith.constant 0 : i32
    %c0_i32_0 = arith.constant 0 : i32
    %c0_i32_1 = arith.constant 0 : i32
    return %c0_i32, %c0_i32_0 : i32, i32
  }
  func.func @transform_11(%arg0: i32) -> (i32, i32) {
    %c0_i32 = arith.constant 0 : i32
    %c0_i32_0 = arith.constant 0 : i32
    %c0_i32_1 = arith.constant 0 : i32
    return %c0_i32, %c0_i32_0 : i32, i32
  }
  func.func @transform_12(%arg0: i32) -> (i32, i32) {
    %c0_i32 = arith.constant 0 : i32
    %c0_i32_0 = arith.constant 0 : i32
    %c0_i32_1 = arith.constant 0 : i32
    return %c0_i32, %c0_i32_0 : i32, i32
  }
  func.func @transform_13(%arg0: i32) -> (i32, i32) {
    %c0_i32 = arith.constant 0 : i32
    %c0_i32_0 = arith.constant 0 : i32
    %c0_i32_1 = arith.constant 0 : i32
    return %c0_i32, %c0_i32_0 : i32, i32
  }
  func.func @transform_14(%arg0: i32) -> (i32, i32) {
    %c0_i32 = arith.constant 0 : i32
    %c0_i32_0 = arith.constant 0 : i32
    %c0_i32_1 = arith.constant 0 : i32
    return %c0_i32, %c0_i32_0 : i32, i32
  }
  func.func @transform_15(%arg0: i32) -> (i32, i32, i32) {
    %c0_i32 = arith.constant 0 : i32
    %c0_i32_0 = arith.constant 0 : i32
    %c0_i32_1 = arith.constant 0 : i32
    return %arg0, %c0_i32, %c0_i32_0 : i32, i32, i32
  }
}

module attributes {stable_mosaic.version = 11 : i64} {
  func.func @_encoder_layer_kernel(%arg0: i32, %arg1: memref<4x16x128xf32, #tpu.memory_space<vmem>>, %arg2: memref<4x8x128xf32, #tpu.memory_space<vmem>>, %arg3: memref<4x8x128xf32, #tpu.memory_space<vmem>>, %arg4: memref<4x1x16xf32, #tpu.memory_space<vmem>>, %arg5: memref<8x8xf32, #tpu.memory_space<vmem>>, %arg6: memref<1x128xf32, #tpu.memory_space<vmem>>, %arg7: memref<1x128xf32, #tpu.memory_space<vmem>>, %arg8: memref<1x128xf32, #tpu.memory_space<vmem>>, %arg9: memref<1x128xf32, #tpu.memory_space<vmem>>, %arg10: memref<128x512xf32, #tpu.memory_space<vmem>>, %arg11: memref<1x512xf32, #tpu.memory_space<vmem>>, %arg12: memref<128x256xf32, #tpu.memory_space<vmem>>, %arg13: memref<1x256xf32, #tpu.memory_space<vmem>>, %arg14: memref<256x128xf32, #tpu.memory_space<vmem>>, %arg15: memref<1x128xf32, #tpu.memory_space<vmem>>, %arg16: memref<4x16x128xf32, #tpu.memory_space<vmem>>) attributes {dimension_semantics = [#tpu.dimension_semantics<parallel>], iteration_bounds = array<i64: 1>, scalar_prefetch = 0 : i64, scratch_operands = 0 : i64, tpu.core_type = #tpu.core_type<tc>, window_params = [{transform_indices = @transform_0, window_bounds = array<i64: 4, 16, 128>}, {transform_indices = @transform_1, window_bounds = array<i64: 4, 8, 128>}, {transform_indices = @transform_2, window_bounds = array<i64: 4, 8, 128>}, {transform_indices = @transform_3, window_bounds = array<i64: 4, 1, 16>}, {pipeline_mode = #tpu.pipeline_mode<synchronous>, transform_indices = @transform_4, window_bounds = array<i64: 8, 8>}, {pipeline_mode = #tpu.pipeline_mode<synchronous>, transform_indices = @transform_5, window_bounds = array<i64: 1, 128>}, {pipeline_mode = #tpu.pipeline_mode<synchronous>, transform_indices = @transform_6, window_bounds = array<i64: 1, 128>}, {pipeline_mode = #tpu.pipeline_mode<synchronous>, transform_indices = @transform_7, window_bounds = array<i64: 1, 128>}, {pipeline_mode = #tpu.pipeline_mode<synchronous>, transform_indices = @transform_8, window_bounds = array<i64: 1, 128>}, {pipeline_mode = #tpu.pipeline_mode<synchronous>, transform_indices = @transform_9, window_bounds = array<i64: 128, 512>}, {pipeline_mode = #tpu.pipeline_mode<synchronous>, transform_indices = @transform_10, window_bounds = array<i64: 1, 512>}, {pipeline_mode = #tpu.pipeline_mode<synchronous>, transform_indices = @transform_11, window_bounds = array<i64: 128, 256>}, {pipeline_mode = #tpu.pipeline_mode<synchronous>, transform_indices = @transform_12, window_bounds = array<i64: 1, 256>}, {pipeline_mode = #tpu.pipeline_mode<synchronous>, transform_indices = @transform_13, window_bounds = array<i64: 256, 128>}, {pipeline_mode = #tpu.pipeline_mode<synchronous>, transform_indices = @transform_14, window_bounds = array<i64: 1, 128>}, {transform_indices = @transform_15, window_bounds = array<i64: 4, 16, 128>}]} {
    %c0 = arith.constant 0 : index
    %c0_0 = arith.constant 0 : index
    %c0_1 = arith.constant 0 : index
    %0 = vector.load %arg1[%c0, %c0_0, %c0_1] : memref<4x16x128xf32, #tpu.memory_space<vmem>>, vector<4x16x128xf32>
    %1 = vector.shape_cast %0 : vector<4x16x128xf32> to vector<64x128xf32>
    %c0_2 = arith.constant 0 : index
    %c0_3 = arith.constant 0 : index
    %2 = vector.load %arg6[%c0_2, %c0_3] : memref<1x128xf32, #tpu.memory_space<vmem>>, vector<1x128xf32>
    %c0_4 = arith.constant 0 : index
    %c0_5 = arith.constant 0 : index
    %3 = vector.load %arg7[%c0_4, %c0_5] : memref<1x128xf32, #tpu.memory_space<vmem>>, vector<1x128xf32>
    %cst = arith.constant dense<0.000000e+00> : vector<64xf32>
    %4 = vector.multi_reduction <add>, %1, %cst [1] : vector<64x128xf32> to vector<64xf32>
    %5 = vector.shape_cast %4 : vector<64xf32> to vector<64x1xf32>
    %cst_6 = arith.constant 1.280000e+02 : f32
    %6 = vector.broadcast %cst_6 : f32 to vector<64x1xf32>
    %7 = arith.divf %5, %6 : vector<64x1xf32>
    %8 = vector.broadcast %7 : vector<64x1xf32> to vector<64x128xf32>
    %9 = arith.subf %1, %8 : vector<64x128xf32>
    %10 = arith.mulf %9, %9 : vector<64x128xf32>
    %cst_7 = arith.constant dense<0.000000e+00> : vector<64xf32>
    %11 = vector.multi_reduction <add>, %10, %cst_7 [1] : vector<64x128xf32> to vector<64xf32>
    %12 = vector.shape_cast %11 : vector<64xf32> to vector<64x1xf32>
    %cst_8 = arith.constant 1.280000e+02 : f32
    %13 = vector.broadcast %cst_8 : f32 to vector<64x1xf32>
    %14 = arith.divf %12, %13 : vector<64x1xf32>
    %15 = vector.broadcast %7 : vector<64x1xf32> to vector<64x128xf32>
    %16 = arith.subf %1, %15 : vector<64x128xf32>
    %cst_9 = arith.constant 9.99999974E-5 : f32
    %17 = vector.broadcast %cst_9 : f32 to vector<64x1xf32>
    %18 = arith.addf %14, %17 : vector<64x1xf32>
    %19 = math.rsqrt %18 : vector<64x1xf32>
    %20 = vector.broadcast %19 : vector<64x1xf32> to vector<64x128xf32>
    %21 = arith.mulf %16, %20 : vector<64x128xf32>
    %22 = vector.broadcast %2 : vector<1x128xf32> to vector<64x128xf32>
    %23 = arith.mulf %21, %22 : vector<64x128xf32>
    %24 = vector.broadcast %3 : vector<1x128xf32> to vector<64x128xf32>
    %25 = arith.addf %23, %24 : vector<64x128xf32>
    %c0_10 = arith.constant 0 : index
    %c0_11 = arith.constant 0 : index
    %26 = vector.load %arg10[%c0_10, %c0_11] : memref<128x512xf32, #tpu.memory_space<vmem>>, vector<128x512xf32>
    %cst_12 = arith.constant dense<0.000000e+00> : vector<64x512xf32>
    %27 = tpu.matmul %25, %26, %cst_12 {dimension_numbers = #tpu.dot_dimension_numbers<[1], [0], [0], [1], [0, 0, 1, 1], [], []>} : vector<64x128xf32>, vector<128x512xf32>, vector<64x512xf32> -> vector<64x512xf32>
    %c0_13 = arith.constant 0 : index
    %c0_14 = arith.constant 0 : index
    %28 = vector.load %arg11[%c0_13, %c0_14] : memref<1x512xf32, #tpu.memory_space<vmem>>, vector<1x512xf32>
    %29 = vector.broadcast %28 : vector<1x512xf32> to vector<64x512xf32>
    %30 = arith.addf %27, %29 : vector<64x512xf32>
    %31 = vector.extract_strided_slice %30 {offsets = [0, 0], sizes = [64, 128], strides = [1, 1]} : vector<64x512xf32> to vector<64x128xf32>
    %32 = vector.shape_cast %31 : vector<64x128xf32> to vector<4x16x128xf32>
    %33 = vector.extract_strided_slice %30 {offsets = [0, 128], sizes = [64, 128], strides = [1, 1]} : vector<64x512xf32> to vector<64x128xf32>
    %34 = vector.shape_cast %33 : vector<64x128xf32> to vector<4x16x128xf32>
    %35 = vector.extract_strided_slice %30 {offsets = [0, 256], sizes = [64, 128], strides = [1, 1]} : vector<64x512xf32> to vector<64x128xf32>
    %36 = vector.shape_cast %35 : vector<64x128xf32> to vector<4x16x128xf32>
    %37 = vector.extract_strided_slice %30 {offsets = [0, 384], sizes = [64, 128], strides = [1, 1]} : vector<64x512xf32> to vector<64x128xf32>
    %cst_15 = arith.constant 0.000000e+00 : f32
    %38 = vector.broadcast %cst_15 : f32 to vector<64x128xf32>
    %39 = arith.subf %38, %37 : vector<64x128xf32>
    %40 = math.exp %39 : vector<64x128xf32>
    %cst_16 = arith.constant 1.000000e+00 : f32
    %41 = vector.broadcast %cst_16 : f32 to vector<64x128xf32>
    %42 = arith.addf %41, %40 : vector<64x128xf32>
    %cst_17 = arith.constant 1.000000e+00 : f32
    %43 = vector.broadcast %cst_17 : f32 to vector<64x128xf32>
    %44 = arith.divf %43, %42 : vector<64x128xf32>
    %45 = vector.shape_cast %44 : vector<64x128xf32> to vector<4x16x128xf32>
    %c0_18 = arith.constant 0 : index
    %c0_19 = arith.constant 0 : index
    %c0_20 = arith.constant 0 : index
    %46 = vector.load %arg2[%c0_18, %c0_19, %c0_20] : memref<4x8x128xf32, #tpu.memory_space<vmem>>, vector<4x8x128xf32>
    %cst_21 = arith.constant dense<0.000000e+00> : vector<4x8x16xf32>
    %47 = tpu.matmul %46, %32, %cst_21 {dimension_numbers = #tpu.dot_dimension_numbers<[2], [2], [1], [1], [0, 0, 0, 1, 1, 1], [0], [0]>} : vector<4x8x128xf32>, vector<4x16x128xf32>, vector<4x8x16xf32> -> vector<4x8x16xf32>
    %cst_22 = arith.constant 0.0883883461 : f32
    %48 = vector.broadcast %cst_22 : f32 to vector<4x8x16xf32>
    %49 = arith.mulf %47, %48 : vector<4x8x16xf32>
    %cst_23 = arith.constant dense<0.000000e+00> : vector<4x16x8xf32>
    %50 = tpu.matmul %32, %46, %cst_23 {dimension_numbers = #tpu.dot_dimension_numbers<[2], [2], [1], [1], [0, 0, 0, 1, 1, 1], [0], [0]>} : vector<4x16x128xf32>, vector<4x8x128xf32>, vector<4x16x8xf32> -> vector<4x16x8xf32>
    %cst_24 = arith.constant 0.0883883461 : f32
    %51 = vector.broadcast %cst_24 : f32 to vector<4x16x8xf32>
    %52 = arith.mulf %50, %51 : vector<4x16x8xf32>
    %c0_25 = arith.constant 0 : index
    %c0_26 = arith.constant 0 : index
    %c0_27 = arith.constant 0 : index
    %53 = vector.load %arg4[%c0_25, %c0_26, %c0_27] : memref<4x1x16xf32, #tpu.memory_space<vmem>>, vector<4x1x16xf32>
    %cst_28 = arith.constant 0.000000e+00 : f32
    %54 = vector.broadcast %cst_28 : f32 to vector<4x1x16xf32>
    %55 = arith.cmpf one, %53, %54 : vector<4x1x16xf32>
    %56 = arith.extui %55 : vector<4x1x16xi1> to vector<4x1x16xi32>
    %57 = arith.sitofp %56 : vector<4x1x16xi32> to vector<4x1x16xf32>
    %cst_29 = arith.constant 0.000000e+00 : f32
    %58 = vector.broadcast %cst_29 : f32 to vector<4x8x16xf32>
    %59 = arith.maximumf %49, %58 : vector<4x8x16xf32>
    %60 = vector.broadcast %57 : vector<4x1x16xf32> to vector<4x8x16xf32>
    %61 = arith.mulf %59, %60 : vector<4x8x16xf32>
    %cst_30 = arith.constant 0.000000e+00 : f32
    %62 = vector.broadcast %cst_30 : f32 to vector<4x8x16xf32>
    %63 = arith.subf %62, %49 : vector<4x8x16xf32>
    %cst_31 = arith.constant 0.000000e+00 : f32
    %64 = vector.broadcast %cst_31 : f32 to vector<4x8x16xf32>
    %65 = arith.maximumf %63, %64 : vector<4x8x16xf32>
    %66 = vector.broadcast %57 : vector<4x1x16xf32> to vector<4x8x16xf32>
    %67 = arith.mulf %65, %66 : vector<4x8x16xf32>
    %cst_32 = arith.constant dense<0.000000e+00> : vector<4x8xf32>
    %68 = vector.multi_reduction <add>, %61, %cst_32 [2] : vector<4x8x16xf32> to vector<4x8xf32>
    %69 = vector.shape_cast %68 : vector<4x8xf32> to vector<4x8x1xf32>
    %cst_33 = arith.constant 9.99999974E-5 : f32
    %70 = vector.broadcast %cst_33 : f32 to vector<4x8x1xf32>
    %71 = arith.addf %69, %70 : vector<4x8x1xf32>
    %72 = tpu.reciprocal %71 {approx = true} : vector<4x8x1xf32> -> vector<4x8x1xf32>
    %73 = arith.mulf %71, %72 : vector<4x8x1xf32>
    %cst_34 = arith.constant 2.000000e+00 : f32
    %74 = vector.broadcast %cst_34 : f32 to vector<4x8x1xf32>
    %75 = arith.subf %74, %73 : vector<4x8x1xf32>
    %76 = arith.mulf %72, %75 : vector<4x8x1xf32>
    %77 = vector.broadcast %76 : vector<4x8x1xf32> to vector<4x8x16xf32>
    %78 = arith.mulf %61, %77 : vector<4x8x16xf32>
    %cst_35 = arith.constant dense<0.000000e+00> : vector<4x8xf32>
    %79 = vector.multi_reduction <add>, %67, %cst_35 [2] : vector<4x8x16xf32> to vector<4x8xf32>
    %80 = vector.shape_cast %79 : vector<4x8xf32> to vector<4x8x1xf32>
    %cst_36 = arith.constant 9.99999974E-5 : f32
    %81 = vector.broadcast %cst_36 : f32 to vector<4x8x1xf32>
    %82 = arith.addf %80, %81 : vector<4x8x1xf32>
    %83 = tpu.reciprocal %82 {approx = true} : vector<4x8x1xf32> -> vector<4x8x1xf32>
    %84 = arith.mulf %82, %83 : vector<4x8x1xf32>
    %cst_37 = arith.constant 2.000000e+00 : f32
    %85 = vector.broadcast %cst_37 : f32 to vector<4x8x1xf32>
    %86 = arith.subf %85, %84 : vector<4x8x1xf32>
    %87 = arith.mulf %83, %86 : vector<4x8x1xf32>
    %88 = vector.broadcast %87 : vector<4x8x1xf32> to vector<4x8x16xf32>
    %89 = arith.mulf %67, %88 : vector<4x8x16xf32>
    %c0_38 = arith.constant 0 : index
    %c0_39 = arith.constant 0 : index
    %c0_40 = arith.constant 0 : index
    %90 = vector.load %arg3[%c0_38, %c0_39, %c0_40] : memref<4x8x128xf32, #tpu.memory_space<vmem>>, vector<4x8x128xf32>
    %cst_41 = arith.constant dense<0.000000e+00> : vector<4x8x128xf32>
    %91 = tpu.matmul %78, %34, %cst_41 {dimension_numbers = #tpu.dot_dimension_numbers<[2], [1], [1], [2], [0, 0, 0, 1, 1, 2], [0], [0]>} : vector<4x8x16xf32>, vector<4x16x128xf32>, vector<4x8x128xf32> -> vector<4x8x128xf32>
    %92 = arith.addf %91, %90 : vector<4x8x128xf32>
    %cst_42 = arith.constant dense<0.000000e+00> : vector<4x8x128xf32>
    %93 = tpu.matmul %89, %36, %cst_42 {dimension_numbers = #tpu.dot_dimension_numbers<[2], [1], [1], [2], [0, 0, 0, 1, 1, 2], [0], [0]>} : vector<4x8x16xf32>, vector<4x16x128xf32>, vector<4x8x128xf32> -> vector<4x8x128xf32>
    %94 = arith.addf %93, %90 : vector<4x8x128xf32>
    %cst_43 = arith.constant 0.000000e+00 : f32
    %95 = vector.broadcast %cst_43 : f32 to vector<4x16x8xf32>
    %96 = arith.maximumf %52, %95 : vector<4x16x8xf32>
    %97 = vector.shape_cast %96 : vector<4x16x8xf32> to vector<64x8xf32>
    %cst_44 = arith.constant 0.000000e+00 : f32
    %98 = vector.broadcast %cst_44 : f32 to vector<4x16x8xf32>
    %99 = arith.subf %98, %52 : vector<4x16x8xf32>
    %cst_45 = arith.constant 0.000000e+00 : f32
    %100 = vector.broadcast %cst_45 : f32 to vector<4x16x8xf32>
    %101 = arith.maximumf %99, %100 : vector<4x16x8xf32>
    %102 = vector.shape_cast %101 : vector<4x16x8xf32> to vector<64x8xf32>
    %c0_46 = arith.constant 0 : index
    %c0_47 = arith.constant 0 : index
    %103 = vector.load %arg5[%c0_46, %c0_47] : memref<8x8xf32, #tpu.memory_space<vmem>>, vector<8x8xf32>
    %cst_48 = arith.constant dense<0.000000e+00> : vector<64x8xf32>
    %104 = tpu.matmul %97, %103, %cst_48 {dimension_numbers = #tpu.dot_dimension_numbers<[1], [0], [0], [1], [0, 0, 1, 1], [], []>} : vector<64x8xf32>, vector<8x8xf32>, vector<64x8xf32> -> vector<64x8xf32>
    %c0_49 = arith.constant 0 : index
    %c0_50 = arith.constant 0 : index
    %105 = vector.load %arg5[%c0_49, %c0_50] : memref<8x8xf32, #tpu.memory_space<vmem>>, vector<8x8xf32>
    %cst_51 = arith.constant dense<0.000000e+00> : vector<64x8xf32>
    %106 = tpu.matmul %102, %105, %cst_51 {dimension_numbers = #tpu.dot_dimension_numbers<[1], [0], [0], [1], [0, 0, 1, 1], [], []>} : vector<64x8xf32>, vector<8x8xf32>, vector<64x8xf32> -> vector<64x8xf32>
    %cst_52 = arith.constant 9.99999974E-5 : f32
    %107 = vector.broadcast %cst_52 : f32 to vector<64x8xf32>
    %108 = arith.addf %104, %107 : vector<64x8xf32>
    %109 = tpu.reciprocal %108 {approx = true} : vector<64x8xf32> -> vector<64x8xf32>
    %110 = arith.mulf %108, %109 : vector<64x8xf32>
    %cst_53 = arith.constant 2.000000e+00 : f32
    %111 = vector.broadcast %cst_53 : f32 to vector<64x8xf32>
    %112 = arith.subf %111, %110 : vector<64x8xf32>
    %113 = arith.mulf %109, %112 : vector<64x8xf32>
    %cst_54 = arith.constant 5.000000e-01 : f32
    %114 = vector.broadcast %cst_54 : f32 to vector<64x8xf32>
    %115 = arith.mulf %114, %113 : vector<64x8xf32>
    %116 = arith.mulf %97, %115 : vector<64x8xf32>
    %117 = vector.shape_cast %116 : vector<64x8xf32> to vector<4x16x8xf32>
    %cst_55 = arith.constant 9.99999974E-5 : f32
    %118 = vector.broadcast %cst_55 : f32 to vector<64x8xf32>
    %119 = arith.addf %106, %118 : vector<64x8xf32>
    %120 = tpu.reciprocal %119 {approx = true} : vector<64x8xf32> -> vector<64x8xf32>
    %121 = arith.mulf %119, %120 : vector<64x8xf32>
    %cst_56 = arith.constant 2.000000e+00 : f32
    %122 = vector.broadcast %cst_56 : f32 to vector<64x8xf32>
    %123 = arith.subf %122, %121 : vector<64x8xf32>
    %124 = arith.mulf %120, %123 : vector<64x8xf32>
    %cst_57 = arith.constant 5.000000e-01 : f32
    %125 = vector.broadcast %cst_57 : f32 to vector<64x8xf32>
    %126 = arith.mulf %125, %124 : vector<64x8xf32>
    %127 = arith.mulf %102, %126 : vector<64x8xf32>
    %128 = vector.shape_cast %127 : vector<64x8xf32> to vector<4x16x8xf32>
    %cst_58 = arith.constant dense<0.000000e+00> : vector<4x16x128xf32>
    %129 = tpu.matmul %117, %92, %cst_58 {dimension_numbers = #tpu.dot_dimension_numbers<[2], [1], [1], [2], [0, 0, 0, 1, 1, 2], [0], [0]>} : vector<4x16x8xf32>, vector<4x8x128xf32>, vector<4x16x128xf32> -> vector<4x16x128xf32>
    %cst_59 = arith.constant dense<0.000000e+00> : vector<4x16x128xf32>
    %130 = tpu.matmul %128, %94, %cst_59 {dimension_numbers = #tpu.dot_dimension_numbers<[2], [1], [1], [2], [0, 0, 0, 1, 1, 2], [0], [0]>} : vector<4x16x8xf32>, vector<4x8x128xf32>, vector<4x16x128xf32> -> vector<4x16x128xf32>
    %131 = arith.mulf %45, %129 : vector<4x16x128xf32>
    %132 = arith.addf %0, %131 : vector<4x16x128xf32>
    %cst_60 = arith.constant 1.000000e+00 : f32
    %133 = vector.broadcast %cst_60 : f32 to vector<4x16x128xf32>
    %134 = arith.subf %133, %45 : vector<4x16x128xf32>
    %135 = arith.mulf %134, %130 : vector<4x16x128xf32>
    %136 = arith.addf %132, %135 : vector<4x16x128xf32>
    %137 = vector.shape_cast %136 : vector<4x16x128xf32> to vector<64x128xf32>
    %c0_61 = arith.constant 0 : index
    %c0_62 = arith.constant 0 : index
    %138 = vector.load %arg8[%c0_61, %c0_62] : memref<1x128xf32, #tpu.memory_space<vmem>>, vector<1x128xf32>
    %c0_63 = arith.constant 0 : index
    %c0_64 = arith.constant 0 : index
    %139 = vector.load %arg9[%c0_63, %c0_64] : memref<1x128xf32, #tpu.memory_space<vmem>>, vector<1x128xf32>
    %cst_65 = arith.constant dense<0.000000e+00> : vector<64xf32>
    %140 = vector.multi_reduction <add>, %137, %cst_65 [1] : vector<64x128xf32> to vector<64xf32>
    %141 = vector.shape_cast %140 : vector<64xf32> to vector<64x1xf32>
    %cst_66 = arith.constant 1.280000e+02 : f32
    %142 = vector.broadcast %cst_66 : f32 to vector<64x1xf32>
    %143 = arith.divf %141, %142 : vector<64x1xf32>
    %144 = vector.broadcast %143 : vector<64x1xf32> to vector<64x128xf32>
    %145 = arith.subf %137, %144 : vector<64x128xf32>
    %146 = arith.mulf %145, %145 : vector<64x128xf32>
    %cst_67 = arith.constant dense<0.000000e+00> : vector<64xf32>
    %147 = vector.multi_reduction <add>, %146, %cst_67 [1] : vector<64x128xf32> to vector<64xf32>
    %148 = vector.shape_cast %147 : vector<64xf32> to vector<64x1xf32>
    %cst_68 = arith.constant 1.280000e+02 : f32
    %149 = vector.broadcast %cst_68 : f32 to vector<64x1xf32>
    %150 = arith.divf %148, %149 : vector<64x1xf32>
    %151 = vector.broadcast %143 : vector<64x1xf32> to vector<64x128xf32>
    %152 = arith.subf %137, %151 : vector<64x128xf32>
    %cst_69 = arith.constant 9.99999974E-5 : f32
    %153 = vector.broadcast %cst_69 : f32 to vector<64x1xf32>
    %154 = arith.addf %150, %153 : vector<64x1xf32>
    %155 = math.rsqrt %154 : vector<64x1xf32>
    %156 = vector.broadcast %155 : vector<64x1xf32> to vector<64x128xf32>
    %157 = arith.mulf %152, %156 : vector<64x128xf32>
    %158 = vector.broadcast %138 : vector<1x128xf32> to vector<64x128xf32>
    %159 = arith.mulf %157, %158 : vector<64x128xf32>
    %160 = vector.broadcast %139 : vector<1x128xf32> to vector<64x128xf32>
    %161 = arith.addf %159, %160 : vector<64x128xf32>
    %c0_70 = arith.constant 0 : index
    %c0_71 = arith.constant 0 : index
    %162 = vector.load %arg12[%c0_70, %c0_71] : memref<128x256xf32, #tpu.memory_space<vmem>>, vector<128x256xf32>
    %cst_72 = arith.constant dense<0.000000e+00> : vector<64x256xf32>
    %163 = tpu.matmul %161, %162, %cst_72 {dimension_numbers = #tpu.dot_dimension_numbers<[1], [0], [0], [1], [0, 0, 1, 1], [], []>} : vector<64x128xf32>, vector<128x256xf32>, vector<64x256xf32> -> vector<64x256xf32>
    %c0_73 = arith.constant 0 : index
    %c0_74 = arith.constant 0 : index
    %164 = vector.load %arg13[%c0_73, %c0_74] : memref<1x256xf32, #tpu.memory_space<vmem>>, vector<1x256xf32>
    %165 = vector.broadcast %164 : vector<1x256xf32> to vector<64x256xf32>
    %166 = arith.addf %163, %165 : vector<64x256xf32>
    %cst_75 = arith.constant 0.000000e+00 : f32
    %167 = vector.broadcast %cst_75 : f32 to vector<64x256xf32>
    %168 = arith.maximumf %166, %167 : vector<64x256xf32>
    %c0_76 = arith.constant 0 : index
    %c0_77 = arith.constant 0 : index
    %169 = vector.load %arg14[%c0_76, %c0_77] : memref<256x128xf32, #tpu.memory_space<vmem>>, vector<256x128xf32>
    %cst_78 = arith.constant dense<0.000000e+00> : vector<64x128xf32>
    %170 = tpu.matmul %168, %169, %cst_78 {dimension_numbers = #tpu.dot_dimension_numbers<[1], [0], [0], [1], [0, 0, 1, 1], [], []>} : vector<64x256xf32>, vector<256x128xf32>, vector<64x128xf32> -> vector<64x128xf32>
    %c0_79 = arith.constant 0 : index
    %c0_80 = arith.constant 0 : index
    %171 = vector.load %arg15[%c0_79, %c0_80] : memref<1x128xf32, #tpu.memory_space<vmem>>, vector<1x128xf32>
    %172 = vector.broadcast %171 : vector<1x128xf32> to vector<64x128xf32>
    %173 = arith.addf %170, %172 : vector<64x128xf32>
    %174 = arith.addf %137, %173 : vector<64x128xf32>
    %175 = vector.shape_cast %174 : vector<64x128xf32> to vector<4x16x128xf32>
    %c0_81 = arith.constant 0 : index
    %c0_82 = arith.constant 0 : index
    %c0_83 = arith.constant 0 : index
    %176 = vector.load %arg16[%c0_81, %c0_82, %c0_83] : memref<4x16x128xf32, #tpu.memory_space<vmem>>, vector<4x16x128xf32>
    tpu.vector_store %arg16[%c0_81, %c0_82, %c0_83], %175 {strides = array<i32>} : memref<4x16x128xf32, #tpu.memory_space<vmem>>, vector<4x16x128xf32>,
    return
  }
  func.func @transform_0(%arg0: i32) -> (i32, i32, i32) {
    %c0_i32 = arith.constant 0 : i32
    %c0_i32_0 = arith.constant 0 : i32
    %c0_i32_1 = arith.constant 0 : i32
    return %arg0, %c0_i32, %c0_i32_0 : i32, i32, i32
  }
  func.func @transform_1(%arg0: i32) -> (i32, i32, i32) {
    %c0_i32 = arith.constant 0 : i32
    %c0_i32_0 = arith.constant 0 : i32
    %c0_i32_1 = arith.constant 0 : i32
    return %arg0, %c0_i32, %c0_i32_0 : i32, i32, i32
  }
  func.func @transform_2(%arg0: i32) -> (i32, i32, i32) {
    %c0_i32 = arith.constant 0 : i32
    %c0_i32_0 = arith.constant 0 : i32
    %c0_i32_1 = arith.constant 0 : i32
    return %arg0, %c0_i32, %c0_i32_0 : i32, i32, i32
  }
  func.func @transform_3(%arg0: i32) -> (i32, i32, i32) {
    %c0_i32 = arith.constant 0 : i32
    %c0_i32_0 = arith.constant 0 : i32
    %c0_i32_1 = arith.constant 0 : i32
    return %arg0, %c0_i32, %c0_i32_0 : i32, i32, i32
  }
  func.func @transform_4(%arg0: i32) -> (i32, i32) {
    %c0_i32 = arith.constant 0 : i32
    %c0_i32_0 = arith.constant 0 : i32
    %c0_i32_1 = arith.constant 0 : i32
    return %c0_i32, %c0_i32_0 : i32, i32
  }
  func.func @transform_5(%arg0: i32) -> (i32, i32) {
    %c0_i32 = arith.constant 0 : i32
    %c0_i32_0 = arith.constant 0 : i32
    %c0_i32_1 = arith.constant 0 : i32
    return %c0_i32, %c0_i32_0 : i32, i32
  }
  func.func @transform_6(%arg0: i32) -> (i32, i32) {
    %c0_i32 = arith.constant 0 : i32
    %c0_i32_0 = arith.constant 0 : i32
    %c0_i32_1 = arith.constant 0 : i32
    return %c0_i32, %c0_i32_0 : i32, i32
  }
  func.func @transform_7(%arg0: i32) -> (i32, i32) {
    %c0_i32 = arith.constant 0 : i32
    %c0_i32_0 = arith.constant 0 : i32
    %c0_i32_1 = arith.constant 0 : i32
    return %c0_i32, %c0_i32_0 : i32, i32
  }
  func.func @transform_8(%arg0: i32) -> (i32, i32) {
    %c0_i32 = arith.constant 0 : i32
    %c0_i32_0 = arith.constant 0 : i32
    %c0_i32_1 = arith.constant 0 : i32
    return %c0_i32, %c0_i32_0 : i32, i32
  }
  func.func @transform_9(%arg0: i32) -> (i32, i32) {
    %c0_i32 = arith.constant 0 : i32
    %c0_i32_0 = arith.constant 0 : i32
    %c0_i32_1 = arith.constant 0 : i32
    return %c0_i32, %c0_i32_0 : i32, i32
  }
  func.func @transform_10(%arg0: i32) -> (i32, i32) {
    %c0_i32 = arith.constant 0 : i32
    %c0_i32_0 = arith.constant 0 : i32
    %c0_i32_1 = arith.constant 0 : i32
    return %c0_i32, %c0_i32_0 : i32, i32
  }
  func.func @transform_11(%arg0: i32) -> (i32, i32) {
    %c0_i32 = arith.constant 0 : i32
    %c0_i32_0 = arith.constant 0 : i32
    %c0_i32_1 = arith.constant 0 : i32
    return %c0_i32, %c0_i32_0 : i32, i32
  }
  func.func @transform_12(%arg0: i32) -> (i32, i32) {
    %c0_i32 = arith.constant 0 : i32
    %c0_i32_0 = arith.constant 0 : i32
    %c0_i32_1 = arith.constant 0 : i32
    return %c0_i32, %c0_i32_0 : i32, i32
  }
  func.func @transform_13(%arg0: i32) -> (i32, i32) {
    %c0_i32 = arith.constant 0 : i32
    %c0_i32_0 = arith.constant 0 : i32
    %c0_i32_1 = arith.constant 0 : i32
    return %c0_i32, %c0_i32_0 : i32, i32
  }
  func.func @transform_14(%arg0: i32) -> (i32, i32) {
    %c0_i32 = arith.constant 0 : i32
    %c0_i32_0 = arith.constant 0 : i32
    %c0_i32_1 = arith.constant 0 : i32
    return %c0_i32, %c0_i32_0 : i32, i32
  }
  func.func @transform_15(%arg0: i32) -> (i32, i32, i32) {
    %c0_i32 = arith.constant 0 : i32
    %c0_i32_0 = arith.constant 0 : i32
    %c0_i32_1 = arith.constant 0 : i32
    return %arg0, %c0_i32, %c0_i32_0 : i32, i32, i32
  }
}

</mosaic_0001>

<llo_original>
// kernel: tpu_custom_call.1
$region0: #{tpu_custom_call.1}
  #allocation0 [shape = 'u32[]', space=smem, size = 0x4, offset = 0x4, fixed_abs, tag = 'smem constant byte address 0x4 - core index']
  #allocation1 [shape = 'u32[144,128]{1,0:T(1,128)}', space=vmem, size = 0x12000, scoped, tag = 'internal scratch']
  %s0 = inlined_call_operand.hbm [shape: f32[4,16,128], index: 0, kind: input, shape index: {}]
  %s1 = inlined_call_operand.hbm [shape: f32[4,8,128], index: 1, kind: input, shape index: {}]
  %s2 = inlined_call_operand.hbm [shape: f32[4,8,128], index: 2, kind: input, shape index: {}]
  %s3 = inlined_call_operand.vmem [shape: f32[4,1,16], index: 3, kind: input, shape index: {}]
  %s4 = inlined_call_operand.vmem [shape: f32[8,8], index: 4, kind: input, shape index: {}]
  %s5 = inlined_call_operand.hbm [shape: f32[1,128], index: 5, kind: input, shape index: {}]
  %s6 = inlined_call_operand.vmem [shape: f32[1,128], index: 6, kind: input, shape index: {}]
  %s7 = inlined_call_operand.vmem [shape: f32[1,128], index: 7, kind: input, shape index: {}]
  %s8 = inlined_call_operand.vmem [shape: f32[1,128], index: 8, kind: input, shape index: {}]
  %s9 = inlined_call_operand.hbm [shape: f32[128,512], index: 9, kind: input, shape index: {}]
  %s10 = inlined_call_operand.vmem [shape: f32[1,512], index: 10, kind: input, shape index: {}]
  %s11 = inlined_call_operand.hbm [shape: f32[128,256], index: 11, kind: input, shape index: {}]
  %s12 = inlined_call_operand.vmem [shape: f32[1,256], index: 12, kind: input, shape index: {}]
  %s13 = inlined_call_operand.hbm [shape: f32[256,128], index: 13, kind: input, shape index: {}]
  %s14 = inlined_call_operand.vmem [shape: f32[1,128], index: 14, kind: input, shape index: {}]
  %s15 = inlined_call_operand.hbm [shape: f32[4,16,128], index: 15, kind: output, shape index: {}]
  %s16 = sld [smem:[#allocation0]]
  $region98: #{tpu_custom_call.1} parent=0
    _
  %s18 = ssub.s32 1, %s16
  %s19 = scalar_select 0, %s18, %s16
  $region1: #{tpu_custom_call.1} parent=0
    #allocation2 [shape = 'u8[32768]{0}', space=vmem, size = 0x8000, scoped, tag = 'input window, operand 0, single buffered']
    #allocation3 [shape = 's32[1]{0}', space=sflag, size = 0x4, scoped, tag = 'scoped memory for tpu_custom_call.1']
    #allocation4 [shape = 's32[1]{0}', space=sflag, size = 0x4, scoped, tag = 'scoped memory for tpu_custom_call.1']
    #allocation5 [shape = 'u8[16384]{0}', space=vmem, size = 0x4000, scoped, tag = 'input window, operand 1, single buffered']
    #allocation6 [shape = 's32[1]{0}', space=sflag, size = 0x4, scoped, tag = 'scoped memory for tpu_custom_call.1']
    #allocation7 [shape = 'u8[16384]{0}', space=vmem, size = 0x4000, scoped, tag = 'input window, operand 2, single buffered']
    #allocation8 [shape = 'u8[512]{0}', space=vmem, size = 0x400, scoped, tag = 'input window, operand 5, single buffered']
    #allocation9 [shape = 's32[1]{0}', space=sflag, size = 0x4, scoped, tag = 'scoped memory for tpu_custom_call.1']
    #allocation10 [shape = 'u8[262144]{0}', space=vmem, size = 0x40000, scoped, tag = 'input window, operand 9, single buffered']
    #allocation11 [shape = 'u8[131072]{0}', space=vmem, size = 0x20000, scoped, tag = 'input window, operand 11, single buffered']
    #allocation12 [shape = 's32[1]{0}', space=sflag, size = 0x4, scoped, tag = 'scoped memory for tpu_custom_call.1']
    #allocation13 [shape = 'u8[131072]{0}', space=vmem, size = 0x20000, scoped, tag = 'input window, operand 13, single buffered']
    #allocation14 [shape = 'u8[32768]{0}', space=vmem, size = 0x8000, scoped, tag = 'output window, operand 0, single buffered']
    %20 = vsyncpa [#allocation3], 0
    %21 = vsyncpa [#allocation6], 0
    %22 = vsyncpa [#allocation9], 0
    %23 = vsyncpa [#allocation12], 0
    %24 = vsyncpa [#allocation4], 0
    // Predicated region
    $region2: #{tpu_custom_call.1} parent=1 // pred_check
      _
    $region3: #{tpu_custom_call.1} parent=1 // pred_check_branch
      %26 = sbr.rel (0) target = $region5
    $region4: #{tpu_custom_call.1} parent=1 // pred_region
      %s28 = ssub.s32 1024, 1024
      %29 = vsyncadd [#allocation3], %s28
      %s30 = sshll.u32 [#allocation2], 4
      %s31 = int_to_ptr.vmem [resolvable:$true] %s30
      %36 = dma.hbm_to_vmem [thread:$0]  %s0, 1024, %s31, [#allocation3], 128, 128, 8
    $region5: #{tpu_custom_call.1} parent=1 // pred_fallthru
      _
    // Predicated region
    $region6: #{tpu_custom_call.1} parent=1 // pred_check
      _
    $region7: #{tpu_custom_call.1} parent=1 // pred_check_branch
      %38 = sbr.rel (0) target = $region9
    $region8: #{tpu_custom_call.1} parent=1 // pred_region
      %s40 = ssub.s32 512, 512
      %41 = vsyncadd [#allocation6], %s40
      %s42 = sshll.u32 [#allocation5], 4
      %s43 = int_to_ptr.vmem [resolvable:$true] %s42
      %48 = dma.hbm_to_vmem [thread:$0]  %s1, 512, %s43, [#allocation6], 128, 128, 8
    $region9: #{tpu_custom_call.1} parent=1 // pred_fallthru
      _
    // Predicated region
    $region10: #{tpu_custom_call.1} parent=1 // pred_check
      _
    $region11: #{tpu_custom_call.1} parent=1 // pred_check_branch
      %50 = sbr.rel (0) target = $region13
    $region12: #{tpu_custom_call.1} parent=1 // pred_region
      %s52 = ssub.s32 512, 512
      %53 = vsyncadd [#allocation6], %s52
      %s54 = sshll.u32 [#allocation7], 4
      %s55 = int_to_ptr.vmem [resolvable:$true] %s54
      %60 = dma.hbm_to_vmem [thread:$0]  %s2, 512, %s55, [#allocation6], 128, 128, 8
    $region13: #{tpu_custom_call.1} parent=1 // pred_fallthru
      _
    // Predicated region
    $region14: #{tpu_custom_call.1} parent=1 // pred_check
      _
    $region15: #{tpu_custom_call.1} parent=1 // pred_check_branch
      %62 = sbr.rel (0) target = $region17
    $region16: #{tpu_custom_call.1} parent=1 // pred_region
      _
    $region17: #{tpu_custom_call.1} parent=1 // pred_fallthru
      _
    // Predicated region
    $region18: #{tpu_custom_call.1} parent=1 // pred_check
      _
    $region19: #{tpu_custom_call.1} parent=1 // pred_check_branch
      %64 = sbr.rel (0) target = $region21
    $region20: #{tpu_custom_call.1} parent=1 // pred_region
      _
    $region21: #{tpu_custom_call.1} parent=1 // pred_fallthru
      _
    // Predicated region
    $region22: #{tpu_custom_call.1} parent=1 // pred_check
      _
    $region23: #{tpu_custom_call.1} parent=1 // pred_check_branch
      %66 = sbr.rel (0) target = $region25
    $region24: #{tpu_custom_call.1} parent=1 // pred_region
      %s68 = ssub.s32 16, 16
      %69 = vsyncadd [#allocation9], %s68
      %s71 = sshll.u32 [#allocation8], 4
      %s72 = int_to_ptr.vmem [resolvable:$true] %s71
      %74 = dma.hbm_to_vmem [thread:$0]  %s5, 16, %s72, [#allocation9]
    $region25: #{tpu_custom_call.1} parent=1 // pred_fallthru
      _
    // Predicated region
    $region26: #{tpu_custom_call.1} parent=1 // pred_check
      _
    $region27: #{tpu_custom_call.1} parent=1 // pred_check_branch
      %76 = sbr.rel (0) target = $region29
    $region28: #{tpu_custom_call.1} parent=1 // pred_region
      _
    $region29: #{tpu_custom_call.1} parent=1 // pred_fallthru
      _
    // Predicated region
    $region30: #{tpu_custom_call.1} parent=1 // pred_check
      _
    $region31: #{tpu_custom_call.1} parent=1 // pred_check_branch
      %78 = sbr.rel (0) target = $region33
    $region32: #{tpu_custom_call.1} parent=1 // pred_region
      _
    $region33: #{tpu_custom_call.1} parent=1 // pred_fallthru
      _
    // Predicated region
    $region34: #{tpu_custom_call.1} parent=1 // pred_check
      _
    $region35: #{tpu_custom_call.1} parent=1 // pred_check_branch
      %80 = sbr.rel (0) target = $region37
    $region36: #{tpu_custom_call.1} parent=1 // pred_region
      _
    $region37: #{tpu_custom_call.1} parent=1 // pred_fallthru
      _
    // Predicated region
    $region38: #{tpu_custom_call.1} parent=1 // pred_check
      _
    $region39: #{tpu_custom_call.1} parent=1 // pred_check_branch
      %82 = sbr.rel (0) target = $region41
    $region40: #{tpu_custom_call.1} parent=1 // pred_region
      %s84 = ssub.s32 8192, 8192
      %85 = vsyncadd [#allocation9], %s84
      %s86 = sshll.u32 [#allocation10], 4
      %s87 = int_to_ptr.vmem [resolvable:$true] %s86
      %92 = dma.hbm_to_vmem [thread:$0]  %s9, 8192, %s87, [#allocation9], 512, 512, 32
    $region41: #{tpu_custom_call.1} parent=1 // pred_fallthru
      _
    // Predicated region
    $region42: #{tpu_custom_call.1} parent=1 // pred_check
      _
    $region43: #{tpu_custom_call.1} parent=1 // pred_check_branch
      %94 = sbr.rel (0) target = $region45
    $region44: #{tpu_custom_call.1} parent=1 // pred_region
      _
    $region45: #{tpu_custom_call.1} parent=1 // pred_fallthru
      _
    // Predicated region
    $region46: #{tpu_custom_call.1} parent=1 // pred_check
      _
    $region47: #{tpu_custom_call.1} parent=1 // pred_check_branch
      %96 = sbr.rel (0) target = $region49
    $region48: #{tpu_custom_call.1} parent=1 // pred_region
      %s98 = ssub.s32 4096, 4096
      %99 = vsyncadd [#allocation12], %s98
      %s100 = sshll.u32 [#allocation11], 4
      %s101 = int_to_ptr.vmem [resolvable:$true] %s100
      %106 = dma.hbm_to_vmem [thread:$0]  %s11, 4096, %s101, [#allocation12], 256, 256, 16
    $region49: #{tpu_custom_call.1} parent=1 // pred_fallthru
      _
    // Predicated region
    $region50: #{tpu_custom_call.1} parent=1 // pred_check
      _
    $region51: #{tpu_custom_call.1} parent=1 // pred_check_branch
      %108 = sbr.rel (0) target = $region53
    $region52: #{tpu_custom_call.1} parent=1 // pred_region
      _
    $region53: #{tpu_custom_call.1} parent=1 // pred_fallthru
      _
    // Predicated region
    $region54: #{tpu_custom_call.1} parent=1 // pred_check
      _
    $region55: #{tpu_custom_call.1} parent=1 // pred_check_branch
      %110 = sbr.rel (0) target = $region57
    $region56: #{tpu_custom_call.1} parent=1 // pred_region
      %s112 = ssub.s32 4096, 4096
      %113 = vsyncadd [#allocation12], %s112
      %s114 = sshll.u32 [#allocation13], 4
      %s115 = int_to_ptr.vmem [resolvable:$true] %s114
      %120 = dma.hbm_to_vmem [thread:$0]  %s13, 4096, %s115, [#allocation12], 128, 128, 8
    $region57: #{tpu_custom_call.1} parent=1 // pred_fallthru
      _
    // Predicated region
    $region58: #{tpu_custom_call.1} parent=1 // pred_check
      _
    $region59: #{tpu_custom_call.1} parent=1 // pred_check_branch
      %122 = sbr.rel (0) target = $region61
    $region60: #{tpu_custom_call.1} parent=1 // pred_region
      _
    $region61: #{tpu_custom_call.1} parent=1 // pred_fallthru
      _
    // Predicated region
    $region62: #{tpu_custom_call.1} parent=1 // pred_check
      _
    $region63: #{tpu_custom_call.1} parent=1 // pred_check_branch
      %124 = sbr.rel (0) target = $region65
    $region64: #{tpu_custom_call.1} parent=1 // pred_region
      %125 = dma.done [#allocation3], 1024
    $region65: #{tpu_custom_call.1} parent=1 // pred_fallthru
      _
    // Predicated region
    $region66: #{tpu_custom_call.1} parent=1 // pred_check
      _
    $region67: #{tpu_custom_call.1} parent=1 // pred_check_branch
      %127 = sbr.rel (0) target = $region69
    $region68: #{tpu_custom_call.1} parent=1 // pred_region
      %128 = dma.done [#allocation6], 512
    $region69: #{tpu_custom_call.1} parent=1 // pred_fallthru
      _
    // Predicated region
    $region70: #{tpu_custom_call.1} parent=1 // pred_check
      _
    $region71: #{tpu_custom_call.1} parent=1 // pred_check_branch
      %130 = sbr.rel (0) target = $region73
    $region72: #{tpu_custom_call.1} parent=1 // pred_region
      %131 = dma.done [#allocation6], 512
    $region73: #{tpu_custom_call.1} parent=1 // pred_fallthru
      _
    // Predicated region
    $region74: #{tpu_custom_call.1} parent=1 // pred_check
      _
    $region75: #{tpu_custom_call.1} parent=1 // pred_check_branch
      %133 = sbr.rel (0) target = $region77
    $region76: #{tpu_custom_call.1} parent=1 // pred_region
      %134 = dma.done [#allocation9], 16
    $region77: #{tpu_custom_call.1} parent=1 // pred_fallthru
      _
    // Predicated region
    $region78: #{tpu_custom_call.1} parent=1 // pred_check
      _
    $region79: #{tpu_custom_call.1} parent=1 // pred_check_branch
      %136 = sbr.rel (0) target = $region81
    $region80: #{tpu_custom_call.1} parent=1 // pred_region
      %137 = dma.done [#allocation9], 8192
    $region81: #{tpu_custom_call.1} parent=1 // pred_fallthru
      _
    // Predicated region
    $region82: #{tpu_custom_call.1} parent=1 // pred_check
      _
    $region83: #{tpu_custom_call.1} parent=1 // pred_check_branch
      %139 = sbr.rel (0) target = $region85
    $region84: #{tpu_custom_call.1} parent=1 // pred_region
      %140 = dma.done [#allocation12], 4096
    $region85: #{tpu_custom_call.1} parent=1 // pred_fallthru
      _
    // Predicated region
    $region86: #{tpu_custom_call.1} parent=1 // pred_check
      _
    $region87: #{tpu_custom_call.1} parent=1 // pred_check_branch
      %142 = sbr.rel (0) target = $region89
    $region88: #{tpu_custom_call.1} parent=1 // pred_region
      %143 = dma.done [#allocation12], 4096
    $region89: #{tpu_custom_call.1} parent=1 // pred_fallthru
      _
    %v144 = vld [vmem:[#allocation2] sm:$0xff]
    %v145 = vld [vmem:[#allocation2 + $0x8] sm:$0xff]
    %v146 = vld [vmem:[#allocation2 + $0x10] sm:$0xff]
    %v147 = vld [vmem:[#allocation2 + $0x18] sm:$0xff]
    %v148 = vld [vmem:[#allocation2 + $0x20] sm:$0xff]
    %v149 = vld [vmem:[#allocation2 + $0x28] sm:$0xff]
    %v150 = vld [vmem:[#allocation2 + $0x30] sm:$0xff]
    %v151 = vld [vmem:[#allocation2 + $0x38] sm:$0xff]
    %v152 = vld [vmem:[#allocation8] sm:$0x1]
    %v153 = vld [vmem:[%s6] sm:$0x1]
    %154 = vadd.xlane.f32.xlu0 %v144
    %v155 = vpop.xlane.xlu0 %154
    %156 = vadd.xlane.f32.xlu0 %v145
    %v157 = vpop.xlane.xlu0 %156
    %158 = vadd.xlane.f32.xlu0 %v146
    %v159 = vpop.xlane.xlu0 %158
    %160 = vadd.xlane.f32.xlu0 %v147
    %v161 = vpop.xlane.xlu0 %160
    %162 = vadd.xlane.f32.xlu0 %v148
    %v163 = vpop.xlane.xlu0 %162
    %164 = vadd.xlane.f32.xlu0 %v149
    %v165 = vpop.xlane.xlu0 %164
    %166 = vadd.xlane.f32.xlu0 %v150
    %v167 = vpop.xlane.xlu0 %166
    %168 = vadd.xlane.f32.xlu0 %v151
    %v169 = vpop.xlane.xlu0 %168
    %v170 = vrcp.pop 128.0
    %v171 = vmul.f32 %v155, %v170
    %v172 = vmul.f32 %v157, %v170
    %v173 = vmul.f32 %v159, %v170
    %v174 = vmul.f32 %v161, %v170
    %v175 = vmul.f32 %v163, %v170
    %v176 = vmul.f32 %v165, %v170
    %v177 = vmul.f32 %v167, %v170
    %v178 = vmul.f32 %v169, %v170
    %v179 = vsub.f32 %v144, %v171
    %v180 = vsub.f32 %v145, %v172
    %v181 = vsub.f32 %v146, %v173
    %v182 = vsub.f32 %v147, %v174
    %v183 = vsub.f32 %v148, %v175
    %v184 = vsub.f32 %v149, %v176
    %v185 = vsub.f32 %v150, %v177
    %v186 = vsub.f32 %v151, %v178
    %v187 = vmul.f32 %v179, %v179
    %v188 = vmul.f32 %v180, %v180
    %v189 = vmul.f32 %v181, %v181
    %v190 = vmul.f32 %v182, %v182
    %v191 = vmul.f32 %v183, %v183
    %v192 = vmul.f32 %v184, %v184
    %v193 = vmul.f32 %v185, %v185
    %v194 = vmul.f32 %v186, %v186
    %195 = vadd.xlane.f32.xlu0 %v187
    %v196 = vpop.xlane.xlu0 %195
    %197 = vadd.xlane.f32.xlu0 %v188
    %v198 = vpop.xlane.xlu0 %197
    %199 = vadd.xlane.f32.xlu0 %v189
    %v200 = vpop.xlane.xlu0 %199
    %201 = vadd.xlane.f32.xlu0 %v190
    %v202 = vpop.xlane.xlu0 %201
    %203 = vadd.xlane.f32.xlu0 %v191
    %v204 = vpop.xlane.xlu0 %203
    %205 = vadd.xlane.f32.xlu0 %v192
    %v206 = vpop.xlane.xlu0 %205
    %207 = vadd.xlane.f32.xlu0 %v193
    %v208 = vpop.xlane.xlu0 %207
    %209 = vadd.xlane.f32.xlu0 %v194
    %v210 = vpop.xlane.xlu0 %209
    %v211 = vmul.f32 %v196, %v170
    %v212 = vmul.f32 %v198, %v170
    %v213 = vmul.f32 %v200, %v170
    %v214 = vmul.f32 %v202, %v170
    %v215 = vmul.f32 %v204, %v170
    %v216 = vmul.f32 %v206, %v170
    %v217 = vmul.f32 %v208, %v170
    %v218 = vmul.f32 %v210, %v170
    %v219 = vadd.f32 %v211, 0.0001
    %v220 = vadd.f32 %v212, 0.0001
    %v221 = vadd.f32 %v213, 0.0001
    %v222 = vadd.f32 %v214, 0.0001
    %v223 = vadd.f32 %v215, 0.0001
    %v224 = vadd.f32 %v216, 0.0001
    %v225 = vadd.f32 %v217, 0.0001
    %v226 = vadd.f32 %v218, 0.0001
    %v227 = vrsqrt.pop %v219
    %v228 = vrsqrt.pop %v220
    %v229 = vrsqrt.pop %v221
    %v230 = vrsqrt.pop %v222
    %v231 = vrsqrt.pop %v223
    %v232 = vrsqrt.pop %v224
    %v233 = vrsqrt.pop %v225
    %v234 = vrsqrt.pop %v226
    %v235 = vmul.f32 %v179, %v227
    %v236 = vmul.f32 %v180, %v228
    %v237 = vmul.f32 %v181, %v229
    %v238 = vmul.f32 %v182, %v230
    %v239 = vmul.f32 %v183, %v231
    %v240 = vmul.f32 %v184, %v232
    %v241 = vmul.f32 %v185, %v233
    %v242 = vmul.f32 %v186, %v234
    %v244 = vlaneseq
    %v245 = vshrl.u32 %v244, 7
    %v246 = vsub.s32 0, %v245
    %v247 = vrot.slane %v152, %v246
    %v249 = vmul.f32 %v235, %v247
    %v250 = vmul.f32 %v236, %v247
    %v251 = vmul.f32 %v237, %v247
    %v252 = vmul.f32 %v238, %v247
    %v253 = vmul.f32 %v239, %v247
    %v254 = vmul.f32 %v240, %v247
    %v255 = vmul.f32 %v241, %v247
    %v256 = vmul.f32 %v242, %v247
    %v258 = vlaneseq
    %v259 = vshrl.u32 %v258, 7
    %v260 = vsub.s32 0, %v259
    %v261 = vrot.slane %v153, %v260
    %v263 = vadd.f32 %v249, %v261
    %v264 = vadd.f32 %v250, %v261
    %v265 = vadd.f32 %v251, %v261
    %v266 = vadd.f32 %v252, %v261
    %v267 = vadd.f32 %v253, %v261
    %v268 = vadd.f32 %v254, %v261
    %v269 = vadd.f32 %v255, %v261
    %v270 = vadd.f32 %v256, %v261
    %v271 = vld [vmem:[#allocation10] sm:$0xff]
    %v272 = vld [vmem:[#allocation10 + $0x8] sm:$0xff]
    %v273 = vld [vmem:[#allocation10 + $0x10] sm:$0xff]
    %v274 = vld [vmem:[#allocation10 + $0x18] sm:$0xff]
    %v275 = vld [vmem:[#allocation10 + $0x20] sm:$0xff]
    %v276 = vld [vmem:[#allocation10 + $0x28] sm:$0xff]
    %v277 = vld [vmem:[#allocation10 + $0x30] sm:$0xff]
    %v278 = vld [vmem:[#allocation10 + $0x38] sm:$0xff]
    %v279 = vld [vmem:[#allocation10 + $0x40] sm:$0xff]
    %v280 = vld [vmem:[#allocation10 + $0x48] sm:$0xff]
    %v281 = vld [vmem:[#allocation10 + $0x50] sm:$0xff]
    %v282 = vld [vmem:[#allocation10 + $0x58] sm:$0xff]
    %v283 = vld [vmem:[#allocation10 + $0x60] sm:$0xff]
    %v284 = vld [vmem:[#allocation10 + $0x68] sm:$0xff]
    %v285 = vld [vmem:[#allocation10 + $0x70] sm:$0xff]
    %v286 = vld [vmem:[#allocation10 + $0x78] sm:$0xff]
    %v287 = vld [vmem:[#allocation10 + $0x80] sm:$0xff]
    %v288 = vld [vmem:[#allocation10 + $0x88] sm:$0xff]
    %v289 = vld [vmem:[#allocation10 + $0x90] sm:$0xff]
    %v290 = vld [vmem:[#allocation10 + $0x98] sm:$0xff]
    %v291 = vld [vmem:[#allocation10 + $0xa0] sm:$0xff]
    %v292 = vld [vmem:[#allocation10 + $0xa8] sm:$0xff]
    %v293 = vld [vmem:[#allocation10 + $0xb0] sm:$0xff]
    %v294 = vld [vmem:[#allocation10 + $0xb8] sm:$0xff]
    %v295 = vld [vmem:[#allocation10 + $0xc0] sm:$0xff]
    %v296 = vld [vmem:[#allocation10 + $0xc8] sm:$0xff]
    %v297 = vld [vmem:[#allocation10 + $0xd0] sm:$0xff]
    %v298 = vld [vmem:[#allocation10 + $0xd8] sm:$0xff]
    %v299 = vld [vmem:[#allocation10 + $0xe0] sm:$0xff]
    %v300 = vld [vmem:[#allocation10 + $0xe8] sm:$0xff]
    %v301 = vld [vmem:[#allocation10 + $0xf0] sm:$0xff]
    %v302 = vld [vmem:[#allocation10 + $0xf8] sm:$0xff]
    %v303 = vld [vmem:[#allocation10 + $0x100] sm:$0xff]
    %v304 = vld [vmem:[#allocation10 + $0x108] sm:$0xff]
    %v305 = vld [vmem:[#allocation10 + $0x110] sm:$0xff]
    %v306 = vld [vmem:[#allocation10 + $0x118] sm:$0xff]
    %v307 = vld [vmem:[#allocation10 + $0x120] sm:$0xff]
    %v308 = vld [vmem:[#allocation10 + $0x128] sm:$0xff]
    %v309 = vld [vmem:[#allocation10 + $0x130] sm:$0xff]
    %v310 = vld [vmem:[#allocation10 + $0x138] sm:$0xff]
    %v311 = vld [vmem:[#allocation10 + $0x140] sm:$0xff]
    %v312 = vld [vmem:[#allocation10 + $0x148] sm:$0xff]
    %v313 = vld [vmem:[#allocation10 + $0x150] sm:$0xff]
    %v314 = vld [vmem:[#allocation10 + $0x158] sm:$0xff]
    %v315 = vld [vmem:[#allocation10 + $0x160] sm:$0xff]
    %v316 = vld [vmem:[#allocation10 + $0x168] sm:$0xff]
    %v317 = vld [vmem:[#allocation10 + $0x170] sm:$0xff]
    %v318 = vld [vmem:[#allocation10 + $0x178] sm:$0xff]
    %v319 = vld [vmem:[#allocation10 + $0x180] sm:$0xff]
    %v320 = vld [vmem:[#allocation10 + $0x188] sm:$0xff]
    %v321 = vld [vmem:[#allocation10 + $0x190] sm:$0xff]
    %v322 = vld [vmem:[#allocation10 + $0x198] sm:$0xff]
    %v323 = vld [vmem:[#allocation10 + $0x1a0] sm:$0xff]
    %v324 = vld [vmem:[#allocation10 + $0x1a8] sm:$0xff]
    %v325 = vld [vmem:[#allocation10 + $0x1b0] sm:$0xff]
    %v326 = vld [vmem:[#allocation10 + $0x1b8] sm:$0xff]
    %v327 = vld [vmem:[#allocation10 + $0x1c0] sm:$0xff]
    %v328 = vld [vmem:[#allocation10 + $0x1c8] sm:$0xff]
    %v329 = vld [vmem:[#allocation10 + $0x1d0] sm:$0xff]
    %v330 = vld [vmem:[#allocation10 + $0x1d8] sm:$0xff]
    %v331 = vld [vmem:[#allocation10 + $0x1e0] sm:$0xff]
    %v332 = vld [vmem:[#allocation10 + $0x1e8] sm:$0xff]
    %v333 = vld [vmem:[#allocation10 + $0x1f0] sm:$0xff]
    %v334 = vld [vmem:[#allocation10 + $0x1f8] sm:$0xff]
    %v335 = vld [vmem:[%s10] sm:$0xf]
    %v337 = vlaneseq
    %v338 = vshrl.u32 %v337, 7
    %v339 = vsub.s32 0, %v338
    %v340 = vrot.slane %v335, %v339
    %v341 = vlaneseq
    %v342 = vshrl.u32 %v341, 7
    %v343 = vsub.s32 1, %v342
    %v344 = vrot.slane %v335, %v343
    %v345 = vlaneseq
    %v346 = vshrl.u32 %v345, 7
    %v347 = vsub.s32 2, %v346
    %v348 = vrot.slane %v335, %v347
    %v349 = vlaneseq
    %v350 = vshrl.u32 %v349, 7
    %v351 = vsub.s32 3, %v350
    %v352 = vrot.slane %v335, %v351
    %357 = vmatprep.subr.mxu0 %v272
    %358 = vmatpush1.msra.mxu0 %v271
    %359 = vmatprep.subr.mxu0 %v276
    %360 = vmatpush1.msra.mxu0 %v275
    %361 = vmatprep.subr.mxu0 %v280
    %362 = vmatpush1.msra.mxu0 %v279
    %363 = vmatprep.subr.mxu0 %v284
    %364 = vmatpush1.msra.mxu0 %v283
    %365 = vmatprep.subr.mxu0 %v288
    %366 = vmatpush1.msra.mxu0 %v287
    %367 = vmatprep.subr.mxu0 %v292
    %368 = vmatpush1.msra.mxu0 %v291
    %369 = vmatprep.subr.mxu0 %v296
    %370 = vmatpush1.msra.mxu0 %v295
    %371 = vmatprep.subr.mxu0 %v300
    %372 = vmatpush1.msra.mxu0 %v299
    %373 = vmatprep.subr.mxu0 %v304
    %374 = vmatpush1.msra.mxu0 %v303
    %375 = vmatprep.subr.mxu0 %v308
    %376 = vmatpush1.msra.mxu0 %v307
    %377 = vmatprep.subr.mxu0 %v312
    %378 = vmatpush1.msra.mxu0 %v311
    %379 = vmatprep.subr.mxu0 %v316
    %380 = vmatpush1.msra.mxu0 %v315
    %381 = vmatprep.subr.mxu0 %v320
    %382 = vmatpush1.msra.mxu0 %v319
    %383 = vmatprep.subr.mxu0 %v324
    %384 = vmatpush1.msra.mxu0 %v323
    %385 = vmatprep.subr.mxu0 %v328
    %386 = vmatpush1.msra.mxu0 %v327
    %387 = vmatprep.subr.mxu0 %v332
    %388 = vmatpush1.msra.mxu0 %v331
    %389 = vmatprep.subr.mxu0 0.0
    %390 = vmatpush1.msra.mxu0 0.0
    %391 = vmatprep.subr.mxu0 0.0
    %392 = vmatpush1.msra.mxu0 0.0
    %393 = vmatprep.subr.mxu0 0.0
    %394 = vmatpush1.msra.mxu0 0.0
    %395 = vmatprep.subr.mxu0 0.0
    %396 = vmatpush1.msra.mxu0 0.0
    %397 = vmatprep.subr.mxu0 0.0
    %398 = vmatpush1.msra.mxu0 0.0
    %399 = vmatprep.subr.mxu0 0.0
    %400 = vmatpush1.msra.mxu0 0.0
    %401 = vmatprep.subr.mxu0 0.0
    %402 = vmatpush1.msra.mxu0 0.0
    %403 = vmatprep.subr.mxu0 0.0
    %404 = vmatpush1.msra.mxu0 0.0
    %405 = vmatprep.subr.mxu0 0.0
    %406 = vmatpush1.msra.mxu0 0.0
    %407 = vmatprep.subr.mxu0 0.0
    %408 = vmatpush1.msra.mxu0 0.0
    %409 = vmatprep.subr.mxu0 0.0
    %410 = vmatpush1.msra.mxu0 0.0
    %411 = vmatprep.subr.mxu0 0.0
    %412 = vmatpush1.msra.mxu0 0.0
    %413 = vmatprep.subr.mxu0 0.0
    %414 = vmatpush1.msra.mxu0 0.0
    %415 = vmatprep.subr.mxu0 0.0
    %416 = vmatpush1.msra.mxu0 0.0
    %417 = vmatprep.subr.mxu0 0.0
    %418 = vmatpush1.msra.mxu0 0.0
    %419 = vmatprep.subr.mxu0 0.0
    %420 = vmatpush1.msra.mxu0 0.0
    %421 = vmatprep.mubr.f32.mxu0 0.0
    %422 = vmatmul.mubr.f32.gmra.mrb[0].mxu0 %v263
    %v423 = vpop.f32.mrb[0].mxu0
    %v424 = vadd.f32 %v340, %v423
    %v425 = vpop.f32.mrb[0].mxu0
    %v426 = vadd.f32 %v344, %v425
    %427 = vmatprep.mubr.f32.mxu0 0.0
    %428 = vmatmul.mubr.f32.gmra.mrb[0].mxu0 %v264
    %v429 = vpop.f32.mrb[0].mxu0
    %v430 = vadd.f32 %v340, %v429
    %v431 = vpop.f32.mrb[0].mxu0
    %v432 = vadd.f32 %v344, %v431
    %433 = vmatprep.mubr.f32.mxu0 0.0
    %434 = vmatmul.mubr.f32.gmra.mrb[0].mxu0 %v265
    %v435 = vpop.f32.mrb[0].mxu0
    %v436 = vadd.f32 %v340, %v435
    %v437 = vpop.f32.mrb[0].mxu0
    %v438 = vadd.f32 %v344, %v437
    %439 = vmatprep.mubr.f32.mxu0 0.0
    %440 = vmatmul.mubr.f32.gmra.mrb[0].mxu0 %v266
    %v441 = vpop.f32.mrb[0].mxu0
    %v442 = vadd.f32 %v340, %v441
    %v443 = vpop.f32.mrb[0].mxu0
    %v444 = vadd.f32 %v344, %v443
    %445 = vmatprep.mubr.f32.mxu0 0.0
    %446 = vmatmul.mubr.f32.gmra.mrb[0].mxu0 %v267
    %v447 = vpop.f32.mrb[0].mxu0
    %v448 = vadd.f32 %v340, %v447
    %v449 = vpop.f32.mrb[0].mxu0
    %v450 = vadd.f32 %v344, %v449
    %451 = vmatprep.mubr.f32.mxu0 0.0
    %452 = vmatmul.mubr.f32.gmra.mrb[0].mxu0 %v268
    %v453 = vpop.f32.mrb[0].mxu0
    %v454 = vadd.f32 %v340, %v453
    %v455 = vpop.f32.mrb[0].mxu0
    %v456 = vadd.f32 %v344, %v455
    %457 = vmatprep.mubr.f32.mxu0 0.0
    %458 = vmatmul.mubr.f32.gmra.mrb[0].mxu0 %v269
    %v459 = vpop.f32.mrb[0].mxu0
    %v460 = vadd.f32 %v340, %v459
    %v461 = vpop.f32.mrb[0].mxu0
    %v462 = vadd.f32 %v344, %v461
    %463 = vmatprep.mubr.f32.mxu0 0.0
    %464 = vmatmul.mubr.f32.gmra.mrb[0].mxu0 %v270
    %v465 = vpop.f32.mrb[0].mxu0
    %v466 = vadd.f32 %v340, %v465
    %v467 = vpop.f32.mrb[0].mxu0
    %v468 = vadd.f32 %v344, %v467
    %469 = vdwg.mxu0
    %470 = vmatprep.subr.mxu0 %v274
    %471 = vmatpush1.msra.mxu0 %v273
    %472 = vmatprep.subr.mxu0 %v278
    %473 = vmatpush1.msra.mxu0 %v277
    %474 = vmatprep.subr.mxu0 %v282
    %475 = vmatpush1.msra.mxu0 %v281
    %476 = vmatprep.subr.mxu0 %v286
    %477 = vmatpush1.msra.mxu0 %v285
    %478 = vmatprep.subr.mxu0 %v290
    %479 = vmatpush1.msra.mxu0 %v289
    %480 = vmatprep.subr.mxu0 %v294
    %481 = vmatpush1.msra.mxu0 %v293
    %482 = vmatprep.subr.mxu0 %v298
    %483 = vmatpush1.msra.mxu0 %v297
    %484 = vmatprep.subr.mxu0 %v302
    %485 = vmatpush1.msra.mxu0 %v301
    %486 = vmatprep.subr.mxu0 %v306
    %487 = vmatpush1.msra.mxu0 %v305
    %488 = vmatprep.subr.mxu0 %v310
    %489 = vmatpush1.msra.mxu0 %v309
    %490 = vmatprep.subr.mxu0 %v314
    %491 = vmatpush1.msra.mxu0 %v313
    %492 = vmatprep.subr.mxu0 %v318
    %493 = vmatpush1.msra.mxu0 %v317
    %494 = vmatprep.subr.mxu0 %v322
    %495 = vmatpush1.msra.mxu0 %v321
    %496 = vmatprep.subr.mxu0 %v326
    %497 = vmatpush1.msra.mxu0 %v325
    %498 = vmatprep.subr.mxu0 %v330
    %499 = vmatpush1.msra.mxu0 %v329
    %500 = vmatprep.subr.mxu0 %v334
    %501 = vmatpush1.msra.mxu0 %v333
    %502 = vmatprep.subr.mxu0 0.0
    %503 = vmatpush1.msra.mxu0 0.0
    %504 = vmatprep.subr.mxu0 0.0
    %505 = vmatpush1.msra.mxu0 0.0
    %506 = vmatprep.subr.mxu0 0.0
    %507 = vmatpush1.msra.mxu0 0.0
    %508 = vmatprep.subr.mxu0 0.0
    %509 = vmatpush1.msra.mxu0 0.0
    %510 = vmatprep.subr.mxu0 0.0
    %511 = vmatpush1.msra.mxu0 0.0
    %512 = vmatprep.subr.mxu0 0.0
    %513 = vmatpush1.msra.mxu0 0.0
    %514 = vmatprep.subr.mxu0 0.0
    %515 = vmatpush1.msra.mxu0 0.0
    %516 = vmatprep.subr.mxu0 0.0
    %517 = vmatpush1.msra.mxu0 0.0
    %518 = vmatprep.subr.mxu0 0.0
    %519 = vmatpush1.msra.mxu0 0.0
    %520 = vmatprep.subr.mxu0 0.0
    %521 = vmatpush1.msra.mxu0 0.0
    %522 = vmatprep.subr.mxu0 0.0
    %523 = vmatpush1.msra.mxu0 0.0
    %524 = vmatprep.subr.mxu0 0.0
    %525 = vmatpush1.msra.mxu0 0.0
    %526 = vmatprep.subr.mxu0 0.0
    %527 = vmatpush1.msra.mxu0 0.0
    %528 = vmatprep.subr.mxu0 0.0
    %529 = vmatpush1.msra.mxu0 0.0
    %530 = vmatprep.subr.mxu0 0.0
    %531 = vmatpush1.msra.mxu0 0.0
    %532 = vmatprep.subr.mxu0 0.0
    %533 = vmatpush1.msra.mxu0 0.0
    %534 = vmatprep.mubr.f32.mxu0 0.0
    %535 = vmatmul.mubr.f32.gmra.mrb[0].mxu0 %v263
    %v536 = vpop.f32.mrb[0].mxu0
    %v537 = vadd.f32 %v348, %v536
    %v538 = vpop.f32.mrb[0].mxu0
    %v539 = vadd.f32 %v352, %v538
    %540 = vmatprep.mubr.f32.mxu0 0.0
    %541 = vmatmul.mubr.f32.gmra.mrb[0].mxu0 %v264
    %v542 = vpop.f32.mrb[0].mxu0
    %v543 = vadd.f32 %v348, %v542
    %v544 = vpop.f32.mrb[0].mxu0
    %v545 = vadd.f32 %v352, %v544
    %546 = vmatprep.mubr.f32.mxu0 0.0
    %547 = vmatmul.mubr.f32.gmra.mrb[0].mxu0 %v265
    %v548 = vpop.f32.mrb[0].mxu0
    %v549 = vadd.f32 %v348, %v548
    %v550 = vpop.f32.mrb[0].mxu0
    %v551 = vadd.f32 %v352, %v550
    %552 = vmatprep.mubr.f32.mxu0 0.0
    %553 = vmatmul.mubr.f32.gmra.mrb[0].mxu0 %v266
    %v554 = vpop.f32.mrb[0].mxu0
    %v555 = vadd.f32 %v348, %v554
    %v556 = vpop.f32.mrb[0].mxu0
    %v557 = vadd.f32 %v352, %v556
    %558 = vmatprep.mubr.f32.mxu0 0.0
    %559 = vmatmul.mubr.f32.gmra.mrb[0].mxu0 %v267
    %v560 = vpop.f32.mrb[0].mxu0
    %v561 = vadd.f32 %v348, %v560
    %v562 = vpop.f32.mrb[0].mxu0
    %v563 = vadd.f32 %v352, %v562
    %564 = vmatprep.mubr.f32.mxu0 0.0
    %565 = vmatmul.mubr.f32.gmra.mrb[0].mxu0 %v268
    %v566 = vpop.f32.mrb[0].mxu0
    %v567 = vadd.f32 %v348, %v566
    %v568 = vpop.f32.mrb[0].mxu0
    %v569 = vadd.f32 %v352, %v568
    %570 = vmatprep.mubr.f32.mxu0 0.0
    %571 = vmatmul.mubr.f32.gmra.mrb[0].mxu0 %v269
    %v572 = vpop.f32.mrb[0].mxu0
    %v573 = vadd.f32 %v348, %v572
    %v574 = vpop.f32.mrb[0].mxu0
    %v575 = vadd.f32 %v352, %v574
    %576 = vmatprep.mubr.f32.mxu0 0.0
    %577 = vmatmul.mubr.f32.gmra.mrb[0].mxu0 %v270
    %v578 = vpop.f32.mrb[0].mxu0
    %v579 = vadd.f32 %v348, %v578
    %v580 = vpop.f32.mrb[0].mxu0
    %v581 = vadd.f32 %v352, %v580
    %582 = vdwg.mxu0
    %v583 = vsub.f32 0.0, %v539
    %v584 = vsub.f32 0.0, %v545
    %v585 = vsub.f32 0.0, %v551
    %v586 = vsub.f32 0.0, %v557
    %v587 = vsub.f32 0.0, %v563
    %v588 = vsub.f32 0.0, %v569
    %v589 = vsub.f32 0.0, %v575
    %v590 = vsub.f32 0.0, %v581
    %v591 = vmul.f32 %v583, 1.442695
    %v592 = vpow.pop %v591
    %v593 = vmul.f32 %v584, 1.442695
    %v594 = vpow.pop %v593
    %v595 = vmul.f32 %v585, 1.442695
    %v596 = vpow.pop %v595
    %v597 = vmul.f32 %v586, 1.442695
    %v598 = vpow.pop %v597
    %v599 = vmul.f32 %v587, 1.442695
    %v600 = vpow.pop %v599
    %v601 = vmul.f32 %v588, 1.442695
    %v602 = vpow.pop %v601
    %v603 = vmul.f32 %v589, 1.442695
    %v604 = vpow.pop %v603
    %v605 = vmul.f32 %v590, 1.442695
    %v606 = vpow.pop %v605
    %v607 = vadd.f32 %v592, 1.0
    %v608 = vadd.f32 %v594, 1.0
    %v609 = vadd.f32 %v596, 1.0
    %v610 = vadd.f32 %v598, 1.0
    %v611 = vadd.f32 %v600, 1.0
    %v612 = vadd.f32 %v602, 1.0
    %v613 = vadd.f32 %v604, 1.0
    %v614 = vadd.f32 %v606, 1.0
    %v615 = vrcp.pop %v607
    %v616 = vmul.f32 1.0, %v615
    %v617 = vrcp.pop %v608
    %v618 = vmul.f32 1.0, %v617
    %v619 = vrcp.pop %v609
    %v620 = vmul.f32 1.0, %v619
    %v621 = vrcp.pop %v610
    %v622 = vmul.f32 1.0, %v621
    %v623 = vrcp.pop %v611
    %v624 = vmul.f32 1.0, %v623
    %v625 = vrcp.pop %v612
    %v626 = vmul.f32 1.0, %v625
    %v627 = vrcp.pop %v613
    %v628 = vmul.f32 1.0, %v627
    %v629 = vrcp.pop %v614
    %v630 = vmul.f32 1.0, %v629
    %v631 = vld [vmem:[#allocation5] sm:$0xff]
    %v632 = vld [vmem:[#allocation5 + $0x8] sm:$0xff]
    %v633 = vld [vmem:[#allocation5 + $0x10] sm:$0xff]
    %v634 = vld [vmem:[#allocation5 + $0x18] sm:$0xff]
    %635 = vmatprep.subr.mxu0 0.0
    %636 = vmatpush1.xpose.msra.mxu0 %v424
    %637 = vmatprep.subr.mxu0 0.0
    %638 = vmatpush1.xpose.msra.mxu0 %v430
    %639 = vmatprep.subr.mxu0 0.0
    %640 = vmatpush1.xpose.msra.mxu0 0.0
    %641 = vmatprep.subr.mxu0 0.0
    %642 = vmatpush1.xpose.msra.mxu0 0.0
    %643 = vmatprep.subr.mxu0 0.0
    %644 = vmatpush1.xpose.msra.mxu0 0.0
    %645 = vmatprep.subr.mxu0 0.0
    %646 = vmatpush1.xpose.msra.mxu0 0.0
    %647 = vmatprep.subr.mxu0 0.0
    %648 = vmatpush1.xpose.msra.mxu0 0.0
    %649 = vmatprep.subr.mxu0 0.0
    %650 = vmatpush1.xpose.msra.mxu0 0.0
    %651 = vmatprep.subr.mxu0 0.0
    %652 = vmatpush1.xpose.msra.mxu0 0.0
    %653 = vmatprep.subr.mxu0 0.0
    %654 = vmatpush1.xpose.msra.mxu0 0.0
    %655 = vmatprep.subr.mxu0 0.0
    %656 = vmatpush1.xpose.msra.mxu0 0.0
    %657 = vmatprep.subr.mxu0 0.0
    %658 = vmatpush1.xpose.msra.mxu0 0.0
    %659 = vmatprep.subr.mxu0 0.0
    %660 = vmatpush1.xpose.msra.mxu0 0.0
    %661 = vmatprep.subr.mxu0 0.0
    %662 = vmatpush1.xpose.msra.mxu0 0.0
    %663 = vmatprep.subr.mxu0 0.0
    %664 = vmatpush1.xpose.msra.mxu0 0.0
    %665 = vmatprep.subr.mxu0 0.0
    %666 = vmatpush1.xpose.msra.mxu0 0.0
    %667 = vmatprep.subr.mxu0 0.0
    %668 = vmatpush1.xpose.msra.mxu0 0.0
    %669 = vmatprep.subr.mxu0 0.0
    %670 = vmatpush1.xpose.msra.mxu0 0.0
    %671 = vmatprep.subr.mxu0 0.0
    %672 = vmatpush1.xpose.msra.mxu0 0.0
    %673 = vmatprep.subr.mxu0 0.0
    %674 = vmatpush1.xpose.msra.mxu0 0.0
    %675 = vmatprep.subr.mxu0 0.0
    %676 = vmatpush1.xpose.msra.mxu0 0.0
    %677 = vmatprep.subr.mxu0 0.0
    %678 = vmatpush1.xpose.msra.mxu0 0.0
    %679 = vmatprep.subr.mxu0 0.0
    %680 = vmatpush1.xpose.msra.mxu0 0.0
    %681 = vmatprep.subr.mxu0 0.0
    %682 = vmatpush1.xpose.msra.mxu0 0.0
    %683 = vmatprep.subr.mxu0 0.0
    %684 = vmatpush1.xpose.msra.mxu0 0.0
    %685 = vmatprep.subr.mxu0 0.0
    %686 = vmatpush1.xpose.msra.mxu0 0.0
    %687 = vmatprep.subr.mxu0 0.0
    %688 = vmatpush1.xpose.msra.mxu0 0.0
    %689 = vmatprep.subr.mxu0 0.0
    %690 = vmatpush1.xpose.msra.mxu0 0.0
    %691 = vmatprep.subr.mxu0 0.0
    %692 = vmatpush1.xpose.msra.mxu0 0.0
    %693 = vmatprep.subr.mxu0 0.0
    %694 = vmatpush1.xpose.msra.mxu0 0.0
    %695 = vmatprep.subr.mxu0 0.0
    %696 = vmatpush1.xpose.msra.mxu0 0.0
    %697 = vmatprep.subr.mxu0 0.0
    %698 = vmatpush1.xpose.msra.mxu0 0.0
    %699 = vmatprep.mubr.f32.mxu0 0.0
    %700 = vmatmul.mubr.f32.gmra.mrb[0].mxu0 %v631
    %v701 = vpop.f32.mrb[0].mxu0
    %v702 = vadd.f32 0.0, %v701
    %v703 = vpop.f32.mrb[0].mxu0
    %704 = vdwg.mxu0
    %705 = vmatprep.subr.mxu0 0.0
    %706 = vmatpush1.xpose.msra.mxu0 %v436
    %707 = vmatprep.subr.mxu0 0.0
    %708 = vmatpush1.xpose.msra.mxu0 %v442
    %709 = vmatprep.subr.mxu0 0.0
    %710 = vmatpush1.xpose.msra.mxu0 0.0
    %711 = vmatprep.subr.mxu0 0.0
    %712 = vmatpush1.xpose.msra.mxu0 0.0
    %713 = vmatprep.subr.mxu0 0.0
    %714 = vmatpush1.xpose.msra.mxu0 0.0
    %715 = vmatprep.subr.mxu0 0.0
    %716 = vmatpush1.xpose.msra.mxu0 0.0
    %717 = vmatprep.subr.mxu0 0.0
    %718 = vmatpush1.xpose.msra.mxu0 0.0
    %719 = vmatprep.subr.mxu0 0.0
    %720 = vmatpush1.xpose.msra.mxu0 0.0
    %721 = vmatprep.subr.mxu0 0.0
    %722 = vmatpush1.xpose.msra.mxu0 0.0
    %723 = vmatprep.subr.mxu0 0.0
    %724 = vmatpush1.xpose.msra.mxu0 0.0
    %725 = vmatprep.subr.mxu0 0.0
    %726 = vmatpush1.xpose.msra.mxu0 0.0
    %727 = vmatprep.subr.mxu0 0.0
    %728 = vmatpush1.xpose.msra.mxu0 0.0
    %729 = vmatprep.subr.mxu0 0.0
    %730 = vmatpush1.xpose.msra.mxu0 0.0
    %731 = vmatprep.subr.mxu0 0.0
    %732 = vmatpush1.xpose.msra.mxu0 0.0
    %733 = vmatprep.subr.mxu0 0.0
    %734 = vmatpush1.xpose.msra.mxu0 0.0
    %735 = vmatprep.subr.mxu0 0.0
    %736 = vmatpush1.xpose.msra.mxu0 0.0
    %737 = vmatprep.subr.mxu0 0.0
    %738 = vmatpush1.xpose.msra.mxu0 0.0
    %739 = vmatprep.subr.mxu0 0.0
    %740 = vmatpush1.xpose.msra.mxu0 0.0
    %741 = vmatprep.subr.mxu0 0.0
    %742 = vmatpush1.xpose.msra.mxu0 0.0
    %743 = vmatprep.subr.mxu0 0.0
    %744 = vmatpush1.xpose.msra.mxu0 0.0
    %745 = vmatprep.subr.mxu0 0.0
    %746 = vmatpush1.xpose.msra.mxu0 0.0
    %747 = vmatprep.subr.mxu0 0.0
    %748 = vmatpush1.xpose.msra.mxu0 0.0
    %749 = vmatprep.subr.mxu0 0.0
    %750 = vmatpush1.xpose.msra.mxu0 0.0
    %751 = vmatprep.subr.mxu0 0.0
    %752 = vmatpush1.xpose.msra.mxu0 0.0
    %753 = vmatprep.subr.mxu0 0.0
    %754 = vmatpush1.xpose.msra.mxu0 0.0
    %755 = vmatprep.subr.mxu0 0.0
    %756 = vmatpush1.xpose.msra.mxu0 0.0
    %757 = vmatprep.subr.mxu0 0.0
    %758 = vmatpush1.xpose.msra.mxu0 0.0
    %759 = vmatprep.subr.mxu0 0.0
    %760 = vmatpush1.xpose.msra.mxu0 0.0
    %761 = vmatprep.subr.mxu0 0.0
    %762 = vmatpush1.xpose.msra.mxu0 0.0
    %763 = vmatprep.subr.mxu0 0.0
    %764 = vmatpush1.xpose.msra.mxu0 0.0
    %765 = vmatprep.subr.mxu0 0.0
    %766 = vmatpush1.xpose.msra.mxu0 0.0
    %767 = vmatprep.subr.mxu0 0.0
    %768 = vmatpush1.xpose.msra.mxu0 0.0
    %769 = vmatprep.mubr.f32.mxu0 0.0
    %770 = vmatmul.mubr.f32.gmra.mrb[0].mxu0 %v632
    %v771 = vpop.f32.mrb[0].mxu0
    %v772 = vadd.f32 0.0, %v771
    %v773 = vpop.f32.mrb[0].mxu0
    %774 = vdwg.mxu0
    %775 = vmatprep.subr.mxu0 0.0
    %776 = vmatpush1.xpose.msra.mxu0 %v448
    %777 = vmatprep.subr.mxu0 0.0
    %778 = vmatpush1.xpose.msra.mxu0 %v454
    %779 = vmatprep.subr.mxu0 0.0
    %780 = vmatpush1.xpose.msra.mxu0 0.0
    %781 = vmatprep.subr.mxu0 0.0
    %782 = vmatpush1.xpose.msra.mxu0 0.0
    %783 = vmatprep.subr.mxu0 0.0
    %784 = vmatpush1.xpose.msra.mxu0 0.0
    %785 = vmatprep.subr.mxu0 0.0
    %786 = vmatpush1.xpose.msra.mxu0 0.0
    %787 = vmatprep.subr.mxu0 0.0
    %788 = vmatpush1.xpose.msra.mxu0 0.0
    %789 = vmatprep.subr.mxu0 0.0
    %790 = vmatpush1.xpose.msra.mxu0 0.0
    %791 = vmatprep.subr.mxu0 0.0
    %792 = vmatpush1.xpose.msra.mxu0 0.0
    %793 = vmatprep.subr.mxu0 0.0
    %794 = vmatpush1.xpose.msra.mxu0 0.0
    %795 = vmatprep.subr.mxu0 0.0
    %796 = vmatpush1.xpose.msra.mxu0 0.0
    %797 = vmatprep.subr.mxu0 0.0
    %798 = vmatpush1.xpose.msra.mxu0 0.0
    %799 = vmatprep.subr.mxu0 0.0
    %800 = vmatpush1.xpose.msra.mxu0 0.0
    %801 = vmatprep.subr.mxu0 0.0
    %802 = vmatpush1.xpose.msra.mxu0 0.0
    %803 = vmatprep.subr.mxu0 0.0
    %804 = vmatpush1.xpose.msra.mxu0 0.0
    %805 = vmatprep.subr.mxu0 0.0
    %806 = vmatpush1.xpose.msra.mxu0 0.0
    %807 = vmatprep.subr.mxu0 0.0
    %808 = vmatpush1.xpose.msra.mxu0 0.0
    %809 = vmatprep.subr.mxu0 0.0
    %810 = vmatpush1.xpose.msra.mxu0 0.0
    %811 = vmatprep.subr.mxu0 0.0
    %812 = vmatpush1.xpose.msra.mxu0 0.0
    %813 = vmatprep.subr.mxu0 0.0
    %814 = vmatpush1.xpose.msra.mxu0 0.0
    %815 = vmatprep.subr.mxu0 0.0
    %816 = vmatpush1.xpose.msra.mxu0 0.0
    %817 = vmatprep.subr.mxu0 0.0
    %818 = vmatpush1.xpose.msra.mxu0 0.0
    %819 = vmatprep.subr.mxu0 0.0
    %820 = vmatpush1.xpose.msra.mxu0 0.0
    %821 = vmatprep.subr.mxu0 0.0
    %822 = vmatpush1.xpose.msra.mxu0 0.0
    %823 = vmatprep.subr.mxu0 0.0
    %824 = vmatpush1.xpose.msra.mxu0 0.0
    %825 = vmatprep.subr.mxu0 0.0
    %826 = vmatpush1.xpose.msra.mxu0 0.0
    %827 = vmatprep.subr.mxu0 0.0
    %828 = vmatpush1.xpose.msra.mxu0 0.0
    %829 = vmatprep.subr.mxu0 0.0
    %830 = vmatpush1.xpose.msra.mxu0 0.0
    %831 = vmatprep.subr.mxu0 0.0
    %832 = vmatpush1.xpose.msra.mxu0 0.0
    %833 = vmatprep.subr.mxu0 0.0
    %834 = vmatpush1.xpose.msra.mxu0 0.0
    %835 = vmatprep.subr.mxu0 0.0
    %836 = vmatpush1.xpose.msra.mxu0 0.0
    %837 = vmatprep.subr.mxu0 0.0
    %838 = vmatpush1.xpose.msra.mxu0 0.0
    %839 = vmatprep.mubr.f32.mxu0 0.0
    %840 = vmatmul.mubr.f32.gmra.mrb[0].mxu0 %v633
    %v841 = vpop.f32.mrb[0].mxu0
    %v842 = vadd.f32 0.0, %v841
    %v843 = vpop.f32.mrb[0].mxu0
    %844 = vdwg.mxu0
    %845 = vmatprep.subr.mxu0 0.0
    %846 = vmatpush1.xpose.msra.mxu0 %v460
    %847 = vmatprep.subr.mxu0 0.0
    %848 = vmatpush1.xpose.msra.mxu0 %v466
    %849 = vmatprep.subr.mxu0 0.0
    %850 = vmatpush1.xpose.msra.mxu0 0.0
    %851 = vmatprep.subr.mxu0 0.0
    %852 = vmatpush1.xpose.msra.mxu0 0.0
    %853 = vmatprep.subr.mxu0 0.0
    %854 = vmatpush1.xpose.msra.mxu0 0.0
    %855 = vmatprep.subr.mxu0 0.0
    %856 = vmatpush1.xpose.msra.mxu0 0.0
    %857 = vmatprep.subr.mxu0 0.0
    %858 = vmatpush1.xpose.msra.mxu0 0.0
    %859 = vmatprep.subr.mxu0 0.0
    %860 = vmatpush1.xpose.msra.mxu0 0.0
    %861 = vmatprep.subr.mxu0 0.0
    %862 = vmatpush1.xpose.msra.mxu0 0.0
    %863 = vmatprep.subr.mxu0 0.0
    %864 = vmatpush1.xpose.msra.mxu0 0.0
    %865 = vmatprep.subr.mxu0 0.0
    %866 = vmatpush1.xpose.msra.mxu0 0.0
    %867 = vmatprep.subr.mxu0 0.0
    %868 = vmatpush1.xpose.msra.mxu0 0.0
    %869 = vmatprep.subr.mxu0 0.0
    %870 = vmatpush1.xpose.msra.mxu0 0.0
    %871 = vmatprep.subr.mxu0 0.0
    %872 = vmatpush1.xpose.msra.mxu0 0.0
    %873 = vmatprep.subr.mxu0 0.0
    %874 = vmatpush1.xpose.msra.mxu0 0.0
    %875 = vmatprep.subr.mxu0 0.0
    %876 = vmatpush1.xpose.msra.mxu0 0.0
    %877 = vmatprep.subr.mxu0 0.0
    %878 = vmatpush1.xpose.msra.mxu0 0.0
    %879 = vmatprep.subr.mxu0 0.0
    %880 = vmatpush1.xpose.msra.mxu0 0.0
    %881 = vmatprep.subr.mxu0 0.0
    %882 = vmatpush1.xpose.msra.mxu0 0.0
    %883 = vmatprep.subr.mxu0 0.0
    %884 = vmatpush1.xpose.msra.mxu0 0.0
    %885 = vmatprep.subr.mxu0 0.0
    %886 = vmatpush1.xpose.msra.mxu0 0.0
    %887 = vmatprep.subr.mxu0 0.0
    %888 = vmatpush1.xpose.msra.mxu0 0.0
    %889 = vmatprep.subr.mxu0 0.0
    %890 = vmatpush1.xpose.msra.mxu0 0.0
    %891 = vmatprep.subr.mxu0 0.0
    %892 = vmatpush1.xpose.msra.mxu0 0.0
    %893 = vmatprep.subr.mxu0 0.0
    %894 = vmatpush1.xpose.msra.mxu0 0.0
    %895 = vmatprep.subr.mxu0 0.0
    %896 = vmatpush1.xpose.msra.mxu0 0.0
    %897 = vmatprep.subr.mxu0 0.0
    %898 = vmatpush1.xpose.msra.mxu0 0.0
    %899 = vmatprep.subr.mxu0 0.0
    %900 = vmatpush1.xpose.msra.mxu0 0.0
    %901 = vmatprep.subr.mxu0 0.0
    %902 = vmatpush1.xpose.msra.mxu0 0.0
    %903 = vmatprep.subr.mxu0 0.0
    %904 = vmatpush1.xpose.msra.mxu0 0.0
    %905 = vmatprep.subr.mxu0 0.0
    %906 = vmatpush1.xpose.msra.mxu0 0.0
    %907 = vmatprep.subr.mxu0 0.0
    %908 = vmatpush1.xpose.msra.mxu0 0.0
    %909 = vmatprep.mubr.f32.mxu0 0.0
    %910 = vmatmul.mubr.f32.gmra.mrb[0].mxu0 %v634
    %v911 = vpop.f32.mrb[0].mxu0
    %v912 = vadd.f32 0.0, %v911
    %v913 = vpop.f32.mrb[0].mxu0
    %914 = vdwg.mxu0
    %v915 = vmul.f32 %v702, 0.088388346
    %v916 = vmul.f32 %v772, 0.088388346
    %v917 = vmul.f32 %v842, 0.088388346
    %v918 = vmul.f32 %v912, 0.088388346
    %919 = vmatprep.subr.mxu0 0.0
    %920 = vmatpush1.xpose.msra.mxu0 %v631
    %921 = vmatprep.subr.mxu0 0.0
    %922 = vmatpush1.xpose.msra.mxu0 0.0
    %923 = vmatprep.subr.mxu0 0.0
    %924 = vmatpush1.xpose.msra.mxu0 0.0
    %925 = vmatprep.subr.mxu0 0.0
    %926 = vmatpush1.xpose.msra.mxu0 0.0
    %927 = vmatprep.subr.mxu0 0.0
    %928 = vmatpush1.xpose.msra.mxu0 0.0
    %929 = vmatprep.subr.mxu0 0.0
    %930 = vmatpush1.xpose.msra.mxu0 0.0
    %931 = vmatprep.subr.mxu0 0.0
    %932 = vmatpush1.xpose.msra.mxu0 0.0
    %933 = vmatprep.subr.mxu0 0.0
    %934 = vmatpush1.xpose.msra.mxu0 0.0
    %935 = vmatprep.subr.mxu0 0.0
    %936 = vmatpush1.xpose.msra.mxu0 0.0
    %937 = vmatprep.subr.mxu0 0.0
    %938 = vmatpush1.xpose.msra.mxu0 0.0
    %939 = vmatprep.subr.mxu0 0.0
    %940 = vmatpush1.xpose.msra.mxu0 0.0
    %941 = vmatprep.subr.mxu0 0.0
    %942 = vmatpush1.xpose.msra.mxu0 0.0
    %943 = vmatprep.subr.mxu0 0.0
    %944 = vmatpush1.xpose.msra.mxu0 0.0
    %945 = vmatprep.subr.mxu0 0.0
    %946 = vmatpush1.xpose.msra.mxu0 0.0
    %947 = vmatprep.subr.mxu0 0.0
    %948 = vmatpush1.xpose.msra.mxu0 0.0
    %949 = vmatprep.subr.mxu0 0.0
    %950 = vmatpush1.xpose.msra.mxu0 0.0
    %951 = vmatprep.subr.mxu0 0.0
    %952 = vmatpush1.xpose.msra.mxu0 0.0
    %953 = vmatprep.subr.mxu0 0.0
    %954 = vmatpush1.xpose.msra.mxu0 0.0
    %955 = vmatprep.subr.mxu0 0.0
    %956 = vmatpush1.xpose.msra.mxu0 0.0
    %957 = vmatprep.subr.mxu0 0.0
    %958 = vmatpush1.xpose.msra.mxu0 0.0
    %959 = vmatprep.subr.mxu0 0.0
    %960 = vmatpush1.xpose.msra.mxu0 0.0
    %961 = vmatprep.subr.mxu0 0.0
    %962 = vmatpush1.xpose.msra.mxu0 0.0
    %963 = vmatprep.subr.mxu0 0.0
    %964 = vmatpush1.xpose.msra.mxu0 0.0
    %965 = vmatprep.subr.mxu0 0.0
    %966 = vmatpush1.xpose.msra.mxu0 0.0
    %967 = vmatprep.subr.mxu0 0.0
    %968 = vmatpush1.xpose.msra.mxu0 0.0
    %969 = vmatprep.subr.mxu0 0.0
    %970 = vmatpush1.xpose.msra.mxu0 0.0
    %971 = vmatprep.subr.mxu0 0.0
    %972 = vmatpush1.xpose.msra.mxu0 0.0
    %973 = vmatprep.subr.mxu0 0.0
    %974 = vmatpush1.xpose.msra.mxu0 0.0
    %975 = vmatprep.subr.mxu0 0.0
    %976 = vmatpush1.xpose.msra.mxu0 0.0
    %977 = vmatprep.subr.mxu0 0.0
    %978 = vmatpush1.xpose.msra.mxu0 0.0
    %979 = vmatprep.subr.mxu0 0.0
    %980 = vmatpush1.xpose.msra.mxu0 0.0
    %981 = vmatprep.subr.mxu0 0.0
    %982 = vmatpush1.xpose.msra.mxu0 0.0
    %983 = vmatprep.mubr.f32.mxu0 0.0
    %984 = vmatmul.mubr.f32.gmra.mrb[0].mxu0 %v424
    %v985 = vpop.f32.mrb[0].mxu0
    %v986 = vadd.f32 0.0, %v985
    %v987 = vpop.f32.mrb[0].mxu0
    %988 = vmatprep.mubr.f32.mxu0 0.0
    %989 = vmatmul.mubr.f32.gmra.mrb[0].mxu0 %v430
    %v990 = vpop.f32.mrb[0].mxu0
    %v991 = vadd.f32 0.0, %v990
    %v992 = vpop.f32.mrb[0].mxu0
    %993 = vdwg.mxu0
    %994 = vmatprep.subr.mxu0 0.0
    %995 = vmatpush1.xpose.msra.mxu0 %v632
    %996 = vmatprep.subr.mxu0 0.0
    %997 = vmatpush1.xpose.msra.mxu0 0.0
    %998 = vmatprep.subr.mxu0 0.0
    %999 = vmatpush1.xpose.msra.mxu0 0.0
    %1000 = vmatprep.subr.mxu0 0.0
    %1001 = vmatpush1.xpose.msra.mxu0 0.0
    %1002 = vmatprep.subr.mxu0 0.0
    %1003 = vmatpush1.xpose.msra.mxu0 0.0
    %1004 = vmatprep.subr.mxu0 0.0
    %1005 = vmatpush1.xpose.msra.mxu0 0.0
    %1006 = vmatprep.subr.mxu0 0.0
    %1007 = vmatpush1.xpose.msra.mxu0 0.0
    %1008 = vmatprep.subr.mxu0 0.0
    %1009 = vmatpush1.xpose.msra.mxu0 0.0
    %1010 = vmatprep.subr.mxu0 0.0
    %1011 = vmatpush1.xpose.msra.mxu0 0.0
    %1012 = vmatprep.subr.mxu0 0.0
    %1013 = vmatpush1.xpose.msra.mxu0 0.0
    %1014 = vmatprep.subr.mxu0 0.0
    %1015 = vmatpush1.xpose.msra.mxu0 0.0
    %1016 = vmatprep.subr.mxu0 0.0
    %1017 = vmatpush1.xpose.msra.mxu0 0.0
    %1018 = vmatprep.subr.mxu0 0.0
    %1019 = vmatpush1.xpose.msra.mxu0 0.0
    %1020 = vmatprep.subr.mxu0 0.0
    %1021 = vmatpush1.xpose.msra.mxu0 0.0
    %1022 = vmatprep.subr.mxu0 0.0
    %1023 = vmatpush1.xpose.msra.mxu0 0.0
    %1024 = vmatprep.subr.mxu0 0.0
    %1025 = vmatpush1.xpose.msra.mxu0 0.0
    %1026 = vmatprep.subr.mxu0 0.0
    %1027 = vmatpush1.xpose.msra.mxu0 0.0
    %1028 = vmatprep.subr.mxu0 0.0
    %1029 = vmatpush1.xpose.msra.mxu0 0.0
    %1030 = vmatprep.subr.mxu0 0.0
    %1031 = vmatpush1.xpose.msra.mxu0 0.0
    %1032 = vmatprep.subr.mxu0 0.0
    %1033 = vmatpush1.xpose.msra.mxu0 0.0
    %1034 = vmatprep.subr.mxu0 0.0
    %1035 = vmatpush1.xpose.msra.mxu0 0.0
    %1036 = vmatprep.subr.mxu0 0.0
    %1037 = vmatpush1.xpose.msra.mxu0 0.0
    %1038 = vmatprep.subr.mxu0 0.0
    %1039 = vmatpush1.xpose.msra.mxu0 0.0
    %1040 = vmatprep.subr.mxu0 0.0
    %1041 = vmatpush1.xpose.msra.mxu0 0.0
    %1042 = vmatprep.subr.mxu0 0.0
    %1043 = vmatpush1.xpose.msra.mxu0 0.0
    %1044 = vmatprep.subr.mxu0 0.0
    %1045 = vmatpush1.xpose.msra.mxu0 0.0
    %1046 = vmatprep.subr.mxu0 0.0
    %1047 = vmatpush1.xpose.msra.mxu0 0.0
    %1048 = vmatprep.subr.mxu0 0.0
    %1049 = vmatpush1.xpose.msra.mxu0 0.0
    %1050 = vmatprep.subr.mxu0 0.0
    %1051 = vmatpush1.xpose.msra.mxu0 0.0
    %1052 = vmatprep.subr.mxu0 0.0
    %1053 = vmatpush1.xpose.msra.mxu0 0.0
    %1054 = vmatprep.subr.mxu0 0.0
    %1055 = vmatpush1.xpose.msra.mxu0 0.0
    %1056 = vmatprep.subr.mxu0 0.0
    %1057 = vmatpush1.xpose.msra.mxu0 0.0
    %1058 = vmatprep.mubr.f32.mxu0 0.0
    %1059 = vmatmul.mubr.f32.gmra.mrb[0].mxu0 %v436
    %v1060 = vpop.f32.mrb[0].mxu0
    %v1061 = vadd.f32 0.0, %v1060
    %v1062 = vpop.f32.mrb[0].mxu0
    %1063 = vmatprep.mubr.f32.mxu0 0.0
    %1064 = vmatmul.mubr.f32.gmra.mrb[0].mxu0 %v442
    %v1065 = vpop.f32.mrb[0].mxu0
    %v1066 = vadd.f32 0.0, %v1065
    %v1067 = vpop.f32.mrb[0].mxu0
    %1068 = vdwg.mxu0
    %1069 = vmatprep.subr.mxu0 0.0
    %1070 = vmatpush1.xpose.msra.mxu0 %v633
    %1071 = vmatprep.subr.mxu0 0.0
    %1072 = vmatpush1.xpose.msra.mxu0 0.0
    %1073 = vmatprep.subr.mxu0 0.0
    %1074 = vmatpush1.xpose.msra.mxu0 0.0
    %1075 = vmatprep.subr.mxu0 0.0
    %1076 = vmatpush1.xpose.msra.mxu0 0.0
    %1077 = vmatprep.subr.mxu0 0.0
    %1078 = vmatpush1.xpose.msra.mxu0 0.0
    %1079 = vmatprep.subr.mxu0 0.0
    %1080 = vmatpush1.xpose.msra.mxu0 0.0
    %1081 = vmatprep.subr.mxu0 0.0
    %1082 = vmatpush1.xpose.msra.mxu0 0.0
    %1083 = vmatprep.subr.mxu0 0.0
    %1084 = vmatpush1.xpose.msra.mxu0 0.0
    %1085 = vmatprep.subr.mxu0 0.0
    %1086 = vmatpush1.xpose.msra.mxu0 0.0
    %1087 = vmatprep.subr.mxu0 0.0
    %1088 = vmatpush1.xpose.msra.mxu0 0.0
    %1089 = vmatprep.subr.mxu0 0.0
    %1090 = vmatpush1.xpose.msra.mxu0 0.0
    %1091 = vmatprep.subr.mxu0 0.0
    %1092 = vmatpush1.xpose.msra.mxu0 0.0
    %1093 = vmatprep.subr.mxu0 0.0
    %1094 = vmatpush1.xpose.msra.mxu0 0.0
    %1095 = vmatprep.subr.mxu0 0.0
    %1096 = vmatpush1.xpose.msra.mxu0 0.0
    %1097 = vmatprep.subr.mxu0 0.0
    %1098 = vmatpush1.xpose.msra.mxu0 0.0
    %1099 = vmatprep.subr.mxu0 0.0
    %1100 = vmatpush1.xpose.msra.mxu0 0.0
    %1101 = vmatprep.subr.mxu0 0.0
    %1102 = vmatpush1.xpose.msra.mxu0 0.0
    %1103 = vmatprep.subr.mxu0 0.0
    %1104 = vmatpush1.xpose.msra.mxu0 0.0
    %1105 = vmatprep.subr.mxu0 0.0
    %1106 = vmatpush1.xpose.msra.mxu0 0.0
    %1107 = vmatprep.subr.mxu0 0.0
    %1108 = vmatpush1.xpose.msra.mxu0 0.0
    %1109 = vmatprep.subr.mxu0 0.0
    %1110 = vmatpush1.xpose.msra.mxu0 0.0
    %1111 = vmatprep.subr.mxu0 0.0
    %1112 = vmatpush1.xpose.msra.mxu0 0.0
    %1113 = vmatprep.subr.mxu0 0.0
    %1114 = vmatpush1.xpose.msra.mxu0 0.0
    %1115 = vmatprep.subr.mxu0 0.0
    %1116 = vmatpush1.xpose.msra.mxu0 0.0
    %1117 = vmatprep.subr.mxu0 0.0
    %1118 = vmatpush1.xpose.msra.mxu0 0.0
    %1119 = vmatprep.subr.mxu0 0.0
    %1120 = vmatpush1.xpose.msra.mxu0 0.0
    %1121 = vmatprep.subr.mxu0 0.0
    %1122 = vmatpush1.xpose.msra.mxu0 0.0
    %1123 = vmatprep.subr.mxu0 0.0
    %1124 = vmatpush1.xpose.msra.mxu0 0.0
    %1125 = vmatprep.subr.mxu0 0.0
    %1126 = vmatpush1.xpose.msra.mxu0 0.0
    %1127 = vmatprep.subr.mxu0 0.0
    %1128 = vmatpush1.xpose.msra.mxu0 0.0
    %1129 = vmatprep.subr.mxu0 0.0
    %1130 = vmatpush1.xpose.msra.mxu0 0.0
    %1131 = vmatprep.subr.mxu0 0.0
    %1132 = vmatpush1.xpose.msra.mxu0 0.0
    %1133 = vmatprep.mubr.f32.mxu0 0.0
    %1134 = vmatmul.mubr.f32.gmra.mrb[0].mxu0 %v448
    %v1135 = vpop.f32.mrb[0].mxu0
    %v1136 = vadd.f32 0.0, %v1135
    %v1137 = vpop.f32.mrb[0].mxu0
    %1138 = vmatprep.mubr.f32.mxu0 0.0
    %1139 = vmatmul.mubr.f32.gmra.mrb[0].mxu0 %v454
    %v1140 = vpop.f32.mrb[0].mxu0
    %v1141 = vadd.f32 0.0, %v1140
    %v1142 = vpop.f32.mrb[0].mxu0
    %1143 = vdwg.mxu0
    %1144 = vmatprep.subr.mxu0 0.0
    %1145 = vmatpush1.xpose.msra.mxu0 %v634
    %1146 = vmatprep.subr.mxu0 0.0
    %1147 = vmatpush1.xpose.msra.mxu0 0.0
    %1148 = vmatprep.subr.mxu0 0.0
    %1149 = vmatpush1.xpose.msra.mxu0 0.0
    %1150 = vmatprep.subr.mxu0 0.0
    %1151 = vmatpush1.xpose.msra.mxu0 0.0
    %1152 = vmatprep.subr.mxu0 0.0
    %1153 = vmatpush1.xpose.msra.mxu0 0.0
    %1154 = vmatprep.subr.mxu0 0.0
    %1155 = vmatpush1.xpose.msra.mxu0 0.0
    %1156 = vmatprep.subr.mxu0 0.0
    %1157 = vmatpush1.xpose.msra.mxu0 0.0
    %1158 = vmatprep.subr.mxu0 0.0
    %1159 = vmatpush1.xpose.msra.mxu0 0.0
    %1160 = vmatprep.subr.mxu0 0.0
    %1161 = vmatpush1.xpose.msra.mxu0 0.0
    %1162 = vmatprep.subr.mxu0 0.0
    %1163 = vmatpush1.xpose.msra.mxu0 0.0
    %1164 = vmatprep.subr.mxu0 0.0
    %1165 = vmatpush1.xpose.msra.mxu0 0.0
    %1166 = vmatprep.subr.mxu0 0.0
    %1167 = vmatpush1.xpose.msra.mxu0 0.0
    %1168 = vmatprep.subr.mxu0 0.0
    %1169 = vmatpush1.xpose.msra.mxu0 0.0
    %1170 = vmatprep.subr.mxu0 0.0
    %1171 = vmatpush1.xpose.msra.mxu0 0.0
    %1172 = vmatprep.subr.mxu0 0.0
    %1173 = vmatpush1.xpose.msra.mxu0 0.0
    %1174 = vmatprep.subr.mxu0 0.0
    %1175 = vmatpush1.xpose.msra.mxu0 0.0
    %1176 = vmatprep.subr.mxu0 0.0
    %1177 = vmatpush1.xpose.msra.mxu0 0.0
    %1178 = vmatprep.subr.mxu0 0.0
    %1179 = vmatpush1.xpose.msra.mxu0 0.0
    %1180 = vmatprep.subr.mxu0 0.0
    %1181 = vmatpush1.xpose.msra.mxu0 0.0
    %1182 = vmatprep.subr.mxu0 0.0
    %1183 = vmatpush1.xpose.msra.mxu0 0.0
    %1184 = vmatprep.subr.mxu0 0.0
    %1185 = vmatpush1.xpose.msra.mxu0 0.0
    %1186 = vmatprep.subr.mxu0 0.0
    %1187 = vmatpush1.xpose.msra.mxu0 0.0
    %1188 = vmatprep.subr.mxu0 0.0
    %1189 = vmatpush1.xpose.msra.mxu0 0.0
    %1190 = vmatprep.subr.mxu0 0.0
    %1191 = vmatpush1.xpose.msra.mxu0 0.0
    %1192 = vmatprep.subr.mxu0 0.0
    %1193 = vmatpush1.xpose.msra.mxu0 0.0
    %1194 = vmatprep.subr.mxu0 0.0
    %1195 = vmatpush1.xpose.msra.mxu0 0.0
    %1196 = vmatprep.subr.mxu0 0.0
    %1197 = vmatpush1.xpose.msra.mxu0 0.0
    %1198 = vmatprep.subr.mxu0 0.0
    %1199 = vmatpush1.xpose.msra.mxu0 0.0
    %1200 = vmatprep.subr.mxu0 0.0
    %1201 = vmatpush1.xpose.msra.mxu0 0.0
    %1202 = vmatprep.subr.mxu0 0.0
    %1203 = vmatpush1.xpose.msra.mxu0 0.0
    %1204 = vmatprep.subr.mxu0 0.0
    %1205 = vmatpush1.xpose.msra.mxu0 0.0
    %1206 = vmatprep.subr.mxu0 0.0
    %1207 = vmatpush1.xpose.msra.mxu0 0.0
    %1208 = vmatprep.mubr.f32.mxu0 0.0
    %1209 = vmatmul.mubr.f32.gmra.mrb[0].mxu0 %v460
    %v1210 = vpop.f32.mrb[0].mxu0
    %v1211 = vadd.f32 0.0, %v1210
    %v1212 = vpop.f32.mrb[0].mxu0
    %1213 = vmatprep.mubr.f32.mxu0 0.0
    %1214 = vmatmul.mubr.f32.gmra.mrb[0].mxu0 %v466
    %v1215 = vpop.f32.mrb[0].mxu0
    %v1216 = vadd.f32 0.0, %v1215
    %v1217 = vpop.f32.mrb[0].mxu0
    %1218 = vdwg.mxu0
    %v1219 = vmul.f32 %v986, 0.088388346
    %v1220 = vmul.f32 %v991, 0.088388346
    %v1221 = vmul.f32 %v1061, 0.088388346
    %v1222 = vmul.f32 %v1066, 0.088388346
    %v1223 = vmul.f32 %v1136, 0.088388346
    %v1224 = vmul.f32 %v1141, 0.088388346
    %v1225 = vmul.f32 %v1211, 0.088388346
    %v1226 = vmul.f32 %v1216, 0.088388346
    %v1227 = vld [vmem:[%s3] sm:$0x1]
    %v1228 = vld [vmem:[%s3 + $0x1] sm:$0x1]
    %v1229 = vld [vmem:[%s3 + $0x2] sm:$0x1]
    %v1230 = vld [vmem:[%s3 + $0x3] sm:$0x1]
    %vm1231 = vcmp.ne.f32.partialorder %v1227, 0.0
    %vm1232 = vcmp.ne.f32.partialorder %v1228, 0.0
    %vm1233 = vcmp.ne.f32.partialorder %v1229, 0.0
    %vm1234 = vcmp.ne.f32.partialorder %v1230, 0.0
    %v1235 = vsel %vm1231, 1, 0
    %v1236 = vsel %vm1232, 1, 0
    %v1237 = vsel %vm1233, 1, 0
    %v1238 = vsel %vm1234, 1, 0
    %v1239 = vcvt.s32.f32 %v1235
    %v1240 = vcvt.s32.f32 %v1236
    %v1241 = vcvt.s32.f32 %v1237
    %v1242 = vcvt.s32.f32 %v1238
    %v1243 = vmax.f32 %v915, 0.0
    %v1244 = vmax.f32 %v916, 0.0
    %v1245 = vmax.f32 %v917, 0.0
    %v1246 = vmax.f32 %v918, 0.0
    %v1251 = vlaneseq
    %v1252 = vshrl.u32 %v1251, 7
    %v1253 = vsub.s32 0, %v1252
    %v1254 = vrot.slane %v1239, %v1253
    %v1255 = vlaneseq
    %v1256 = vshrl.u32 %v1255, 7
    %v1257 = vsub.s32 0, %v1256
    %v1258 = vrot.slane %v1240, %v1257
    %v1259 = vlaneseq
    %v1260 = vshrl.u32 %v1259, 7
    %v1261 = vsub.s32 0, %v1260
    %v1262 = vrot.slane %v1241, %v1261
    %v1263 = vlaneseq
    %v1264 = vshrl.u32 %v1263, 7
    %v1265 = vsub.s32 0, %v1264
    %v1266 = vrot.slane %v1242, %v1265
    %v1271 = vmul.f32 %v1243, %v1254
    %v1272 = vmul.f32 %v1244, %v1258
    %v1273 = vmul.f32 %v1245, %v1262
    %v1274 = vmul.f32 %v1246, %v1266
    %v1275 = vsub.f32 0.0, %v915
    %v1276 = vsub.f32 0.0, %v916
    %v1277 = vsub.f32 0.0, %v917
    %v1278 = vsub.f32 0.0, %v918
    %v1279 = vmax.f32 %v1275, 0.0
    %v1280 = vmax.f32 %v1276, 0.0
    %v1281 = vmax.f32 %v1277, 0.0
    %v1282 = vmax.f32 %v1278, 0.0
    %v1283 = vmul.f32 %v1279, %v1254
    %v1284 = vmul.f32 %v1280, %v1258
    %v1285 = vmul.f32 %v1281, %v1262
    %v1286 = vmul.f32 %v1282, %v1266
    %vm1287 = vcmask 130048
    %v1288 = vsel %vm1287, %v1271, 0.0
    %1289 = vadd.xlane.f32.xlu0 %v1288
    %v1290 = vpop.xlane.xlu0 %1289
    %v1291 = vsel %vm1287, %v1272, 0.0
    %1292 = vadd.xlane.f32.xlu0 %v1291
    %v1293 = vpop.xlane.xlu0 %1292
    %v1294 = vsel %vm1287, %v1273, 0.0
    %1295 = vadd.xlane.f32.xlu0 %v1294
    %v1296 = vpop.xlane.xlu0 %1295
    %v1297 = vsel %vm1287, %v1274, 0.0
    %1298 = vadd.xlane.f32.xlu0 %v1297
    %v1299 = vpop.xlane.xlu0 %1298
    %v1300 = vadd.f32 %v1290, 0.0001
    %v1301 = vadd.f32 %v1293, 0.0001
    %v1302 = vadd.f32 %v1296, 0.0001
    %v1303 = vadd.f32 %v1299, 0.0001
    %v1304 = vrcp.pop %v1300
    %v1305 = vrcp.pop %v1301
    %v1306 = vrcp.pop %v1302
    %v1307 = vrcp.pop %v1303
    %v1308 = vmul.f32 %v1300, %v1304
    %v1309 = vmul.f32 %v1301, %v1305
    %v1310 = vmul.f32 %v1302, %v1306
    %v1311 = vmul.f32 %v1303, %v1307
    %v1312 = vsub.f32 2.0, %v1308
    %v1313 = vsub.f32 2.0, %v1309
    %v1314 = vsub.f32 2.0, %v1310
    %v1315 = vsub.f32 2.0, %v1311
    %v1316 = vmul.f32 %v1304, %v1312
    %v1317 = vmul.f32 %v1305, %v1313
    %v1318 = vmul.f32 %v1306, %v1314
    %v1319 = vmul.f32 %v1307, %v1315
    %v1320 = vmul.f32 %v1271, %v1316
    %v1321 = vmul.f32 %v1272, %v1317
    %v1322 = vmul.f32 %v1273, %v1318
    %v1323 = vmul.f32 %v1274, %v1319
    %v1324 = vsel %vm1287, %v1283, 0.0
    %1325 = vadd.xlane.f32.xlu0 %v1324
    %v1326 = vpop.xlane.xlu0 %1325
    %v1327 = vsel %vm1287, %v1284, 0.0
    %1328 = vadd.xlane.f32.xlu0 %v1327
    %v1329 = vpop.xlane.xlu0 %1328
    %v1330 = vsel %vm1287, %v1285, 0.0
    %1331 = vadd.xlane.f32.xlu0 %v1330
    %v1332 = vpop.xlane.xlu0 %1331
    %v1333 = vsel %vm1287, %v1286, 0.0
    %1334 = vadd.xlane.f32.xlu0 %v1333
    %v1335 = vpop.xlane.xlu0 %1334
    %v1336 = vadd.f32 %v1326, 0.0001
    %v1337 = vadd.f32 %v1329, 0.0001
    %v1338 = vadd.f32 %v1332, 0.0001
    %v1339 = vadd.f32 %v1335, 0.0001
    %v1340 = vrcp.pop %v1336
    %v1341 = vrcp.pop %v1337
    %v1342 = vrcp.pop %v1338
    %v1343 = vrcp.pop %v1339
    %v1344 = vmul.f32 %v1336, %v1340
    %v1345 = vmul.f32 %v1337, %v1341
    %v1346 = vmul.f32 %v1338, %v1342
    %v1347 = vmul.f32 %v1339, %v1343
    %v1348 = vsub.f32 2.0, %v1344
    %v1349 = vsub.f32 2.0, %v1345
    %v1350 = vsub.f32 2.0, %v1346
    %v1351 = vsub.f32 2.0, %v1347
    %v1352 = vmul.f32 %v1340, %v1348
    %v1353 = vmul.f32 %v1341, %v1349
    %v1354 = vmul.f32 %v1342, %v1350
    %v1355 = vmul.f32 %v1343, %v1351
    %v1356 = vmul.f32 %v1283, %v1352
    %v1357 = vmul.f32 %v1284, %v1353
    %v1358 = vmul.f32 %v1285, %v1354
    %v1359 = vmul.f32 %v1286, %v1355
    %v1360 = vld [vmem:[#allocation7] sm:$0xff]
    %v1361 = vld [vmem:[#allocation7 + $0x8] sm:$0xff]
    %v1362 = vld [vmem:[#allocation7 + $0x10] sm:$0xff]
    %v1363 = vld [vmem:[#allocation7 + $0x18] sm:$0xff]
    %v1365 = vsel %vm1287, %v1320, 0
    %1367 = vmatprep.subr.mxu0 0.0
    %1368 = vmatpush1.msra.mxu0 %v426
    %1369 = vmatprep.subr.mxu0 0.0
    %1370 = vmatpush1.msra.mxu0 %v432
    %1371 = vmatprep.subr.mxu0 0.0
    %1372 = vmatpush1.msra.mxu0 0.0
    %1373 = vmatprep.subr.mxu0 0.0
    %1374 = vmatpush1.msra.mxu0 0.0
    %1375 = vmatprep.subr.mxu0 0.0
    %1376 = vmatpush1.msra.mxu0 0.0
    %1377 = vmatprep.subr.mxu0 0.0
    %1378 = vmatpush1.msra.mxu0 0.0
    %1379 = vmatprep.subr.mxu0 0.0
    %1380 = vmatpush1.msra.mxu0 0.0
    %1381 = vmatprep.subr.mxu0 0.0
    %1382 = vmatpush1.msra.mxu0 0.0
    %1383 = vmatprep.subr.mxu0 0.0
    %1384 = vmatpush1.msra.mxu0 0.0
    %1385 = vmatprep.subr.mxu0 0.0
    %1386 = vmatpush1.msra.mxu0 0.0
    %1387 = vmatprep.subr.mxu0 0.0
    %1388 = vmatpush1.msra.mxu0 0.0
    %1389 = vmatprep.subr.mxu0 0.0
    %1390 = vmatpush1.msra.mxu0 0.0
    %1391 = vmatprep.subr.mxu0 0.0
    %1392 = vmatpush1.msra.mxu0 0.0
    %1393 = vmatprep.subr.mxu0 0.0
    %1394 = vmatpush1.msra.mxu0 0.0
    %1395 = vmatprep.subr.mxu0 0.0
    %1396 = vmatpush1.msra.mxu0 0.0
    %1397 = vmatprep.subr.mxu0 0.0
    %1398 = vmatpush1.msra.mxu0 0.0
    %1399 = vmatprep.subr.mxu0 0.0
    %1400 = vmatpush1.msra.mxu0 0.0
    %1401 = vmatprep.subr.mxu0 0.0
    %1402 = vmatpush1.msra.mxu0 0.0
    %1403 = vmatprep.subr.mxu0 0.0
    %1404 = vmatpush1.msra.mxu0 0.0
    %1405 = vmatprep.subr.mxu0 0.0
    %1406 = vmatpush1.msra.mxu0 0.0
    %1407 = vmatprep.subr.mxu0 0.0
    %1408 = vmatpush1.msra.mxu0 0.0
    %1409 = vmatprep.subr.mxu0 0.0
    %1410 = vmatpush1.msra.mxu0 0.0
    %1411 = vmatprep.subr.mxu0 0.0
    %1412 = vmatpush1.msra.mxu0 0.0
    %1413 = vmatprep.subr.mxu0 0.0
    %1414 = vmatpush1.msra.mxu0 0.0
    %1415 = vmatprep.subr.mxu0 0.0
    %1416 = vmatpush1.msra.mxu0 0.0
    %1417 = vmatprep.subr.mxu0 0.0
    %1418 = vmatpush1.msra.mxu0 0.0
    %1419 = vmatprep.subr.mxu0 0.0
    %1420 = vmatpush1.msra.mxu0 0.0
    %1421 = vmatprep.subr.mxu0 0.0
    %1422 = vmatpush1.msra.mxu0 0.0
    %1423 = vmatprep.subr.mxu0 0.0
    %1424 = vmatpush1.msra.mxu0 0.0
    %1425 = vmatprep.subr.mxu0 0.0
    %1426 = vmatpush1.msra.mxu0 0.0
    %1427 = vmatprep.subr.mxu0 0.0
    %1428 = vmatpush1.msra.mxu0 0.0
    %1429 = vmatprep.subr.mxu0 0.0
    %1430 = vmatpush1.msra.mxu0 0.0
    %1431 = vmatprep.mubr.f32.mxu0 0.0
    %1432 = vmatmul.mubr.f32.gmra.mrb[0].mxu0 %v1365
    %v1433 = vpop.f32.mrb[0].mxu0
    %v1434 = vadd.f32 %v1360, %v1433
    %v1435 = vpop.f32.mrb[0].mxu0
    %1436 = vdwg.mxu0
    %v1438 = vsel %vm1287, %v1321, 0
    %1440 = vmatprep.subr.mxu0 0.0
    %1441 = vmatpush1.msra.mxu0 %v438
    %1442 = vmatprep.subr.mxu0 0.0
    %1443 = vmatpush1.msra.mxu0 %v444
    %1444 = vmatprep.subr.mxu0 0.0
    %1445 = vmatpush1.msra.mxu0 0.0
    %1446 = vmatprep.subr.mxu0 0.0
    %1447 = vmatpush1.msra.mxu0 0.0
    %1448 = vmatprep.subr.mxu0 0.0
    %1449 = vmatpush1.msra.mxu0 0.0
    %1450 = vmatprep.subr.mxu0 0.0
    %1451 = vmatpush1.msra.mxu0 0.0
    %1452 = vmatprep.subr.mxu0 0.0
    %1453 = vmatpush1.msra.mxu0 0.0
    %1454 = vmatprep.subr.mxu0 0.0
    %1455 = vmatpush1.msra.mxu0 0.0
    %1456 = vmatprep.subr.mxu0 0.0
    %1457 = vmatpush1.msra.mxu0 0.0
    %1458 = vmatprep.subr.mxu0 0.0
    %1459 = vmatpush1.msra.mxu0 0.0
    %1460 = vmatprep.subr.mxu0 0.0
    %1461 = vmatpush1.msra.mxu0 0.0
    %1462 = vmatprep.subr.mxu0 0.0
    %1463 = vmatpush1.msra.mxu0 0.0
    %1464 = vmatprep.subr.mxu0 0.0
    %1465 = vmatpush1.msra.mxu0 0.0
    %1466 = vmatprep.subr.mxu0 0.0
    %1467 = vmatpush1.msra.mxu0 0.0
    %1468 = vmatprep.subr.mxu0 0.0
    %1469 = vmatpush1.msra.mxu0 0.0
    %1470 = vmatprep.subr.mxu0 0.0
    %1471 = vmatpush1.msra.mxu0 0.0
    %1472 = vmatprep.subr.mxu0 0.0
    %1473 = vmatpush1.msra.mxu0 0.0
    %1474 = vmatprep.subr.mxu0 0.0
    %1475 = vmatpush1.msra.mxu0 0.0
    %1476 = vmatprep.subr.mxu0 0.0
    %1477 = vmatpush1.msra.mxu0 0.0
    %1478 = vmatprep.subr.mxu0 0.0
    %1479 = vmatpush1.msra.mxu0 0.0
    %1480 = vmatprep.subr.mxu0 0.0
    %1481 = vmatpush1.msra.mxu0 0.0
    %1482 = vmatprep.subr.mxu0 0.0
    %1483 = vmatpush1.msra.mxu0 0.0
    %1484 = vmatprep.subr.mxu0 0.0
    %1485 = vmatpush1.msra.mxu0 0.0
    %1486 = vmatprep.subr.mxu0 0.0
    %1487 = vmatpush1.msra.mxu0 0.0
    %1488 = vmatprep.subr.mxu0 0.0
    %1489 = vmatpush1.msra.mxu0 0.0
    %1490 = vmatprep.subr.mxu0 0.0
    %1491 = vmatpush1.msra.mxu0 0.0
    %1492 = vmatprep.subr.mxu0 0.0
    %1493 = vmatpush1.msra.mxu0 0.0
    %1494 = vmatprep.subr.mxu0 0.0
    %1495 = vmatpush1.msra.mxu0 0.0
    %1496 = vmatprep.subr.mxu0 0.0
    %1497 = vmatpush1.msra.mxu0 0.0
    %1498 = vmatprep.subr.mxu0 0.0
    %1499 = vmatpush1.msra.mxu0 0.0
    %1500 = vmatprep.subr.mxu0 0.0
    %1501 = vmatpush1.msra.mxu0 0.0
    %1502 = vmatprep.subr.mxu0 0.0
    %1503 = vmatpush1.msra.mxu0 0.0
    %1504 = vmatprep.mubr.f32.mxu0 0.0
    %1505 = vmatmul.mubr.f32.gmra.mrb[0].mxu0 %v1438
    %v1506 = vpop.f32.mrb[0].mxu0
    %v1507 = vadd.f32 %v1361, %v1506
    %v1508 = vpop.f32.mrb[0].mxu0
    %1509 = vdwg.mxu0
    %v1511 = vsel %vm1287, %v1322, 0
    %1513 = vmatprep.subr.mxu0 0.0
    %1514 = vmatpush1.msra.mxu0 %v450
    %1515 = vmatprep.subr.mxu0 0.0
    %1516 = vmatpush1.msra.mxu0 %v456
    %1517 = vmatprep.subr.mxu0 0.0
    %1518 = vmatpush1.msra.mxu0 0.0
    %1519 = vmatprep.subr.mxu0 0.0
    %1520 = vmatpush1.msra.mxu0 0.0
    %1521 = vmatprep.subr.mxu0 0.0
    %1522 = vmatpush1.msra.mxu0 0.0
    %1523 = vmatprep.subr.mxu0 0.0
    %1524 = vmatpush1.msra.mxu0 0.0
    %1525 = vmatprep.subr.mxu0 0.0
    %1526 = vmatpush1.msra.mxu0 0.0
    %1527 = vmatprep.subr.mxu0 0.0
    %1528 = vmatpush1.msra.mxu0 0.0
    %1529 = vmatprep.subr.mxu0 0.0
    %1530 = vmatpush1.msra.mxu0 0.0
    %1531 = vmatprep.subr.mxu0 0.0
    %1532 = vmatpush1.msra.mxu0 0.0
    %1533 = vmatprep.subr.mxu0 0.0
    %1534 = vmatpush1.msra.mxu0 0.0
    %1535 = vmatprep.subr.mxu0 0.0
    %1536 = vmatpush1.msra.mxu0 0.0
    %1537 = vmatprep.subr.mxu0 0.0
    %1538 = vmatpush1.msra.mxu0 0.0
    %1539 = vmatprep.subr.mxu0 0.0
    %1540 = vmatpush1.msra.mxu0 0.0
    %1541 = vmatprep.subr.mxu0 0.0
    %1542 = vmatpush1.msra.mxu0 0.0
    %1543 = vmatprep.subr.mxu0 0.0
    %1544 = vmatpush1.msra.mxu0 0.0
    %1545 = vmatprep.subr.mxu0 0.0
    %1546 = vmatpush1.msra.mxu0 0.0
    %1547 = vmatprep.subr.mxu0 0.0
    %1548 = vmatpush1.msra.mxu0 0.0
    %1549 = vmatprep.subr.mxu0 0.0
    %1550 = vmatpush1.msra.mxu0 0.0
    %1551 = vmatprep.subr.mxu0 0.0
    %1552 = vmatpush1.msra.mxu0 0.0
    %1553 = vmatprep.subr.mxu0 0.0
    %1554 = vmatpush1.msra.mxu0 0.0
    %1555 = vmatprep.subr.mxu0 0.0
    %1556 = vmatpush1.msra.mxu0 0.0
    %1557 = vmatprep.subr.mxu0 0.0
    %1558 = vmatpush1.msra.mxu0 0.0
    %1559 = vmatprep.subr.mxu0 0.0
    %1560 = vmatpush1.msra.mxu0 0.0
    %1561 = vmatprep.subr.mxu0 0.0
    %1562 = vmatpush1.msra.mxu0 0.0
    %1563 = vmatprep.subr.mxu0 0.0
    %1564 = vmatpush1.msra.mxu0 0.0
    %1565 = vmatprep.subr.mxu0 0.0
    %1566 = vmatpush1.msra.mxu0 0.0
    %1567 = vmatprep.subr.mxu0 0.0
    %1568 = vmatpush1.msra.mxu0 0.0
    %1569 = vmatprep.subr.mxu0 0.0
    %1570 = vmatpush1.msra.mxu0 0.0
    %1571 = vmatprep.subr.mxu0 0.0
    %1572 = vmatpush1.msra.mxu0 0.0
    %1573 = vmatprep.subr.mxu0 0.0
    %1574 = vmatpush1.msra.mxu0 0.0
    %1575 = vmatprep.subr.mxu0 0.0
    %1576 = vmatpush1.msra.mxu0 0.0
    %1577 = vmatprep.mubr.f32.mxu0 0.0
    %1578 = vmatmul.mubr.f32.gmra.mrb[0].mxu0 %v1511
    %v1579 = vpop.f32.mrb[0].mxu0
    %v1580 = vadd.f32 %v1362, %v1579
    %v1581 = vpop.f32.mrb[0].mxu0
    %1582 = vdwg.mxu0
    %v1584 = vsel %vm1287, %v1323, 0
    %1586 = vmatprep.subr.mxu0 0.0
    %1587 = vmatpush1.msra.mxu0 %v462
    %1588 = vmatprep.subr.mxu0 0.0
    %1589 = vmatpush1.msra.mxu0 %v468
    %1590 = vmatprep.subr.mxu0 0.0
    %1591 = vmatpush1.msra.mxu0 0.0
    %1592 = vmatprep.subr.mxu0 0.0
    %1593 = vmatpush1.msra.mxu0 0.0
    %1594 = vmatprep.subr.mxu0 0.0
    %1595 = vmatpush1.msra.mxu0 0.0
    %1596 = vmatprep.subr.mxu0 0.0
    %1597 = vmatpush1.msra.mxu0 0.0
    %1598 = vmatprep.subr.mxu0 0.0
    %1599 = vmatpush1.msra.mxu0 0.0
    %1600 = vmatprep.subr.mxu0 0.0
    %1601 = vmatpush1.msra.mxu0 0.0
    %1602 = vmatprep.subr.mxu0 0.0
    %1603 = vmatpush1.msra.mxu0 0.0
    %1604 = vmatprep.subr.mxu0 0.0
    %1605 = vmatpush1.msra.mxu0 0.0
    %1606 = vmatprep.subr.mxu0 0.0
    %1607 = vmatpush1.msra.mxu0 0.0
    %1608 = vmatprep.subr.mxu0 0.0
    %1609 = vmatpush1.msra.mxu0 0.0
    %1610 = vmatprep.subr.mxu0 0.0
    %1611 = vmatpush1.msra.mxu0 0.0
    %1612 = vmatprep.subr.mxu0 0.0
    %1613 = vmatpush1.msra.mxu0 0.0
    %1614 = vmatprep.subr.mxu0 0.0
    %1615 = vmatpush1.msra.mxu0 0.0
    %1616 = vmatprep.subr.mxu0 0.0
    %1617 = vmatpush1.msra.mxu0 0.0
    %1618 = vmatprep.subr.mxu0 0.0
    %1619 = vmatpush1.msra.mxu0 0.0
    %1620 = vmatprep.subr.mxu0 0.0
    %1621 = vmatpush1.msra.mxu0 0.0
    %1622 = vmatprep.subr.mxu0 0.0
    %1623 = vmatpush1.msra.mxu0 0.0
    %1624 = vmatprep.subr.mxu0 0.0
    %1625 = vmatpush1.msra.mxu0 0.0
    %1626 = vmatprep.subr.mxu0 0.0
    %1627 = vmatpush1.msra.mxu0 0.0
    %1628 = vmatprep.subr.mxu0 0.0
    %1629 = vmatpush1.msra.mxu0 0.0
    %1630 = vmatprep.subr.mxu0 0.0
    %1631 = vmatpush1.msra.mxu0 0.0
    %1632 = vmatprep.subr.mxu0 0.0
    %1633 = vmatpush1.msra.mxu0 0.0
    %1634 = vmatprep.subr.mxu0 0.0
    %1635 = vmatpush1.msra.mxu0 0.0
    %1636 = vmatprep.subr.mxu0 0.0
    %1637 = vmatpush1.msra.mxu0 0.0
    %1638 = vmatprep.subr.mxu0 0.0
    %1639 = vmatpush1.msra.mxu0 0.0
    %1640 = vmatprep.subr.mxu0 0.0
    %1641 = vmatpush1.msra.mxu0 0.0
    %1642 = vmatprep.subr.mxu0 0.0
    %1643 = vmatpush1.msra.mxu0 0.0
    %1644 = vmatprep.subr.mxu0 0.0
    %1645 = vmatpush1.msra.mxu0 0.0
    %1646 = vmatprep.subr.mxu0 0.0
    %1647 = vmatpush1.msra.mxu0 0.0
    %1648 = vmatprep.subr.mxu0 0.0
    %1649 = vmatpush1.msra.mxu0 0.0
    %1650 = vmatprep.mubr.f32.mxu0 0.0
    %1651 = vmatmul.mubr.f32.gmra.mrb[0].mxu0 %v1584
    %v1652 = vpop.f32.mrb[0].mxu0
    %v1653 = vadd.f32 %v1363, %v1652
    %v1654 = vpop.f32.mrb[0].mxu0
    %1655 = vdwg.mxu0
    %v1657 = vsel %vm1287, %v1356, 0
    %1659 = vmatprep.subr.mxu0 0.0
    %1660 = vmatpush1.msra.mxu0 %v537
    %1661 = vmatprep.subr.mxu0 0.0
    %1662 = vmatpush1.msra.mxu0 %v543
    %1663 = vmatprep.subr.mxu0 0.0
    %1664 = vmatpush1.msra.mxu0 0.0
    %1665 = vmatprep.subr.mxu0 0.0
    %1666 = vmatpush1.msra.mxu0 0.0
    %1667 = vmatprep.subr.mxu0 0.0
    %1668 = vmatpush1.msra.mxu0 0.0
    %1669 = vmatprep.subr.mxu0 0.0
    %1670 = vmatpush1.msra.mxu0 0.0
    %1671 = vmatprep.subr.mxu0 0.0
    %1672 = vmatpush1.msra.mxu0 0.0
    %1673 = vmatprep.subr.mxu0 0.0
    %1674 = vmatpush1.msra.mxu0 0.0
    %1675 = vmatprep.subr.mxu0 0.0
    %1676 = vmatpush1.msra.mxu0 0.0
    %1677 = vmatprep.subr.mxu0 0.0
    %1678 = vmatpush1.msra.mxu0 0.0
    %1679 = vmatprep.subr.mxu0 0.0
    %1680 = vmatpush1.msra.mxu0 0.0
    %1681 = vmatprep.subr.mxu0 0.0
    %1682 = vmatpush1.msra.mxu0 0.0
    %1683 = vmatprep.subr.mxu0 0.0
    %1684 = vmatpush1.msra.mxu0 0.0
    %1685 = vmatprep.subr.mxu0 0.0
    %1686 = vmatpush1.msra.mxu0 0.0
    %1687 = vmatprep.subr.mxu0 0.0
    %1688 = vmatpush1.msra.mxu0 0.0
    %1689 = vmatprep.subr.mxu0 0.0
    %1690 = vmatpush1.msra.mxu0 0.0
    %1691 = vmatprep.subr.mxu0 0.0
    %1692 = vmatpush1.msra.mxu0 0.0
    %1693 = vmatprep.subr.mxu0 0.0
    %1694 = vmatpush1.msra.mxu0 0.0
    %1695 = vmatprep.subr.mxu0 0.0
    %1696 = vmatpush1.msra.mxu0 0.0
    %1697 = vmatprep.subr.mxu0 0.0
    %1698 = vmatpush1.msra.mxu0 0.0
    %1699 = vmatprep.subr.mxu0 0.0
    %1700 = vmatpush1.msra.mxu0 0.0
    %1701 = vmatprep.subr.mxu0 0.0
    %1702 = vmatpush1.msra.mxu0 0.0
    %1703 = vmatprep.subr.mxu0 0.0
    %1704 = vmatpush1.msra.mxu0 0.0
    %1705 = vmatprep.subr.mxu0 0.0
    %1706 = vmatpush1.msra.mxu0 0.0
    %1707 = vmatprep.subr.mxu0 0.0
    %1708 = vmatpush1.msra.mxu0 0.0
    %1709 = vmatprep.subr.mxu0 0.0
    %1710 = vmatpush1.msra.mxu0 0.0
    %1711 = vmatprep.subr.mxu0 0.0
    %1712 = vmatpush1.msra.mxu0 0.0
    %1713 = vmatprep.subr.mxu0 0.0
    %1714 = vmatpush1.msra.mxu0 0.0
    %1715 = vmatprep.subr.mxu0 0.0
    %1716 = vmatpush1.msra.mxu0 0.0
    %1717 = vmatprep.subr.mxu0 0.0
    %1718 = vmatpush1.msra.mxu0 0.0
    %1719 = vmatprep.subr.mxu0 0.0
    %1720 = vmatpush1.msra.mxu0 0.0
    %1721 = vmatprep.subr.mxu0 0.0
    %1722 = vmatpush1.msra.mxu0 0.0
    %1723 = vmatprep.mubr.f32.mxu0 0.0
    %1724 = vmatmul.mubr.f32.gmra.mrb[0].mxu0 %v1657
    %v1725 = vpop.f32.mrb[0].mxu0
    %v1726 = vadd.f32 %v1360, %v1725
    %v1727 = vpop.f32.mrb[0].mxu0
    %1728 = vdwg.mxu0
    %v1730 = vsel %vm1287, %v1357, 0
    %1732 = vmatprep.subr.mxu0 0.0
    %1733 = vmatpush1.msra.mxu0 %v549
    %1734 = vmatprep.subr.mxu0 0.0
    %1735 = vmatpush1.msra.mxu0 %v555
    %1736 = vmatprep.subr.mxu0 0.0
    %1737 = vmatpush1.msra.mxu0 0.0
    %1738 = vmatprep.subr.mxu0 0.0
    %1739 = vmatpush1.msra.mxu0 0.0
    %1740 = vmatprep.subr.mxu0 0.0
    %1741 = vmatpush1.msra.mxu0 0.0
    %1742 = vmatprep.subr.mxu0 0.0
    %1743 = vmatpush1.msra.mxu0 0.0
    %1744 = vmatprep.subr.mxu0 0.0
    %1745 = vmatpush1.msra.mxu0 0.0
    %1746 = vmatprep.subr.mxu0 0.0
    %1747 = vmatpush1.msra.mxu0 0.0
    %1748 = vmatprep.subr.mxu0 0.0
    %1749 = vmatpush1.msra.mxu0 0.0
    %1750 = vmatprep.subr.mxu0 0.0
    %1751 = vmatpush1.msra.mxu0 0.0
    %1752 = vmatprep.subr.mxu0 0.0
    %1753 = vmatpush1.msra.mxu0 0.0
    %1754 = vmatprep.subr.mxu0 0.0
    %1755 = vmatpush1.msra.mxu0 0.0
    %1756 = vmatprep.subr.mxu0 0.0
    %1757 = vmatpush1.msra.mxu0 0.0
    %1758 = vmatprep.subr.mxu0 0.0
    %1759 = vmatpush1.msra.mxu0 0.0
    %1760 = vmatprep.subr.mxu0 0.0
    %1761 = vmatpush1.msra.mxu0 0.0
    %1762 = vmatprep.subr.mxu0 0.0
    %1763 = vmatpush1.msra.mxu0 0.0
    %1764 = vmatprep.subr.mxu0 0.0
    %1765 = vmatpush1.msra.mxu0 0.0
    %1766 = vmatprep.subr.mxu0 0.0
    %1767 = vmatpush1.msra.mxu0 0.0
    %1768 = vmatprep.subr.mxu0 0.0
    %1769 = vmatpush1.msra.mxu0 0.0
    %1770 = vmatprep.subr.mxu0 0.0
    %1771 = vmatpush1.msra.mxu0 0.0
    %1772 = vmatprep.subr.mxu0 0.0
    %1773 = vmatpush1.msra.mxu0 0.0
    %1774 = vmatprep.subr.mxu0 0.0
    %1775 = vmatpush1.msra.mxu0 0.0
    %1776 = vmatprep.subr.mxu0 0.0
    %1777 = vmatpush1.msra.mxu0 0.0
    %1778 = vmatprep.subr.mxu0 0.0
    %1779 = vmatpush1.msra.mxu0 0.0
    %1780 = vmatprep.subr.mxu0 0.0
    %1781 = vmatpush1.msra.mxu0 0.0
    %1782 = vmatprep.subr.mxu0 0.0
    %1783 = vmatpush1.msra.mxu0 0.0
    %1784 = vmatprep.subr.mxu0 0.0
    %1785 = vmatpush1.msra.mxu0 0.0
    %1786 = vmatprep.subr.mxu0 0.0
    %1787 = vmatpush1.msra.mxu0 0.0
    %1788 = vmatprep.subr.mxu0 0.0
    %1789 = vmatpush1.msra.mxu0 0.0
    %1790 = vmatprep.subr.mxu0 0.0
    %1791 = vmatpush1.msra.mxu0 0.0
    %1792 = vmatprep.subr.mxu0 0.0
    %1793 = vmatpush1.msra.mxu0 0.0
    %1794 = vmatprep.subr.mxu0 0.0
    %1795 = vmatpush1.msra.mxu0 0.0
    %1796 = vmatprep.mubr.f32.mxu0 0.0
    %1797 = vmatmul.mubr.f32.gmra.mrb[0].mxu0 %v1730
    %v1798 = vpop.f32.mrb[0].mxu0
    %v1799 = vadd.f32 %v1361, %v1798
    %v1800 = vpop.f32.mrb[0].mxu0
    %1801 = vdwg.mxu0
    %v1803 = vsel %vm1287, %v1358, 0
    %1805 = vmatprep.subr.mxu0 0.0
    %1806 = vmatpush1.msra.mxu0 %v561
    %1807 = vmatprep.subr.mxu0 0.0
    %1808 = vmatpush1.msra.mxu0 %v567
    %1809 = vmatprep.subr.mxu0 0.0
    %1810 = vmatpush1.msra.mxu0 0.0
    %1811 = vmatprep.subr.mxu0 0.0
    %1812 = vmatpush1.msra.mxu0 0.0
    %1813 = vmatprep.subr.mxu0 0.0
    %1814 = vmatpush1.msra.mxu0 0.0
    %1815 = vmatprep.subr.mxu0 0.0
    %1816 = vmatpush1.msra.mxu0 0.0
    %1817 = vmatprep.subr.mxu0 0.0
    %1818 = vmatpush1.msra.mxu0 0.0
    %1819 = vmatprep.subr.mxu0 0.0
    %1820 = vmatpush1.msra.mxu0 0.0
    %1821 = vmatprep.subr.mxu0 0.0
    %1822 = vmatpush1.msra.mxu0 0.0
    %1823 = vmatprep.subr.mxu0 0.0
    %1824 = vmatpush1.msra.mxu0 0.0
    %1825 = vmatprep.subr.mxu0 0.0
    %1826 = vmatpush1.msra.mxu0 0.0
    %1827 = vmatprep.subr.mxu0 0.0
    %1828 = vmatpush1.msra.mxu0 0.0
    %1829 = vmatprep.subr.mxu0 0.0
    %1830 = vmatpush1.msra.mxu0 0.0
    %1831 = vmatprep.subr.mxu0 0.0
    %1832 = vmatpush1.msra.mxu0 0.0
    %1833 = vmatprep.subr.mxu0 0.0
    %1834 = vmatpush1.msra.mxu0 0.0
    %1835 = vmatprep.subr.mxu0 0.0
    %1836 = vmatpush1.msra.mxu0 0.0
    %1837 = vmatprep.subr.mxu0 0.0
    %1838 = vmatpush1.msra.mxu0 0.0
    %1839 = vmatprep.subr.mxu0 0.0
    %1840 = vmatpush1.msra.mxu0 0.0
    %1841 = vmatprep.subr.mxu0 0.0
    %1842 = vmatpush1.msra.mxu0 0.0
    %1843 = vmatprep.subr.mxu0 0.0
    %1844 = vmatpush1.msra.mxu0 0.0
    %1845 = vmatprep.subr.mxu0 0.0
    %1846 = vmatpush1.msra.mxu0 0.0
    %1847 = vmatprep.subr.mxu0 0.0
    %1848 = vmatpush1.msra.mxu0 0.0
    %1849 = vmatprep.subr.mxu0 0.0
    %1850 = vmatpush1.msra.mxu0 0.0
    %1851 = vmatprep.subr.mxu0 0.0
    %1852 = vmatpush1.msra.mxu0 0.0
    %1853 = vmatprep.subr.mxu0 0.0
    %1854 = vmatpush1.msra.mxu0 0.0
    %1855 = vmatprep.subr.mxu0 0.0
    %1856 = vmatpush1.msra.mxu0 0.0
    %1857 = vmatprep.subr.mxu0 0.0
    %1858 = vmatpush1.msra.mxu0 0.0
    %1859 = vmatprep.subr.mxu0 0.0
    %1860 = vmatpush1.msra.mxu0 0.0
    %1861 = vmatprep.subr.mxu0 0.0
    %1862 = vmatpush1.msra.mxu0 0.0
    %1863 = vmatprep.subr.mxu0 0.0
    %1864 = vmatpush1.msra.mxu0 0.0
    %1865 = vmatprep.subr.mxu0 0.0
    %1866 = vmatpush1.msra.mxu0 0.0
    %1867 = vmatprep.subr.mxu0 0.0
    %1868 = vmatpush1.msra.mxu0 0.0
    %1869 = vmatprep.mubr.f32.mxu0 0.0
    %1870 = vmatmul.mubr.f32.gmra.mrb[0].mxu0 %v1803
    %v1871 = vpop.f32.mrb[0].mxu0
    %v1872 = vadd.f32 %v1362, %v1871
    %v1873 = vpop.f32.mrb[0].mxu0
    %1874 = vdwg.mxu0
    %v1876 = vsel %vm1287, %v1359, 0
    %1878 = vmatprep.subr.mxu0 0.0
    %1879 = vmatpush1.msra.mxu0 %v573
    %1880 = vmatprep.subr.mxu0 0.0
    %1881 = vmatpush1.msra.mxu0 %v579
    %1882 = vmatprep.subr.mxu0 0.0
    %1883 = vmatpush1.msra.mxu0 0.0
    %1884 = vmatprep.subr.mxu0 0.0
    %1885 = vmatpush1.msra.mxu0 0.0
    %1886 = vmatprep.subr.mxu0 0.0
    %1887 = vmatpush1.msra.mxu0 0.0
    %1888 = vmatprep.subr.mxu0 0.0
    %1889 = vmatpush1.msra.mxu0 0.0
    %1890 = vmatprep.subr.mxu0 0.0
    %1891 = vmatpush1.msra.mxu0 0.0
    %1892 = vmatprep.subr.mxu0 0.0
    %1893 = vmatpush1.msra.mxu0 0.0
    %1894 = vmatprep.subr.mxu0 0.0
    %1895 = vmatpush1.msra.mxu0 0.0
    %1896 = vmatprep.subr.mxu0 0.0
    %1897 = vmatpush1.msra.mxu0 0.0
    %1898 = vmatprep.subr.mxu0 0.0
    %1899 = vmatpush1.msra.mxu0 0.0
    %1900 = vmatprep.subr.mxu0 0.0
    %1901 = vmatpush1.msra.mxu0 0.0
    %1902 = vmatprep.subr.mxu0 0.0
    %1903 = vmatpush1.msra.mxu0 0.0
    %1904 = vmatprep.subr.mxu0 0.0
    %1905 = vmatpush1.msra.mxu0 0.0
    %1906 = vmatprep.subr.mxu0 0.0
    %1907 = vmatpush1.msra.mxu0 0.0
    %1908 = vmatprep.subr.mxu0 0.0
    %1909 = vmatpush1.msra.mxu0 0.0
    %1910 = vmatprep.subr.mxu0 0.0
    %1911 = vmatpush1.msra.mxu0 0.0
    %1912 = vmatprep.subr.mxu0 0.0
    %1913 = vmatpush1.msra.mxu0 0.0
    %1914 = vmatprep.subr.mxu0 0.0
    %1915 = vmatpush1.msra.mxu0 0.0
    %1916 = vmatprep.subr.mxu0 0.0
    %1917 = vmatpush1.msra.mxu0 0.0
    %1918 = vmatprep.subr.mxu0 0.0
    %1919 = vmatpush1.msra.mxu0 0.0
    %1920 = vmatprep.subr.mxu0 0.0
    %1921 = vmatpush1.msra.mxu0 0.0
    %1922 = vmatprep.subr.mxu0 0.0
    %1923 = vmatpush1.msra.mxu0 0.0
    %1924 = vmatprep.subr.mxu0 0.0
    %1925 = vmatpush1.msra.mxu0 0.0
    %1926 = vmatprep.subr.mxu0 0.0
    %1927 = vmatpush1.msra.mxu0 0.0
    %1928 = vmatprep.subr.mxu0 0.0
    %1929 = vmatpush1.msra.mxu0 0.0
    %1930 = vmatprep.subr.mxu0 0.0
    %1931 = vmatpush1.msra.mxu0 0.0
    %1932 = vmatprep.subr.mxu0 0.0
    %1933 = vmatpush1.msra.mxu0 0.0
    %1934 = vmatprep.subr.mxu0 0.0
    %1935 = vmatpush1.msra.mxu0 0.0
    %1936 = vmatprep.subr.mxu0 0.0
    %1937 = vmatpush1.msra.mxu0 0.0
    %1938 = vmatprep.subr.mxu0 0.0
    %1939 = vmatpush1.msra.mxu0 0.0
    %1940 = vmatprep.subr.mxu0 0.0
    %1941 = vmatpush1.msra.mxu0 0.0
    %1942 = vmatprep.mubr.f32.mxu0 0.0
    %1943 = vmatmul.mubr.f32.gmra.mrb[0].mxu0 %v1876
    %v1944 = vpop.f32.mrb[0].mxu0
    %v1945 = vadd.f32 %v1363, %v1944
    %v1946 = vpop.f32.mrb[0].mxu0
    %1947 = vdwg.mxu0
    %v1948 = vmax.f32 %v1219, 0.0
    %v1949 = vmax.f32 %v1220, 0.0
    %v1950 = vmax.f32 %v1221, 0.0
    %v1951 = vmax.f32 %v1222, 0.0
    %v1952 = vmax.f32 %v1223, 0.0
    %v1953 = vmax.f32 %v1224, 0.0
    %v1954 = vmax.f32 %v1225, 0.0
    %v1955 = vmax.f32 %v1226, 0.0
    %v1956 = vsub.f32 0.0, %v1219
    %v1957 = vsub.f32 0.0, %v1220
    %v1958 = vsub.f32 0.0, %v1221
    %v1959 = vsub.f32 0.0, %v1222
    %v1960 = vsub.f32 0.0, %v1223
    %v1961 = vsub.f32 0.0, %v1224
    %v1962 = vsub.f32 0.0, %v1225
    %v1963 = vsub.f32 0.0, %v1226
    %v1964 = vmax.f32 %v1956, 0.0
    %v1965 = vmax.f32 %v1957, 0.0
    %v1966 = vmax.f32 %v1958, 0.0
    %v1967 = vmax.f32 %v1959, 0.0
    %v1968 = vmax.f32 %v1960, 0.0
    %v1969 = vmax.f32 %v1961, 0.0
    %v1970 = vmax.f32 %v1962, 0.0
    %v1971 = vmax.f32 %v1963, 0.0
    %v1972 = vld [vmem:[%s4] sm:$0xff]
    %vm1973 = vcmask 64512
    %v1975 = vsel %vm1973, %v1948, 0
    %v1978 = vsel %vm1973, %v1949, 0
    %v1981 = vsel %vm1973, %v1950, 0
    %v1984 = vsel %vm1973, %v1951, 0
    %v1987 = vsel %vm1973, %v1952, 0
    %v1990 = vsel %vm1973, %v1953, 0
    %v1993 = vsel %vm1973, %v1954, 0
    %v1996 = vsel %vm1973, %v1955, 0
    %1998 = vmatprep.subr.mxu0 0.0
    %1999 = vmatpush1.msra.mxu0 %v1972
    %2000 = vmatprep.subr.mxu0 0.0
    %2001 = vmatpush1.msra.mxu0 0.0
    %2002 = vmatprep.subr.mxu0 0.0
    %2003 = vmatpush1.msra.mxu0 0.0
    %2004 = vmatprep.subr.mxu0 0.0
    %2005 = vmatpush1.msra.mxu0 0.0
    %2006 = vmatprep.subr.mxu0 0.0
    %2007 = vmatpush1.msra.mxu0 0.0
    %2008 = vmatprep.subr.mxu0 0.0
    %2009 = vmatpush1.msra.mxu0 0.0
    %2010 = vmatprep.subr.mxu0 0.0
    %2011 = vmatpush1.msra.mxu0 0.0
    %2012 = vmatprep.subr.mxu0 0.0
    %2013 = vmatpush1.msra.mxu0 0.0
    %2014 = vmatprep.subr.mxu0 0.0
    %2015 = vmatpush1.msra.mxu0 0.0
    %2016 = vmatprep.subr.mxu0 0.0
    %2017 = vmatpush1.msra.mxu0 0.0
    %2018 = vmatprep.subr.mxu0 0.0
    %2019 = vmatpush1.msra.mxu0 0.0
    %2020 = vmatprep.subr.mxu0 0.0
    %2021 = vmatpush1.msra.mxu0 0.0
    %2022 = vmatprep.subr.mxu0 0.0
    %2023 = vmatpush1.msra.mxu0 0.0
    %2024 = vmatprep.subr.mxu0 0.0
    %2025 = vmatpush1.msra.mxu0 0.0
    %2026 = vmatprep.subr.mxu0 0.0
    %2027 = vmatpush1.msra.mxu0 0.0
    %2028 = vmatprep.subr.mxu0 0.0
    %2029 = vmatpush1.msra.mxu0 0.0
    %2030 = vmatprep.subr.mxu0 0.0
    %2031 = vmatpush1.msra.mxu0 0.0
    %2032 = vmatprep.subr.mxu0 0.0
    %2033 = vmatpush1.msra.mxu0 0.0
    %2034 = vmatprep.subr.mxu0 0.0
    %2035 = vmatpush1.msra.mxu0 0.0
    %2036 = vmatprep.subr.mxu0 0.0
    %2037 = vmatpush1.msra.mxu0 0.0
    %2038 = vmatprep.subr.mxu0 0.0
    %2039 = vmatpush1.msra.mxu0 0.0
    %2040 = vmatprep.subr.mxu0 0.0
    %2041 = vmatpush1.msra.mxu0 0.0
    %2042 = vmatprep.subr.mxu0 0.0
    %2043 = vmatpush1.msra.mxu0 0.0
    %2044 = vmatprep.subr.mxu0 0.0
    %2045 = vmatpush1.msra.mxu0 0.0
    %2046 = vmatprep.subr.mxu0 0.0
    %2047 = vmatpush1.msra.mxu0 0.0
    %2048 = vmatprep.subr.mxu0 0.0
    %2049 = vmatpush1.msra.mxu0 0.0
    %2050 = vmatprep.subr.mxu0 0.0
    %2051 = vmatpush1.msra.mxu0 0.0
    %2052 = vmatprep.subr.mxu0 0.0
    %2053 = vmatpush1.msra.mxu0 0.0
    %2054 = vmatprep.subr.mxu0 0.0
    %2055 = vmatpush1.msra.mxu0 0.0
    %2056 = vmatprep.subr.mxu0 0.0
    %2057 = vmatpush1.msra.mxu0 0.0
    %2058 = vmatprep.subr.mxu0 0.0
    %2059 = vmatpush1.msra.mxu0 0.0
    %2060 = vmatprep.subr.mxu0 0.0
    %2061 = vmatpush1.msra.mxu0 0.0
    %2062 = vmatprep.mubr.f32.mxu0 0.0
    %2063 = vmatmul.mubr.f32.gmra.mrb[0].mxu0 %v1975
    %v2064 = vpop.f32.mrb[0].mxu0
    %v2065 = vadd.f32 0.0001, %v2064
    %v2066 = vpop.f32.mrb[0].mxu0
    %2067 = vmatprep.mubr.f32.mxu0 0.0
    %2068 = vmatmul.mubr.f32.gmra.mrb[0].mxu0 %v1978
    %v2069 = vpop.f32.mrb[0].mxu0
    %v2070 = vadd.f32 0.0001, %v2069
    %v2071 = vpop.f32.mrb[0].mxu0
    %2072 = vmatprep.mubr.f32.mxu0 0.0
    %2073 = vmatmul.mubr.f32.gmra.mrb[0].mxu0 %v1981
    %v2074 = vpop.f32.mrb[0].mxu0
    %v2075 = vadd.f32 0.0001, %v2074
    %v2076 = vpop.f32.mrb[0].mxu0
    %2077 = vmatprep.mubr.f32.mxu0 0.0
    %2078 = vmatmul.mubr.f32.gmra.mrb[0].mxu0 %v1984
    %v2079 = vpop.f32.mrb[0].mxu0
    %v2080 = vadd.f32 0.0001, %v2079
    %v2081 = vpop.f32.mrb[0].mxu0
    %2082 = vmatprep.mubr.f32.mxu0 0.0
    %2083 = vmatmul.mubr.f32.gmra.mrb[0].mxu0 %v1987
    %v2084 = vpop.f32.mrb[0].mxu0
    %v2085 = vadd.f32 0.0001, %v2084
    %v2086 = vpop.f32.mrb[0].mxu0
    %2087 = vmatprep.mubr.f32.mxu0 0.0
    %2088 = vmatmul.mubr.f32.gmra.mrb[0].mxu0 %v1990
    %v2089 = vpop.f32.mrb[0].mxu0
    %v2090 = vadd.f32 0.0001, %v2089
    %v2091 = vpop.f32.mrb[0].mxu0
    %2092 = vmatprep.mubr.f32.mxu0 0.0
    %2093 = vmatmul.mubr.f32.gmra.mrb[0].mxu0 %v1993
    %v2094 = vpop.f32.mrb[0].mxu0
    %v2095 = vadd.f32 0.0001, %v2094
    %v2096 = vpop.f32.mrb[0].mxu0
    %2097 = vmatprep.mubr.f32.mxu0 0.0
    %2098 = vmatmul.mubr.f32.gmra.mrb[0].mxu0 %v1996
    %v2099 = vpop.f32.mrb[0].mxu0
    %v2100 = vadd.f32 0.0001, %v2099
    %v2101 = vpop.f32.mrb[0].mxu0
    %2102 = vdwg.mxu0
    %v2103 = vrcp.pop %v2065
    %v2104 = vrcp.pop %v2070
    %v2105 = vrcp.pop %v2075
    %v2106 = vrcp.pop %v2080
    %v2107 = vrcp.pop %v2085
    %v2108 = vrcp.pop %v2090
    %v2109 = vrcp.pop %v2095
    %v2110 = vrcp.pop %v2100
    %v2111 = vmul.f32 %v2065, %v2103
    %v2112 = vmul.f32 %v2070, %v2104
    %v2113 = vmul.f32 %v2075, %v2105
    %v2114 = vmul.f32 %v2080, %v2106
    %v2115 = vmul.f32 %v2085, %v2107
    %v2116 = vmul.f32 %v2090, %v2108
    %v2117 = vmul.f32 %v2095, %v2109
    %v2118 = vmul.f32 %v2100, %v2110
    %v2119 = vsub.f32 2.0, %v2111
    %v2120 = vsub.f32 2.0, %v2112
    %v2121 = vsub.f32 2.0, %v2113
    %v2122 = vsub.f32 2.0, %v2114
    %v2123 = vsub.f32 2.0, %v2115
    %v2124 = vsub.f32 2.0, %v2116
    %v2125 = vsub.f32 2.0, %v2117
    %v2126 = vsub.f32 2.0, %v2118
    %v2127 = vmul.f32 %v2103, %v2119
    %v2128 = vmul.f32 %v2104, %v2120
    %v2129 = vmul.f32 %v2105, %v2121
    %v2130 = vmul.f32 %v2106, %v2122
    %v2131 = vmul.f32 %v2107, %v2123
    %v2132 = vmul.f32 %v2108, %v2124
    %v2133 = vmul.f32 %v2109, %v2125
    %v2134 = vmul.f32 %v2110, %v2126
    %v2135 = vmul.f32 %v2127, 0.5
    %v2136 = vmul.f32 %v2128, 0.5
    %v2137 = vmul.f32 %v2129, 0.5
    %v2138 = vmul.f32 %v2130, 0.5
    %v2139 = vmul.f32 %v2131, 0.5
    %v2140 = vmul.f32 %v2132, 0.5
    %v2141 = vmul.f32 %v2133, 0.5
    %v2142 = vmul.f32 %v2134, 0.5
    %v2143 = vmul.f32 %v1948, %v2135
    %v2144 = vmul.f32 %v1949, %v2136
    %v2145 = vmul.f32 %v1950, %v2137
    %v2146 = vmul.f32 %v1951, %v2138
    %v2147 = vmul.f32 %v1952, %v2139
    %v2148 = vmul.f32 %v1953, %v2140
    %v2149 = vmul.f32 %v1954, %v2141
    %v2150 = vmul.f32 %v1955, %v2142
    %v2152 = vsel %vm1973, %v1964, 0
    %v2155 = vsel %vm1973, %v1965, 0
    %v2158 = vsel %vm1973, %v1966, 0
    %v2161 = vsel %vm1973, %v1967, 0
    %v2164 = vsel %vm1973, %v1968, 0
    %v2167 = vsel %vm1973, %v1969, 0
    %v2170 = vsel %vm1973, %v1970, 0
    %v2173 = vsel %vm1973, %v1971, 0
    %2175 = vmatprep.subr.mxu0 0.0
    %2176 = vmatpush1.msra.mxu0 %v1972
    %2177 = vmatprep.subr.mxu0 0.0
    %2178 = vmatpush1.msra.mxu0 0.0
    %2179 = vmatprep.subr.mxu0 0.0
    %2180 = vmatpush1.msra.mxu0 0.0
    %2181 = vmatprep.subr.mxu0 0.0
    %2182 = vmatpush1.msra.mxu0 0.0
    %2183 = vmatprep.subr.mxu0 0.0
    %2184 = vmatpush1.msra.mxu0 0.0
    %2185 = vmatprep.subr.mxu0 0.0
    %2186 = vmatpush1.msra.mxu0 0.0
    %2187 = vmatprep.subr.mxu0 0.0
    %2188 = vmatpush1.msra.mxu0 0.0
    %2189 = vmatprep.subr.mxu0 0.0
    %2190 = vmatpush1.msra.mxu0 0.0
    %2191 = vmatprep.subr.mxu0 0.0
    %2192 = vmatpush1.msra.mxu0 0.0
    %2193 = vmatprep.subr.mxu0 0.0
    %2194 = vmatpush1.msra.mxu0 0.0
    %2195 = vmatprep.subr.mxu0 0.0
    %2196 = vmatpush1.msra.mxu0 0.0
    %2197 = vmatprep.subr.mxu0 0.0
    %2198 = vmatpush1.msra.mxu0 0.0
    %2199 = vmatprep.subr.mxu0 0.0
    %2200 = vmatpush1.msra.mxu0 0.0
    %2201 = vmatprep.subr.mxu0 0.0
    %2202 = vmatpush1.msra.mxu0 0.0
    %2203 = vmatprep.subr.mxu0 0.0
    %2204 = vmatpush1.msra.mxu0 0.0
    %2205 = vmatprep.subr.mxu0 0.0
    %2206 = vmatpush1.msra.mxu0 0.0
    %2207 = vmatprep.subr.mxu0 0.0
    %2208 = vmatpush1.msra.mxu0 0.0
    %2209 = vmatprep.subr.mxu0 0.0
    %2210 = vmatpush1.msra.mxu0 0.0
    %2211 = vmatprep.subr.mxu0 0.0
    %2212 = vmatpush1.msra.mxu0 0.0
    %2213 = vmatprep.subr.mxu0 0.0
    %2214 = vmatpush1.msra.mxu0 0.0
    %2215 = vmatprep.subr.mxu0 0.0
    %2216 = vmatpush1.msra.mxu0 0.0
    %2217 = vmatprep.subr.mxu0 0.0
    %2218 = vmatpush1.msra.mxu0 0.0
    %2219 = vmatprep.subr.mxu0 0.0
    %2220 = vmatpush1.msra.mxu0 0.0
    %2221 = vmatprep.subr.mxu0 0.0
    %2222 = vmatpush1.msra.mxu0 0.0
    %2223 = vmatprep.subr.mxu0 0.0
    %2224 = vmatpush1.msra.mxu0 0.0
    %2225 = vmatprep.subr.mxu0 0.0
    %2226 = vmatpush1.msra.mxu0 0.0
    %2227 = vmatprep.subr.mxu0 0.0
    %2228 = vmatpush1.msra.mxu0 0.0
    %2229 = vmatprep.subr.mxu0 0.0
    %2230 = vmatpush1.msra.mxu0 0.0
    %2231 = vmatprep.subr.mxu0 0.0
    %2232 = vmatpush1.msra.mxu0 0.0
    %2233 = vmatprep.subr.mxu0 0.0
    %2234 = vmatpush1.msra.mxu0 0.0
    %2235 = vmatprep.subr.mxu0 0.0
    %2236 = vmatpush1.msra.mxu0 0.0
    %2237 = vmatprep.subr.mxu0 0.0
    %2238 = vmatpush1.msra.mxu0 0.0
    %2239 = vmatprep.mubr.f32.mxu0 0.0
    %2240 = vmatmul.mubr.f32.gmra.mrb[0].mxu0 %v2152
    %v2241 = vpop.f32.mrb[0].mxu0
    %v2242 = vadd.f32 0.0001, %v2241
    %v2243 = vpop.f32.mrb[0].mxu0
    %2244 = vmatprep.mubr.f32.mxu0 0.0
    %2245 = vmatmul.mubr.f32.gmra.mrb[0].mxu0 %v2155
    %v2246 = vpop.f32.mrb[0].mxu0
    %v2247 = vadd.f32 0.0001, %v2246
    %v2248 = vpop.f32.mrb[0].mxu0
    %2249 = vmatprep.mubr.f32.mxu0 0.0
    %2250 = vmatmul.mubr.f32.gmra.mrb[0].mxu0 %v2158
    %v2251 = vpop.f32.mrb[0].mxu0
    %v2252 = vadd.f32 0.0001, %v2251
    %v2253 = vpop.f32.mrb[0].mxu0
    %2254 = vmatprep.mubr.f32.mxu0 0.0
    %2255 = vmatmul.mubr.f32.gmra.mrb[0].mxu0 %v2161
    %v2256 = vpop.f32.mrb[0].mxu0
    %v2257 = vadd.f32 0.0001, %v2256
    %v2258 = vpop.f32.mrb[0].mxu0
    %2259 = vmatprep.mubr.f32.mxu0 0.0
    %2260 = vmatmul.mubr.f32.gmra.mrb[0].mxu0 %v2164
    %v2261 = vpop.f32.mrb[0].mxu0
    %v2262 = vadd.f32 0.0001, %v2261
    %v2263 = vpop.f32.mrb[0].mxu0
    %2264 = vmatprep.mubr.f32.mxu0 0.0
    %2265 = vmatmul.mubr.f32.gmra.mrb[0].mxu0 %v2167
    %v2266 = vpop.f32.mrb[0].mxu0
    %v2267 = vadd.f32 0.0001, %v2266
    %v2268 = vpop.f32.mrb[0].mxu0
    %2269 = vmatprep.mubr.f32.mxu0 0.0
    %2270 = vmatmul.mubr.f32.gmra.mrb[0].mxu0 %v2170
    %v2271 = vpop.f32.mrb[0].mxu0
    %v2272 = vadd.f32 0.0001, %v2271
    %v2273 = vpop.f32.mrb[0].mxu0
    %2274 = vmatprep.mubr.f32.mxu0 0.0
    %2275 = vmatmul.mubr.f32.gmra.mrb[0].mxu0 %v2173
    %v2276 = vpop.f32.mrb[0].mxu0
    %v2277 = vadd.f32 0.0001, %v2276
    %v2278 = vpop.f32.mrb[0].mxu0
    %2279 = vdwg.mxu0
    %v2280 = vrcp.pop %v2242
    %v2281 = vrcp.pop %v2247
    %v2282 = vrcp.pop %v2252
    %v2283 = vrcp.pop %v2257
    %v2284 = vrcp.pop %v2262
    %v2285 = vrcp.pop %v2267
    %v2286 = vrcp.pop %v2272
    %v2287 = vrcp.pop %v2277
    %v2288 = vmul.f32 %v2242, %v2280
    %v2289 = vmul.f32 %v2247, %v2281
    %v2290 = vmul.f32 %v2252, %v2282
    %v2291 = vmul.f32 %v2257, %v2283
    %v2292 = vmul.f32 %v2262, %v2284
    %v2293 = vmul.f32 %v2267, %v2285
    %v2294 = vmul.f32 %v2272, %v2286
    %v2295 = vmul.f32 %v2277, %v2287
    %v2296 = vsub.f32 2.0, %v2288
    %v2297 = vsub.f32 2.0, %v2289
    %v2298 = vsub.f32 2.0, %v2290
    %v2299 = vsub.f32 2.0, %v2291
    %v2300 = vsub.f32 2.0, %v2292
    %v2301 = vsub.f32 2.0, %v2293
    %v2302 = vsub.f32 2.0, %v2294
    %v2303 = vsub.f32 2.0, %v2295
    %v2304 = vmul.f32 %v2280, %v2296
    %v2305 = vmul.f32 %v2281, %v2297
    %v2306 = vmul.f32 %v2282, %v2298
    %v2307 = vmul.f32 %v2283, %v2299
    %v2308 = vmul.f32 %v2284, %v2300
    %v2309 = vmul.f32 %v2285, %v2301
    %v2310 = vmul.f32 %v2286, %v2302
    %v2311 = vmul.f32 %v2287, %v2303
    %v2312 = vmul.f32 %v2304, 0.5
    %v2313 = vmul.f32 %v2305, 0.5
    %v2314 = vmul.f32 %v2306, 0.5
    %v2315 = vmul.f32 %v2307, 0.5
    %v2316 = vmul.f32 %v2308, 0.5
    %v2317 = vmul.f32 %v2309, 0.5
    %v2318 = vmul.f32 %v2310, 0.5
    %v2319 = vmul.f32 %v2311, 0.5
    %v2320 = vmul.f32 %v1964, %v2312
    %v2321 = vmul.f32 %v1965, %v2313
    %v2322 = vmul.f32 %v1966, %v2314
    %v2323 = vmul.f32 %v1967, %v2315
    %v2324 = vmul.f32 %v1968, %v2316
    %v2325 = vmul.f32 %v1969, %v2317
    %v2326 = vmul.f32 %v1970, %v2318
    %v2327 = vmul.f32 %v1971, %v2319
    %v2329 = vsel %vm1973, %v2143, 0
    %v2332 = vsel %vm1973, %v2144, 0
    %2334 = vmatprep.subr.mxu0 0.0
    %2335 = vmatpush1.msra.mxu0 %v1434
    %2336 = vmatprep.subr.mxu0 0.0
    %2337 = vmatpush1.msra.mxu0 0.0
    %2338 = vmatprep.subr.mxu0 0.0
    %2339 = vmatpush1.msra.mxu0 0.0
    %2340 = vmatprep.subr.mxu0 0.0
    %2341 = vmatpush1.msra.mxu0 0.0
    %2342 = vmatprep.subr.mxu0 0.0
    %2343 = vmatpush1.msra.mxu0 0.0
    %2344 = vmatprep.subr.mxu0 0.0
    %2345 = vmatpush1.msra.mxu0 0.0
    %2346 = vmatprep.subr.mxu0 0.0
    %2347 = vmatpush1.msra.mxu0 0.0
    %2348 = vmatprep.subr.mxu0 0.0
    %2349 = vmatpush1.msra.mxu0 0.0
    %2350 = vmatprep.subr.mxu0 0.0
    %2351 = vmatpush1.msra.mxu0 0.0
    %2352 = vmatprep.subr.mxu0 0.0
    %2353 = vmatpush1.msra.mxu0 0.0
    %2354 = vmatprep.subr.mxu0 0.0
    %2355 = vmatpush1.msra.mxu0 0.0
    %2356 = vmatprep.subr.mxu0 0.0
    %2357 = vmatpush1.msra.mxu0 0.0
    %2358 = vmatprep.subr.mxu0 0.0
    %2359 = vmatpush1.msra.mxu0 0.0
    %2360 = vmatprep.subr.mxu0 0.0
    %2361 = vmatpush1.msra.mxu0 0.0
    %2362 = vmatprep.subr.mxu0 0.0
    %2363 = vmatpush1.msra.mxu0 0.0
    %2364 = vmatprep.subr.mxu0 0.0
    %2365 = vmatpush1.msra.mxu0 0.0
    %2366 = vmatprep.subr.mxu0 0.0
    %2367 = vmatpush1.msra.mxu0 0.0
    %2368 = vmatprep.subr.mxu0 0.0
    %2369 = vmatpush1.msra.mxu0 0.0
    %2370 = vmatprep.subr.mxu0 0.0
    %2371 = vmatpush1.msra.mxu0 0.0
    %2372 = vmatprep.subr.mxu0 0.0
    %2373 = vmatpush1.msra.mxu0 0.0
    %2374 = vmatprep.subr.mxu0 0.0
    %2375 = vmatpush1.msra.mxu0 0.0
    %2376 = vmatprep.subr.mxu0 0.0
    %2377 = vmatpush1.msra.mxu0 0.0
    %2378 = vmatprep.subr.mxu0 0.0
    %2379 = vmatpush1.msra.mxu0 0.0
    %2380 = vmatprep.subr.mxu0 0.0
    %2381 = vmatpush1.msra.mxu0 0.0
    %2382 = vmatprep.subr.mxu0 0.0
    %2383 = vmatpush1.msra.mxu0 0.0
    %2384 = vmatprep.subr.mxu0 0.0
    %2385 = vmatpush1.msra.mxu0 0.0
    %2386 = vmatprep.subr.mxu0 0.0
    %2387 = vmatpush1.msra.mxu0 0.0
    %2388 = vmatprep.subr.mxu0 0.0
    %2389 = vmatpush1.msra.mxu0 0.0
    %2390 = vmatprep.subr.mxu0 0.0
    %2391 = vmatpush1.msra.mxu0 0.0
    %2392 = vmatprep.subr.mxu0 0.0
    %2393 = vmatpush1.msra.mxu0 0.0
    %2394 = vmatprep.subr.mxu0 0.0
    %2395 = vmatpush1.msra.mxu0 0.0
    %2396 = vmatprep.subr.mxu0 0.0
    %2397 = vmatpush1.msra.mxu0 0.0
    %2398 = vmatprep.mubr.f32.mxu0 0.0
    %2399 = vmatmul.mubr.f32.gmra.mrb[0].mxu0 %v2329
    %v2400 = vpop.f32.mrb[0].mxu0
    %v2401 = vadd.f32 0.0, %v2400
    %v2402 = vpop.f32.mrb[0].mxu0
    %2403 = vmatprep.mubr.f32.mxu0 0.0
    %2404 = vmatmul.mubr.f32.gmra.mrb[0].mxu0 %v2332
    %v2405 = vpop.f32.mrb[0].mxu0
    %v2406 = vadd.f32 0.0, %v2405
    %v2407 = vpop.f32.mrb[0].mxu0
    %2408 = vdwg.mxu0
    %v2410 = vsel %vm1973, %v2145, 0
    %v2413 = vsel %vm1973, %v2146, 0
    %2415 = vmatprep.subr.mxu0 0.0
    %2416 = vmatpush1.msra.mxu0 %v1507
    %2417 = vmatprep.subr.mxu0 0.0
    %2418 = vmatpush1.msra.mxu0 0.0
    %2419 = vmatprep.subr.mxu0 0.0
    %2420 = vmatpush1.msra.mxu0 0.0
    %2421 = vmatprep.subr.mxu0 0.0
    %2422 = vmatpush1.msra.mxu0 0.0
    %2423 = vmatprep.subr.mxu0 0.0
    %2424 = vmatpush1.msra.mxu0 0.0
    %2425 = vmatprep.subr.mxu0 0.0
    %2426 = vmatpush1.msra.mxu0 0.0
    %2427 = vmatprep.subr.mxu0 0.0
    %2428 = vmatpush1.msra.mxu0 0.0
    %2429 = vmatprep.subr.mxu0 0.0
    %2430 = vmatpush1.msra.mxu0 0.0
    %2431 = vmatprep.subr.mxu0 0.0
    %2432 = vmatpush1.msra.mxu0 0.0
    %2433 = vmatprep.subr.mxu0 0.0
    %2434 = vmatpush1.msra.mxu0 0.0
    %2435 = vmatprep.subr.mxu0 0.0
    %2436 = vmatpush1.msra.mxu0 0.0
    %2437 = vmatprep.subr.mxu0 0.0
    %2438 = vmatpush1.msra.mxu0 0.0
    %2439 = vmatprep.subr.mxu0 0.0
    %2440 = vmatpush1.msra.mxu0 0.0
    %2441 = vmatprep.subr.mxu0 0.0
    %2442 = vmatpush1.msra.mxu0 0.0
    %2443 = vmatprep.subr.mxu0 0.0
    %2444 = vmatpush1.msra.mxu0 0.0
    %2445 = vmatprep.subr.mxu0 0.0
    %2446 = vmatpush1.msra.mxu0 0.0
    %2447 = vmatprep.subr.mxu0 0.0
    %2448 = vmatpush1.msra.mxu0 0.0
    %2449 = vmatprep.subr.mxu0 0.0
    %2450 = vmatpush1.msra.mxu0 0.0
    %2451 = vmatprep.subr.mxu0 0.0
    %2452 = vmatpush1.msra.mxu0 0.0
    %2453 = vmatprep.subr.mxu0 0.0
    %2454 = vmatpush1.msra.mxu0 0.0
    %2455 = vmatprep.subr.mxu0 0.0
    %2456 = vmatpush1.msra.mxu0 0.0
    %2457 = vmatprep.subr.mxu0 0.0
    %2458 = vmatpush1.msra.mxu0 0.0
    %2459 = vmatprep.subr.mxu0 0.0
    %2460 = vmatpush1.msra.mxu0 0.0
    %2461 = vmatprep.subr.mxu0 0.0
    %2462 = vmatpush1.msra.mxu0 0.0
    %2463 = vmatprep.subr.mxu0 0.0
    %2464 = vmatpush1.msra.mxu0 0.0
    %2465 = vmatprep.subr.mxu0 0.0
    %2466 = vmatpush1.msra.mxu0 0.0
    %2467 = vmatprep.subr.mxu0 0.0
    %2468 = vmatpush1.msra.mxu0 0.0
    %2469 = vmatprep.subr.mxu0 0.0
    %2470 = vmatpush1.msra.mxu0 0.0
    %2471 = vmatprep.subr.mxu0 0.0
    %2472 = vmatpush1.msra.mxu0 0.0
    %2473 = vmatprep.subr.mxu0 0.0
    %2474 = vmatpush1.msra.mxu0 0.0
    %2475 = vmatprep.subr.mxu0 0.0
    %2476 = vmatpush1.msra.mxu0 0.0
    %2477 = vmatprep.subr.mxu0 0.0
    %2478 = vmatpush1.msra.mxu0 0.0
    %2479 = vmatprep.mubr.f32.mxu0 0.0
    %2480 = vmatmul.mubr.f32.gmra.mrb[0].mxu0 %v2410
    %v2481 = vpop.f32.mrb[0].mxu0
    %v2482 = vadd.f32 0.0, %v2481
    %v2483 = vpop.f32.mrb[0].mxu0
    %2484 = vmatprep.mubr.f32.mxu0 0.0
    %2485 = vmatmul.mubr.f32.gmra.mrb[0].mxu0 %v2413
    %v2486 = vpop.f32.mrb[0].mxu0
    %v2487 = vadd.f32 0.0, %v2486
    %v2488 = vpop.f32.mrb[0].mxu0
    %2489 = vdwg.mxu0
    %v2491 = vsel %vm1973, %v2147, 0
    %v2494 = vsel %vm1973, %v2148, 0
    %2496 = vmatprep.subr.mxu0 0.0
    %2497 = vmatpush1.msra.mxu0 %v1580
    %2498 = vmatprep.subr.mxu0 0.0
    %2499 = vmatpush1.msra.mxu0 0.0
    %2500 = vmatprep.subr.mxu0 0.0
    %2501 = vmatpush1.msra.mxu0 0.0
    %2502 = vmatprep.subr.mxu0 0.0
    %2503 = vmatpush1.msra.mxu0 0.0
    %2504 = vmatprep.subr.mxu0 0.0
    %2505 = vmatpush1.msra.mxu0 0.0
    %2506 = vmatprep.subr.mxu0 0.0
    %2507 = vmatpush1.msra.mxu0 0.0
    %2508 = vmatprep.subr.mxu0 0.0
    %2509 = vmatpush1.msra.mxu0 0.0
    %2510 = vmatprep.subr.mxu0 0.0
    %2511 = vmatpush1.msra.mxu0 0.0
    %2512 = vmatprep.subr.mxu0 0.0
    %2513 = vmatpush1.msra.mxu0 0.0
    %2514 = vmatprep.subr.mxu0 0.0
    %2515 = vmatpush1.msra.mxu0 0.0
    %2516 = vmatprep.subr.mxu0 0.0
    %2517 = vmatpush1.msra.mxu0 0.0
    %2518 = vmatprep.subr.mxu0 0.0
    %2519 = vmatpush1.msra.mxu0 0.0
    %2520 = vmatprep.subr.mxu0 0.0
    %2521 = vmatpush1.msra.mxu0 0.0
    %2522 = vmatprep.subr.mxu0 0.0
    %2523 = vmatpush1.msra.mxu0 0.0
    %2524 = vmatprep.subr.mxu0 0.0
    %2525 = vmatpush1.msra.mxu0 0.0
    %2526 = vmatprep.subr.mxu0 0.0
    %2527 = vmatpush1.msra.mxu0 0.0
    %2528 = vmatprep.subr.mxu0 0.0
    %2529 = vmatpush1.msra.mxu0 0.0
    %2530 = vmatprep.subr.mxu0 0.0
    %2531 = vmatpush1.msra.mxu0 0.0
    %2532 = vmatprep.subr.mxu0 0.0
    %2533 = vmatpush1.msra.mxu0 0.0
    %2534 = vmatprep.subr.mxu0 0.0
    %2535 = vmatpush1.msra.mxu0 0.0
    %2536 = vmatprep.subr.mxu0 0.0
    %2537 = vmatpush1.msra.mxu0 0.0
    %2538 = vmatprep.subr.mxu0 0.0
    %2539 = vmatpush1.msra.mxu0 0.0
    %2540 = vmatprep.subr.mxu0 0.0
    %2541 = vmatpush1.msra.mxu0 0.0
    %2542 = vmatprep.subr.mxu0 0.0
    %2543 = vmatpush1.msra.mxu0 0.0
    %2544 = vmatprep.subr.mxu0 0.0
    %2545 = vmatpush1.msra.mxu0 0.0
    %2546 = vmatprep.subr.mxu0 0.0
    %2547 = vmatpush1.msra.mxu0 0.0
    %2548 = vmatprep.subr.mxu0 0.0
    %2549 = vmatpush1.msra.mxu0 0.0
    %2550 = vmatprep.subr.mxu0 0.0
    %2551 = vmatpush1.msra.mxu0 0.0
    %2552 = vmatprep.subr.mxu0 0.0
    %2553 = vmatpush1.msra.mxu0 0.0
    %2554 = vmatprep.subr.mxu0 0.0
    %2555 = vmatpush1.msra.mxu0 0.0
    %2556 = vmatprep.subr.mxu0 0.0
    %2557 = vmatpush1.msra.mxu0 0.0
    %2558 = vmatprep.subr.mxu0 0.0
    %2559 = vmatpush1.msra.mxu0 0.0
    %2560 = vmatprep.mubr.f32.mxu0 0.0
    %2561 = vmatmul.mubr.f32.gmra.mrb[0].mxu0 %v2491
    %v2562 = vpop.f32.mrb[0].mxu0
    %v2563 = vadd.f32 0.0, %v2562
    %v2564 = vpop.f32.mrb[0].mxu0
    %2565 = vmatprep.mubr.f32.mxu0 0.0
    %2566 = vmatmul.mubr.f32.gmra.mrb[0].mxu0 %v2494
    %v2567 = vpop.f32.mrb[0].mxu0
    %v2568 = vadd.f32 0.0, %v2567
    %v2569 = vpop.f32.mrb[0].mxu0
    %2570 = vdwg.mxu0
    %v2572 = vsel %vm1973, %v2149, 0
    %v2575 = vsel %vm1973, %v2150, 0
    %2577 = vmatprep.subr.mxu0 0.0
    %2578 = vmatpush1.msra.mxu0 %v1653
    %2579 = vmatprep.subr.mxu0 0.0
    %2580 = vmatpush1.msra.mxu0 0.0
    %2581 = vmatprep.subr.mxu0 0.0
    %2582 = vmatpush1.msra.mxu0 0.0
    %2583 = vmatprep.subr.mxu0 0.0
    %2584 = vmatpush1.msra.mxu0 0.0
    %2585 = vmatprep.subr.mxu0 0.0
    %2586 = vmatpush1.msra.mxu0 0.0
    %2587 = vmatprep.subr.mxu0 0.0
    %2588 = vmatpush1.msra.mxu0 0.0
    %2589 = vmatprep.subr.mxu0 0.0
    %2590 = vmatpush1.msra.mxu0 0.0
    %2591 = vmatprep.subr.mxu0 0.0
    %2592 = vmatpush1.msra.mxu0 0.0
    %2593 = vmatprep.subr.mxu0 0.0
    %2594 = vmatpush1.msra.mxu0 0.0
    %2595 = vmatprep.subr.mxu0 0.0
    %2596 = vmatpush1.msra.mxu0 0.0
    %2597 = vmatprep.subr.mxu0 0.0
    %2598 = vmatpush1.msra.mxu0 0.0
    %2599 = vmatprep.subr.mxu0 0.0
    %2600 = vmatpush1.msra.mxu0 0.0
    %2601 = vmatprep.subr.mxu0 0.0
    %2602 = vmatpush1.msra.mxu0 0.0
    %2603 = vmatprep.subr.mxu0 0.0
    %2604 = vmatpush1.msra.mxu0 0.0
    %2605 = vmatprep.subr.mxu0 0.0
    %2606 = vmatpush1.msra.mxu0 0.0
    %2607 = vmatprep.subr.mxu0 0.0
    %2608 = vmatpush1.msra.mxu0 0.0
    %2609 = vmatprep.subr.mxu0 0.0
    %2610 = vmatpush1.msra.mxu0 0.0
    %2611 = vmatprep.subr.mxu0 0.0
    %2612 = vmatpush1.msra.mxu0 0.0
    %2613 = vmatprep.subr.mxu0 0.0
    %2614 = vmatpush1.msra.mxu0 0.0
    %2615 = vmatprep.subr.mxu0 0.0
    %2616 = vmatpush1.msra.mxu0 0.0
    %2617 = vmatprep.subr.mxu0 0.0
    %2618 = vmatpush1.msra.mxu0 0.0
    %2619 = vmatprep.subr.mxu0 0.0
    %2620 = vmatpush1.msra.mxu0 0.0
    %2621 = vmatprep.subr.mxu0 0.0
    %2622 = vmatpush1.msra.mxu0 0.0
    %2623 = vmatprep.subr.mxu0 0.0
    %2624 = vmatpush1.msra.mxu0 0.0
    %2625 = vmatprep.subr.mxu0 0.0
    %2626 = vmatpush1.msra.mxu0 0.0
    %2627 = vmatprep.subr.mxu0 0.0
    %2628 = vmatpush1.msra.mxu0 0.0
    %2629 = vmatprep.subr.mxu0 0.0
    %2630 = vmatpush1.msra.mxu0 0.0
    %2631 = vmatprep.subr.mxu0 0.0
    %2632 = vmatpush1.msra.mxu0 0.0
    %2633 = vmatprep.subr.mxu0 0.0
    %2634 = vmatpush1.msra.mxu0 0.0
    %2635 = vmatprep.subr.mxu0 0.0
    %2636 = vmatpush1.msra.mxu0 0.0
    %2637 = vmatprep.subr.mxu0 0.0
    %2638 = vmatpush1.msra.mxu0 0.0
    %2639 = vmatprep.subr.mxu0 0.0
    %2640 = vmatpush1.msra.mxu0 0.0
    %2641 = vmatprep.mubr.f32.mxu0 0.0
    %2642 = vmatmul.mubr.f32.gmra.mrb[0].mxu0 %v2572
    %v2643 = vpop.f32.mrb[0].mxu0
    %v2644 = vadd.f32 0.0, %v2643
    %v2645 = vpop.f32.mrb[0].mxu0
    %2646 = vmatprep.mubr.f32.mxu0 0.0
    %2647 = vmatmul.mubr.f32.gmra.mrb[0].mxu0 %v2575
    %v2648 = vpop.f32.mrb[0].mxu0
    %v2649 = vadd.f32 0.0, %v2648
    %v2650 = vpop.f32.mrb[0].mxu0
    %2651 = vdwg.mxu0
    %v2653 = vsel %vm1973, %v2320, 0
    %v2656 = vsel %vm1973, %v2321, 0
    %2658 = vmatprep.subr.mxu0 0.0
    %2659 = vmatpush1.msra.mxu0 %v1726
    %2660 = vmatprep.subr.mxu0 0.0
    %2661 = vmatpush1.msra.mxu0 0.0
    %2662 = vmatprep.subr.mxu0 0.0
    %2663 = vmatpush1.msra.mxu0 0.0
    %2664 = vmatprep.subr.mxu0 0.0
    %2665 = vmatpush1.msra.mxu0 0.0
    %2666 = vmatprep.subr.mxu0 0.0
    %2667 = vmatpush1.msra.mxu0 0.0
    %2668 = vmatprep.subr.mxu0 0.0
    %2669 = vmatpush1.msra.mxu0 0.0
    %2670 = vmatprep.subr.mxu0 0.0
    %2671 = vmatpush1.msra.mxu0 0.0
    %2672 = vmatprep.subr.mxu0 0.0
    %2673 = vmatpush1.msra.mxu0 0.0
    %2674 = vmatprep.subr.mxu0 0.0
    %2675 = vmatpush1.msra.mxu0 0.0
    %2676 = vmatprep.subr.mxu0 0.0
    %2677 = vmatpush1.msra.mxu0 0.0
    %2678 = vmatprep.subr.mxu0 0.0
    %2679 = vmatpush1.msra.mxu0 0.0
    %2680 = vmatprep.subr.mxu0 0.0
    %2681 = vmatpush1.msra.mxu0 0.0
    %2682 = vmatprep.subr.mxu0 0.0
    %2683 = vmatpush1.msra.mxu0 0.0
    %2684 = vmatprep.subr.mxu0 0.0
    %2685 = vmatpush1.msra.mxu0 0.0
    %2686 = vmatprep.subr.mxu0 0.0
    %2687 = vmatpush1.msra.mxu0 0.0
    %2688 = vmatprep.subr.mxu0 0.0
    %2689 = vmatpush1.msra.mxu0 0.0
    %2690 = vmatprep.subr.mxu0 0.0
    %2691 = vmatpush1.msra.mxu0 0.0
    %2692 = vmatprep.subr.mxu0 0.0
    %2693 = vmatpush1.msra.mxu0 0.0
    %2694 = vmatprep.subr.mxu0 0.0
    %2695 = vmatpush1.msra.mxu0 0.0
    %2696 = vmatprep.subr.mxu0 0.0
    %2697 = vmatpush1.msra.mxu0 0.0
    %2698 = vmatprep.subr.mxu0 0.0
    %2699 = vmatpush1.msra.mxu0 0.0
    %2700 = vmatprep.subr.mxu0 0.0
    %2701 = vmatpush1.msra.mxu0 0.0
    %2702 = vmatprep.subr.mxu0 0.0
    %2703 = vmatpush1.msra.mxu0 0.0
    %2704 = vmatprep.subr.mxu0 0.0
    %2705 = vmatpush1.msra.mxu0 0.0
    %2706 = vmatprep.subr.mxu0 0.0
    %2707 = vmatpush1.msra.mxu0 0.0
    %2708 = vmatprep.subr.mxu0 0.0
    %2709 = vmatpush1.msra.mxu0 0.0
    %2710 = vmatprep.subr.mxu0 0.0
    %2711 = vmatpush1.msra.mxu0 0.0
    %2712 = vmatprep.subr.mxu0 0.0
    %2713 = vmatpush1.msra.mxu0 0.0
    %2714 = vmatprep.subr.mxu0 0.0
    %2715 = vmatpush1.msra.mxu0 0.0
    %2716 = vmatprep.subr.mxu0 0.0
    %2717 = vmatpush1.msra.mxu0 0.0
    %2718 = vmatprep.subr.mxu0 0.0
    %2719 = vmatpush1.msra.mxu0 0.0
    %2720 = vmatprep.subr.mxu0 0.0
    %2721 = vmatpush1.msra.mxu0 0.0
    %2722 = vmatprep.mubr.f32.mxu0 0.0
    %2723 = vmatmul.mubr.f32.gmra.mrb[0].mxu0 %v2653
    %v2724 = vpop.f32.mrb[0].mxu0
    %v2725 = vadd.f32 0.0, %v2724
    %v2726 = vpop.f32.mrb[0].mxu0
    %2727 = vmatprep.mubr.f32.mxu0 0.0
    %2728 = vmatmul.mubr.f32.gmra.mrb[0].mxu0 %v2656
    %v2729 = vpop.f32.mrb[0].mxu0
    %v2730 = vadd.f32 0.0, %v2729
    %v2731 = vpop.f32.mrb[0].mxu0
    %2732 = vdwg.mxu0
    %v2734 = vsel %vm1973, %v2322, 0
    %v2737 = vsel %vm1973, %v2323, 0
    %2739 = vmatprep.subr.mxu0 0.0
    %2740 = vmatpush1.msra.mxu0 %v1799
    %2741 = vmatprep.subr.mxu0 0.0
    %2742 = vmatpush1.msra.mxu0 0.0
    %2743 = vmatprep.subr.mxu0 0.0
    %2744 = vmatpush1.msra.mxu0 0.0
    %2745 = vmatprep.subr.mxu0 0.0
    %2746 = vmatpush1.msra.mxu0 0.0
    %2747 = vmatprep.subr.mxu0 0.0
    %2748 = vmatpush1.msra.mxu0 0.0
    %2749 = vmatprep.subr.mxu0 0.0
    %2750 = vmatpush1.msra.mxu0 0.0
    %2751 = vmatprep.subr.mxu0 0.0
    %2752 = vmatpush1.msra.mxu0 0.0
    %2753 = vmatprep.subr.mxu0 0.0
    %2754 = vmatpush1.msra.mxu0 0.0
    %2755 = vmatprep.subr.mxu0 0.0
    %2756 = vmatpush1.msra.mxu0 0.0
    %2757 = vmatprep.subr.mxu0 0.0
    %2758 = vmatpush1.msra.mxu0 0.0
    %2759 = vmatprep.subr.mxu0 0.0
    %2760 = vmatpush1.msra.mxu0 0.0
    %2761 = vmatprep.subr.mxu0 0.0
    %2762 = vmatpush1.msra.mxu0 0.0
    %2763 = vmatprep.subr.mxu0 0.0
    %2764 = vmatpush1.msra.mxu0 0.0
    %2765 = vmatprep.subr.mxu0 0.0
    %2766 = vmatpush1.msra.mxu0 0.0
    %2767 = vmatprep.subr.mxu0 0.0
    %2768 = vmatpush1.msra.mxu0 0.0
    %2769 = vmatprep.subr.mxu0 0.0
    %2770 = vmatpush1.msra.mxu0 0.0
    %2771 = vmatprep.subr.mxu0 0.0
    %2772 = vmatpush1.msra.mxu0 0.0
    %2773 = vmatprep.subr.mxu0 0.0
    %2774 = vmatpush1.msra.mxu0 0.0
    %2775 = vmatprep.subr.mxu0 0.0
    %2776 = vmatpush1.msra.mxu0 0.0
    %2777 = vmatprep.subr.mxu0 0.0
    %2778 = vmatpush1.msra.mxu0 0.0
    %2779 = vmatprep.subr.mxu0 0.0
    %2780 = vmatpush1.msra.mxu0 0.0
    %2781 = vmatprep.subr.mxu0 0.0
    %2782 = vmatpush1.msra.mxu0 0.0
    %2783 = vmatprep.subr.mxu0 0.0
    %2784 = vmatpush1.msra.mxu0 0.0
    %2785 = vmatprep.subr.mxu0 0.0
    %2786 = vmatpush1.msra.mxu0 0.0
    %2787 = vmatprep.subr.mxu0 0.0
    %2788 = vmatpush1.msra.mxu0 0.0
    %2789 = vmatprep.subr.mxu0 0.0
    %2790 = vmatpush1.msra.mxu0 0.0
    %2791 = vmatprep.subr.mxu0 0.0
    %2792 = vmatpush1.msra.mxu0 0.0
    %2793 = vmatprep.subr.mxu0 0.0
    %2794 = vmatpush1.msra.mxu0 0.0
    %2795 = vmatprep.subr.mxu0 0.0
    %2796 = vmatpush1.msra.mxu0 0.0
    %2797 = vmatprep.subr.mxu0 0.0
    %2798 = vmatpush1.msra.mxu0 0.0
    %2799 = vmatprep.subr.mxu0 0.0
    %2800 = vmatpush1.msra.mxu0 0.0
    %2801 = vmatprep.subr.mxu0 0.0
    %2802 = vmatpush1.msra.mxu0 0.0
    %2803 = vmatprep.mubr.f32.mxu0 0.0
    %2804 = vmatmul.mubr.f32.gmra.mrb[0].mxu0 %v2734
    %v2805 = vpop.f32.mrb[0].mxu0
    %v2806 = vadd.f32 0.0, %v2805
    %v2807 = vpop.f32.mrb[0].mxu0
    %2808 = vmatprep.mubr.f32.mxu0 0.0
    %2809 = vmatmul.mubr.f32.gmra.mrb[0].mxu0 %v2737
    %v2810 = vpop.f32.mrb[0].mxu0
    %v2811 = vadd.f32 0.0, %v2810
    %v2812 = vpop.f32.mrb[0].mxu0
    %2813 = vdwg.mxu0
    %v2815 = vsel %vm1973, %v2324, 0
    %v2818 = vsel %vm1973, %v2325, 0
    %2820 = vmatprep.subr.mxu0 0.0
    %2821 = vmatpush1.msra.mxu0 %v1872
    %2822 = vmatprep.subr.mxu0 0.0
    %2823 = vmatpush1.msra.mxu0 0.0
    %2824 = vmatprep.subr.mxu0 0.0
    %2825 = vmatpush1.msra.mxu0 0.0
    %2826 = vmatprep.subr.mxu0 0.0
    %2827 = vmatpush1.msra.mxu0 0.0
    %2828 = vmatprep.subr.mxu0 0.0
    %2829 = vmatpush1.msra.mxu0 0.0
    %2830 = vmatprep.subr.mxu0 0.0
    %2831 = vmatpush1.msra.mxu0 0.0
    %2832 = vmatprep.subr.mxu0 0.0
    %2833 = vmatpush1.msra.mxu0 0.0
    %2834 = vmatprep.subr.mxu0 0.0
    %2835 = vmatpush1.msra.mxu0 0.0
    %2836 = vmatprep.subr.mxu0 0.0
    %2837 = vmatpush1.msra.mxu0 0.0
    %2838 = vmatprep.subr.mxu0 0.0
    %2839 = vmatpush1.msra.mxu0 0.0
    %2840 = vmatprep.subr.mxu0 0.0
    %2841 = vmatpush1.msra.mxu0 0.0
    %2842 = vmatprep.subr.mxu0 0.0
    %2843 = vmatpush1.msra.mxu0 0.0
    %2844 = vmatprep.subr.mxu0 0.0
    %2845 = vmatpush1.msra.mxu0 0.0
    %2846 = vmatprep.subr.mxu0 0.0
    %2847 = vmatpush1.msra.mxu0 0.0
    %2848 = vmatprep.subr.mxu0 0.0
    %2849 = vmatpush1.msra.mxu0 0.0
    %2850 = vmatprep.subr.mxu0 0.0
    %2851 = vmatpush1.msra.mxu0 0.0
    %2852 = vmatprep.subr.mxu0 0.0
    %2853 = vmatpush1.msra.mxu0 0.0
    %2854 = vmatprep.subr.mxu0 0.0
    %2855 = vmatpush1.msra.mxu0 0.0
    %2856 = vmatprep.subr.mxu0 0.0
    %2857 = vmatpush1.msra.mxu0 0.0
    %2858 = vmatprep.subr.mxu0 0.0
    %2859 = vmatpush1.msra.mxu0 0.0
    %2860 = vmatprep.subr.mxu0 0.0
    %2861 = vmatpush1.msra.mxu0 0.0
    %2862 = vmatprep.subr.mxu0 0.0
    %2863 = vmatpush1.msra.mxu0 0.0
    %2864 = vmatprep.subr.mxu0 0.0
    %2865 = vmatpush1.msra.mxu0 0.0
    %2866 = vmatprep.subr.mxu0 0.0
    %2867 = vmatpush1.msra.mxu0 0.0
    %2868 = vmatprep.subr.mxu0 0.0
    %2869 = vmatpush1.msra.mxu0 0.0
    %2870 = vmatprep.subr.mxu0 0.0
    %2871 = vmatpush1.msra.mxu0 0.0
    %2872 = vmatprep.subr.mxu0 0.0
    %2873 = vmatpush1.msra.mxu0 0.0
    %2874 = vmatprep.subr.mxu0 0.0
    %2875 = vmatpush1.msra.mxu0 0.0
    %2876 = vmatprep.subr.mxu0 0.0
    %2877 = vmatpush1.msra.mxu0 0.0
    %2878 = vmatprep.subr.mxu0 0.0
    %2879 = vmatpush1.msra.mxu0 0.0
    %2880 = vmatprep.subr.mxu0 0.0
    %2881 = vmatpush1.msra.mxu0 0.0
    %2882 = vmatprep.subr.mxu0 0.0
    %2883 = vmatpush1.msra.mxu0 0.0
    %2884 = vmatprep.mubr.f32.mxu0 0.0
    %2885 = vmatmul.mubr.f32.gmra.mrb[0].mxu0 %v2815
    %v2886 = vpop.f32.mrb[0].mxu0
    %v2887 = vadd.f32 0.0, %v2886
    %v2888 = vpop.f32.mrb[0].mxu0
    %2889 = vmatprep.mubr.f32.mxu0 0.0
    %2890 = vmatmul.mubr.f32.gmra.mrb[0].mxu0 %v2818
    %v2891 = vpop.f32.mrb[0].mxu0
    %v2892 = vadd.f32 0.0, %v2891
    %v2893 = vpop.f32.mrb[0].mxu0
    %2894 = vdwg.mxu0
    %v2896 = vsel %vm1973, %v2326, 0
    %v2899 = vsel %vm1973, %v2327, 0
    %2901 = vmatprep.subr.mxu0 0.0
    %2902 = vmatpush1.msra.mxu0 %v1945
    %2903 = vmatprep.subr.mxu0 0.0
    %2904 = vmatpush1.msra.mxu0 0.0
    %2905 = vmatprep.subr.mxu0 0.0
    %2906 = vmatpush1.msra.mxu0 0.0
    %2907 = vmatprep.subr.mxu0 0.0
    %2908 = vmatpush1.msra.mxu0 0.0
    %2909 = vmatprep.subr.mxu0 0.0
    %2910 = vmatpush1.msra.mxu0 0.0
    %2911 = vmatprep.subr.mxu0 0.0
    %2912 = vmatpush1.msra.mxu0 0.0
    %2913 = vmatprep.subr.mxu0 0.0
    %2914 = vmatpush1.msra.mxu0 0.0
    %2915 = vmatprep.subr.mxu0 0.0
    %2916 = vmatpush1.msra.mxu0 0.0
    %2917 = vmatprep.subr.mxu0 0.0
    %2918 = vmatpush1.msra.mxu0 0.0
    %2919 = vmatprep.subr.mxu0 0.0
    %2920 = vmatpush1.msra.mxu0 0.0
    %2921 = vmatprep.subr.mxu0 0.0
    %2922 = vmatpush1.msra.mxu0 0.0
    %2923 = vmatprep.subr.mxu0 0.0
    %2924 = vmatpush1.msra.mxu0 0.0
    %2925 = vmatprep.subr.mxu0 0.0
    %2926 = vmatpush1.msra.mxu0 0.0
    %2927 = vmatprep.subr.mxu0 0.0
    %2928 = vmatpush1.msra.mxu0 0.0
    %2929 = vmatprep.subr.mxu0 0.0
    %2930 = vmatpush1.msra.mxu0 0.0
    %2931 = vmatprep.subr.mxu0 0.0
    %2932 = vmatpush1.msra.mxu0 0.0
    %2933 = vmatprep.subr.mxu0 0.0
    %2934 = vmatpush1.msra.mxu0 0.0
    %2935 = vmatprep.subr.mxu0 0.0
    %2936 = vmatpush1.msra.mxu0 0.0
    %2937 = vmatprep.subr.mxu0 0.0
    %2938 = vmatpush1.msra.mxu0 0.0
    %2939 = vmatprep.subr.mxu0 0.0
    %2940 = vmatpush1.msra.mxu0 0.0
    %2941 = vmatprep.subr.mxu0 0.0
    %2942 = vmatpush1.msra.mxu0 0.0
    %2943 = vmatprep.subr.mxu0 0.0
    %2944 = vmatpush1.msra.mxu0 0.0
    %2945 = vmatprep.subr.mxu0 0.0
    %2946 = vmatpush1.msra.mxu0 0.0
    %2947 = vmatprep.subr.mxu0 0.0
    %2948 = vmatpush1.msra.mxu0 0.0
    %2949 = vmatprep.subr.mxu0 0.0
    %2950 = vmatpush1.msra.mxu0 0.0
    %2951 = vmatprep.subr.mxu0 0.0
    %2952 = vmatpush1.msra.mxu0 0.0
    %2953 = vmatprep.subr.mxu0 0.0
    %2954 = vmatpush1.msra.mxu0 0.0
    %2955 = vmatprep.subr.mxu0 0.0
    %2956 = vmatpush1.msra.mxu0 0.0
    %2957 = vmatprep.subr.mxu0 0.0
    %2958 = vmatpush1.msra.mxu0 0.0
    %2959 = vmatprep.subr.mxu0 0.0
    %2960 = vmatpush1.msra.mxu0 0.0
    %2961 = vmatprep.subr.mxu0 0.0
    %2962 = vmatpush1.msra.mxu0 0.0
    %2963 = vmatprep.subr.mxu0 0.0
    %2964 = vmatpush1.msra.mxu0 0.0
    %2965 = vmatprep.mubr.f32.mxu0 0.0
    %2966 = vmatmul.mubr.f32.gmra.mrb[0].mxu0 %v2896
    %v2967 = vpop.f32.mrb[0].mxu0
    %v2968 = vadd.f32 0.0, %v2967
    %v2969 = vpop.f32.mrb[0].mxu0
    %2970 = vmatprep.mubr.f32.mxu0 0.0
    %2971 = vmatmul.mubr.f32.gmra.mrb[0].mxu0 %v2899
    %v2972 = vpop.f32.mrb[0].mxu0
    %v2973 = vadd.f32 0.0, %v2972
    %v2974 = vpop.f32.mrb[0].mxu0
    %2975 = vdwg.mxu0
    %v2976 = vmul.f32 %v616, %v2401
    %v2977 = vmul.f32 %v618, %v2406
    %v2978 = vmul.f32 %v620, %v2482
    %v2979 = vmul.f32 %v622, %v2487
    %v2980 = vmul.f32 %v624, %v2563
    %v2981 = vmul.f32 %v626, %v2568
    %v2982 = vmul.f32 %v628, %v2644
    %v2983 = vmul.f32 %v630, %v2649
    %v2984 = vadd.f32 %v144, %v2976
    %v2985 = vadd.f32 %v145, %v2977
    %v2986 = vadd.f32 %v146, %v2978
    %v2987 = vadd.f32 %v147, %v2979
    %v2988 = vadd.f32 %v148, %v2980
    %v2989 = vadd.f32 %v149, %v2981
    %v2990 = vadd.f32 %v150, %v2982
    %v2991 = vadd.f32 %v151, %v2983
    %v2992 = vsub.f32 1.0, %v616
    %v2993 = vsub.f32 1.0, %v618
    %v2994 = vsub.f32 1.0, %v620
    %v2995 = vsub.f32 1.0, %v622
    %v2996 = vsub.f32 1.0, %v624
    %v2997 = vsub.f32 1.0, %v626
    %v2998 = vsub.f32 1.0, %v628
    %v2999 = vsub.f32 1.0, %v630
    %v3000 = vmul.f32 %v2992, %v2725
    %v3001 = vmul.f32 %v2993, %v2730
    %v3002 = vmul.f32 %v2994, %v2806
    %v3003 = vmul.f32 %v2995, %v2811
    %v3004 = vmul.f32 %v2996, %v2887
    %v3005 = vmul.f32 %v2997, %v2892
    %v3006 = vmul.f32 %v2998, %v2968
    %v3007 = vmul.f32 %v2999, %v2973
    %v3008 = vadd.f32 %v2984, %v3000
    %v3009 = vadd.f32 %v2985, %v3001
    %v3010 = vadd.f32 %v2986, %v3002
    %v3011 = vadd.f32 %v2987, %v3003
    %v3012 = vadd.f32 %v2988, %v3004
    %v3013 = vadd.f32 %v2989, %v3005
    %v3014 = vadd.f32 %v2990, %v3006
    %v3015 = vadd.f32 %v2991, %v3007
    %v3016 = vld [vmem:[%s7] sm:$0x1]
    %v3017 = vld [vmem:[%s8] sm:$0x1]
    %3018 = vadd.xlane.f32.xlu0 %v3008
    %v3019 = vpop.xlane.xlu0 %3018
    %3020 = vadd.xlane.f32.xlu0 %v3009
    %v3021 = vpop.xlane.xlu0 %3020
    %3022 = vadd.xlane.f32.xlu0 %v3010
    %v3023 = vpop.xlane.xlu0 %3022
    %3024 = vadd.xlane.f32.xlu0 %v3011
    %v3025 = vpop.xlane.xlu0 %3024
    %3026 = vadd.xlane.f32.xlu0 %v3012
    %v3027 = vpop.xlane.xlu0 %3026
    %3028 = vadd.xlane.f32.xlu0 %v3013
    %v3029 = vpop.xlane.xlu0 %3028
    %3030 = vadd.xlane.f32.xlu0 %v3014
    %v3031 = vpop.xlane.xlu0 %3030
    %3032 = vadd.xlane.f32.xlu0 %v3015
    %v3033 = vpop.xlane.xlu0 %3032
    %v3034 = vmul.f32 %v3019, %v170
    %v3035 = vmul.f32 %v3021, %v170
    %v3036 = vmul.f32 %v3023, %v170
    %v3037 = vmul.f32 %v3025, %v170
    %v3038 = vmul.f32 %v3027, %v170
    %v3039 = vmul.f32 %v3029, %v170
    %v3040 = vmul.f32 %v3031, %v170
    %v3041 = vmul.f32 %v3033, %v170
    %v3042 = vsub.f32 %v3008, %v3034
    %v3043 = vsub.f32 %v3009, %v3035
    %v3044 = vsub.f32 %v3010, %v3036
    %v3045 = vsub.f32 %v3011, %v3037
    %v3046 = vsub.f32 %v3012, %v3038
    %v3047 = vsub.f32 %v3013, %v3039
    %v3048 = vsub.f32 %v3014, %v3040
    %v3049 = vsub.f32 %v3015, %v3041
    %v3050 = vmul.f32 %v3042, %v3042
    %v3051 = vmul.f32 %v3043, %v3043
    %v3052 = vmul.f32 %v3044, %v3044
    %v3053 = vmul.f32 %v3045, %v3045
    %v3054 = vmul.f32 %v3046, %v3046
    %v3055 = vmul.f32 %v3047, %v3047
    %v3056 = vmul.f32 %v3048, %v3048
    %v3057 = vmul.f32 %v3049, %v3049
    %3058 = vadd.xlane.f32.xlu0 %v3050
    %v3059 = vpop.xlane.xlu0 %3058
    %3060 = vadd.xlane.f32.xlu0 %v3051
    %v3061 = vpop.xlane.xlu0 %3060
    %3062 = vadd.xlane.f32.xlu0 %v3052
    %v3063 = vpop.xlane.xlu0 %3062
    %3064 = vadd.xlane.f32.xlu0 %v3053
    %v3065 = vpop.xlane.xlu0 %3064
    %3066 = vadd.xlane.f32.xlu0 %v3054
    %v3067 = vpop.xlane.xlu0 %3066
    %3068 = vadd.xlane.f32.xlu0 %v3055
    %v3069 = vpop.xlane.xlu0 %3068
    %3070 = vadd.xlane.f32.xlu0 %v3056
    %v3071 = vpop.xlane.xlu0 %3070
    %3072 = vadd.xlane.f32.xlu0 %v3057
    %v3073 = vpop.xlane.xlu0 %3072
    %v3074 = vmul.f32 %v3059, %v170
    %v3075 = vmul.f32 %v3061, %v170
    %v3076 = vmul.f32 %v3063, %v170
    %v3077 = vmul.f32 %v3065, %v170
    %v3078 = vmul.f32 %v3067, %v170
    %v3079 = vmul.f32 %v3069, %v170
    %v3080 = vmul.f32 %v3071, %v170
    %v3081 = vmul.f32 %v3073, %v170
    %v3082 = vadd.f32 %v3074, 0.0001
    %v3083 = vadd.f32 %v3075, 0.0001
    %v3084 = vadd.f32 %v3076, 0.0001
    %v3085 = vadd.f32 %v3077, 0.0001
    %v3086 = vadd.f32 %v3078, 0.0001
    %v3087 = vadd.f32 %v3079, 0.0001
    %v3088 = vadd.f32 %v3080, 0.0001
    %v3089 = vadd.f32 %v3081, 0.0001
    %v3090 = vrsqrt.pop %v3082
    %v3091 = vrsqrt.pop %v3083
    %v3092 = vrsqrt.pop %v3084
    %v3093 = vrsqrt.pop %v3085
    %v3094 = vrsqrt.pop %v3086
    %v3095 = vrsqrt.pop %v3087
    %v3096 = vrsqrt.pop %v3088
    %v3097 = vrsqrt.pop %v3089
    %v3098 = vmul.f32 %v3042, %v3090
    %v3099 = vmul.f32 %v3043, %v3091
    %v3100 = vmul.f32 %v3044, %v3092
    %v3101 = vmul.f32 %v3045, %v3093
    %v3102 = vmul.f32 %v3046, %v3094
    %v3103 = vmul.f32 %v3047, %v3095
    %v3104 = vmul.f32 %v3048, %v3096
    %v3105 = vmul.f32 %v3049, %v3097
    %v3107 = vlaneseq
    %v3108 = vshrl.u32 %v3107, 7
    %v3109 = vsub.s32 0, %v3108
    %v3110 = vrot.slane %v3016, %v3109
    %v3112 = vmul.f32 %v3098, %v3110
    %v3113 = vmul.f32 %v3099, %v3110
    %v3114 = vmul.f32 %v3100, %v3110
    %v3115 = vmul.f32 %v3101, %v3110
    %v3116 = vmul.f32 %v3102, %v3110
    %v3117 = vmul.f32 %v3103, %v3110
    %v3118 = vmul.f32 %v3104, %v3110
    %v3119 = vmul.f32 %v3105, %v3110
    %v3121 = vlaneseq
    %v3122 = vshrl.u32 %v3121, 7
    %v3123 = vsub.s32 0, %v3122
    %v3124 = vrot.slane %v3017, %v3123
    %v3126 = vadd.f32 %v3112, %v3124
    %v3127 = vadd.f32 %v3113, %v3124
    %v3128 = vadd.f32 %v3114, %v3124
    %v3129 = vadd.f32 %v3115, %v3124
    %v3130 = vadd.f32 %v3116, %v3124
    %v3131 = vadd.f32 %v3117, %v3124
    %v3132 = vadd.f32 %v3118, %v3124
    %v3133 = vadd.f32 %v3119, %v3124
    %v3134 = vld [vmem:[#allocation11] sm:$0xff]
    %v3135 = vld [vmem:[#allocation11 + $0x8] sm:$0xff]
    %v3136 = vld [vmem:[#allocation11 + $0x10] sm:$0xff]
    %v3137 = vld [vmem:[#allocation11 + $0x18] sm:$0xff]
    %v3138 = vld [vmem:[#allocation11 + $0x20] sm:$0xff]
    %v3139 = vld [vmem:[#allocation11 + $0x28] sm:$0xff]
    %v3140 = vld [vmem:[#allocation11 + $0x30] sm:$0xff]
    %v3141 = vld [vmem:[#allocation11 + $0x38] sm:$0xff]
    %v3142 = vld [vmem:[#allocation11 + $0x40] sm:$0xff]
    %v3143 = vld [vmem:[#allocation11 + $0x48] sm:$0xff]
    %v3144 = vld [vmem:[#allocation11 + $0x50] sm:$0xff]
    %v3145 = vld [vmem:[#allocation11 + $0x58] sm:$0xff]
    %v3146 = vld [vmem:[#allocation11 + $0x60] sm:$0xff]
    %v3147 = vld [vmem:[#allocation11 + $0x68] sm:$0xff]
    %v3148 = vld [vmem:[#allocation11 + $0x70] sm:$0xff]
    %v3149 = vld [vmem:[#allocation11 + $0x78] sm:$0xff]
    %v3150 = vld [vmem:[#allocation11 + $0x80] sm:$0xff]
    %v3151 = vld [vmem:[#allocation11 + $0x88] sm:$0xff]
    %v3152 = vld [vmem:[#allocation11 + $0x90] sm:$0xff]
    %v3153 = vld [vmem:[#allocation11 + $0x98] sm:$0xff]
    %v3154 = vld [vmem:[#allocation11 + $0xa0] sm:$0xff]
    %v3155 = vld [vmem:[#allocation11 + $0xa8] sm:$0xff]
    %v3156 = vld [vmem:[#allocation11 + $0xb0] sm:$0xff]
    %v3157 = vld [vmem:[#allocation11 + $0xb8] sm:$0xff]
    %v3158 = vld [vmem:[#allocation11 + $0xc0] sm:$0xff]
    %v3159 = vld [vmem:[#allocation11 + $0xc8] sm:$0xff]
    %v3160 = vld [vmem:[#allocation11 + $0xd0] sm:$0xff]
    %v3161 = vld [vmem:[#allocation11 + $0xd8] sm:$0xff]
    %v3162 = vld [vmem:[#allocation11 + $0xe0] sm:$0xff]
    %v3163 = vld [vmem:[#allocation11 + $0xe8] sm:$0xff]
    %v3164 = vld [vmem:[#allocation11 + $0xf0] sm:$0xff]
    %v3165 = vld [vmem:[#allocation11 + $0xf8] sm:$0xff]
    %v3166 = vld [vmem:[%s12] sm:$0x3]
    %v3168 = vlaneseq
    %v3169 = vshrl.u32 %v3168, 7
    %v3170 = vsub.s32 0, %v3169
    %v3171 = vrot.slane %v3166, %v3170
    %v3172 = vlaneseq
    %v3173 = vshrl.u32 %v3172, 7
    %v3174 = vsub.s32 1, %v3173
    %v3175 = vrot.slane %v3166, %v3174
    %3178 = vmatprep.subr.mxu0 %v3135
    %3179 = vmatpush1.msra.mxu0 %v3134
    %3180 = vmatprep.subr.mxu0 %v3137
    %3181 = vmatpush1.msra.mxu0 %v3136
    %3182 = vmatprep.subr.mxu0 %v3139
    %3183 = vmatpush1.msra.mxu0 %v3138
    %3184 = vmatprep.subr.mxu0 %v3141
    %3185 = vmatpush1.msra.mxu0 %v3140
    %3186 = vmatprep.subr.mxu0 %v3143
    %3187 = vmatpush1.msra.mxu0 %v3142
    %3188 = vmatprep.subr.mxu0 %v3145
    %3189 = vmatpush1.msra.mxu0 %v3144
    %3190 = vmatprep.subr.mxu0 %v3147
    %3191 = vmatpush1.msra.mxu0 %v3146
    %3192 = vmatprep.subr.mxu0 %v3149
    %3193 = vmatpush1.msra.mxu0 %v3148
    %3194 = vmatprep.subr.mxu0 %v3151
    %3195 = vmatpush1.msra.mxu0 %v3150
    %3196 = vmatprep.subr.mxu0 %v3153
    %3197 = vmatpush1.msra.mxu0 %v3152
    %3198 = vmatprep.subr.mxu0 %v3155
    %3199 = vmatpush1.msra.mxu0 %v3154
    %3200 = vmatprep.subr.mxu0 %v3157
    %3201 = vmatpush1.msra.mxu0 %v3156
    %3202 = vmatprep.subr.mxu0 %v3159
    %3203 = vmatpush1.msra.mxu0 %v3158
    %3204 = vmatprep.subr.mxu0 %v3161
    %3205 = vmatpush1.msra.mxu0 %v3160
    %3206 = vmatprep.subr.mxu0 %v3163
    %3207 = vmatpush1.msra.mxu0 %v3162
    %3208 = vmatprep.subr.mxu0 %v3165
    %3209 = vmatpush1.msra.mxu0 %v3164
    %3210 = vmatprep.subr.mxu0 0.0
    %3211 = vmatpush1.msra.mxu0 0.0
    %3212 = vmatprep.subr.mxu0 0.0
    %3213 = vmatpush1.msra.mxu0 0.0
    %3214 = vmatprep.subr.mxu0 0.0
    %3215 = vmatpush1.msra.mxu0 0.0
    %3216 = vmatprep.subr.mxu0 0.0
    %3217 = vmatpush1.msra.mxu0 0.0
    %3218 = vmatprep.subr.mxu0 0.0
    %3219 = vmatpush1.msra.mxu0 0.0
    %3220 = vmatprep.subr.mxu0 0.0
    %3221 = vmatpush1.msra.mxu0 0.0
    %3222 = vmatprep.subr.mxu0 0.0
    %3223 = vmatpush1.msra.mxu0 0.0
    %3224 = vmatprep.subr.mxu0 0.0
    %3225 = vmatpush1.msra.mxu0 0.0
    %3226 = vmatprep.subr.mxu0 0.0
    %3227 = vmatpush1.msra.mxu0 0.0
    %3228 = vmatprep.subr.mxu0 0.0
    %3229 = vmatpush1.msra.mxu0 0.0
    %3230 = vmatprep.subr.mxu0 0.0
    %3231 = vmatpush1.msra.mxu0 0.0
    %3232 = vmatprep.subr.mxu0 0.0
    %3233 = vmatpush1.msra.mxu0 0.0
    %3234 = vmatprep.subr.mxu0 0.0
    %3235 = vmatpush1.msra.mxu0 0.0
    %3236 = vmatprep.subr.mxu0 0.0
    %3237 = vmatpush1.msra.mxu0 0.0
    %3238 = vmatprep.subr.mxu0 0.0
    %3239 = vmatpush1.msra.mxu0 0.0
    %3240 = vmatprep.subr.mxu0 0.0
    %3241 = vmatpush1.msra.mxu0 0.0
    %3242 = vmatprep.mubr.f32.mxu0 0.0
    %3243 = vmatmul.mubr.f32.gmra.mrb[0].mxu0 %v3126
    %v3244 = vpop.f32.mrb[0].mxu0
    %v3245 = vadd.f32 %v3171, %v3244
    %v3246 = vpop.f32.mrb[0].mxu0
    %v3247 = vadd.f32 %v3175, %v3246
    %3248 = vmatprep.mubr.f32.mxu0 0.0
    %3249 = vmatmul.mubr.f32.gmra.mrb[0].mxu0 %v3127
    %v3250 = vpop.f32.mrb[0].mxu0
    %v3251 = vadd.f32 %v3171, %v3250
    %v3252 = vpop.f32.mrb[0].mxu0
    %v3253 = vadd.f32 %v3175, %v3252
    %3254 = vmatprep.mubr.f32.mxu0 0.0
    %3255 = vmatmul.mubr.f32.gmra.mrb[0].mxu0 %v3128
    %v3256 = vpop.f32.mrb[0].mxu0
    %v3257 = vadd.f32 %v3171, %v3256
    %v3258 = vpop.f32.mrb[0].mxu0
    %v3259 = vadd.f32 %v3175, %v3258
    %3260 = vmatprep.mubr.f32.mxu0 0.0
    %3261 = vmatmul.mubr.f32.gmra.mrb[0].mxu0 %v3129
    %v3262 = vpop.f32.mrb[0].mxu0
    %v3263 = vadd.f32 %v3171, %v3262
    %v3264 = vpop.f32.mrb[0].mxu0
    %v3265 = vadd.f32 %v3175, %v3264
    %3266 = vmatprep.mubr.f32.mxu0 0.0
    %3267 = vmatmul.mubr.f32.gmra.mrb[0].mxu0 %v3130
    %v3268 = vpop.f32.mrb[0].mxu0
    %v3269 = vadd.f32 %v3171, %v3268
    %v3270 = vpop.f32.mrb[0].mxu0
    %v3271 = vadd.f32 %v3175, %v3270
    %3272 = vmatprep.mubr.f32.mxu0 0.0
    %3273 = vmatmul.mubr.f32.gmra.mrb[0].mxu0 %v3131
    %v3274 = vpop.f32.mrb[0].mxu0
    %v3275 = vadd.f32 %v3171, %v3274
    %v3276 = vpop.f32.mrb[0].mxu0
    %v3277 = vadd.f32 %v3175, %v3276
    %3278 = vmatprep.mubr.f32.mxu0 0.0
    %3279 = vmatmul.mubr.f32.gmra.mrb[0].mxu0 %v3132
    %v3280 = vpop.f32.mrb[0].mxu0
    %v3281 = vadd.f32 %v3171, %v3280
    %v3282 = vpop.f32.mrb[0].mxu0
    %v3283 = vadd.f32 %v3175, %v3282
    %3284 = vmatprep.mubr.f32.mxu0 0.0
    %3285 = vmatmul.mubr.f32.gmra.mrb[0].mxu0 %v3133
    %v3286 = vpop.f32.mrb[0].mxu0
    %v3287 = vadd.f32 %v3171, %v3286
    %v3288 = vpop.f32.mrb[0].mxu0
    %v3289 = vadd.f32 %v3175, %v3288
    %3290 = vdwg.mxu0
    %v3291 = vmax.f32 %v3245, 0.0
    %v3292 = vmax.f32 %v3247, 0.0
    %v3293 = vmax.f32 %v3251, 0.0
    %v3294 = vmax.f32 %v3253, 0.0
    %v3295 = vmax.f32 %v3257, 0.0
    %v3296 = vmax.f32 %v3259, 0.0
    %v3297 = vmax.f32 %v3263, 0.0
    %v3298 = vmax.f32 %v3265, 0.0
    %v3299 = vmax.f32 %v3269, 0.0
    %v3300 = vmax.f32 %v3271, 0.0
    %v3301 = vmax.f32 %v3275, 0.0
    %v3302 = vmax.f32 %v3277, 0.0
    %v3303 = vmax.f32 %v3281, 0.0
    %v3304 = vmax.f32 %v3283, 0.0
    %v3305 = vmax.f32 %v3287, 0.0
    %v3306 = vmax.f32 %v3289, 0.0
    %v3307 = vld [vmem:[#allocation13] sm:$0xff]
    %v3308 = vld [vmem:[#allocation13 + $0x8] sm:$0xff]
    %v3309 = vld [vmem:[#allocation13 + $0x10] sm:$0xff]
    %v3310 = vld [vmem:[#allocation13 + $0x18] sm:$0xff]
    %v3311 = vld [vmem:[#allocation13 + $0x20] sm:$0xff]
    %v3312 = vld [vmem:[#allocation13 + $0x28] sm:$0xff]
    %v3313 = vld [vmem:[#allocation13 + $0x30] sm:$0xff]
    %v3314 = vld [vmem:[#allocation13 + $0x38] sm:$0xff]
    %v3315 = vld [vmem:[#allocation13 + $0x40] sm:$0xff]
    %v3316 = vld [vmem:[#allocation13 + $0x48] sm:$0xff]
    %v3317 = vld [vmem:[#allocation13 + $0x50] sm:$0xff]
    %v3318 = vld [vmem:[#allocation13 + $0x58] sm:$0xff]
    %v3319 = vld [vmem:[#allocation13 + $0x60] sm:$0xff]
    %v3320 = vld [vmem:[#allocation13 + $0x68] sm:$0xff]
    %v3321 = vld [vmem:[#allocation13 + $0x70] sm:$0xff]
    %v3322 = vld [vmem:[#allocation13 + $0x78] sm:$0xff]
    %v3323 = vld [vmem:[#allocation13 + $0x80] sm:$0xff]
    %v3324 = vld [vmem:[#allocation13 + $0x88] sm:$0xff]
    %v3325 = vld [vmem:[#allocation13 + $0x90] sm:$0xff]
    %v3326 = vld [vmem:[#allocation13 + $0x98] sm:$0xff]
    %v3327 = vld [vmem:[#allocation13 + $0xa0] sm:$0xff]
    %v3328 = vld [vmem:[#allocation13 + $0xa8] sm:$0xff]
    %v3329 = vld [vmem:[#allocation13 + $0xb0] sm:$0xff]
    %v3330 = vld [vmem:[#allocation13 + $0xb8] sm:$0xff]
    %v3331 = vld [vmem:[#allocation13 + $0xc0] sm:$0xff]
    %v3332 = vld [vmem:[#allocation13 + $0xc8] sm:$0xff]
    %v3333 = vld [vmem:[#allocation13 + $0xd0] sm:$0xff]
    %v3334 = vld [vmem:[#allocation13 + $0xd8] sm:$0xff]
    %v3335 = vld [vmem:[#allocation13 + $0xe0] sm:$0xff]
    %v3336 = vld [vmem:[#allocation13 + $0xe8] sm:$0xff]
    %v3337 = vld [vmem:[#allocation13 + $0xf0] sm:$0xff]
    %v3338 = vld [vmem:[#allocation13 + $0xf8] sm:$0xff]
    %v3339 = vld [vmem:[%s14] sm:$0x1]
    %v3341 = vlaneseq
    %v3342 = vshrl.u32 %v3341, 7
    %v3343 = vsub.s32 0, %v3342
    %v3344 = vrot.slane %v3339, %v3343
    %3346 = vmatprep.subr.mxu0 0.0
    %3347 = vmatpush1.msra.mxu0 %v3307
    %3348 = vmatprep.subr.mxu0 0.0
    %3349 = vmatpush1.msra.mxu0 %v3308
    %3350 = vmatprep.subr.mxu0 0.0
    %3351 = vmatpush1.msra.mxu0 %v3309
    %3352 = vmatprep.subr.mxu0 0.0
    %3353 = vmatpush1.msra.mxu0 %v3310
    %3354 = vmatprep.subr.mxu0 0.0
    %3355 = vmatpush1.msra.mxu0 %v3311
    %3356 = vmatprep.subr.mxu0 0.0
    %3357 = vmatpush1.msra.mxu0 %v3312
    %3358 = vmatprep.subr.mxu0 0.0
    %3359 = vmatpush1.msra.mxu0 %v3313
    %3360 = vmatprep.subr.mxu0 0.0
    %3361 = vmatpush1.msra.mxu0 %v3314
    %3362 = vmatprep.subr.mxu0 0.0
    %3363 = vmatpush1.msra.mxu0 %v3315
    %3364 = vmatprep.subr.mxu0 0.0
    %3365 = vmatpush1.msra.mxu0 %v3316
    %3366 = vmatprep.subr.mxu0 0.0
    %3367 = vmatpush1.msra.mxu0 %v3317
    %3368 = vmatprep.subr.mxu0 0.0
    %3369 = vmatpush1.msra.mxu0 %v3318
    %3370 = vmatprep.subr.mxu0 0.0
    %3371 = vmatpush1.msra.mxu0 %v3319
    %3372 = vmatprep.subr.mxu0 0.0
    %3373 = vmatpush1.msra.mxu0 %v3320
    %3374 = vmatprep.subr.mxu0 0.0
    %3375 = vmatpush1.msra.mxu0 %v3321
    %3376 = vmatprep.subr.mxu0 0.0
    %3377 = vmatpush1.msra.mxu0 %v3322
    %3378 = vmatprep.subr.mxu0 0.0
    %3379 = vmatpush1.msra.mxu0 %v3323
    %3380 = vmatprep.subr.mxu0 0.0
    %3381 = vmatpush1.msra.mxu0 %v3324
    %3382 = vmatprep.subr.mxu0 0.0
    %3383 = vmatpush1.msra.mxu0 %v3325
    %3384 = vmatprep.subr.mxu0 0.0
    %3385 = vmatpush1.msra.mxu0 %v3326
    %3386 = vmatprep.subr.mxu0 0.0
    %3387 = vmatpush1.msra.mxu0 %v3327
    %3388 = vmatprep.subr.mxu0 0.0
    %3389 = vmatpush1.msra.mxu0 %v3328
    %3390 = vmatprep.subr.mxu0 0.0
    %3391 = vmatpush1.msra.mxu0 %v3329
    %3392 = vmatprep.subr.mxu0 0.0
    %3393 = vmatpush1.msra.mxu0 %v3330
    %3394 = vmatprep.subr.mxu0 0.0
    %3395 = vmatpush1.msra.mxu0 %v3331
    %3396 = vmatprep.subr.mxu0 0.0
    %3397 = vmatpush1.msra.mxu0 %v3332
    %3398 = vmatprep.subr.mxu0 0.0
    %3399 = vmatpush1.msra.mxu0 %v3333
    %3400 = vmatprep.subr.mxu0 0.0
    %3401 = vmatpush1.msra.mxu0 %v3334
    %3402 = vmatprep.subr.mxu0 0.0
    %3403 = vmatpush1.msra.mxu0 %v3335
    %3404 = vmatprep.subr.mxu0 0.0
    %3405 = vmatpush1.msra.mxu0 %v3336
    %3406 = vmatprep.subr.mxu0 0.0
    %3407 = vmatpush1.msra.mxu0 %v3337
    %3408 = vmatprep.subr.mxu0 0.0
    %3409 = vmatpush1.msra.mxu0 %v3338
    %3410 = vmatprep.mubr.f32.mxu0 %v3292
    %3411 = vmatmul.mubr.f32.gmra.mrb[0].mxu0 %v3291
    %v3412 = vpop.f32.mrb[0].mxu0
    %v3413 = vadd.f32 %v3344, %v3412
    %v3414 = vpop.f32.mrb[0].mxu0
    %3415 = vmatprep.mubr.f32.mxu0 %v3294
    %3416 = vmatmul.mubr.f32.gmra.mrb[0].mxu0 %v3293
    %v3417 = vpop.f32.mrb[0].mxu0
    %v3418 = vadd.f32 %v3344, %v3417
    %v3419 = vpop.f32.mrb[0].mxu0
    %3420 = vmatprep.mubr.f32.mxu0 %v3296
    %3421 = vmatmul.mubr.f32.gmra.mrb[0].mxu0 %v3295
    %v3422 = vpop.f32.mrb[0].mxu0
    %v3423 = vadd.f32 %v3344, %v3422
    %v3424 = vpop.f32.mrb[0].mxu0
    %3425 = vmatprep.mubr.f32.mxu0 %v3298
    %3426 = vmatmul.mubr.f32.gmra.mrb[0].mxu0 %v3297
    %v3427 = vpop.f32.mrb[0].mxu0
    %v3428 = vadd.f32 %v3344, %v3427
    %v3429 = vpop.f32.mrb[0].mxu0
    %3430 = vmatprep.mubr.f32.mxu0 %v3300
    %3431 = vmatmul.mubr.f32.gmra.mrb[0].mxu0 %v3299
    %v3432 = vpop.f32.mrb[0].mxu0
    %v3433 = vadd.f32 %v3344, %v3432
    %v3434 = vpop.f32.mrb[0].mxu0
    %3435 = vmatprep.mubr.f32.mxu0 %v3302
    %3436 = vmatmul.mubr.f32.gmra.mrb[0].mxu0 %v3301
    %v3437 = vpop.f32.mrb[0].mxu0
    %v3438 = vadd.f32 %v3344, %v3437
    %v3439 = vpop.f32.mrb[0].mxu0
    %3440 = vmatprep.mubr.f32.mxu0 %v3304
    %3441 = vmatmul.mubr.f32.gmra.mrb[0].mxu0 %v3303
    %v3442 = vpop.f32.mrb[0].mxu0
    %v3443 = vadd.f32 %v3344, %v3442
    %v3444 = vpop.f32.mrb[0].mxu0
    %3445 = vmatprep.mubr.f32.mxu0 %v3306
    %3446 = vmatmul.mubr.f32.gmra.mrb[0].mxu0 %v3305
    %v3447 = vpop.f32.mrb[0].mxu0
    %v3448 = vadd.f32 %v3344, %v3447
    %v3449 = vpop.f32.mrb[0].mxu0
    %3450 = vdwg.mxu0
    %v3451 = vadd.f32 %v3008, %v3413
    %v3452 = vadd.f32 %v3009, %v3418
    %v3453 = vadd.f32 %v3010, %v3423
    %v3454 = vadd.f32 %v3011, %v3428
    %v3455 = vadd.f32 %v3012, %v3433
    %v3456 = vadd.f32 %v3013, %v3438
    %v3457 = vadd.f32 %v3014, %v3443
    %v3458 = vadd.f32 %v3015, %v3448
    %3459 = vst [vmem:[#allocation14] sm:$0xff] %v3451
    %3460 = vst [vmem:[#allocation14 + $0x8] sm:$0xff] %v3452
    %3461 = vst [vmem:[#allocation14 + $0x10] sm:$0xff] %v3453
    %3462 = vst [vmem:[#allocation14 + $0x18] sm:$0xff] %v3454
    %3463 = vst [vmem:[#allocation14 + $0x20] sm:$0xff] %v3455
    %3464 = vst [vmem:[#allocation14 + $0x28] sm:$0xff] %v3456
    %3465 = vst [vmem:[#allocation14 + $0x30] sm:$0xff] %v3457
    %3466 = vst [vmem:[#allocation14 + $0x38] sm:$0xff] %v3458
    // Predicated region
    $region90: #{tpu_custom_call.1} parent=1 // pred_check
      _
    $region91: #{tpu_custom_call.1} parent=1 // pred_check_branch
      %3468 = sbr.rel (0) target = $region93
    $region92: #{tpu_custom_call.1} parent=1 // pred_region
      %s3470 = ssub.s32 1024, 1024
      %3471 = vsyncadd [#allocation4], %s3470
      %s3472 = sshll.u32 [#allocation14], 4
      %s3473 = int_to_ptr.vmem [resolvable:$true] %s3472
      %3478 = dma.vmem_to_hbm [thread:$0]  %s3473, 1024, %s15, [#allocation4], 128, 128, 8
    $region93: #{tpu_custom_call.1} parent=1 // pred_fallthru
      _
    // Predicated region
    $region94: #{tpu_custom_call.1} parent=1 // pred_check
      _
    $region95: #{tpu_custom_call.1} parent=1 // pred_check_branch
      %3480 = sbr.rel (0) target = $region97
    $region96: #{tpu_custom_call.1} parent=1 // pred_region
      %3481 = dma.done [#allocation4], 1024
    $region97: #{tpu_custom_call.1} parent=1 // pred_fallthru
      _
    %3482 = vsyncpa [#allocation3], 1
    %3483 = vsyncpa [#allocation6], 1
    %3484 = vsyncpa [#allocation9], 1
    %3485 = vsyncpa [#allocation12], 1
    %3486 = vsyncpa [#allocation4], 1

// kernel: tpu_custom_call.1
$region0: #{tpu_custom_call.1}
  #allocation0 [shape = 'u32[]', space=smem, size = 0x4, offset = 0x4, fixed_abs, tag = 'smem constant byte address 0x4 - core index']
  #allocation1 [shape = 'u32[144,128]{1,0:T(1,128)}', space=vmem, size = 0x12000, scoped, tag = 'internal scratch']
  %s0 = inlined_call_operand.hbm [shape: f32[4,16,128], index: 0, kind: input, shape index: {}]
  %s1 = inlined_call_operand.hbm [shape: f32[4,8,128], index: 1, kind: input, shape index: {}]
  %s2 = inlined_call_operand.hbm [shape: f32[4,8,128], index: 2, kind: input, shape index: {}]
  %s3 = inlined_call_operand.vmem [shape: f32[4,1,16], index: 3, kind: input, shape index: {}]
  %s4 = inlined_call_operand.vmem [shape: f32[8,8], index: 4, kind: input, shape index: {}]
  %s5 = inlined_call_operand.hbm [shape: f32[1,128], index: 5, kind: input, shape index: {}]
  %s6 = inlined_call_operand.vmem [shape: f32[1,128], index: 6, kind: input, shape index: {}]
  %s7 = inlined_call_operand.vmem [shape: f32[1,128], index: 7, kind: input, shape index: {}]
  %s8 = inlined_call_operand.vmem [shape: f32[1,128], index: 8, kind: input, shape index: {}]
  %s9 = inlined_call_operand.hbm [shape: f32[128,512], index: 9, kind: input, shape index: {}]
  %s10 = inlined_call_operand.vmem [shape: f32[1,512], index: 10, kind: input, shape index: {}]
  %s11 = inlined_call_operand.hbm [shape: f32[128,256], index: 11, kind: input, shape index: {}]
  %s12 = inlined_call_operand.vmem [shape: f32[1,256], index: 12, kind: input, shape index: {}]
  %s13 = inlined_call_operand.hbm [shape: f32[256,128], index: 13, kind: input, shape index: {}]
  %s14 = inlined_call_operand.vmem [shape: f32[1,128], index: 14, kind: input, shape index: {}]
  %s15 = inlined_call_operand.hbm [shape: f32[4,16,128], index: 15, kind: output, shape index: {}]
  %s16 = sld [smem:[#allocation0]]
  $region98: #{tpu_custom_call.1} parent=0
    _
  %s18 = ssub.s32 1, %s16
  %s19 = scalar_select 0, %s18, %s16
  $region1: #{tpu_custom_call.1} parent=0
    #allocation2 [shape = 'u8[32768]{0}', space=vmem, size = 0x8000, scoped, tag = 'input window, operand 0, single buffered']
    #allocation3 [shape = 's32[1]{0}', space=sflag, size = 0x4, scoped, tag = 'scoped memory for tpu_custom_call.1']
    #allocation4 [shape = 's32[1]{0}', space=sflag, size = 0x4, scoped, tag = 'scoped memory for tpu_custom_call.1']
    #allocation5 [shape = 'u8[16384]{0}', space=vmem, size = 0x4000, scoped, tag = 'input window, operand 1, single buffered']
    #allocation6 [shape = 's32[1]{0}', space=sflag, size = 0x4, scoped, tag = 'scoped memory for tpu_custom_call.1']
    #allocation7 [shape = 'u8[16384]{0}', space=vmem, size = 0x4000, scoped, tag = 'input window, operand 2, single buffered']
    #allocation8 [shape = 'u8[512]{0}', space=vmem, size = 0x400, scoped, tag = 'input window, operand 5, single buffered']
    #allocation9 [shape = 's32[1]{0}', space=sflag, size = 0x4, scoped, tag = 'scoped memory for tpu_custom_call.1']
    #allocation10 [shape = 'u8[262144]{0}', space=vmem, size = 0x40000, scoped, tag = 'input window, operand 9, single buffered']
    #allocation11 [shape = 'u8[131072]{0}', space=vmem, size = 0x20000, scoped, tag = 'input window, operand 11, single buffered']
    #allocation12 [shape = 's32[1]{0}', space=sflag, size = 0x4, scoped, tag = 'scoped memory for tpu_custom_call.1']
    #allocation13 [shape = 'u8[131072]{0}', space=vmem, size = 0x20000, scoped, tag = 'input window, operand 13, single buffered']
    #allocation14 [shape = 'u8[32768]{0}', space=vmem, size = 0x8000, scoped, tag = 'output window, operand 0, single buffered']
    %20 = vsyncpa [#allocation3], 0
    %21 = vsyncpa [#allocation6], 0
    %22 = vsyncpa [#allocation9], 0
    %23 = vsyncpa [#allocation12], 0
    %24 = vsyncpa [#allocation4], 0
    // Predicated region
    $region2: #{tpu_custom_call.1} parent=1 // pred_check
      _
    $region3: #{tpu_custom_call.1} parent=1 // pred_check_branch
      %26 = sbr.rel (0) target = $region5
    $region4: #{tpu_custom_call.1} parent=1 // pred_region
      %s28 = ssub.s32 1024, 1024
      %29 = vsyncadd [#allocation3], %s28
      %s30 = sshll.u32 [#allocation2], 4
      %s31 = int_to_ptr.vmem [resolvable:$true] %s30
      %36 = dma.hbm_to_vmem [thread:$0]  %s0, 1024, %s31, [#allocation3], 128, 128, 8
    $region5: #{tpu_custom_call.1} parent=1 // pred_fallthru
      _
    // Predicated region
    $region6: #{tpu_custom_call.1} parent=1 // pred_check
      _
    $region7: #{tpu_custom_call.1} parent=1 // pred_check_branch
      %38 = sbr.rel (0) target = $region9
    $region8: #{tpu_custom_call.1} parent=1 // pred_region
      %s40 = ssub.s32 512, 512
      %41 = vsyncadd [#allocation6], %s40
      %s42 = sshll.u32 [#allocation5], 4
      %s43 = int_to_ptr.vmem [resolvable:$true] %s42
      %48 = dma.hbm_to_vmem [thread:$0]  %s1, 512, %s43, [#allocation6], 128, 128, 8
    $region9: #{tpu_custom_call.1} parent=1 // pred_fallthru
      _
    // Predicated region
    $region10: #{tpu_custom_call.1} parent=1 // pred_check
      _
    $region11: #{tpu_custom_call.1} parent=1 // pred_check_branch
      %50 = sbr.rel (0) target = $region13
    $region12: #{tpu_custom_call.1} parent=1 // pred_region
      %s52 = ssub.s32 512, 512
      %53 = vsyncadd [#allocation6], %s52
      %s54 = sshll.u32 [#allocation7], 4
      %s55 = int_to_ptr.vmem [resolvable:$true] %s54
      %60 = dma.hbm_to_vmem [thread:$0]  %s2, 512, %s55, [#allocation6], 128, 128, 8
    $region13: #{tpu_custom_call.1} parent=1 // pred_fallthru
      _
    // Predicated region
    $region14: #{tpu_custom_call.1} parent=1 // pred_check
      _
    $region15: #{tpu_custom_call.1} parent=1 // pred_check_branch
      %62 = sbr.rel (0) target = $region17
    $region16: #{tpu_custom_call.1} parent=1 // pred_region
      _
    $region17: #{tpu_custom_call.1} parent=1 // pred_fallthru
      _
    // Predicated region
    $region18: #{tpu_custom_call.1} parent=1 // pred_check
      _
    $region19: #{tpu_custom_call.1} parent=1 // pred_check_branch
      %64 = sbr.rel (0) target = $region21
    $region20: #{tpu_custom_call.1} parent=1 // pred_region
      _
    $region21: #{tpu_custom_call.1} parent=1 // pred_fallthru
      _
    // Predicated region
    $region22: #{tpu_custom_call.1} parent=1 // pred_check
      _
    $region23: #{tpu_custom_call.1} parent=1 // pred_check_branch
      %66 = sbr.rel (0) target = $region25
    $region24: #{tpu_custom_call.1} parent=1 // pred_region
      %s68 = ssub.s32 16, 16
      %69 = vsyncadd [#allocation9], %s68
      %s71 = sshll.u32 [#allocation8], 4
      %s72 = int_to_ptr.vmem [resolvable:$true] %s71
      %74 = dma.hbm_to_vmem [thread:$0]  %s5, 16, %s72, [#allocation9]
    $region25: #{tpu_custom_call.1} parent=1 // pred_fallthru
      _
    // Predicated region
    $region26: #{tpu_custom_call.1} parent=1 // pred_check
      _
    $region27: #{tpu_custom_call.1} parent=1 // pred_check_branch
      %76 = sbr.rel (0) target = $region29
    $region28: #{tpu_custom_call.1} parent=1 // pred_region
      _
    $region29: #{tpu_custom_call.1} parent=1 // pred_fallthru
      _
    // Predicated region
    $region30: #{tpu_custom_call.1} parent=1 // pred_check
      _
    $region31: #{tpu_custom_call.1} parent=1 // pred_check_branch
      %78 = sbr.rel (0) target = $region33
    $region32: #{tpu_custom_call.1} parent=1 // pred_region
      _
    $region33: #{tpu_custom_call.1} parent=1 // pred_fallthru
      _
    // Predicated region
    $region34: #{tpu_custom_call.1} parent=1 // pred_check
      _
    $region35: #{tpu_custom_call.1} parent=1 // pred_check_branch
      %80 = sbr.rel (0) target = $region37
    $region36: #{tpu_custom_call.1} parent=1 // pred_region
      _
    $region37: #{tpu_custom_call.1} parent=1 // pred_fallthru
      _
    // Predicated region
    $region38: #{tpu_custom_call.1} parent=1 // pred_check
      _
    $region39: #{tpu_custom_call.1} parent=1 // pred_check_branch
      %82 = sbr.rel (0) target = $region41
    $region40: #{tpu_custom_call.1} parent=1 // pred_region
      %s84 = ssub.s32 8192, 8192
      %85 = vsyncadd [#allocation9], %s84
      %s86 = sshll.u32 [#allocation10], 4
      %s87 = int_to_ptr.vmem [resolvable:$true] %s86
      %92 = dma.hbm_to_vmem [thread:$0]  %s9, 8192, %s87, [#allocation9], 512, 512, 32
    $region41: #{tpu_custom_call.1} parent=1 // pred_fallthru
      _
    // Predicated region
    $region42: #{tpu_custom_call.1} parent=1 // pred_check
      _
    $region43: #{tpu_custom_call.1} parent=1 // pred_check_branch
      %94 = sbr.rel (0) target = $region45
    $region44: #{tpu_custom_call.1} parent=1 // pred_region
      _
    $region45: #{tpu_custom_call.1} parent=1 // pred_fallthru
      _
    // Predicated region
    $region46: #{tpu_custom_call.1} parent=1 // pred_check
      _
    $region47: #{tpu_custom_call.1} parent=1 // pred_check_branch
      %96 = sbr.rel (0) target = $region49
    $region48: #{tpu_custom_call.1} parent=1 // pred_region
      %s98 = ssub.s32 4096, 4096
      %99 = vsyncadd [#allocation12], %s98
      %s100 = sshll.u32 [#allocation11], 4
      %s101 = int_to_ptr.vmem [resolvable:$true] %s100
      %106 = dma.hbm_to_vmem [thread:$0]  %s11, 4096, %s101, [#allocation12], 256, 256, 16
    $region49: #{tpu_custom_call.1} parent=1 // pred_fallthru
      _
    // Predicated region
    $region50: #{tpu_custom_call.1} parent=1 // pred_check
      _
    $region51: #{tpu_custom_call.1} parent=1 // pred_check_branch
      %108 = sbr.rel (0) target = $region53
    $region52: #{tpu_custom_call.1} parent=1 // pred_region
      _
    $region53: #{tpu_custom_call.1} parent=1 // pred_fallthru
      _
    // Predicated region
    $region54: #{tpu_custom_call.1} parent=1 // pred_check
      _
    $region55: #{tpu_custom_call.1} parent=1 // pred_check_branch
      %110 = sbr.rel (0) target = $region57
    $region56: #{tpu_custom_call.1} parent=1 // pred_region
      %s112 = ssub.s32 4096, 4096
      %113 = vsyncadd [#allocation12], %s112
      %s114 = sshll.u32 [#allocation13], 4
      %s115 = int_to_ptr.vmem [resolvable:$true] %s114
      %120 = dma.hbm_to_vmem [thread:$0]  %s13, 4096, %s115, [#allocation12], 128, 128, 8
    $region57: #{tpu_custom_call.1} parent=1 // pred_fallthru
      _
    // Predicated region
    $region58: #{tpu_custom_call.1} parent=1 // pred_check
      _
    $region59: #{tpu_custom_call.1} parent=1 // pred_check_branch
      %122 = sbr.rel (0) target = $region61
    $region60: #{tpu_custom_call.1} parent=1 // pred_region
      _
    $region61: #{tpu_custom_call.1} parent=1 // pred_fallthru
      _
    // Predicated region
    $region62: #{tpu_custom_call.1} parent=1 // pred_check
      _
    $region63: #{tpu_custom_call.1} parent=1 // pred_check_branch
      %124 = sbr.rel (0) target = $region65
    $region64: #{tpu_custom_call.1} parent=1 // pred_region
      %125 = dma.done [#allocation3], 1024
    $region65: #{tpu_custom_call.1} parent=1 // pred_fallthru
      _
    // Predicated region
    $region66: #{tpu_custom_call.1} parent=1 // pred_check
      _
    $region67: #{tpu_custom_call.1} parent=1 // pred_check_branch
      %127 = sbr.rel (0) target = $region69
    $region68: #{tpu_custom_call.1} parent=1 // pred_region
      %128 = dma.done [#allocation6], 512
    $region69: #{tpu_custom_call.1} parent=1 // pred_fallthru
      _
    // Predicated region
    $region70: #{tpu_custom_call.1} parent=1 // pred_check
      _
    $region71: #{tpu_custom_call.1} parent=1 // pred_check_branch
      %130 = sbr.rel (0) target = $region73
    $region72: #{tpu_custom_call.1} parent=1 // pred_region
      %131 = dma.done [#allocation6], 512
    $region73: #{tpu_custom_call.1} parent=1 // pred_fallthru
      _
    // Predicated region
    $region74: #{tpu_custom_call.1} parent=1 // pred_check
      _
    $region75: #{tpu_custom_call.1} parent=1 // pred_check_branch
      %133 = sbr.rel (0) target = $region77
    $region76: #{tpu_custom_call.1} parent=1 // pred_region
      %134 = dma.done [#allocation9], 16
    $region77: #{tpu_custom_call.1} parent=1 // pred_fallthru
      _
    // Predicated region
    $region78: #{tpu_custom_call.1} parent=1 // pred_check
      _
    $region79: #{tpu_custom_call.1} parent=1 // pred_check_branch
      %136 = sbr.rel (0) target = $region81
    $region80: #{tpu_custom_call.1} parent=1 // pred_region
      %137 = dma.done [#allocation9], 8192
    $region81: #{tpu_custom_call.1} parent=1 // pred_fallthru
      _
    // Predicated region
    $region82: #{tpu_custom_call.1} parent=1 // pred_check
      _
    $region83: #{tpu_custom_call.1} parent=1 // pred_check_branch
      %139 = sbr.rel (0) target = $region85
    $region84: #{tpu_custom_call.1} parent=1 // pred_region
      %140 = dma.done [#allocation12], 4096
    $region85: #{tpu_custom_call.1} parent=1 // pred_fallthru
      _
    // Predicated region
    $region86: #{tpu_custom_call.1} parent=1 // pred_check
      _
    $region87: #{tpu_custom_call.1} parent=1 // pred_check_branch
      %142 = sbr.rel (0) target = $region89
    $region88: #{tpu_custom_call.1} parent=1 // pred_region
      %143 = dma.done [#allocation12], 4096
    $region89: #{tpu_custom_call.1} parent=1 // pred_fallthru
      _
    %v144 = vld [vmem:[#allocation2] sm:$0xff]
    %v145 = vld [vmem:[#allocation2 + $0x8] sm:$0xff]
    %v146 = vld [vmem:[#allocation2 + $0x10] sm:$0xff]
    %v147 = vld [vmem:[#allocation2 + $0x18] sm:$0xff]
    %v148 = vld [vmem:[#allocation2 + $0x20] sm:$0xff]
    %v149 = vld [vmem:[#allocation2 + $0x28] sm:$0xff]
    %v150 = vld [vmem:[#allocation2 + $0x30] sm:$0xff]
    %v151 = vld [vmem:[#allocation2 + $0x38] sm:$0xff]
    %v152 = vld [vmem:[#allocation8] sm:$0x1]
    %v153 = vld [vmem:[%s6] sm:$0x1]
    %154 = vadd.xlane.f32.xlu0 %v144
    %v155 = vpop.xlane.xlu0 %154
    %156 = vadd.xlane.f32.xlu0 %v145
    %v157 = vpop.xlane.xlu0 %156
    %158 = vadd.xlane.f32.xlu0 %v146
    %v159 = vpop.xlane.xlu0 %158
    %160 = vadd.xlane.f32.xlu0 %v147
    %v161 = vpop.xlane.xlu0 %160
    %162 = vadd.xlane.f32.xlu0 %v148
    %v163 = vpop.xlane.xlu0 %162
    %164 = vadd.xlane.f32.xlu0 %v149
    %v165 = vpop.xlane.xlu0 %164
    %166 = vadd.xlane.f32.xlu0 %v150
    %v167 = vpop.xlane.xlu0 %166
    %168 = vadd.xlane.f32.xlu0 %v151
    %v169 = vpop.xlane.xlu0 %168
    %v170 = vrcp.pop 128.0
    %v171 = vmul.f32 %v155, %v170
    %v172 = vmul.f32 %v157, %v170
    %v173 = vmul.f32 %v159, %v170
    %v174 = vmul.f32 %v161, %v170
    %v175 = vmul.f32 %v163, %v170
    %v176 = vmul.f32 %v165, %v170
    %v177 = vmul.f32 %v167, %v170
    %v178 = vmul.f32 %v169, %v170
    %v179 = vsub.f32 %v144, %v171
    %v180 = vsub.f32 %v145, %v172
    %v181 = vsub.f32 %v146, %v173
    %v182 = vsub.f32 %v147, %v174
    %v183 = vsub.f32 %v148, %v175
    %v184 = vsub.f32 %v149, %v176
    %v185 = vsub.f32 %v150, %v177
    %v186 = vsub.f32 %v151, %v178
    %v187 = vmul.f32 %v179, %v179
    %v188 = vmul.f32 %v180, %v180
    %v189 = vmul.f32 %v181, %v181
    %v190 = vmul.f32 %v182, %v182
    %v191 = vmul.f32 %v183, %v183
    %v192 = vmul.f32 %v184, %v184
    %v193 = vmul.f32 %v185, %v185
    %v194 = vmul.f32 %v186, %v186
    %195 = vadd.xlane.f32.xlu0 %v187
    %v196 = vpop.xlane.xlu0 %195
    %197 = vadd.xlane.f32.xlu0 %v188
    %v198 = vpop.xlane.xlu0 %197
    %199 = vadd.xlane.f32.xlu0 %v189
    %v200 = vpop.xlane.xlu0 %199
    %201 = vadd.xlane.f32.xlu0 %v190
    %v202 = vpop.xlane.xlu0 %201
    %203 = vadd.xlane.f32.xlu0 %v191
    %v204 = vpop.xlane.xlu0 %203
    %205 = vadd.xlane.f32.xlu0 %v192
    %v206 = vpop.xlane.xlu0 %205
    %207 = vadd.xlane.f32.xlu0 %v193
    %v208 = vpop.xlane.xlu0 %207
    %209 = vadd.xlane.f32.xlu0 %v194
    %v210 = vpop.xlane.xlu0 %209
    %v211 = vmul.f32 %v196, %v170
    %v212 = vmul.f32 %v198, %v170
    %v213 = vmul.f32 %v200, %v170
    %v214 = vmul.f32 %v202, %v170
    %v215 = vmul.f32 %v204, %v170
    %v216 = vmul.f32 %v206, %v170
    %v217 = vmul.f32 %v208, %v170
    %v218 = vmul.f32 %v210, %v170
    %v219 = vadd.f32 %v211, 0.0001
    %v220 = vadd.f32 %v212, 0.0001
    %v221 = vadd.f32 %v213, 0.0001
    %v222 = vadd.f32 %v214, 0.0001
    %v223 = vadd.f32 %v215, 0.0001
    %v224 = vadd.f32 %v216, 0.0001
    %v225 = vadd.f32 %v217, 0.0001
    %v226 = vadd.f32 %v218, 0.0001
    %v227 = vrsqrt.pop %v219
    %v228 = vrsqrt.pop %v220
    %v229 = vrsqrt.pop %v221
    %v230 = vrsqrt.pop %v222
    %v231 = vrsqrt.pop %v223
    %v232 = vrsqrt.pop %v224
    %v233 = vrsqrt.pop %v225
    %v234 = vrsqrt.pop %v226
    %v235 = vmul.f32 %v179, %v227
    %v236 = vmul.f32 %v180, %v228
    %v237 = vmul.f32 %v181, %v229
    %v238 = vmul.f32 %v182, %v230
    %v239 = vmul.f32 %v183, %v231
    %v240 = vmul.f32 %v184, %v232
    %v241 = vmul.f32 %v185, %v233
    %v242 = vmul.f32 %v186, %v234
    %v244 = vlaneseq
    %v245 = vshrl.u32 %v244, 7
    %v246 = vsub.s32 0, %v245
    %v247 = vrot.slane %v152, %v246
    %v249 = vmul.f32 %v235, %v247
    %v250 = vmul.f32 %v236, %v247
    %v251 = vmul.f32 %v237, %v247
    %v252 = vmul.f32 %v238, %v247
    %v253 = vmul.f32 %v239, %v247
    %v254 = vmul.f32 %v240, %v247
    %v255 = vmul.f32 %v241, %v247
    %v256 = vmul.f32 %v242, %v247
    %v258 = vlaneseq
    %v259 = vshrl.u32 %v258, 7
    %v260 = vsub.s32 0, %v259
    %v261 = vrot.slane %v153, %v260
    %v263 = vadd.f32 %v249, %v261
    %v264 = vadd.f32 %v250, %v261
    %v265 = vadd.f32 %v251, %v261
    %v266 = vadd.f32 %v252, %v261
    %v267 = vadd.f32 %v253, %v261
    %v268 = vadd.f32 %v254, %v261
    %v269 = vadd.f32 %v255, %v261
    %v270 = vadd.f32 %v256, %v261
    %v271 = vld [vmem:[#allocation10] sm:$0xff]
    %v272 = vld [vmem:[#allocation10 + $0x8] sm:$0xff]
    %v273 = vld [vmem:[#allocation10 + $0x10] sm:$0xff]
    %v274 = vld [vmem:[#allocation10 + $0x18] sm:$0xff]
    %v275 = vld [vmem:[#allocation10 + $0x20] sm:$0xff]
    %v276 = vld [vmem:[#allocation10 + $0x28] sm:$0xff]
    %v277 = vld [vmem:[#allocation10 + $0x30] sm:$0xff]
    %v278 = vld [vmem:[#allocation10 + $0x38] sm:$0xff]
    %v279 = vld [vmem:[#allocation10 + $0x40] sm:$0xff]
    %v280 = vld [vmem:[#allocation10 + $0x48] sm:$0xff]
    %v281 = vld [vmem:[#allocation10 + $0x50] sm:$0xff]
    %v282 = vld [vmem:[#allocation10 + $0x58] sm:$0xff]
    %v283 = vld [vmem:[#allocation10 + $0x60] sm:$0xff]
    %v284 = vld [vmem:[#allocation10 + $0x68] sm:$0xff]
    %v285 = vld [vmem:[#allocation10 + $0x70] sm:$0xff]
    %v286 = vld [vmem:[#allocation10 + $0x78] sm:$0xff]
    %v287 = vld [vmem:[#allocation10 + $0x80] sm:$0xff]
    %v288 = vld [vmem:[#allocation10 + $0x88] sm:$0xff]
    %v289 = vld [vmem:[#allocation10 + $0x90] sm:$0xff]
    %v290 = vld [vmem:[#allocation10 + $0x98] sm:$0xff]
    %v291 = vld [vmem:[#allocation10 + $0xa0] sm:$0xff]
    %v292 = vld [vmem:[#allocation10 + $0xa8] sm:$0xff]
    %v293 = vld [vmem:[#allocation10 + $0xb0] sm:$0xff]
    %v294 = vld [vmem:[#allocation10 + $0xb8] sm:$0xff]
    %v295 = vld [vmem:[#allocation10 + $0xc0] sm:$0xff]
    %v296 = vld [vmem:[#allocation10 + $0xc8] sm:$0xff]
    %v297 = vld [vmem:[#allocation10 + $0xd0] sm:$0xff]
    %v298 = vld [vmem:[#allocation10 + $0xd8] sm:$0xff]
    %v299 = vld [vmem:[#allocation10 + $0xe0] sm:$0xff]
    %v300 = vld [vmem:[#allocation10 + $0xe8] sm:$0xff]
    %v301 = vld [vmem:[#allocation10 + $0xf0] sm:$0xff]
    %v302 = vld [vmem:[#allocation10 + $0xf8] sm:$0xff]
    %v303 = vld [vmem:[#allocation10 + $0x100] sm:$0xff]
    %v304 = vld [vmem:[#allocation10 + $0x108] sm:$0xff]
    %v305 = vld [vmem:[#allocation10 + $0x110] sm:$0xff]
    %v306 = vld [vmem:[#allocation10 + $0x118] sm:$0xff]
    %v307 = vld [vmem:[#allocation10 + $0x120] sm:$0xff]
    %v308 = vld [vmem:[#allocation10 + $0x128] sm:$0xff]
    %v309 = vld [vmem:[#allocation10 + $0x130] sm:$0xff]
    %v310 = vld [vmem:[#allocation10 + $0x138] sm:$0xff]
    %v311 = vld [vmem:[#allocation10 + $0x140] sm:$0xff]
    %v312 = vld [vmem:[#allocation10 + $0x148] sm:$0xff]
    %v313 = vld [vmem:[#allocation10 + $0x150] sm:$0xff]
    %v314 = vld [vmem:[#allocation10 + $0x158] sm:$0xff]
    %v315 = vld [vmem:[#allocation10 + $0x160] sm:$0xff]
    %v316 = vld [vmem:[#allocation10 + $0x168] sm:$0xff]
    %v317 = vld [vmem:[#allocation10 + $0x170] sm:$0xff]
    %v318 = vld [vmem:[#allocation10 + $0x178] sm:$0xff]
    %v319 = vld [vmem:[#allocation10 + $0x180] sm:$0xff]
    %v320 = vld [vmem:[#allocation10 + $0x188] sm:$0xff]
    %v321 = vld [vmem:[#allocation10 + $0x190] sm:$0xff]
    %v322 = vld [vmem:[#allocation10 + $0x198] sm:$0xff]
    %v323 = vld [vmem:[#allocation10 + $0x1a0] sm:$0xff]
    %v324 = vld [vmem:[#allocation10 + $0x1a8] sm:$0xff]
    %v325 = vld [vmem:[#allocation10 + $0x1b0] sm:$0xff]
    %v326 = vld [vmem:[#allocation10 + $0x1b8] sm:$0xff]
    %v327 = vld [vmem:[#allocation10 + $0x1c0] sm:$0xff]
    %v328 = vld [vmem:[#allocation10 + $0x1c8] sm:$0xff]
    %v329 = vld [vmem:[#allocation10 + $0x1d0] sm:$0xff]
    %v330 = vld [vmem:[#allocation10 + $0x1d8] sm:$0xff]
    %v331 = vld [vmem:[#allocation10 + $0x1e0] sm:$0xff]
    %v332 = vld [vmem:[#allocation10 + $0x1e8] sm:$0xff]
    %v333 = vld [vmem:[#allocation10 + $0x1f0] sm:$0xff]
    %v334 = vld [vmem:[#allocation10 + $0x1f8] sm:$0xff]
    %v335 = vld [vmem:[%s10] sm:$0xf]
    %v337 = vlaneseq
    %v338 = vshrl.u32 %v337, 7
    %v339 = vsub.s32 0, %v338
    %v340 = vrot.slane %v335, %v339
    %v341 = vlaneseq
    %v342 = vshrl.u32 %v341, 7
    %v343 = vsub.s32 1, %v342
    %v344 = vrot.slane %v335, %v343
    %v345 = vlaneseq
    %v346 = vshrl.u32 %v345, 7
    %v347 = vsub.s32 2, %v346
    %v348 = vrot.slane %v335, %v347
    %v349 = vlaneseq
    %v350 = vshrl.u32 %v349, 7
    %v351 = vsub.s32 3, %v350
    %v352 = vrot.slane %v335, %v351
    %357 = vmatprep.subr.mxu0 %v272
    %358 = vmatpush1.msra.mxu0 %v271
    %359 = vmatprep.subr.mxu0 %v276
    %360 = vmatpush1.msra.mxu0 %v275
    %361 = vmatprep.subr.mxu0 %v280
    %362 = vmatpush1.msra.mxu0 %v279
    %363 = vmatprep.subr.mxu0 %v284
    %364 = vmatpush1.msra.mxu0 %v283
    %365 = vmatprep.subr.mxu0 %v288
    %366 = vmatpush1.msra.mxu0 %v287
    %367 = vmatprep.subr.mxu0 %v292
    %368 = vmatpush1.msra.mxu0 %v291
    %369 = vmatprep.subr.mxu0 %v296
    %370 = vmatpush1.msra.mxu0 %v295
    %371 = vmatprep.subr.mxu0 %v300
    %372 = vmatpush1.msra.mxu0 %v299
    %373 = vmatprep.subr.mxu0 %v304
    %374 = vmatpush1.msra.mxu0 %v303
    %375 = vmatprep.subr.mxu0 %v308
    %376 = vmatpush1.msra.mxu0 %v307
    %377 = vmatprep.subr.mxu0 %v312
    %378 = vmatpush1.msra.mxu0 %v311
    %379 = vmatprep.subr.mxu0 %v316
    %380 = vmatpush1.msra.mxu0 %v315
    %381 = vmatprep.subr.mxu0 %v320
    %382 = vmatpush1.msra.mxu0 %v319
    %383 = vmatprep.subr.mxu0 %v324
    %384 = vmatpush1.msra.mxu0 %v323
    %385 = vmatprep.subr.mxu0 %v328
    %386 = vmatpush1.msra.mxu0 %v327
    %387 = vmatprep.subr.mxu0 %v332
    %388 = vmatpush1.msra.mxu0 %v331
    %389 = vmatprep.subr.mxu0 0.0
    %390 = vmatpush1.msra.mxu0 0.0
    %391 = vmatprep.subr.mxu0 0.0
    %392 = vmatpush1.msra.mxu0 0.0
    %393 = vmatprep.subr.mxu0 0.0
    %394 = vmatpush1.msra.mxu0 0.0
    %395 = vmatprep.subr.mxu0 0.0
    %396 = vmatpush1.msra.mxu0 0.0
    %397 = vmatprep.subr.mxu0 0.0
    %398 = vmatpush1.msra.mxu0 0.0
    %399 = vmatprep.subr.mxu0 0.0
    %400 = vmatpush1.msra.mxu0 0.0
    %401 = vmatprep.subr.mxu0 0.0
    %402 = vmatpush1.msra.mxu0 0.0
    %403 = vmatprep.subr.mxu0 0.0
    %404 = vmatpush1.msra.mxu0 0.0
    %405 = vmatprep.subr.mxu0 0.0
    %406 = vmatpush1.msra.mxu0 0.0
    %407 = vmatprep.subr.mxu0 0.0
    %408 = vmatpush1.msra.mxu0 0.0
    %409 = vmatprep.subr.mxu0 0.0
    %410 = vmatpush1.msra.mxu0 0.0
    %411 = vmatprep.subr.mxu0 0.0
    %412 = vmatpush1.msra.mxu0 0.0
    %413 = vmatprep.subr.mxu0 0.0
    %414 = vmatpush1.msra.mxu0 0.0
    %415 = vmatprep.subr.mxu0 0.0
    %416 = vmatpush1.msra.mxu0 0.0
    %417 = vmatprep.subr.mxu0 0.0
    %418 = vmatpush1.msra.mxu0 0.0
    %419 = vmatprep.subr.mxu0 0.0
    %420 = vmatpush1.msra.mxu0 0.0
    %421 = vmatprep.mubr.f32.mxu0 0.0
    %422 = vmatmul.mubr.f32.gmra.mrb[0].mxu0 %v263
    %v423 = vpop.f32.mrb[0].mxu0
    %v424 = vadd.f32 %v340, %v423
    %v425 = vpop.f32.mrb[0].mxu0
    %v426 = vadd.f32 %v344, %v425
    %427 = vmatprep.mubr.f32.mxu0 0.0
    %428 = vmatmul.mubr.f32.gmra.mrb[0].mxu0 %v264
    %v429 = vpop.f32.mrb[0].mxu0
    %v430 = vadd.f32 %v340, %v429
    %v431 = vpop.f32.mrb[0].mxu0
    %v432 = vadd.f32 %v344, %v431
    %433 = vmatprep.mubr.f32.mxu0 0.0
    %434 = vmatmul.mubr.f32.gmra.mrb[0].mxu0 %v265
    %v435 = vpop.f32.mrb[0].mxu0
    %v436 = vadd.f32 %v340, %v435
    %v437 = vpop.f32.mrb[0].mxu0
    %v438 = vadd.f32 %v344, %v437
    %439 = vmatprep.mubr.f32.mxu0 0.0
    %440 = vmatmul.mubr.f32.gmra.mrb[0].mxu0 %v266
    %v441 = vpop.f32.mrb[0].mxu0
    %v442 = vadd.f32 %v340, %v441
    %v443 = vpop.f32.mrb[0].mxu0
    %v444 = vadd.f32 %v344, %v443
    %445 = vmatprep.mubr.f32.mxu0 0.0
    %446 = vmatmul.mubr.f32.gmra.mrb[0].mxu0 %v267
    %v447 = vpop.f32.mrb[0].mxu0
    %v448 = vadd.f32 %v340, %v447
    %v449 = vpop.f32.mrb[0].mxu0
    %v450 = vadd.f32 %v344, %v449
    %451 = vmatprep.mubr.f32.mxu0 0.0
    %452 = vmatmul.mubr.f32.gmra.mrb[0].mxu0 %v268
    %v453 = vpop.f32.mrb[0].mxu0
    %v454 = vadd.f32 %v340, %v453
    %v455 = vpop.f32.mrb[0].mxu0
    %v456 = vadd.f32 %v344, %v455
    %457 = vmatprep.mubr.f32.mxu0 0.0
    %458 = vmatmul.mubr.f32.gmra.mrb[0].mxu0 %v269
    %v459 = vpop.f32.mrb[0].mxu0
    %v460 = vadd.f32 %v340, %v459
    %v461 = vpop.f32.mrb[0].mxu0
    %v462 = vadd.f32 %v344, %v461
    %463 = vmatprep.mubr.f32.mxu0 0.0
    %464 = vmatmul.mubr.f32.gmra.mrb[0].mxu0 %v270
    %v465 = vpop.f32.mrb[0].mxu0
    %v466 = vadd.f32 %v340, %v465
    %v467 = vpop.f32.mrb[0].mxu0
    %v468 = vadd.f32 %v344, %v467
    %469 = vdwg.mxu0
    %470 = vmatprep.subr.mxu0 %v274
    %471 = vmatpush1.msra.mxu0 %v273
    %472 = vmatprep.subr.mxu0 %v278
    %473 = vmatpush1.msra.mxu0 %v277
    %474 = vmatprep.subr.mxu0 %v282
    %475 = vmatpush1.msra.mxu0 %v281
    %476 = vmatprep.subr.mxu0 %v286
    %477 = vmatpush1.msra.mxu0 %v285
    %478 = vmatprep.subr.mxu0 %v290
    %479 = vmatpush1.msra.mxu0 %v289
    %480 = vmatprep.subr.mxu0 %v294
    %481 = vmatpush1.msra.mxu0 %v293
    %482 = vmatprep.subr.mxu0 %v298
    %483 = vmatpush1.msra.mxu0 %v297
    %484 = vmatprep.subr.mxu0 %v302
    %485 = vmatpush1.msra.mxu0 %v301
    %486 = vmatprep.subr.mxu0 %v306
    %487 = vmatpush1.msra.mxu0 %v305
    %488 = vmatprep.subr.mxu0 %v310
    %489 = vmatpush1.msra.mxu0 %v309
    %490 = vmatprep.subr.mxu0 %v314
    %491 = vmatpush1.msra.mxu0 %v313
    %492 = vmatprep.subr.mxu0 %v318
    %493 = vmatpush1.msra.mxu0 %v317
    %494 = vmatprep.subr.mxu0 %v322
    %495 = vmatpush1.msra.mxu0 %v321
    %496 = vmatprep.subr.mxu0 %v326
    %497 = vmatpush1.msra.mxu0 %v325
    %498 = vmatprep.subr.mxu0 %v330
    %499 = vmatpush1.msra.mxu0 %v329
    %500 = vmatprep.subr.mxu0 %v334
    %501 = vmatpush1.msra.mxu0 %v333
    %502 = vmatprep.subr.mxu0 0.0
    %503 = vmatpush1.msra.mxu0 0.0
    %504 = vmatprep.subr.mxu0 0.0
    %505 = vmatpush1.msra.mxu0 0.0
    %506 = vmatprep.subr.mxu0 0.0
    %507 = vmatpush1.msra.mxu0 0.0
    %508 = vmatprep.subr.mxu0 0.0
    %509 = vmatpush1.msra.mxu0 0.0
    %510 = vmatprep.subr.mxu0 0.0
    %511 = vmatpush1.msra.mxu0 0.0
    %512 = vmatprep.subr.mxu0 0.0
    %513 = vmatpush1.msra.mxu0 0.0
    %514 = vmatprep.subr.mxu0 0.0
    %515 = vmatpush1.msra.mxu0 0.0
    %516 = vmatprep.subr.mxu0 0.0
    %517 = vmatpush1.msra.mxu0 0.0
    %518 = vmatprep.subr.mxu0 0.0
    %519 = vmatpush1.msra.mxu0 0.0
    %520 = vmatprep.subr.mxu0 0.0
    %521 = vmatpush1.msra.mxu0 0.0
    %522 = vmatprep.subr.mxu0 0.0
    %523 = vmatpush1.msra.mxu0 0.0
    %524 = vmatprep.subr.mxu0 0.0
    %525 = vmatpush1.msra.mxu0 0.0
    %526 = vmatprep.subr.mxu0 0.0
    %527 = vmatpush1.msra.mxu0 0.0
    %528 = vmatprep.subr.mxu0 0.0
    %529 = vmatpush1.msra.mxu0 0.0
    %530 = vmatprep.subr.mxu0 0.0
    %531 = vmatpush1.msra.mxu0 0.0
    %532 = vmatprep.subr.mxu0 0.0
    %533 = vmatpush1.msra.mxu0 0.0
    %534 = vmatprep.mubr.f32.mxu0 0.0
    %535 = vmatmul.mubr.f32.gmra.mrb[0].mxu0 %v263
    %v536 = vpop.f32.mrb[0].mxu0
    %v537 = vadd.f32 %v348, %v536
    %v538 = vpop.f32.mrb[0].mxu0
    %v539 = vadd.f32 %v352, %v538
    %540 = vmatprep.mubr.f32.mxu0 0.0
    %541 = vmatmul.mubr.f32.gmra.mrb[0].mxu0 %v264
    %v542 = vpop.f32.mrb[0].mxu0
    %v543 = vadd.f32 %v348, %v542
    %v544 = vpop.f32.mrb[0].mxu0
    %v545 = vadd.f32 %v352, %v544
    %546 = vmatprep.mubr.f32.mxu0 0.0
    %547 = vmatmul.mubr.f32.gmra.mrb[0].mxu0 %v265
    %v548 = vpop.f32.mrb[0].mxu0
    %v549 = vadd.f32 %v348, %v548
    %v550 = vpop.f32.mrb[0].mxu0
    %v551 = vadd.f32 %v352, %v550
    %552 = vmatprep.mubr.f32.mxu0 0.0
    %553 = vmatmul.mubr.f32.gmra.mrb[0].mxu0 %v266
    %v554 = vpop.f32.mrb[0].mxu0
    %v555 = vadd.f32 %v348, %v554
    %v556 = vpop.f32.mrb[0].mxu0
    %v557 = vadd.f32 %v352, %v556
    %558 = vmatprep.mubr.f32.mxu0 0.0
    %559 = vmatmul.mubr.f32.gmra.mrb[0].mxu0 %v267
    %v560 = vpop.f32.mrb[0].mxu0
    %v561 = vadd.f32 %v348, %v560
    %v562 = vpop.f32.mrb[0].mxu0
    %v563 = vadd.f32 %v352, %v562
    %564 = vmatprep.mubr.f32.mxu0 0.0
    %565 = vmatmul.mubr.f32.gmra.mrb[0].mxu0 %v268
    %v566 = vpop.f32.mrb[0].mxu0
    %v567 = vadd.f32 %v348, %v566
    %v568 = vpop.f32.mrb[0].mxu0
    %v569 = vadd.f32 %v352, %v568
    %570 = vmatprep.mubr.f32.mxu0 0.0
    %571 = vmatmul.mubr.f32.gmra.mrb[0].mxu0 %v269
    %v572 = vpop.f32.mrb[0].mxu0
    %v573 = vadd.f32 %v348, %v572
    %v574 = vpop.f32.mrb[0].mxu0
    %v575 = vadd.f32 %v352, %v574
    %576 = vmatprep.mubr.f32.mxu0 0.0
    %577 = vmatmul.mubr.f32.gmra.mrb[0].mxu0 %v270
    %v578 = vpop.f32.mrb[0].mxu0
    %v579 = vadd.f32 %v348, %v578
    %v580 = vpop.f32.mrb[0].mxu0
    %v581 = vadd.f32 %v352, %v580
    %582 = vdwg.mxu0
    %v583 = vsub.f32 0.0, %v539
    %v584 = vsub.f32 0.0, %v545
    %v585 = vsub.f32 0.0, %v551
    %v586 = vsub.f32 0.0, %v557
    %v587 = vsub.f32 0.0, %v563
    %v588 = vsub.f32 0.0, %v569
    %v589 = vsub.f32 0.0, %v575
    %v590 = vsub.f32 0.0, %v581
    %v591 = vmul.f32 %v583, 1.442695
    %v592 = vpow.pop %v591
    %v593 = vmul.f32 %v584, 1.442695
    %v594 = vpow.pop %v593
    %v595 = vmul.f32 %v585, 1.442695
    %v596 = vpow.pop %v595
    %v597 = vmul.f32 %v586, 1.442695
    %v598 = vpow.pop %v597
    %v599 = vmul.f32 %v587, 1.442695
    %v600 = vpow.pop %v599
    %v601 = vmul.f32 %v588, 1.442695
    %v602 = vpow.pop %v601
    %v603 = vmul.f32 %v589, 1.442695
    %v604 = vpow.pop %v603
    %v605 = vmul.f32 %v590, 1.442695
    %v606 = vpow.pop %v605
    %v607 = vadd.f32 %v592, 1.0
    %v608 = vadd.f32 %v594, 1.0
    %v609 = vadd.f32 %v596, 1.0
    %v610 = vadd.f32 %v598, 1.0
    %v611 = vadd.f32 %v600, 1.0
    %v612 = vadd.f32 %v602, 1.0
    %v613 = vadd.f32 %v604, 1.0
    %v614 = vadd.f32 %v606, 1.0
    %v615 = vrcp.pop %v607
    %v616 = vmul.f32 1.0, %v615
    %v617 = vrcp.pop %v608
    %v618 = vmul.f32 1.0, %v617
    %v619 = vrcp.pop %v609
    %v620 = vmul.f32 1.0, %v619
    %v621 = vrcp.pop %v610
    %v622 = vmul.f32 1.0, %v621
    %v623 = vrcp.pop %v611
    %v624 = vmul.f32 1.0, %v623
    %v625 = vrcp.pop %v612
    %v626 = vmul.f32 1.0, %v625
    %v627 = vrcp.pop %v613
    %v628 = vmul.f32 1.0, %v627
    %v629 = vrcp.pop %v614
    %v630 = vmul.f32 1.0, %v629
    %v631 = vld [vmem:[#allocation5] sm:$0xff]
    %v632 = vld [vmem:[#allocation5 + $0x8] sm:$0xff]
    %v633 = vld [vmem:[#allocation5 + $0x10] sm:$0xff]
    %v634 = vld [vmem:[#allocation5 + $0x18] sm:$0xff]
    %635 = vmatprep.subr.mxu0 0.0
    %636 = vmatpush1.xpose.msra.mxu0 %v424
    %637 = vmatprep.subr.mxu0 0.0
    %638 = vmatpush1.xpose.msra.mxu0 %v430
    %639 = vmatprep.subr.mxu0 0.0
    %640 = vmatpush1.xpose.msra.mxu0 0.0
    %641 = vmatprep.subr.mxu0 0.0
    %642 = vmatpush1.xpose.msra.mxu0 0.0
    %643 = vmatprep.subr.mxu0 0.0
    %644 = vmatpush1.xpose.msra.mxu0 0.0
    %645 = vmatprep.subr.mxu0 0.0
    %646 = vmatpush1.xpose.msra.mxu0 0.0
    %647 = vmatprep.subr.mxu0 0.0
    %648 = vmatpush1.xpose.msra.mxu0 0.0
    %649 = vmatprep.subr.mxu0 0.0
    %650 = vmatpush1.xpose.msra.mxu0 0.0
    %651 = vmatprep.subr.mxu0 0.0
    %652 = vmatpush1.xpose.msra.mxu0 0.0
    %653 = vmatprep.subr.mxu0 0.0
    %654 = vmatpush1.xpose.msra.mxu0 0.0
    %655 = vmatprep.subr.mxu0 0.0
    %656 = vmatpush1.xpose.msra.mxu0 0.0
    %657 = vmatprep.subr.mxu0 0.0
    %658 = vmatpush1.xpose.msra.mxu0 0.0
    %659 = vmatprep.subr.mxu0 0.0
    %660 = vmatpush1.xpose.msra.mxu0 0.0
    %661 = vmatprep.subr.mxu0 0.0
    %662 = vmatpush1.xpose.msra.mxu0 0.0
    %663 = vmatprep.subr.mxu0 0.0
    %664 = vmatpush1.xpose.msra.mxu0 0.0
    %665 = vmatprep.subr.mxu0 0.0
    %666 = vmatpush1.xpose.msra.mxu0 0.0
    %667 = vmatprep.subr.mxu0 0.0
    %668 = vmatpush1.xpose.msra.mxu0 0.0
    %669 = vmatprep.subr.mxu0 0.0
    %670 = vmatpush1.xpose.msra.mxu0 0.0
    %671 = vmatprep.subr.mxu0 0.0
    %672 = vmatpush1.xpose.msra.mxu0 0.0
    %673 = vmatprep.subr.mxu0 0.0
    %674 = vmatpush1.xpose.msra.mxu0 0.0
    %675 = vmatprep.subr.mxu0 0.0
    %676 = vmatpush1.xpose.msra.mxu0 0.0
    %677 = vmatprep.subr.mxu0 0.0
    %678 = vmatpush1.xpose.msra.mxu0 0.0
    %679 = vmatprep.subr.mxu0 0.0
    %680 = vmatpush1.xpose.msra.mxu0 0.0
    %681 = vmatprep.subr.mxu0 0.0
    %682 = vmatpush1.xpose.msra.mxu0 0.0
    %683 = vmatprep.subr.mxu0 0.0
    %684 = vmatpush1.xpose.msra.mxu0 0.0
    %685 = vmatprep.subr.mxu0 0.0
    %686 = vmatpush1.xpose.msra.mxu0 0.0
    %687 = vmatprep.subr.mxu0 0.0
    %688 = vmatpush1.xpose.msra.mxu0 0.0
    %689 = vmatprep.subr.mxu0 0.0
    %690 = vmatpush1.xpose.msra.mxu0 0.0
    %691 = vmatprep.subr.mxu0 0.0
    %692 = vmatpush1.xpose.msra.mxu0 0.0
    %693 = vmatprep.subr.mxu0 0.0
    %694 = vmatpush1.xpose.msra.mxu0 0.0
    %695 = vmatprep.subr.mxu0 0.0
    %696 = vmatpush1.xpose.msra.mxu0 0.0
    %697 = vmatprep.subr.mxu0 0.0
    %698 = vmatpush1.xpose.msra.mxu0 0.0
    %699 = vmatprep.mubr.f32.mxu0 0.0
    %700 = vmatmul.mubr.f32.gmra.mrb[0].mxu0 %v631
    %v701 = vpop.f32.mrb[0].mxu0
    %v702 = vadd.f32 0.0, %v701
    %v703 = vpop.f32.mrb[0].mxu0
    %704 = vdwg.mxu0
    %705 = vmatprep.subr.mxu0 0.0
    %706 = vmatpush1.xpose.msra.mxu0 %v436
    %707 = vmatprep.subr.mxu0 0.0
    %708 = vmatpush1.xpose.msra.mxu0 %v442
    %709 = vmatprep.subr.mxu0 0.0
    %710 = vmatpush1.xpose.msra.mxu0 0.0
    %711 = vmatprep.subr.mxu0 0.0
    %712 = vmatpush1.xpose.msra.mxu0 0.0
    %713 = vmatprep.subr.mxu0 0.0
    %714 = vmatpush1.xpose.msra.mxu0 0.0
    %715 = vmatprep.subr.mxu0 0.0
    %716 = vmatpush1.xpose.msra.mxu0 0.0
    %717 = vmatprep.subr.mxu0 0.0
    %718 = vmatpush1.xpose.msra.mxu0 0.0
    %719 = vmatprep.subr.mxu0 0.0
    %720 = vmatpush1.xpose.msra.mxu0 0.0
    %721 = vmatprep.subr.mxu0 0.0
    %722 = vmatpush1.xpose.msra.mxu0 0.0
    %723 = vmatprep.subr.mxu0 0.0
    %724 = vmatpush1.xpose.msra.mxu0 0.0
    %725 = vmatprep.subr.mxu0 0.0
    %726 = vmatpush1.xpose.msra.mxu0 0.0
    %727 = vmatprep.subr.mxu0 0.0
    %728 = vmatpush1.xpose.msra.mxu0 0.0
    %729 = vmatprep.subr.mxu0 0.0
    %730 = vmatpush1.xpose.msra.mxu0 0.0
    %731 = vmatprep.subr.mxu0 0.0
    %732 = vmatpush1.xpose.msra.mxu0 0.0
    %733 = vmatprep.subr.mxu0 0.0
    %734 = vmatpush1.xpose.msra.mxu0 0.0
    %735 = vmatprep.subr.mxu0 0.0
    %736 = vmatpush1.xpose.msra.mxu0 0.0
    %737 = vmatprep.subr.mxu0 0.0
    %738 = vmatpush1.xpose.msra.mxu0 0.0
    %739 = vmatprep.subr.mxu0 0.0
    %740 = vmatpush1.xpose.msra.mxu0 0.0
    %741 = vmatprep.subr.mxu0 0.0
    %742 = vmatpush1.xpose.msra.mxu0 0.0
    %743 = vmatprep.subr.mxu0 0.0
    %744 = vmatpush1.xpose.msra.mxu0 0.0
    %745 = vmatprep.subr.mxu0 0.0
    %746 = vmatpush1.xpose.msra.mxu0 0.0
    %747 = vmatprep.subr.mxu0 0.0
    %748 = vmatpush1.xpose.msra.mxu0 0.0
    %749 = vmatprep.subr.mxu0 0.0
    %750 = vmatpush1.xpose.msra.mxu0 0.0
    %751 = vmatprep.subr.mxu0 0.0
    %752 = vmatpush1.xpose.msra.mxu0 0.0
    %753 = vmatprep.subr.mxu0 0.0
    %754 = vmatpush1.xpose.msra.mxu0 0.0
    %755 = vmatprep.subr.mxu0 0.0
    %756 = vmatpush1.xpose.msra.mxu0 0.0
    %757 = vmatprep.subr.mxu0 0.0
    %758 = vmatpush1.xpose.msra.mxu0 0.0
    %759 = vmatprep.subr.mxu0 0.0
    %760 = vmatpush1.xpose.msra.mxu0 0.0
    %761 = vmatprep.subr.mxu0 0.0
    %762 = vmatpush1.xpose.msra.mxu0 0.0
    %763 = vmatprep.subr.mxu0 0.0
    %764 = vmatpush1.xpose.msra.mxu0 0.0
    %765 = vmatprep.subr.mxu0 0.0
    %766 = vmatpush1.xpose.msra.mxu0 0.0
    %767 = vmatprep.subr.mxu0 0.0
    %768 = vmatpush1.xpose.msra.mxu0 0.0
    %769 = vmatprep.mubr.f32.mxu0 0.0
    %770 = vmatmul.mubr.f32.gmra.mrb[0].mxu0 %v632
    %v771 = vpop.f32.mrb[0].mxu0
    %v772 = vadd.f32 0.0, %v771
    %v773 = vpop.f32.mrb[0].mxu0
    %774 = vdwg.mxu0
    %775 = vmatprep.subr.mxu0 0.0
    %776 = vmatpush1.xpose.msra.mxu0 %v448
    %777 = vmatprep.subr.mxu0 0.0
    %778 = vmatpush1.xpose.msra.mxu0 %v454
    %779 = vmatprep.subr.mxu0 0.0
    %780 = vmatpush1.xpose.msra.mxu0 0.0
    %781 = vmatprep.subr.mxu0 0.0
    %782 = vmatpush1.xpose.msra.mxu0 0.0
    %783 = vmatprep.subr.mxu0 0.0
    %784 = vmatpush1.xpose.msra.mxu0 0.0
    %785 = vmatprep.subr.mxu0 0.0
    %786 = vmatpush1.xpose.msra.mxu0 0.0
    %787 = vmatprep.subr.mxu0 0.0
    %788 = vmatpush1.xpose.msra.mxu0 0.0
    %789 = vmatprep.subr.mxu0 0.0
    %790 = vmatpush1.xpose.msra.mxu0 0.0
    %791 = vmatprep.subr.mxu0 0.0
    %792 = vmatpush1.xpose.msra.mxu0 0.0
    %793 = vmatprep.subr.mxu0 0.0
    %794 = vmatpush1.xpose.msra.mxu0 0.0
    %795 = vmatprep.subr.mxu0 0.0
    %796 = vmatpush1.xpose.msra.mxu0 0.0
    %797 = vmatprep.subr.mxu0 0.0
    %798 = vmatpush1.xpose.msra.mxu0 0.0
    %799 = vmatprep.subr.mxu0 0.0
    %800 = vmatpush1.xpose.msra.mxu0 0.0
    %801 = vmatprep.subr.mxu0 0.0
    %802 = vmatpush1.xpose.msra.mxu0 0.0
    %803 = vmatprep.subr.mxu0 0.0
    %804 = vmatpush1.xpose.msra.mxu0 0.0
    %805 = vmatprep.subr.mxu0 0.0
    %806 = vmatpush1.xpose.msra.mxu0 0.0
    %807 = vmatprep.subr.mxu0 0.0
    %808 = vmatpush1.xpose.msra.mxu0 0.0
    %809 = vmatprep.subr.mxu0 0.0
    %810 = vmatpush1.xpose.msra.mxu0 0.0
    %811 = vmatprep.subr.mxu0 0.0
    %812 = vmatpush1.xpose.msra.mxu0 0.0
    %813 = vmatprep.subr.mxu0 0.0
    %814 = vmatpush1.xpose.msra.mxu0 0.0
    %815 = vmatprep.subr.mxu0 0.0
    %816 = vmatpush1.xpose.msra.mxu0 0.0
    %817 = vmatprep.subr.mxu0 0.0
    %818 = vmatpush1.xpose.msra.mxu0 0.0
    %819 = vmatprep.subr.mxu0 0.0
    %820 = vmatpush1.xpose.msra.mxu0 0.0
    %821 = vmatprep.subr.mxu0 0.0
    %822 = vmatpush1.xpose.msra.mxu0 0.0
    %823 = vmatprep.subr.mxu0 0.0
    %824 = vmatpush1.xpose.msra.mxu0 0.0
    %825 = vmatprep.subr.mxu0 0.0
    %826 = vmatpush1.xpose.msra.mxu0 0.0
    %827 = vmatprep.subr.mxu0 0.0
    %828 = vmatpush1.xpose.msra.mxu0 0.0
    %829 = vmatprep.subr.mxu0 0.0
    %830 = vmatpush1.xpose.msra.mxu0 0.0
    %831 = vmatprep.subr.mxu0 0.0
    %832 = vmatpush1.xpose.msra.mxu0 0.0
    %833 = vmatprep.subr.mxu0 0.0
    %834 = vmatpush1.xpose.msra.mxu0 0.0
    %835 = vmatprep.subr.mxu0 0.0
    %836 = vmatpush1.xpose.msra.mxu0 0.0
    %837 = vmatprep.subr.mxu0 0.0
    %838 = vmatpush1.xpose.msra.mxu0 0.0
    %839 = vmatprep.mubr.f32.mxu0 0.0
    %840 = vmatmul.mubr.f32.gmra.mrb[0].mxu0 %v633
    %v841 = vpop.f32.mrb[0].mxu0
    %v842 = vadd.f32 0.0, %v841
    %v843 = vpop.f32.mrb[0].mxu0
    %844 = vdwg.mxu0
    %845 = vmatprep.subr.mxu0 0.0
    %846 = vmatpush1.xpose.msra.mxu0 %v460
    %847 = vmatprep.subr.mxu0 0.0
    %848 = vmatpush1.xpose.msra.mxu0 %v466
    %849 = vmatprep.subr.mxu0 0.0
    %850 = vmatpush1.xpose.msra.mxu0 0.0
    %851 = vmatprep.subr.mxu0 0.0
    %852 = vmatpush1.xpose.msra.mxu0 0.0
    %853 = vmatprep.subr.mxu0 0.0
    %854 = vmatpush1.xpose.msra.mxu0 0.0
    %855 = vmatprep.subr.mxu0 0.0
    %856 = vmatpush1.xpose.msra.mxu0 0.0
    %857 = vmatprep.subr.mxu0 0.0
    %858 = vmatpush1.xpose.msra.mxu0 0.0
    %859 = vmatprep.subr.mxu0 0.0
    %860 = vmatpush1.xpose.msra.mxu0 0.0
    %861 = vmatprep.subr.mxu0 0.0
    %862 = vmatpush1.xpose.msra.mxu0 0.0
    %863 = vmatprep.subr.mxu0 0.0
    %864 = vmatpush1.xpose.msra.mxu0 0.0
    %865 = vmatprep.subr.mxu0 0.0
    %866 = vmatpush1.xpose.msra.mxu0 0.0
    %867 = vmatprep.subr.mxu0 0.0
    %868 = vmatpush1.xpose.msra.mxu0 0.0
    %869 = vmatprep.subr.mxu0 0.0
    %870 = vmatpush1.xpose.msra.mxu0 0.0
    %871 = vmatprep.subr.mxu0 0.0
    %872 = vmatpush1.xpose.msra.mxu0 0.0
    %873 = vmatprep.subr.mxu0 0.0
    %874 = vmatpush1.xpose.msra.mxu0 0.0
    %875 = vmatprep.subr.mxu0 0.0
    %876 = vmatpush1.xpose.msra.mxu0 0.0
    %877 = vmatprep.subr.mxu0 0.0
    %878 = vmatpush1.xpose.msra.mxu0 0.0
    %879 = vmatprep.subr.mxu0 0.0
    %880 = vmatpush1.xpose.msra.mxu0 0.0
    %881 = vmatprep.subr.mxu0 0.0
    %882 = vmatpush1.xpose.msra.mxu0 0.0
    %883 = vmatprep.subr.mxu0 0.0
    %884 = vmatpush1.xpose.msra.mxu0 0.0
    %885 = vmatprep.subr.mxu0 0.0
    %886 = vmatpush1.xpose.msra.mxu0 0.0
    %887 = vmatprep.subr.mxu0 0.0
    %888 = vmatpush1.xpose.msra.mxu0 0.0
    %889 = vmatprep.subr.mxu0 0.0
    %890 = vmatpush1.xpose.msra.mxu0 0.0
    %891 = vmatprep.subr.mxu0 0.0
    %892 = vmatpush1.xpose.msra.mxu0 0.0
    %893 = vmatprep.subr.mxu0 0.0
    %894 = vmatpush1.xpose.msra.mxu0 0.0
    %895 = vmatprep.subr.mxu0 0.0
    %896 = vmatpush1.xpose.msra.mxu0 0.0
    %897 = vmatprep.subr.mxu0 0.0
    %898 = vmatpush1.xpose.msra.mxu0 0.0
    %899 = vmatprep.subr.mxu0 0.0
    %900 = vmatpush1.xpose.msra.mxu0 0.0
    %901 = vmatprep.subr.mxu0 0.0
    %902 = vmatpush1.xpose.msra.mxu0 0.0
    %903 = vmatprep.subr.mxu0 0.0
    %904 = vmatpush1.xpose.msra.mxu0 0.0
    %905 = vmatprep.subr.mxu0 0.0
    %906 = vmatpush1.xpose.msra.mxu0 0.0
    %907 = vmatprep.subr.mxu0 0.0
    %908 = vmatpush1.xpose.msra.mxu0 0.0
    %909 = vmatprep.mubr.f32.mxu0 0.0
    %910 = vmatmul.mubr.f32.gmra.mrb[0].mxu0 %v634
    %v911 = vpop.f32.mrb[0].mxu0
    %v912 = vadd.f32 0.0, %v911
    %v913 = vpop.f32.mrb[0].mxu0
    %914 = vdwg.mxu0
    %v915 = vmul.f32 %v702, 0.088388346
    %v916 = vmul.f32 %v772, 0.088388346
    %v917 = vmul.f32 %v842, 0.088388346
    %v918 = vmul.f32 %v912, 0.088388346
    %919 = vmatprep.subr.mxu0 0.0
    %920 = vmatpush1.xpose.msra.mxu0 %v631
    %921 = vmatprep.subr.mxu0 0.0
    %922 = vmatpush1.xpose.msra.mxu0 0.0
    %923 = vmatprep.subr.mxu0 0.0
    %924 = vmatpush1.xpose.msra.mxu0 0.0
    %925 = vmatprep.subr.mxu0 0.0
    %926 = vmatpush1.xpose.msra.mxu0 0.0
    %927 = vmatprep.subr.mxu0 0.0
    %928 = vmatpush1.xpose.msra.mxu0 0.0
    %929 = vmatprep.subr.mxu0 0.0
    %930 = vmatpush1.xpose.msra.mxu0 0.0
    %931 = vmatprep.subr.mxu0 0.0
    %932 = vmatpush1.xpose.msra.mxu0 0.0
    %933 = vmatprep.subr.mxu0 0.0
    %934 = vmatpush1.xpose.msra.mxu0 0.0
    %935 = vmatprep.subr.mxu0 0.0
    %936 = vmatpush1.xpose.msra.mxu0 0.0
    %937 = vmatprep.subr.mxu0 0.0
    %938 = vmatpush1.xpose.msra.mxu0 0.0
    %939 = vmatprep.subr.mxu0 0.0
    %940 = vmatpush1.xpose.msra.mxu0 0.0
    %941 = vmatprep.subr.mxu0 0.0
    %942 = vmatpush1.xpose.msra.mxu0 0.0
    %943 = vmatprep.subr.mxu0 0.0
    %944 = vmatpush1.xpose.msra.mxu0 0.0
    %945 = vmatprep.subr.mxu0 0.0
    %946 = vmatpush1.xpose.msra.mxu0 0.0
    %947 = vmatprep.subr.mxu0 0.0
    %948 = vmatpush1.xpose.msra.mxu0 0.0
    %949 = vmatprep.subr.mxu0 0.0
    %950 = vmatpush1.xpose.msra.mxu0 0.0
    %951 = vmatprep.subr.mxu0 0.0
    %952 = vmatpush1.xpose.msra.mxu0 0.0
    %953 = vmatprep.subr.mxu0 0.0
    %954 = vmatpush1.xpose.msra.mxu0 0.0
    %955 = vmatprep.subr.mxu0 0.0
    %956 = vmatpush1.xpose.msra.mxu0 0.0
    %957 = vmatprep.subr.mxu0 0.0
    %958 = vmatpush1.xpose.msra.mxu0 0.0
    %959 = vmatprep.subr.mxu0 0.0
    %960 = vmatpush1.xpose.msra.mxu0 0.0
    %961 = vmatprep.subr.mxu0 0.0
    %962 = vmatpush1.xpose.msra.mxu0 0.0
    %963 = vmatprep.subr.mxu0 0.0
    %964 = vmatpush1.xpose.msra.mxu0 0.0
    %965 = vmatprep.subr.mxu0 0.0
    %966 = vmatpush1.xpose.msra.mxu0 0.0
    %967 = vmatprep.subr.mxu0 0.0
    %968 = vmatpush1.xpose.msra.mxu0 0.0
    %969 = vmatprep.subr.mxu0 0.0
    %970 = vmatpush1.xpose.msra.mxu0 0.0
    %971 = vmatprep.subr.mxu0 0.0
    %972 = vmatpush1.xpose.msra.mxu0 0.0
    %973 = vmatprep.subr.mxu0 0.0
    %974 = vmatpush1.xpose.msra.mxu0 0.0
    %975 = vmatprep.subr.mxu0 0.0
    %976 = vmatpush1.xpose.msra.mxu0 0.0
    %977 = vmatprep.subr.mxu0 0.0
    %978 = vmatpush1.xpose.msra.mxu0 0.0
    %979 = vmatprep.subr.mxu0 0.0
    %980 = vmatpush1.xpose.msra.mxu0 0.0
    %981 = vmatprep.subr.mxu0 0.0
    %982 = vmatpush1.xpose.msra.mxu0 0.0
    %983 = vmatprep.mubr.f32.mxu0 0.0
    %984 = vmatmul.mubr.f32.gmra.mrb[0].mxu0 %v424
    %v985 = vpop.f32.mrb[0].mxu0
    %v986 = vadd.f32 0.0, %v985
    %v987 = vpop.f32.mrb[0].mxu0
    %988 = vmatprep.mubr.f32.mxu0 0.0
    %989 = vmatmul.mubr.f32.gmra.mrb[0].mxu0 %v430
    %v990 = vpop.f32.mrb[0].mxu0
    %v991 = vadd.f32 0.0, %v990
    %v992 = vpop.f32.mrb[0].mxu0
    %993 = vdwg.mxu0
    %994 = vmatprep.subr.mxu0 0.0
    %995 = vmatpush1.xpose.msra.mxu0 %v632
    %996 = vmatprep.subr.mxu0 0.0
    %997 = vmatpush1.xpose.msra.mxu0 0.0
    %998 = vmatprep.subr.mxu0 0.0
    %999 = vmatpush1.xpose.msra.mxu0 0.0
    %1000 = vmatprep.subr.mxu0 0.0
    %1001 = vmatpush1.xpose.msra.mxu0 0.0
    %1002 = vmatprep.subr.mxu0 0.0
    %1003 = vmatpush1.xpose.msra.mxu0 0.0
    %1004 = vmatprep.subr.mxu0 0.0
    %1005 = vmatpush1.xpose.msra.mxu0 0.0
    %1006 = vmatprep.subr.mxu0 0.0
    %1007 = vmatpush1.xpose.msra.mxu0 0.0
    %1008 = vmatprep.subr.mxu0 0.0
    %1009 = vmatpush1.xpose.msra.mxu0 0.0
    %1010 = vmatprep.subr.mxu0 0.0
    %1011 = vmatpush1.xpose.msra.mxu0 0.0
    %1012 = vmatprep.subr.mxu0 0.0
    %1013 = vmatpush1.xpose.msra.mxu0 0.0
    %1014 = vmatprep.subr.mxu0 0.0
    %1015 = vmatpush1.xpose.msra.mxu0 0.0
    %1016 = vmatprep.subr.mxu0 0.0
    %1017 = vmatpush1.xpose.msra.mxu0 0.0
    %1018 = vmatprep.subr.mxu0 0.0
    %1019 = vmatpush1.xpose.msra.mxu0 0.0
    %1020 = vmatprep.subr.mxu0 0.0
    %1021 = vmatpush1.xpose.msra.mxu0 0.0
    %1022 = vmatprep.subr.mxu0 0.0
    %1023 = vmatpush1.xpose.msra.mxu0 0.0
    %1024 = vmatprep.subr.mxu0 0.0
    %1025 = vmatpush1.xpose.msra.mxu0 0.0
    %1026 = vmatprep.subr.mxu0 0.0
    %1027 = vmatpush1.xpose.msra.mxu0 0.0
    %1028 = vmatprep.subr.mxu0 0.0
    %1029 = vmatpush1.xpose.msra.mxu0 0.0
    %1030 = vmatprep.subr.mxu0 0.0
    %1031 = vmatpush1.xpose.msra.mxu0 0.0
    %1032 = vmatprep.subr.mxu0 0.0
    %1033 = vmatpush1.xpose.msra.mxu0 0.0
    %1034 = vmatprep.subr.mxu0 0.0
    %1035 = vmatpush1.xpose.msra.mxu0 0.0
    %1036 = vmatprep.subr.mxu0 0.0
    %1037 = vmatpush1.xpose.msra.mxu0 0.0
    %1038 = vmatprep.subr.mxu0 0.0
    %1039 = vmatpush1.xpose.msra.mxu0 0.0
    %1040 = vmatprep.subr.mxu0 0.0
    %1041 = vmatpush1.xpose.msra.mxu0 0.0
    %1042 = vmatprep.subr.mxu0 0.0
    %1043 = vmatpush1.xpose.msra.mxu0 0.0
    %1044 = vmatprep.subr.mxu0 0.0
    %1045 = vmatpush1.xpose.msra.mxu0 0.0
    %1046 = vmatprep.subr.mxu0 0.0
    %1047 = vmatpush1.xpose.msra.mxu0 0.0
    %1048 = vmatprep.subr.mxu0 0.0
    %1049 = vmatpush1.xpose.msra.mxu0 0.0
    %1050 = vmatprep.subr.mxu0 0.0
    %1051 = vmatpush1.xpose.msra.mxu0 0.0
    %1052 = vmatprep.subr.mxu0 0.0
    %1053 = vmatpush1.xpose.msra.mxu0 0.0
    %1054 = vmatprep.subr.mxu0 0.0
    %1055 = vmatpush1.xpose.msra.mxu0 0.0
    %1056 = vmatprep.subr.mxu0 0.0
    %1057 = vmatpush1.xpose.msra.mxu0 0.0
    %1058 = vmatprep.mubr.f32.mxu0 0.0
    %1059 = vmatmul.mubr.f32.gmra.mrb[0].mxu0 %v436
    %v1060 = vpop.f32.mrb[0].mxu0
    %v1061 = vadd.f32 0.0, %v1060
    %v1062 = vpop.f32.mrb[0].mxu0
    %1063 = vmatprep.mubr.f32.mxu0 0.0
    %1064 = vmatmul.mubr.f32.gmra.mrb[0].mxu0 %v442
    %v1065 = vpop.f32.mrb[0].mxu0
    %v1066 = vadd.f32 0.0, %v1065
    %v1067 = vpop.f32.mrb[0].mxu0
    %1068 = vdwg.mxu0
    %1069 = vmatprep.subr.mxu0 0.0
    %1070 = vmatpush1.xpose.msra.mxu0 %v633
    %1071 = vmatprep.subr.mxu0 0.0
    %1072 = vmatpush1.xpose.msra.mxu0 0.0
    %1073 = vmatprep.subr.mxu0 0.0
    %1074 = vmatpush1.xpose.msra.mxu0 0.0
    %1075 = vmatprep.subr.mxu0 0.0
    %1076 = vmatpush1.xpose.msra.mxu0 0.0
    %1077 = vmatprep.subr.mxu0 0.0
    %1078 = vmatpush1.xpose.msra.mxu0 0.0
    %1079 = vmatprep.subr.mxu0 0.0
    %1080 = vmatpush1.xpose.msra.mxu0 0.0
    %1081 = vmatprep.subr.mxu0 0.0
    %1082 = vmatpush1.xpose.msra.mxu0 0.0
    %1083 = vmatprep.subr.mxu0 0.0
    %1084 = vmatpush1.xpose.msra.mxu0 0.0
    %1085 = vmatprep.subr.mxu0 0.0
    %1086 = vmatpush1.xpose.msra.mxu0 0.0
    %1087 = vmatprep.subr.mxu0 0.0
    %1088 = vmatpush1.xpose.msra.mxu0 0.0
    %1089 = vmatprep.subr.mxu0 0.0
    %1090 = vmatpush1.xpose.msra.mxu0 0.0
    %1091 = vmatprep.subr.mxu0 0.0
    %1092 = vmatpush1.xpose.msra.mxu0 0.0
    %1093 = vmatprep.subr.mxu0 0.0
    %1094 = vmatpush1.xpose.msra.mxu0 0.0
    %1095 = vmatprep.subr.mxu0 0.0
    %1096 = vmatpush1.xpose.msra.mxu0 0.0
    %1097 = vmatprep.subr.mxu0 0.0
    %1098 = vmatpush1.xpose.msra.mxu0 0.0
    %1099 = vmatprep.subr.mxu0 0.0
    %1100 = vmatpush1.xpose.msra.mxu0 0.0
    %1101 = vmatprep.subr.mxu0 0.0
    %1102 = vmatpush1.xpose.msra.mxu0 0.0
    %1103 = vmatprep.subr.mxu0 0.0
    %1104 = vmatpush1.xpose.msra.mxu0 0.0
    %1105 = vmatprep.subr.mxu0 0.0
    %1106 = vmatpush1.xpose.msra.mxu0 0.0
    %1107 = vmatprep.subr.mxu0 0.0
    %1108 = vmatpush1.xpose.msra.mxu0 0.0
    %1109 = vmatprep.subr.mxu0 0.0
    %1110 = vmatpush1.xpose.msra.mxu0 0.0
    %1111 = vmatprep.subr.mxu0 0.0
    %1112 = vmatpush1.xpose.msra.mxu0 0.0
    %1113 = vmatprep.subr.mxu0 0.0
    %1114 = vmatpush1.xpose.msra.mxu0 0.0
    %1115 = vmatprep.subr.mxu0 0.0
    %1116 = vmatpush1.xpose.msra.mxu0 0.0
    %1117 = vmatprep.subr.mxu0 0.0
    %1118 = vmatpush1.xpose.msra.mxu0 0.0
    %1119 = vmatprep.subr.mxu0 0.0
    %1120 = vmatpush1.xpose.msra.mxu0 0.0
    %1121 = vmatprep.subr.mxu0 0.0
    %1122 = vmatpush1.xpose.msra.mxu0 0.0
    %1123 = vmatprep.subr.mxu0 0.0
    %1124 = vmatpush1.xpose.msra.mxu0 0.0
    %1125 = vmatprep.subr.mxu0 0.0
    %1126 = vmatpush1.xpose.msra.mxu0 0.0
    %1127 = vmatprep.subr.mxu0 0.0
    %1128 = vmatpush1.xpose.msra.mxu0 0.0
    %1129 = vmatprep.subr.mxu0 0.0
    %1130 = vmatpush1.xpose.msra.mxu0 0.0
    %1131 = vmatprep.subr.mxu0 0.0
    %1132 = vmatpush1.xpose.msra.mxu0 0.0
    %1133 = vmatprep.mubr.f32.mxu0 0.0
    %1134 = vmatmul.mubr.f32.gmra.mrb[0].mxu0 %v448
    %v1135 = vpop.f32.mrb[0].mxu0
    %v1136 = vadd.f32 0.0, %v1135
    %v1137 = vpop.f32.mrb[0].mxu0
    %1138 = vmatprep.mubr.f32.mxu0 0.0
    %1139 = vmatmul.mubr.f32.gmra.mrb[0].mxu0 %v454
    %v1140 = vpop.f32.mrb[0].mxu0
    %v1141 = vadd.f32 0.0, %v1140
    %v1142 = vpop.f32.mrb[0].mxu0
    %1143 = vdwg.mxu0
    %1144 = vmatprep.subr.mxu0 0.0
    %1145 = vmatpush1.xpose.msra.mxu0 %v634
    %1146 = vmatprep.subr.mxu0 0.0
    %1147 = vmatpush1.xpose.msra.mxu0 0.0
    %1148 = vmatprep.subr.mxu0 0.0
    %1149 = vmatpush1.xpose.msra.mxu0 0.0
    %1150 = vmatprep.subr.mxu0 0.0
    %1151 = vmatpush1.xpose.msra.mxu0 0.0
    %1152 = vmatprep.subr.mxu0 0.0
    %1153 = vmatpush1.xpose.msra.mxu0 0.0
    %1154 = vmatprep.subr.mxu0 0.0
    %1155 = vmatpush1.xpose.msra.mxu0 0.0
    %1156 = vmatprep.subr.mxu0 0.0
    %1157 = vmatpush1.xpose.msra.mxu0 0.0
    %1158 = vmatprep.subr.mxu0 0.0
    %1159 = vmatpush1.xpose.msra.mxu0 0.0
    %1160 = vmatprep.subr.mxu0 0.0
    %1161 = vmatpush1.xpose.msra.mxu0 0.0
    %1162 = vmatprep.subr.mxu0 0.0
    %1163 = vmatpush1.xpose.msra.mxu0 0.0
    %1164 = vmatprep.subr.mxu0 0.0
    %1165 = vmatpush1.xpose.msra.mxu0 0.0
    %1166 = vmatprep.subr.mxu0 0.0
    %1167 = vmatpush1.xpose.msra.mxu0 0.0
    %1168 = vmatprep.subr.mxu0 0.0
    %1169 = vmatpush1.xpose.msra.mxu0 0.0
    %1170 = vmatprep.subr.mxu0 0.0
    %1171 = vmatpush1.xpose.msra.mxu0 0.0
    %1172 = vmatprep.subr.mxu0 0.0
    %1173 = vmatpush1.xpose.msra.mxu0 0.0
    %1174 = vmatprep.subr.mxu0 0.0
    %1175 = vmatpush1.xpose.msra.mxu0 0.0
    %1176 = vmatprep.subr.mxu0 0.0
    %1177 = vmatpush1.xpose.msra.mxu0 0.0
    %1178 = vmatprep.subr.mxu0 0.0
    %1179 = vmatpush1.xpose.msra.mxu0 0.0
    %1180 = vmatprep.subr.mxu0 0.0
    %1181 = vmatpush1.xpose.msra.mxu0 0.0
    %1182 = vmatprep.subr.mxu0 0.0
    %1183 = vmatpush1.xpose.msra.mxu0 0.0
    %1184 = vmatprep.subr.mxu0 0.0
    %1185 = vmatpush1.xpose.msra.mxu0 0.0
    %1186 = vmatprep.subr.mxu0 0.0
    %1187 = vmatpush1.xpose.msra.mxu0 0.0
    %1188 = vmatprep.subr.mxu0 0.0
    %1189 = vmatpush1.xpose.msra.mxu0 0.0
    %1190 = vmatprep.subr.mxu0 0.0
    %1191 = vmatpush1.xpose.msra.mxu0 0.0
    %1192 = vmatprep.subr.mxu0 0.0
    %1193 = vmatpush1.xpose.msra.mxu0 0.0
    %1194 = vmatprep.subr.mxu0 0.0
    %1195 = vmatpush1.xpose.msra.mxu0 0.0
    %1196 = vmatprep.subr.mxu0 0.0
    %1197 = vmatpush1.xpose.msra.mxu0 0.0
    %1198 = vmatprep.subr.mxu0 0.0
    %1199 = vmatpush1.xpose.msra.mxu0 0.0
    %1200 = vmatprep.subr.mxu0 0.0
    %1201 = vmatpush1.xpose.msra.mxu0 0.0
    %1202 = vmatprep.subr.mxu0 0.0
    %1203 = vmatpush1.xpose.msra.mxu0 0.0
    %1204 = vmatprep.subr.mxu0 0.0
    %1205 = vmatpush1.xpose.msra.mxu0 0.0
    %1206 = vmatprep.subr.mxu0 0.0
    %1207 = vmatpush1.xpose.msra.mxu0 0.0
    %1208 = vmatprep.mubr.f32.mxu0 0.0
    %1209 = vmatmul.mubr.f32.gmra.mrb[0].mxu0 %v460
    %v1210 = vpop.f32.mrb[0].mxu0
    %v1211 = vadd.f32 0.0, %v1210
    %v1212 = vpop.f32.mrb[0].mxu0
    %1213 = vmatprep.mubr.f32.mxu0 0.0
    %1214 = vmatmul.mubr.f32.gmra.mrb[0].mxu0 %v466
    %v1215 = vpop.f32.mrb[0].mxu0
    %v1216 = vadd.f32 0.0, %v1215
    %v1217 = vpop.f32.mrb[0].mxu0
    %1218 = vdwg.mxu0
    %v1219 = vmul.f32 %v986, 0.088388346
    %v1220 = vmul.f32 %v991, 0.088388346
    %v1221 = vmul.f32 %v1061, 0.088388346
    %v1222 = vmul.f32 %v1066, 0.088388346
    %v1223 = vmul.f32 %v1136, 0.088388346
    %v1224 = vmul.f32 %v1141, 0.088388346
    %v1225 = vmul.f32 %v1211, 0.088388346
    %v1226 = vmul.f32 %v1216, 0.088388346
    %v1227 = vld [vmem:[%s3] sm:$0x1]
    %v1228 = vld [vmem:[%s3 + $0x1] sm:$0x1]
    %v1229 = vld [vmem:[%s3 + $0x2] sm:$0x1]
    %v1230 = vld [vmem:[%s3 + $0x3] sm:$0x1]
    %vm1231 = vcmp.ne.f32.partialorder %v1227, 0.0
    %vm1232 = vcmp.ne.f32.partialorder %v1228, 0.0
    %vm1233 = vcmp.ne.f32.partialorder %v1229, 0.0
    %vm1234 = vcmp.ne.f32.partialorder %v1230, 0.0
    %v1235 = vsel %vm1231, 1, 0
    %v1236 = vsel %vm1232, 1, 0
    %v1237 = vsel %vm1233, 1, 0
    %v1238 = vsel %vm1234, 1, 0
    %v1239 = vcvt.s32.f32 %v1235
    %v1240 = vcvt.s32.f32 %v1236
    %v1241 = vcvt.s32.f32 %v1237
    %v1242 = vcvt.s32.f32 %v1238
    %v1243 = vmax.f32 %v915, 0.0
    %v1244 = vmax.f32 %v916, 0.0
    %v1245 = vmax.f32 %v917, 0.0
    %v1246 = vmax.f32 %v918, 0.0
    %v1251 = vlaneseq
    %v1252 = vshrl.u32 %v1251, 7
    %v1253 = vsub.s32 0, %v1252
    %v1254 = vrot.slane %v1239, %v1253
    %v1255 = vlaneseq
    %v1256 = vshrl.u32 %v1255, 7
    %v1257 = vsub.s32 0, %v1256
    %v1258 = vrot.slane %v1240, %v1257
    %v1259 = vlaneseq
    %v1260 = vshrl.u32 %v1259, 7
    %v1261 = vsub.s32 0, %v1260
    %v1262 = vrot.slane %v1241, %v1261
    %v1263 = vlaneseq
    %v1264 = vshrl.u32 %v1263, 7
    %v1265 = vsub.s32 0, %v1264
    %v1266 = vrot.slane %v1242, %v1265
    %v1271 = vmul.f32 %v1243, %v1254
    %v1272 = vmul.f32 %v1244, %v1258
    %v1273 = vmul.f32 %v1245, %v1262
    %v1274 = vmul.f32 %v1246, %v1266
    %v1275 = vsub.f32 0.0, %v915
    %v1276 = vsub.f32 0.0, %v916
    %v1277 = vsub.f32 0.0, %v917
    %v1278 = vsub.f32 0.0, %v918
    %v1279 = vmax.f32 %v1275, 0.0
    %v1280 = vmax.f32 %v1276, 0.0
    %v1281 = vmax.f32 %v1277, 0.0
    %v1282 = vmax.f32 %v1278, 0.0
    %v1283 = vmul.f32 %v1279, %v1254
    %v1284 = vmul.f32 %v1280, %v1258
    %v1285 = vmul.f32 %v1281, %v1262
    %v1286 = vmul.f32 %v1282, %v1266
    %vm1287 = vcmask 130048
    %v1288 = vsel %vm1287, %v1271, 0.0
    %1289 = vadd.xlane.f32.xlu0 %v1288
    %v1290 = vpop.xlane.xlu0 %1289
    %v1291 = vsel %vm1287, %v1272, 0.0
    %1292 = vadd.xlane.f32.xlu0 %v1291
    %v1293 = vpop.xlane.xlu0 %1292
    %v1294 = vsel %vm1287, %v1273, 0.0
    %1295 = vadd.xlane.f32.xlu0 %v1294
    %v1296 = vpop.xlane.xlu0 %1295
    %v1297 = vsel %vm1287, %v1274, 0.0
    %1298 = vadd.xlane.f32.xlu0 %v1297
    %v1299 = vpop.xlane.xlu0 %1298
    %v1300 = vadd.f32 %v1290, 0.0001
    %v1301 = vadd.f32 %v1293, 0.0001
    %v1302 = vadd.f32 %v1296, 0.0001
    %v1303 = vadd.f32 %v1299, 0.0001
    %v1304 = vrcp.pop %v1300
    %v1305 = vrcp.pop %v1301
    %v1306 = vrcp.pop %v1302
    %v1307 = vrcp.pop %v1303
    %v1308 = vmul.f32 %v1300, %v1304
    %v1309 = vmul.f32 %v1301, %v1305
    %v1310 = vmul.f32 %v1302, %v1306
    %v1311 = vmul.f32 %v1303, %v1307
    %v1312 = vsub.f32 2.0, %v1308
    %v1313 = vsub.f32 2.0, %v1309
    %v1314 = vsub.f32 2.0, %v1310
    %v1315 = vsub.f32 2.0, %v1311
    %v1316 = vmul.f32 %v1304, %v1312
    %v1317 = vmul.f32 %v1305, %v1313
    %v1318 = vmul.f32 %v1306, %v1314
    %v1319 = vmul.f32 %v1307, %v1315
    %v1320 = vmul.f32 %v1271, %v1316
    %v1321 = vmul.f32 %v1272, %v1317
    %v1322 = vmul.f32 %v1273, %v1318
    %v1323 = vmul.f32 %v1274, %v1319
    %v1324 = vsel %vm1287, %v1283, 0.0
    %1325 = vadd.xlane.f32.xlu0 %v1324
    %v1326 = vpop.xlane.xlu0 %1325
    %v1327 = vsel %vm1287, %v1284, 0.0
    %1328 = vadd.xlane.f32.xlu0 %v1327
    %v1329 = vpop.xlane.xlu0 %1328
    %v1330 = vsel %vm1287, %v1285, 0.0
    %1331 = vadd.xlane.f32.xlu0 %v1330
    %v1332 = vpop.xlane.xlu0 %1331
    %v1333 = vsel %vm1287, %v1286, 0.0
    %1334 = vadd.xlane.f32.xlu0 %v1333
    %v1335 = vpop.xlane.xlu0 %1334
    %v1336 = vadd.f32 %v1326, 0.0001
    %v1337 = vadd.f32 %v1329, 0.0001
    %v1338 = vadd.f32 %v1332, 0.0001
    %v1339 = vadd.f32 %v1335, 0.0001
    %v1340 = vrcp.pop %v1336
    %v1341 = vrcp.pop %v1337
    %v1342 = vrcp.pop %v1338
    %v1343 = vrcp.pop %v1339
    %v1344 = vmul.f32 %v1336, %v1340
    %v1345 = vmul.f32 %v1337, %v1341
    %v1346 = vmul.f32 %v1338, %v1342
    %v1347 = vmul.f32 %v1339, %v1343
    %v1348 = vsub.f32 2.0, %v1344
    %v1349 = vsub.f32 2.0, %v1345
    %v1350 = vsub.f32 2.0, %v1346
    %v1351 = vsub.f32 2.0, %v1347
    %v1352 = vmul.f32 %v1340, %v1348
    %v1353 = vmul.f32 %v1341, %v1349
    %v1354 = vmul.f32 %v1342, %v1350
    %v1355 = vmul.f32 %v1343, %v1351
    %v1356 = vmul.f32 %v1283, %v1352
    %v1357 = vmul.f32 %v1284, %v1353
    %v1358 = vmul.f32 %v1285, %v1354
    %v1359 = vmul.f32 %v1286, %v1355
    %v1360 = vld [vmem:[#allocation7] sm:$0xff]
    %v1361 = vld [vmem:[#allocation7 + $0x8] sm:$0xff]
    %v1362 = vld [vmem:[#allocation7 + $0x10] sm:$0xff]
    %v1363 = vld [vmem:[#allocation7 + $0x18] sm:$0xff]
    %v1365 = vsel %vm1287, %v1320, 0
    %1367 = vmatprep.subr.mxu0 0.0
    %1368 = vmatpush1.msra.mxu0 %v426
    %1369 = vmatprep.subr.mxu0 0.0
    %1370 = vmatpush1.msra.mxu0 %v432
    %1371 = vmatprep.subr.mxu0 0.0
    %1372 = vmatpush1.msra.mxu0 0.0
    %1373 = vmatprep.subr.mxu0 0.0
    %1374 = vmatpush1.msra.mxu0 0.0
    %1375 = vmatprep.subr.mxu0 0.0
    %1376 = vmatpush1.msra.mxu0 0.0
    %1377 = vmatprep.subr.mxu0 0.0
    %1378 = vmatpush1.msra.mxu0 0.0
    %1379 = vmatprep.subr.mxu0 0.0
    %1380 = vmatpush1.msra.mxu0 0.0
    %1381 = vmatprep.subr.mxu0 0.0
    %1382 = vmatpush1.msra.mxu0 0.0
    %1383 = vmatprep.subr.mxu0 0.0
    %1384 = vmatpush1.msra.mxu0 0.0
    %1385 = vmatprep.subr.mxu0 0.0
    %1386 = vmatpush1.msra.mxu0 0.0
    %1387 = vmatprep.subr.mxu0 0.0
    %1388 = vmatpush1.msra.mxu0 0.0
    %1389 = vmatprep.subr.mxu0 0.0
    %1390 = vmatpush1.msra.mxu0 0.0
    %1391 = vmatprep.subr.mxu0 0.0
    %1392 = vmatpush1.msra.mxu0 0.0
    %1393 = vmatprep.subr.mxu0 0.0
    %1394 = vmatpush1.msra.mxu0 0.0
    %1395 = vmatprep.subr.mxu0 0.0
    %1396 = vmatpush1.msra.mxu0 0.0
    %1397 = vmatprep.subr.mxu0 0.0
    %1398 = vmatpush1.msra.mxu0 0.0
    %1399 = vmatprep.subr.mxu0 0.0
    %1400 = vmatpush1.msra.mxu0 0.0
    %1401 = vmatprep.subr.mxu0 0.0
    %1402 = vmatpush1.msra.mxu0 0.0
    %1403 = vmatprep.subr.mxu0 0.0
    %1404 = vmatpush1.msra.mxu0 0.0
    %1405 = vmatprep.subr.mxu0 0.0
    %1406 = vmatpush1.msra.mxu0 0.0
    %1407 = vmatprep.subr.mxu0 0.0
    %1408 = vmatpush1.msra.mxu0 0.0
    %1409 = vmatprep.subr.mxu0 0.0
    %1410 = vmatpush1.msra.mxu0 0.0
    %1411 = vmatprep.subr.mxu0 0.0
    %1412 = vmatpush1.msra.mxu0 0.0
    %1413 = vmatprep.subr.mxu0 0.0
    %1414 = vmatpush1.msra.mxu0 0.0
    %1415 = vmatprep.subr.mxu0 0.0
    %1416 = vmatpush1.msra.mxu0 0.0
    %1417 = vmatprep.subr.mxu0 0.0
    %1418 = vmatpush1.msra.mxu0 0.0
    %1419 = vmatprep.subr.mxu0 0.0
    %1420 = vmatpush1.msra.mxu0 0.0
    %1421 = vmatprep.subr.mxu0 0.0
    %1422 = vmatpush1.msra.mxu0 0.0
    %1423 = vmatprep.subr.mxu0 0.0
    %1424 = vmatpush1.msra.mxu0 0.0
    %1425 = vmatprep.subr.mxu0 0.0
    %1426 = vmatpush1.msra.mxu0 0.0
    %1427 = vmatprep.subr.mxu0 0.0
    %1428 = vmatpush1.msra.mxu0 0.0
    %1429 = vmatprep.subr.mxu0 0.0
    %1430 = vmatpush1.msra.mxu0 0.0
    %1431 = vmatprep.mubr.f32.mxu0 0.0
    %1432 = vmatmul.mubr.f32.gmra.mrb[0].mxu0 %v1365
    %v1433 = vpop.f32.mrb[0].mxu0
    %v1434 = vadd.f32 %v1360, %v1433
    %v1435 = vpop.f32.mrb[0].mxu0
    %1436 = vdwg.mxu0
    %v1438 = vsel %vm1287, %v1321, 0
    %1440 = vmatprep.subr.mxu0 0.0
    %1441 = vmatpush1.msra.mxu0 %v438
    %1442 = vmatprep.subr.mxu0 0.0
    %1443 = vmatpush1.msra.mxu0 %v444
    %1444 = vmatprep.subr.mxu0 0.0
    %1445 = vmatpush1.msra.mxu0 0.0
    %1446 = vmatprep.subr.mxu0 0.0
    %1447 = vmatpush1.msra.mxu0 0.0
    %1448 = vmatprep.subr.mxu0 0.0
    %1449 = vmatpush1.msra.mxu0 0.0
    %1450 = vmatprep.subr.mxu0 0.0
    %1451 = vmatpush1.msra.mxu0 0.0
    %1452 = vmatprep.subr.mxu0 0.0
    %1453 = vmatpush1.msra.mxu0 0.0
    %1454 = vmatprep.subr.mxu0 0.0
    %1455 = vmatpush1.msra.mxu0 0.0
    %1456 = vmatprep.subr.mxu0 0.0
    %1457 = vmatpush1.msra.mxu0 0.0
    %1458 = vmatprep.subr.mxu0 0.0
    %1459 = vmatpush1.msra.mxu0 0.0
    %1460 = vmatprep.subr.mxu0 0.0
    %1461 = vmatpush1.msra.mxu0 0.0
    %1462 = vmatprep.subr.mxu0 0.0
    %1463 = vmatpush1.msra.mxu0 0.0
    %1464 = vmatprep.subr.mxu0 0.0
    %1465 = vmatpush1.msra.mxu0 0.0
    %1466 = vmatprep.subr.mxu0 0.0
    %1467 = vmatpush1.msra.mxu0 0.0
    %1468 = vmatprep.subr.mxu0 0.0
    %1469 = vmatpush1.msra.mxu0 0.0
    %1470 = vmatprep.subr.mxu0 0.0
    %1471 = vmatpush1.msra.mxu0 0.0
    %1472 = vmatprep.subr.mxu0 0.0
    %1473 = vmatpush1.msra.mxu0 0.0
    %1474 = vmatprep.subr.mxu0 0.0
    %1475 = vmatpush1.msra.mxu0 0.0
    %1476 = vmatprep.subr.mxu0 0.0
    %1477 = vmatpush1.msra.mxu0 0.0
    %1478 = vmatprep.subr.mxu0 0.0
    %1479 = vmatpush1.msra.mxu0 0.0
    %1480 = vmatprep.subr.mxu0 0.0
    %1481 = vmatpush1.msra.mxu0 0.0
    %1482 = vmatprep.subr.mxu0 0.0
    %1483 = vmatpush1.msra.mxu0 0.0
    %1484 = vmatprep.subr.mxu0 0.0
    %1485 = vmatpush1.msra.mxu0 0.0
    %1486 = vmatprep.subr.mxu0 0.0
    %1487 = vmatpush1.msra.mxu0 0.0
    %1488 = vmatprep.subr.mxu0 0.0
    %1489 = vmatpush1.msra.mxu0 0.0
    %1490 = vmatprep.subr.mxu0 0.0
    %1491 = vmatpush1.msra.mxu0 0.0
    %1492 = vmatprep.subr.mxu0 0.0
    %1493 = vmatpush1.msra.mxu0 0.0
    %1494 = vmatprep.subr.mxu0 0.0
    %1495 = vmatpush1.msra.mxu0 0.0
    %1496 = vmatprep.subr.mxu0 0.0
    %1497 = vmatpush1.msra.mxu0 0.0
    %1498 = vmatprep.subr.mxu0 0.0
    %1499 = vmatpush1.msra.mxu0 0.0
    %1500 = vmatprep.subr.mxu0 0.0
    %1501 = vmatpush1.msra.mxu0 0.0
    %1502 = vmatprep.subr.mxu0 0.0
    %1503 = vmatpush1.msra.mxu0 0.0
    %1504 = vmatprep.mubr.f32.mxu0 0.0
    %1505 = vmatmul.mubr.f32.gmra.mrb[0].mxu0 %v1438
    %v1506 = vpop.f32.mrb[0].mxu0
    %v1507 = vadd.f32 %v1361, %v1506
    %v1508 = vpop.f32.mrb[0].mxu0
    %1509 = vdwg.mxu0
    %v1511 = vsel %vm1287, %v1322, 0
    %1513 = vmatprep.subr.mxu0 0.0
    %1514 = vmatpush1.msra.mxu0 %v450
    %1515 = vmatprep.subr.mxu0 0.0
    %1516 = vmatpush1.msra.mxu0 %v456
    %1517 = vmatprep.subr.mxu0 0.0
    %1518 = vmatpush1.msra.mxu0 0.0
    %1519 = vmatprep.subr.mxu0 0.0
    %1520 = vmatpush1.msra.mxu0 0.0
    %1521 = vmatprep.subr.mxu0 0.0
    %1522 = vmatpush1.msra.mxu0 0.0
    %1523 = vmatprep.subr.mxu0 0.0
    %1524 = vmatpush1.msra.mxu0 0.0
    %1525 = vmatprep.subr.mxu0 0.0
    %1526 = vmatpush1.msra.mxu0 0.0
    %1527 = vmatprep.subr.mxu0 0.0
    %1528 = vmatpush1.msra.mxu0 0.0
    %1529 = vmatprep.subr.mxu0 0.0
    %1530 = vmatpush1.msra.mxu0 0.0
    %1531 = vmatprep.subr.mxu0 0.0
    %1532 = vmatpush1.msra.mxu0 0.0
    %1533 = vmatprep.subr.mxu0 0.0
    %1534 = vmatpush1.msra.mxu0 0.0
    %1535 = vmatprep.subr.mxu0 0.0
    %1536 = vmatpush1.msra.mxu0 0.0
    %1537 = vmatprep.subr.mxu0 0.0
    %1538 = vmatpush1.msra.mxu0 0.0
    %1539 = vmatprep.subr.mxu0 0.0
    %1540 = vmatpush1.msra.mxu0 0.0
    %1541 = vmatprep.subr.mxu0 0.0
    %1542 = vmatpush1.msra.mxu0 0.0
    %1543 = vmatprep.subr.mxu0 0.0
    %1544 = vmatpush1.msra.mxu0 0.0
    %1545 = vmatprep.subr.mxu0 0.0
    %1546 = vmatpush1.msra.mxu0 0.0
    %1547 = vmatprep.subr.mxu0 0.0
    %1548 = vmatpush1.msra.mxu0 0.0
    %1549 = vmatprep.subr.mxu0 0.0
    %1550 = vmatpush1.msra.mxu0 0.0
    %1551 = vmatprep.subr.mxu0 0.0
    %1552 = vmatpush1.msra.mxu0 0.0
    %1553 = vmatprep.subr.mxu0 0.0
    %1554 = vmatpush1.msra.mxu0 0.0
    %1555 = vmatprep.subr.mxu0 0.0
    %1556 = vmatpush1.msra.mxu0 0.0
    %1557 = vmatprep.subr.mxu0 0.0
    %1558 = vmatpush1.msra.mxu0 0.0
    %1559 = vmatprep.subr.mxu0 0.0
    %1560 = vmatpush1.msra.mxu0 0.0
    %1561 = vmatprep.subr.mxu0 0.0
    %1562 = vmatpush1.msra.mxu0 0.0
    %1563 = vmatprep.subr.mxu0 0.0
    %1564 = vmatpush1.msra.mxu0 0.0
    %1565 = vmatprep.subr.mxu0 0.0
    %1566 = vmatpush1.msra.mxu0 0.0
    %1567 = vmatprep.subr.mxu0 0.0
    %1568 = vmatpush1.msra.mxu0 0.0
    %1569 = vmatprep.subr.mxu0 0.0
    %1570 = vmatpush1.msra.mxu0 0.0
    %1571 = vmatprep.subr.mxu0 0.0
    %1572 = vmatpush1.msra.mxu0 0.0
    %1573 = vmatprep.subr.mxu0 0.0
    %1574 = vmatpush1.msra.mxu0 0.0
    %1575 = vmatprep.subr.mxu0 0.0
    %1576 = vmatpush1.msra.mxu0 0.0
    %1577 = vmatprep.mubr.f32.mxu0 0.0
    %1578 = vmatmul.mubr.f32.gmra.mrb[0].mxu0 %v1511
    %v1579 = vpop.f32.mrb[0].mxu0
    %v1580 = vadd.f32 %v1362, %v1579
    %v1581 = vpop.f32.mrb[0].mxu0
    %1582 = vdwg.mxu0
    %v1584 = vsel %vm1287, %v1323, 0
    %1586 = vmatprep.subr.mxu0 0.0
    %1587 = vmatpush1.msra.mxu0 %v462
    %1588 = vmatprep.subr.mxu0 0.0
    %1589 = vmatpush1.msra.mxu0 %v468
    %1590 = vmatprep.subr.mxu0 0.0
    %1591 = vmatpush1.msra.mxu0 0.0
    %1592 = vmatprep.subr.mxu0 0.0
    %1593 = vmatpush1.msra.mxu0 0.0
    %1594 = vmatprep.subr.mxu0 0.0
    %1595 = vmatpush1.msra.mxu0 0.0
    %1596 = vmatprep.subr.mxu0 0.0
    %1597 = vmatpush1.msra.mxu0 0.0
    %1598 = vmatprep.subr.mxu0 0.0
    %1599 = vmatpush1.msra.mxu0 0.0
    %1600 = vmatprep.subr.mxu0 0.0
    %1601 = vmatpush1.msra.mxu0 0.0
    %1602 = vmatprep.subr.mxu0 0.0
    %1603 = vmatpush1.msra.mxu0 0.0
    %1604 = vmatprep.subr.mxu0 0.0
    %1605 = vmatpush1.msra.mxu0 0.0
    %1606 = vmatprep.subr.mxu0 0.0
    %1607 = vmatpush1.msra.mxu0 0.0
    %1608 = vmatprep.subr.mxu0 0.0
    %1609 = vmatpush1.msra.mxu0 0.0
    %1610 = vmatprep.subr.mxu0 0.0
    %1611 = vmatpush1.msra.mxu0 0.0
    %1612 = vmatprep.subr.mxu0 0.0
    %1613 = vmatpush1.msra.mxu0 0.0
    %1614 = vmatprep.subr.mxu0 0.0
    %1615 = vmatpush1.msra.mxu0 0.0
    %1616 = vmatprep.subr.mxu0 0.0
    %1617 = vmatpush1.msra.mxu0 0.0
    %1618 = vmatprep.subr.mxu0 0.0
    %1619 = vmatpush1.msra.mxu0 0.0
    %1620 = vmatprep.subr.mxu0 0.0
    %1621 = vmatpush1.msra.mxu0 0.0
    %1622 = vmatprep.subr.mxu0 0.0
    %1623 = vmatpush1.msra.mxu0 0.0
    %1624 = vmatprep.subr.mxu0 0.0
    %1625 = vmatpush1.msra.mxu0 0.0
    %1626 = vmatprep.subr.mxu0 0.0
    %1627 = vmatpush1.msra.mxu0 0.0
    %1628 = vmatprep.subr.mxu0 0.0
    %1629 = vmatpush1.msra.mxu0 0.0
    %1630 = vmatprep.subr.mxu0 0.0
    %1631 = vmatpush1.msra.mxu0 0.0
    %1632 = vmatprep.subr.mxu0 0.0
    %1633 = vmatpush1.msra.mxu0 0.0
    %1634 = vmatprep.subr.mxu0 0.0
    %1635 = vmatpush1.msra.mxu0 0.0
    %1636 = vmatprep.subr.mxu0 0.0
    %1637 = vmatpush1.msra.mxu0 0.0
    %1638 = vmatprep.subr.mxu0 0.0
    %1639 = vmatpush1.msra.mxu0 0.0
    %1640 = vmatprep.subr.mxu0 0.0
    %1641 = vmatpush1.msra.mxu0 0.0
    %1642 = vmatprep.subr.mxu0 0.0
    %1643 = vmatpush1.msra.mxu0 0.0
    %1644 = vmatprep.subr.mxu0 0.0
    %1645 = vmatpush1.msra.mxu0 0.0
    %1646 = vmatprep.subr.mxu0 0.0
    %1647 = vmatpush1.msra.mxu0 0.0
    %1648 = vmatprep.subr.mxu0 0.0
    %1649 = vmatpush1.msra.mxu0 0.0
    %1650 = vmatprep.mubr.f32.mxu0 0.0
    %1651 = vmatmul.mubr.f32.gmra.mrb[0].mxu0 %v1584
    %v1652 = vpop.f32.mrb[0].mxu0
    %v1653 = vadd.f32 %v1363, %v1652
    %v1654 = vpop.f32.mrb[0].mxu0
    %1655 = vdwg.mxu0
    %v1657 = vsel %vm1287, %v1356, 0
    %1659 = vmatprep.subr.mxu0 0.0
    %1660 = vmatpush1.msra.mxu0 %v537
    %1661 = vmatprep.subr.mxu0 0.0
    %1662 = vmatpush1.msra.mxu0 %v543
    %1663 = vmatprep.subr.mxu0 0.0
    %1664 = vmatpush1.msra.mxu0 0.0
    %1665 = vmatprep.subr.mxu0 0.0
    %1666 = vmatpush1.msra.mxu0 0.0
    %1667 = vmatprep.subr.mxu0 0.0
    %1668 = vmatpush1.msra.mxu0 0.0
    %1669 = vmatprep.subr.mxu0 0.0
    %1670 = vmatpush1.msra.mxu0 0.0
    %1671 = vmatprep.subr.mxu0 0.0
    %1672 = vmatpush1.msra.mxu0 0.0
    %1673 = vmatprep.subr.mxu0 0.0
    %1674 = vmatpush1.msra.mxu0 0.0
    %1675 = vmatprep.subr.mxu0 0.0
    %1676 = vmatpush1.msra.mxu0 0.0
    %1677 = vmatprep.subr.mxu0 0.0
    %1678 = vmatpush1.msra.mxu0 0.0
    %1679 = vmatprep.subr.mxu0 0.0
    %1680 = vmatpush1.msra.mxu0 0.0
    %1681 = vmatprep.subr.mxu0 0.0
    %1682 = vmatpush1.msra.mxu0 0.0
    %1683 = vmatprep.subr.mxu0 0.0
    %1684 = vmatpush1.msra.mxu0 0.0
    %1685 = vmatprep.subr.mxu0 0.0
    %1686 = vmatpush1.msra.mxu0 0.0
    %1687 = vmatprep.subr.mxu0 0.0
    %1688 = vmatpush1.msra.mxu0 0.0
    %1689 = vmatprep.subr.mxu0 0.0
    %1690 = vmatpush1.msra.mxu0 0.0
    %1691 = vmatprep.subr.mxu0 0.0
    %1692 = vmatpush1.msra.mxu0 0.0
    %1693 = vmatprep.subr.mxu0 0.0
    %1694 = vmatpush1.msra.mxu0 0.0
    %1695 = vmatprep.subr.mxu0 0.0
    %1696 = vmatpush1.msra.mxu0 0.0
    %1697 = vmatprep.subr.mxu0 0.0
    %1698 = vmatpush1.msra.mxu0 0.0
    %1699 = vmatprep.subr.mxu0 0.0
    %1700 = vmatpush1.msra.mxu0 0.0
    %1701 = vmatprep.subr.mxu0 0.0
    %1702 = vmatpush1.msra.mxu0 0.0
    %1703 = vmatprep.subr.mxu0 0.0
    %1704 = vmatpush1.msra.mxu0 0.0
    %1705 = vmatprep.subr.mxu0 0.0
    %1706 = vmatpush1.msra.mxu0 0.0
    %1707 = vmatprep.subr.mxu0 0.0
    %1708 = vmatpush1.msra.mxu0 0.0
    %1709 = vmatprep.subr.mxu0 0.0
    %1710 = vmatpush1.msra.mxu0 0.0
    %1711 = vmatprep.subr.mxu0 0.0
    %1712 = vmatpush1.msra.mxu0 0.0
    %1713 = vmatprep.subr.mxu0 0.0
    %1714 = vmatpush1.msra.mxu0 0.0
    %1715 = vmatprep.subr.mxu0 0.0
    %1716 = vmatpush1.msra.mxu0 0.0
    %1717 = vmatprep.subr.mxu0 0.0
    %1718 = vmatpush1.msra.mxu0 0.0
    %1719 = vmatprep.subr.mxu0 0.0
    %1720 = vmatpush1.msra.mxu0 0.0
    %1721 = vmatprep.subr.mxu0 0.0
    %1722 = vmatpush1.msra.mxu0 0.0
    %1723 = vmatprep.mubr.f32.mxu0 0.0
    %1724 = vmatmul.mubr.f32.gmra.mrb[0].mxu0 %v1657
    %v1725 = vpop.f32.mrb[0].mxu0
    %v1726 = vadd.f32 %v1360, %v1725
    %v1727 = vpop.f32.mrb[0].mxu0
    %1728 = vdwg.mxu0
    %v1730 = vsel %vm1287, %v1357, 0
    %1732 = vmatprep.subr.mxu0 0.0
    %1733 = vmatpush1.msra.mxu0 %v549
    %1734 = vmatprep.subr.mxu0 0.0
    %1735 = vmatpush1.msra.mxu0 %v555
    %1736 = vmatprep.subr.mxu0 0.0
    %1737 = vmatpush1.msra.mxu0 0.0
    %1738 = vmatprep.subr.mxu0 0.0
    %1739 = vmatpush1.msra.mxu0 0.0
    %1740 = vmatprep.subr.mxu0 0.0
    %1741 = vmatpush1.msra.mxu0 0.0
    %1742 = vmatprep.subr.mxu0 0.0
    %1743 = vmatpush1.msra.mxu0 0.0
    %1744 = vmatprep.subr.mxu0 0.0
    %1745 = vmatpush1.msra.mxu0 0.0
    %1746 = vmatprep.subr.mxu0 0.0
    %1747 = vmatpush1.msra.mxu0 0.0
    %1748 = vmatprep.subr.mxu0 0.0
    %1749 = vmatpush1.msra.mxu0 0.0
    %1750 = vmatprep.subr.mxu0 0.0
    %1751 = vmatpush1.msra.mxu0 0.0
    %1752 = vmatprep.subr.mxu0 0.0
    %1753 = vmatpush1.msra.mxu0 0.0
    %1754 = vmatprep.subr.mxu0 0.0
    %1755 = vmatpush1.msra.mxu0 0.0
    %1756 = vmatprep.subr.mxu0 0.0
    %1757 = vmatpush1.msra.mxu0 0.0
    %1758 = vmatprep.subr.mxu0 0.0
    %1759 = vmatpush1.msra.mxu0 0.0
    %1760 = vmatprep.subr.mxu0 0.0
    %1761 = vmatpush1.msra.mxu0 0.0
    %1762 = vmatprep.subr.mxu0 0.0
    %1763 = vmatpush1.msra.mxu0 0.0
    %1764 = vmatprep.subr.mxu0 0.0
    %1765 = vmatpush1.msra.mxu0 0.0
    %1766 = vmatprep.subr.mxu0 0.0
    %1767 = vmatpush1.msra.mxu0 0.0
    %1768 = vmatprep.subr.mxu0 0.0
    %1769 = vmatpush1.msra.mxu0 0.0
    %1770 = vmatprep.subr.mxu0 0.0
    %1771 = vmatpush1.msra.mxu0 0.0
    %1772 = vmatprep.subr.mxu0 0.0
    %1773 = vmatpush1.msra.mxu0 0.0
    %1774 = vmatprep.subr.mxu0 0.0
    %1775 = vmatpush1.msra.mxu0 0.0
    %1776 = vmatprep.subr.mxu0 0.0
    %1777 = vmatpush1.msra.mxu0 0.0
    %1778 = vmatprep.subr.mxu0 0.0
    %1779 = vmatpush1.msra.mxu0 0.0
    %1780 = vmatprep.subr.mxu0 0.0
    %1781 = vmatpush1.msra.mxu0 0.0
    %1782 = vmatprep.subr.mxu0 0.0
    %1783 = vmatpush1.msra.mxu0 0.0
    %1784 = vmatprep.subr.mxu0 0.0
    %1785 = vmatpush1.msra.mxu0 0.0
    %1786 = vmatprep.subr.mxu0 0.0
    %1787 = vmatpush1.msra.mxu0 0.0
    %1788 = vmatprep.subr.mxu0 0.0
    %1789 = vmatpush1.msra.mxu0 0.0
    %1790 = vmatprep.subr.mxu0 0.0
    %1791 = vmatpush1.msra.mxu0 0.0
    %1792 = vmatprep.subr.mxu0 0.0
    %1793 = vmatpush1.msra.mxu0 0.0
    %1794 = vmatprep.subr.mxu0 0.0
    %1795 = vmatpush1.msra.mxu0 0.0
    %1796 = vmatprep.mubr.f32.mxu0 0.0
    %1797 = vmatmul.mubr.f32.gmra.mrb[0].mxu0 %v1730
    %v1798 = vpop.f32.mrb[0].mxu0
    %v1799 = vadd.f32 %v1361, %v1798
    %v1800 = vpop.f32.mrb[0].mxu0
    %1801 = vdwg.mxu0
    %v1803 = vsel %vm1287, %v1358, 0
    %1805 = vmatprep.subr.mxu0 0.0
    %1806 = vmatpush1.msra.mxu0 %v561
    %1807 = vmatprep.subr.mxu0 0.0
    %1808 = vmatpush1.msra.mxu0 %v567
    %1809 = vmatprep.subr.mxu0 0.0
    %1810 = vmatpush1.msra.mxu0 0.0
    %1811 = vmatprep.subr.mxu0 0.0
    %1812 = vmatpush1.msra.mxu0 0.0
    %1813 = vmatprep.subr.mxu0 0.0
    %1814 = vmatpush1.msra.mxu0 0.0
    %1815 = vmatprep.subr.mxu0 0.0
    %1816 = vmatpush1.msra.mxu0 0.0
    %1817 = vmatprep.subr.mxu0 0.0
    %1818 = vmatpush1.msra.mxu0 0.0
    %1819 = vmatprep.subr.mxu0 0.0
    %1820 = vmatpush1.msra.mxu0 0.0
    %1821 = vmatprep.subr.mxu0 0.0
    %1822 = vmatpush1.msra.mxu0 0.0
    %1823 = vmatprep.subr.mxu0 0.0
    %1824 = vmatpush1.msra.mxu0 0.0
    %1825 = vmatprep.subr.mxu0 0.0
    %1826 = vmatpush1.msra.mxu0 0.0
    %1827 = vmatprep.subr.mxu0 0.0
    %1828 = vmatpush1.msra.mxu0 0.0
    %1829 = vmatprep.subr.mxu0 0.0
    %1830 = vmatpush1.msra.mxu0 0.0
    %1831 = vmatprep.subr.mxu0 0.0
    %1832 = vmatpush1.msra.mxu0 0.0
    %1833 = vmatprep.subr.mxu0 0.0
    %1834 = vmatpush1.msra.mxu0 0.0
    %1835 = vmatprep.subr.mxu0 0.0
    %1836 = vmatpush1.msra.mxu0 0.0
    %1837 = vmatprep.subr.mxu0 0.0
    %1838 = vmatpush1.msra.mxu0 0.0
    %1839 = vmatprep.subr.mxu0 0.0
    %1840 = vmatpush1.msra.mxu0 0.0
    %1841 = vmatprep.subr.mxu0 0.0
    %1842 = vmatpush1.msra.mxu0 0.0
    %1843 = vmatprep.subr.mxu0 0.0
    %1844 = vmatpush1.msra.mxu0 0.0
    %1845 = vmatprep.subr.mxu0 0.0
    %1846 = vmatpush1.msra.mxu0 0.0
    %1847 = vmatprep.subr.mxu0 0.0
    %1848 = vmatpush1.msra.mxu0 0.0
    %1849 = vmatprep.subr.mxu0 0.0
    %1850 = vmatpush1.msra.mxu0 0.0
    %1851 = vmatprep.subr.mxu0 0.0
    %1852 = vmatpush1.msra.mxu0 0.0
    %1853 = vmatprep.subr.mxu0 0.0
    %1854 = vmatpush1.msra.mxu0 0.0
    %1855 = vmatprep.subr.mxu0 0.0
    %1856 = vmatpush1.msra.mxu0 0.0
    %1857 = vmatprep.subr.mxu0 0.0
    %1858 = vmatpush1.msra.mxu0 0.0
    %1859 = vmatprep.subr.mxu0 0.0
    %1860 = vmatpush1.msra.mxu0 0.0
    %1861 = vmatprep.subr.mxu0 0.0
    %1862 = vmatpush1.msra.mxu0 0.0
    %1863 = vmatprep.subr.mxu0 0.0
    %1864 = vmatpush1.msra.mxu0 0.0
    %1865 = vmatprep.subr.mxu0 0.0
    %1866 = vmatpush1.msra.mxu0 0.0
    %1867 = vmatprep.subr.mxu0 0.0
    %1868 = vmatpush1.msra.mxu0 0.0
    %1869 = vmatprep.mubr.f32.mxu0 0.0
    %1870 = vmatmul.mubr.f32.gmra.mrb[0].mxu0 %v1803
    %v1871 = vpop.f32.mrb[0].mxu0
    %v1872 = vadd.f32 %v1362, %v1871
    %v1873 = vpop.f32.mrb[0].mxu0
    %1874 = vdwg.mxu0
    %v1876 = vsel %vm1287, %v1359, 0
    %1878 = vmatprep.subr.mxu0 0.0
    %1879 = vmatpush1.msra.mxu0 %v573
    %1880 = vmatprep.subr.mxu0 0.0
    %1881 = vmatpush1.msra.mxu0 %v579
    %1882 = vmatprep.subr.mxu0 0.0
    %1883 = vmatpush1.msra.mxu0 0.0
    %1884 = vmatprep.subr.mxu0 0.0
    %1885 = vmatpush1.msra.mxu0 0.0
    %1886 = vmatprep.subr.mxu0 0.0
    %1887 = vmatpush1.msra.mxu0 0.0
    %1888 = vmatprep.subr.mxu0 0.0
    %1889 = vmatpush1.msra.mxu0 0.0
    %1890 = vmatprep.subr.mxu0 0.0
    %1891 = vmatpush1.msra.mxu0 0.0
    %1892 = vmatprep.subr.mxu0 0.0
    %1893 = vmatpush1.msra.mxu0 0.0
    %1894 = vmatprep.subr.mxu0 0.0
    %1895 = vmatpush1.msra.mxu0 0.0
    %1896 = vmatprep.subr.mxu0 0.0
    %1897 = vmatpush1.msra.mxu0 0.0
    %1898 = vmatprep.subr.mxu0 0.0
    %1899 = vmatpush1.msra.mxu0 0.0
    %1900 = vmatprep.subr.mxu0 0.0
    %1901 = vmatpush1.msra.mxu0 0.0
    %1902 = vmatprep.subr.mxu0 0.0
    %1903 = vmatpush1.msra.mxu0 0.0
    %1904 = vmatprep.subr.mxu0 0.0
    %1905 = vmatpush1.msra.mxu0 0.0
    %1906 = vmatprep.subr.mxu0 0.0
    %1907 = vmatpush1.msra.mxu0 0.0
    %1908 = vmatprep.subr.mxu0 0.0
    %1909 = vmatpush1.msra.mxu0 0.0
    %1910 = vmatprep.subr.mxu0 0.0
    %1911 = vmatpush1.msra.mxu0 0.0
    %1912 = vmatprep.subr.mxu0 0.0
    %1913 = vmatpush1.msra.mxu0 0.0
    %1914 = vmatprep.subr.mxu0 0.0
    %1915 = vmatpush1.msra.mxu0 0.0
    %1916 = vmatprep.subr.mxu0 0.0
    %1917 = vmatpush1.msra.mxu0 0.0
    %1918 = vmatprep.subr.mxu0 0.0
    %1919 = vmatpush1.msra.mxu0 0.0
    %1920 = vmatprep.subr.mxu0 0.0
    %1921 = vmatpush1.msra.mxu0 0.0
    %1922 = vmatprep.subr.mxu0 0.0
    %1923 = vmatpush1.msra.mxu0 0.0
    %1924 = vmatprep.subr.mxu0 0.0
    %1925 = vmatpush1.msra.mxu0 0.0
    %1926 = vmatprep.subr.mxu0 0.0
    %1927 = vmatpush1.msra.mxu0 0.0
    %1928 = vmatprep.subr.mxu0 0.0
    %1929 = vmatpush1.msra.mxu0 0.0
    %1930 = vmatprep.subr.mxu0 0.0
    %1931 = vmatpush1.msra.mxu0 0.0
    %1932 = vmatprep.subr.mxu0 0.0
    %1933 = vmatpush1.msra.mxu0 0.0
    %1934 = vmatprep.subr.mxu0 0.0
    %1935 = vmatpush1.msra.mxu0 0.0
    %1936 = vmatprep.subr.mxu0 0.0
    %1937 = vmatpush1.msra.mxu0 0.0
    %1938 = vmatprep.subr.mxu0 0.0
    %1939 = vmatpush1.msra.mxu0 0.0
    %1940 = vmatprep.subr.mxu0 0.0
    %1941 = vmatpush1.msra.mxu0 0.0
    %1942 = vmatprep.mubr.f32.mxu0 0.0
    %1943 = vmatmul.mubr.f32.gmra.mrb[0].mxu0 %v1876
    %v1944 = vpop.f32.mrb[0].mxu0
    %v1945 = vadd.f32 %v1363, %v1944
    %v1946 = vpop.f32.mrb[0].mxu0
    %1947 = vdwg.mxu0
    %v1948 = vmax.f32 %v1219, 0.0
    %v1949 = vmax.f32 %v1220, 0.0
    %v1950 = vmax.f32 %v1221, 0.0
    %v1951 = vmax.f32 %v1222, 0.0
    %v1952 = vmax.f32 %v1223, 0.0
    %v1953 = vmax.f32 %v1224, 0.0
    %v1954 = vmax.f32 %v1225, 0.0
    %v1955 = vmax.f32 %v1226, 0.0
    %v1956 = vsub.f32 0.0, %v1219
    %v1957 = vsub.f32 0.0, %v1220
    %v1958 = vsub.f32 0.0, %v1221
    %v1959 = vsub.f32 0.0, %v1222
    %v1960 = vsub.f32 0.0, %v1223
    %v1961 = vsub.f32 0.0, %v1224
    %v1962 = vsub.f32 0.0, %v1225
    %v1963 = vsub.f32 0.0, %v1226
    %v1964 = vmax.f32 %v1956, 0.0
    %v1965 = vmax.f32 %v1957, 0.0
    %v1966 = vmax.f32 %v1958, 0.0
    %v1967 = vmax.f32 %v1959, 0.0
    %v1968 = vmax.f32 %v1960, 0.0
    %v1969 = vmax.f32 %v1961, 0.0
    %v1970 = vmax.f32 %v1962, 0.0
    %v1971 = vmax.f32 %v1963, 0.0
    %v1972 = vld [vmem:[%s4] sm:$0xff]
    %vm1973 = vcmask 64512
    %v1975 = vsel %vm1973, %v1948, 0
    %v1978 = vsel %vm1973, %v1949, 0
    %v1981 = vsel %vm1973, %v1950, 0
    %v1984 = vsel %vm1973, %v1951, 0
    %v1987 = vsel %vm1973, %v1952, 0
    %v1990 = vsel %vm1973, %v1953, 0
    %v1993 = vsel %vm1973, %v1954, 0
    %v1996 = vsel %vm1973, %v1955, 0
    %1998 = vmatprep.subr.mxu0 0.0
    %1999 = vmatpush1.msra.mxu0 %v1972
    %2000 = vmatprep.subr.mxu0 0.0
    %2001 = vmatpush1.msra.mxu0 0.0
    %2002 = vmatprep.subr.mxu0 0.0
    %2003 = vmatpush1.msra.mxu0 0.0
    %2004 = vmatprep.subr.mxu0 0.0
    %2005 = vmatpush1.msra.mxu0 0.0
    %2006 = vmatprep.subr.mxu0 0.0
    %2007 = vmatpush1.msra.mxu0 0.0
    %2008 = vmatprep.subr.mxu0 0.0
    %2009 = vmatpush1.msra.mxu0 0.0
    %2010 = vmatprep.subr.mxu0 0.0
    %2011 = vmatpush1.msra.mxu0 0.0
    %2012 = vmatprep.subr.mxu0 0.0
    %2013 = vmatpush1.msra.mxu0 0.0
    %2014 = vmatprep.subr.mxu0 0.0
    %2015 = vmatpush1.msra.mxu0 0.0
    %2016 = vmatprep.subr.mxu0 0.0
    %2017 = vmatpush1.msra.mxu0 0.0
    %2018 = vmatprep.subr.mxu0 0.0
    %2019 = vmatpush1.msra.mxu0 0.0
    %2020 = vmatprep.subr.mxu0 0.0
    %2021 = vmatpush1.msra.mxu0 0.0
    %2022 = vmatprep.subr.mxu0 0.0
    %2023 = vmatpush1.msra.mxu0 0.0
    %2024 = vmatprep.subr.mxu0 0.0
    %2025 = vmatpush1.msra.mxu0 0.0
    %2026 = vmatprep.subr.mxu0 0.0
    %2027 = vmatpush1.msra.mxu0 0.0
    %2028 = vmatprep.subr.mxu0 0.0
    %2029 = vmatpush1.msra.mxu0 0.0
    %2030 = vmatprep.subr.mxu0 0.0
    %2031 = vmatpush1.msra.mxu0 0.0
    %2032 = vmatprep.subr.mxu0 0.0
    %2033 = vmatpush1.msra.mxu0 0.0
    %2034 = vmatprep.subr.mxu0 0.0
    %2035 = vmatpush1.msra.mxu0 0.0
    %2036 = vmatprep.subr.mxu0 0.0
    %2037 = vmatpush1.msra.mxu0 0.0
    %2038 = vmatprep.subr.mxu0 0.0
    %2039 = vmatpush1.msra.mxu0 0.0
    %2040 = vmatprep.subr.mxu0 0.0
    %2041 = vmatpush1.msra.mxu0 0.0
    %2042 = vmatprep.subr.mxu0 0.0
    %2043 = vmatpush1.msra.mxu0 0.0
    %2044 = vmatprep.subr.mxu0 0.0
    %2045 = vmatpush1.msra.mxu0 0.0
    %2046 = vmatprep.subr.mxu0 0.0
    %2047 = vmatpush1.msra.mxu0 0.0
    %2048 = vmatprep.subr.mxu0 0.0
    %2049 = vmatpush1.msra.mxu0 0.0
    %2050 = vmatprep.subr.mxu0 0.0
    %2051 = vmatpush1.msra.mxu0 0.0
    %2052 = vmatprep.subr.mxu0 0.0
    %2053 = vmatpush1.msra.mxu0 0.0
    %2054 = vmatprep.subr.mxu0 0.0
    %2055 = vmatpush1.msra.mxu0 0.0
    %2056 = vmatprep.subr.mxu0 0.0
    %2057 = vmatpush1.msra.mxu0 0.0
    %2058 = vmatprep.subr.mxu0 0.0
    %2059 = vmatpush1.msra.mxu0 0.0
    %2060 = vmatprep.subr.mxu0 0.0
    %2061 = vmatpush1.msra.mxu0 0.0
    %2062 = vmatprep.mubr.f32.mxu0 0.0
    %2063 = vmatmul.mubr.f32.gmra.mrb[0].mxu0 %v1975
    %v2064 = vpop.f32.mrb[0].mxu0
    %v2065 = vadd.f32 0.0001, %v2064
    %v2066 = vpop.f32.mrb[0].mxu0
    %2067 = vmatprep.mubr.f32.mxu0 0.0
    %2068 = vmatmul.mubr.f32.gmra.mrb[0].mxu0 %v1978
    %v2069 = vpop.f32.mrb[0].mxu0
    %v2070 = vadd.f32 0.0001, %v2069
    %v2071 = vpop.f32.mrb[0].mxu0
    %2072 = vmatprep.mubr.f32.mxu0 0.0
    %2073 = vmatmul.mubr.f32.gmra.mrb[0].mxu0 %v1981
    %v2074 = vpop.f32.mrb[0].mxu0
    %v2075 = vadd.f32 0.0001, %v2074
    %v2076 = vpop.f32.mrb[0].mxu0
    %2077 = vmatprep.mubr.f32.mxu0 0.0
    %2078 = vmatmul.mubr.f32.gmra.mrb[0].mxu0 %v1984
    %v2079 = vpop.f32.mrb[0].mxu0
    %v2080 = vadd.f32 0.0001, %v2079
    %v2081 = vpop.f32.mrb[0].mxu0
    %2082 = vmatprep.mubr.f32.mxu0 0.0
    %2083 = vmatmul.mubr.f32.gmra.mrb[0].mxu0 %v1987
    %v2084 = vpop.f32.mrb[0].mxu0
    %v2085 = vadd.f32 0.0001, %v2084
    %v2086 = vpop.f32.mrb[0].mxu0
    %2087 = vmatprep.mubr.f32.mxu0 0.0
    %2088 = vmatmul.mubr.f32.gmra.mrb[0].mxu0 %v1990
    %v2089 = vpop.f32.mrb[0].mxu0
    %v2090 = vadd.f32 0.0001, %v2089
    %v2091 = vpop.f32.mrb[0].mxu0
    %2092 = vmatprep.mubr.f32.mxu0 0.0
    %2093 = vmatmul.mubr.f32.gmra.mrb[0].mxu0 %v1993
    %v2094 = vpop.f32.mrb[0].mxu0
    %v2095 = vadd.f32 0.0001, %v2094
    %v2096 = vpop.f32.mrb[0].mxu0
    %2097 = vmatprep.mubr.f32.mxu0 0.0
    %2098 = vmatmul.mubr.f32.gmra.mrb[0].mxu0 %v1996
    %v2099 = vpop.f32.mrb[0].mxu0
    %v2100 = vadd.f32 0.0001, %v2099
    %v2101 = vpop.f32.mrb[0].mxu0
    %2102 = vdwg.mxu0
    %v2103 = vrcp.pop %v2065
    %v2104 = vrcp.pop %v2070
    %v2105 = vrcp.pop %v2075
    %v2106 = vrcp.pop %v2080
    %v2107 = vrcp.pop %v2085
    %v2108 = vrcp.pop %v2090
    %v2109 = vrcp.pop %v2095
    %v2110 = vrcp.pop %v2100
    %v2111 = vmul.f32 %v2065, %v2103
    %v2112 = vmul.f32 %v2070, %v2104
    %v2113 = vmul.f32 %v2075, %v2105
    %v2114 = vmul.f32 %v2080, %v2106
    %v2115 = vmul.f32 %v2085, %v2107
    %v2116 = vmul.f32 %v2090, %v2108
    %v2117 = vmul.f32 %v2095, %v2109
    %v2118 = vmul.f32 %v2100, %v2110
    %v2119 = vsub.f32 2.0, %v2111
    %v2120 = vsub.f32 2.0, %v2112
    %v2121 = vsub.f32 2.0, %v2113
    %v2122 = vsub.f32 2.0, %v2114
    %v2123 = vsub.f32 2.0, %v2115
    %v2124 = vsub.f32 2.0, %v2116
    %v2125 = vsub.f32 2.0, %v2117
    %v2126 = vsub.f32 2.0, %v2118
    %v2127 = vmul.f32 %v2103, %v2119
    %v2128 = vmul.f32 %v2104, %v2120
    %v2129 = vmul.f32 %v2105, %v2121
    %v2130 = vmul.f32 %v2106, %v2122
    %v2131 = vmul.f32 %v2107, %v2123
    %v2132 = vmul.f32 %v2108, %v2124
    %v2133 = vmul.f32 %v2109, %v2125
    %v2134 = vmul.f32 %v2110, %v2126
    %v2135 = vmul.f32 %v2127, 0.5
    %v2136 = vmul.f32 %v2128, 0.5
    %v2137 = vmul.f32 %v2129, 0.5
    %v2138 = vmul.f32 %v2130, 0.5
    %v2139 = vmul.f32 %v2131, 0.5
    %v2140 = vmul.f32 %v2132, 0.5
    %v2141 = vmul.f32 %v2133, 0.5
    %v2142 = vmul.f32 %v2134, 0.5
    %v2143 = vmul.f32 %v1948, %v2135
    %v2144 = vmul.f32 %v1949, %v2136
    %v2145 = vmul.f32 %v1950, %v2137
    %v2146 = vmul.f32 %v1951, %v2138
    %v2147 = vmul.f32 %v1952, %v2139
    %v2148 = vmul.f32 %v1953, %v2140
    %v2149 = vmul.f32 %v1954, %v2141
    %v2150 = vmul.f32 %v1955, %v2142
    %v2152 = vsel %vm1973, %v1964, 0
    %v2155 = vsel %vm1973, %v1965, 0
    %v2158 = vsel %vm1973, %v1966, 0
    %v2161 = vsel %vm1973, %v1967, 0
    %v2164 = vsel %vm1973, %v1968, 0
    %v2167 = vsel %vm1973, %v1969, 0
    %v2170 = vsel %vm1973, %v1970, 0
    %v2173 = vsel %vm1973, %v1971, 0
    %2175 = vmatprep.subr.mxu0 0.0
    %2176 = vmatpush1.msra.mxu0 %v1972
    %2177 = vmatprep.subr.mxu0 0.0
    %2178 = vmatpush1.msra.mxu0 0.0
    %2179 = vmatprep.subr.mxu0 0.0
    %2180 = vmatpush1.msra.mxu0 0.0
    %2181 = vmatprep.subr.mxu0 0.0
    %2182 = vmatpush1.msra.mxu0 0.0
    %2183 = vmatprep.subr.mxu0 0.0
    %2184 = vmatpush1.msra.mxu0 0.0
    %2185 = vmatprep.subr.mxu0 0.0
    %2186 = vmatpush1.msra.mxu0 0.0
    %2187 = vmatprep.subr.mxu0 0.0
    %2188 = vmatpush1.msra.mxu0 0.0
    %2189 = vmatprep.subr.mxu0 0.0
    %2190 = vmatpush1.msra.mxu0 0.0
    %2191 = vmatprep.subr.mxu0 0.0
    %2192 = vmatpush1.msra.mxu0 0.0
    %2193 = vmatprep.subr.mxu0 0.0
    %2194 = vmatpush1.msra.mxu0 0.0
    %2195 = vmatprep.subr.mxu0 0.0
    %2196 = vmatpush1.msra.mxu0 0.0
    %2197 = vmatprep.subr.mxu0 0.0
    %2198 = vmatpush1.msra.mxu0 0.0
    %2199 = vmatprep.subr.mxu0 0.0
    %2200 = vmatpush1.msra.mxu0 0.0
    %2201 = vmatprep.subr.mxu0 0.0
    %2202 = vmatpush1.msra.mxu0 0.0
    %2203 = vmatprep.subr.mxu0 0.0
    %2204 = vmatpush1.msra.mxu0 0.0
    %2205 = vmatprep.subr.mxu0 0.0
    %2206 = vmatpush1.msra.mxu0 0.0
    %2207 = vmatprep.subr.mxu0 0.0
    %2208 = vmatpush1.msra.mxu0 0.0
    %2209 = vmatprep.subr.mxu0 0.0
    %2210 = vmatpush1.msra.mxu0 0.0
    %2211 = vmatprep.subr.mxu0 0.0
    %2212 = vmatpush1.msra.mxu0 0.0
    %2213 = vmatprep.subr.mxu0 0.0
    %2214 = vmatpush1.msra.mxu0 0.0
    %2215 = vmatprep.subr.mxu0 0.0
    %2216 = vmatpush1.msra.mxu0 0.0
    %2217 = vmatprep.subr.mxu0 0.0
    %2218 = vmatpush1.msra.mxu0 0.0
    %2219 = vmatprep.subr.mxu0 0.0
    %2220 = vmatpush1.msra.mxu0 0.0
    %2221 = vmatprep.subr.mxu0 0.0
    %2222 = vmatpush1.msra.mxu0 0.0
    %2223 = vmatprep.subr.mxu0 0.0
    %2224 = vmatpush1.msra.mxu0 0.0
    %2225 = vmatprep.subr.mxu0 0.0
    %2226 = vmatpush1.msra.mxu0 0.0
    %2227 = vmatprep.subr.mxu0 0.0
    %2228 = vmatpush1.msra.mxu0 0.0
    %2229 = vmatprep.subr.mxu0 0.0
    %2230 = vmatpush1.msra.mxu0 0.0
    %2231 = vmatprep.subr.mxu0 0.0
    %2232 = vmatpush1.msra.mxu0 0.0
    %2233 = vmatprep.subr.mxu0 0.0
    %2234 = vmatpush1.msra.mxu0 0.0
    %2235 = vmatprep.subr.mxu0 0.0
    %2236 = vmatpush1.msra.mxu0 0.0
    %2237 = vmatprep.subr.mxu0 0.0
    %2238 = vmatpush1.msra.mxu0 0.0
    %2239 = vmatprep.mubr.f32.mxu0 0.0
    %2240 = vmatmul.mubr.f32.gmra.mrb[0].mxu0 %v2152
    %v2241 = vpop.f32.mrb[0].mxu0
    %v2242 = vadd.f32 0.0001, %v2241
    %v2243 = vpop.f32.mrb[0].mxu0
    %2244 = vmatprep.mubr.f32.mxu0 0.0
    %2245 = vmatmul.mubr.f32.gmra.mrb[0].mxu0 %v2155
    %v2246 = vpop.f32.mrb[0].mxu0
    %v2247 = vadd.f32 0.0001, %v2246
    %v2248 = vpop.f32.mrb[0].mxu0
    %2249 = vmatprep.mubr.f32.mxu0 0.0
    %2250 = vmatmul.mubr.f32.gmra.mrb[0].mxu0 %v2158
    %v2251 = vpop.f32.mrb[0].mxu0
    %v2252 = vadd.f32 0.0001, %v2251
    %v2253 = vpop.f32.mrb[0].mxu0
    %2254 = vmatprep.mubr.f32.mxu0 0.0
    %2255 = vmatmul.mubr.f32.gmra.mrb[0].mxu0 %v2161
    %v2256 = vpop.f32.mrb[0].mxu0
    %v2257 = vadd.f32 0.0001, %v2256
    %v2258 = vpop.f32.mrb[0].mxu0
    %2259 = vmatprep.mubr.f32.mxu0 0.0
    %2260 = vmatmul.mubr.f32.gmra.mrb[0].mxu0 %v2164
    %v2261 = vpop.f32.mrb[0].mxu0
    %v2262 = vadd.f32 0.0001, %v2261
    %v2263 = vpop.f32.mrb[0].mxu0
    %2264 = vmatprep.mubr.f32.mxu0 0.0
    %2265 = vmatmul.mubr.f32.gmra.mrb[0].mxu0 %v2167
    %v2266 = vpop.f32.mrb[0].mxu0
    %v2267 = vadd.f32 0.0001, %v2266
    %v2268 = vpop.f32.mrb[0].mxu0
    %2269 = vmatprep.mubr.f32.mxu0 0.0
    %2270 = vmatmul.mubr.f32.gmra.mrb[0].mxu0 %v2170
    %v2271 = vpop.f32.mrb[0].mxu0
    %v2272 = vadd.f32 0.0001, %v2271
    %v2273 = vpop.f32.mrb[0].mxu0
    %2274 = vmatprep.mubr.f32.mxu0 0.0
    %2275 = vmatmul.mubr.f32.gmra.mrb[0].mxu0 %v2173
    %v2276 = vpop.f32.mrb[0].mxu0
    %v2277 = vadd.f32 0.0001, %v2276
    %v2278 = vpop.f32.mrb[0].mxu0
    %2279 = vdwg.mxu0
    %v2280 = vrcp.pop %v2242
    %v2281 = vrcp.pop %v2247
    %v2282 = vrcp.pop %v2252
    %v2283 = vrcp.pop %v2257
    %v2284 = vrcp.pop %v2262
    %v2285 = vrcp.pop %v2267
    %v2286 = vrcp.pop %v2272
    %v2287 = vrcp.pop %v2277
    %v2288 = vmul.f32 %v2242, %v2280
    %v2289 = vmul.f32 %v2247, %v2281
    %v2290 = vmul.f32 %v2252, %v2282
    %v2291 = vmul.f32 %v2257, %v2283
    %v2292 = vmul.f32 %v2262, %v2284
    %v2293 = vmul.f32 %v2267, %v2285
    %v2294 = vmul.f32 %v2272, %v2286
    %v2295 = vmul.f32 %v2277, %v2287
    %v2296 = vsub.f32 2.0, %v2288
    %v2297 = vsub.f32 2.0, %v2289
    %v2298 = vsub.f32 2.0, %v2290
    %v2299 = vsub.f32 2.0, %v2291
    %v2300 = vsub.f32 2.0, %v2292
    %v2301 = vsub.f32 2.0, %v2293
    %v2302 = vsub.f32 2.0, %v2294
    %v2303 = vsub.f32 2.0, %v2295
    %v2304 = vmul.f32 %v2280, %v2296
    %v2305 = vmul.f32 %v2281, %v2297
    %v2306 = vmul.f32 %v2282, %v2298
    %v2307 = vmul.f32 %v2283, %v2299
    %v2308 = vmul.f32 %v2284, %v2300
    %v2309 = vmul.f32 %v2285, %v2301
    %v2310 = vmul.f32 %v2286, %v2302
    %v2311 = vmul.f32 %v2287, %v2303
    %v2312 = vmul.f32 %v2304, 0.5
    %v2313 = vmul.f32 %v2305, 0.5
    %v2314 = vmul.f32 %v2306, 0.5
    %v2315 = vmul.f32 %v2307, 0.5
    %v2316 = vmul.f32 %v2308, 0.5
    %v2317 = vmul.f32 %v2309, 0.5
    %v2318 = vmul.f32 %v2310, 0.5
    %v2319 = vmul.f32 %v2311, 0.5
    %v2320 = vmul.f32 %v1964, %v2312
    %v2321 = vmul.f32 %v1965, %v2313
    %v2322 = vmul.f32 %v1966, %v2314
    %v2323 = vmul.f32 %v1967, %v2315
    %v2324 = vmul.f32 %v1968, %v2316
    %v2325 = vmul.f32 %v1969, %v2317
    %v2326 = vmul.f32 %v1970, %v2318
    %v2327 = vmul.f32 %v1971, %v2319
    %v2329 = vsel %vm1973, %v2143, 0
    %v2332 = vsel %vm1973, %v2144, 0
    %2334 = vmatprep.subr.mxu0 0.0
    %2335 = vmatpush1.msra.mxu0 %v1434
    %2336 = vmatprep.subr.mxu0 0.0
    %2337 = vmatpush1.msra.mxu0 0.0
    %2338 = vmatprep.subr.mxu0 0.0
    %2339 = vmatpush1.msra.mxu0 0.0
    %2340 = vmatprep.subr.mxu0 0.0
    %2341 = vmatpush1.msra.mxu0 0.0
    %2342 = vmatprep.subr.mxu0 0.0
    %2343 = vmatpush1.msra.mxu0 0.0
    %2344 = vmatprep.subr.mxu0 0.0
    %2345 = vmatpush1.msra.mxu0 0.0
    %2346 = vmatprep.subr.mxu0 0.0
    %2347 = vmatpush1.msra.mxu0 0.0
    %2348 = vmatprep.subr.mxu0 0.0
    %2349 = vmatpush1.msra.mxu0 0.0
    %2350 = vmatprep.subr.mxu0 0.0
    %2351 = vmatpush1.msra.mxu0 0.0
    %2352 = vmatprep.subr.mxu0 0.0
    %2353 = vmatpush1.msra.mxu0 0.0
    %2354 = vmatprep.subr.mxu0 0.0
    %2355 = vmatpush1.msra.mxu0 0.0
    %2356 = vmatprep.subr.mxu0 0.0
    %2357 = vmatpush1.msra.mxu0 0.0
    %2358 = vmatprep.subr.mxu0 0.0
    %2359 = vmatpush1.msra.mxu0 0.0
    %2360 = vmatprep.subr.mxu0 0.0
    %2361 = vmatpush1.msra.mxu0 0.0
    %2362 = vmatprep.subr.mxu0 0.0
    %2363 = vmatpush1.msra.mxu0 0.0
    %2364 = vmatprep.subr.mxu0 0.0
    %2365 = vmatpush1.msra.mxu0 0.0
    %2366 = vmatprep.subr.mxu0 0.0
    %2367 = vmatpush1.msra.mxu0 0.0
    %2368 = vmatprep.subr.mxu0 0.0
    %2369 = vmatpush1.msra.mxu0 0.0
    %2370 = vmatprep.subr.mxu0 0.0
    %2371 = vmatpush1.msra.mxu0 0.0
    %2372 = vmatprep.subr.mxu0 0.0
    %2373 = vmatpush1.msra.mxu0 0.0
    %2374 = vmatprep.subr.mxu0 0.0
    %2375 = vmatpush1.msra.mxu0 0.0
    %2376 = vmatprep.subr.mxu0 0.0
    %2377 = vmatpush1.msra.mxu0 0.0
    %2378 = vmatprep.subr.mxu0 0.0
    %2379 = vmatpush1.msra.mxu0 0.0
    %2380 = vmatprep.subr.mxu0 0.0
    %2381 = vmatpush1.msra.mxu0 0.0
    %2382 = vmatprep.subr.mxu0 0.0
    %2383 = vmatpush1.msra.mxu0 0.0
    %2384 = vmatprep.subr.mxu0 0.0
    %2385 = vmatpush1.msra.mxu0 0.0
    %2386 = vmatprep.subr.mxu0 0.0
    %2387 = vmatpush1.msra.mxu0 0.0
    %2388 = vmatprep.subr.mxu0 0.0
    %2389 = vmatpush1.msra.mxu0 0.0
    %2390 = vmatprep.subr.mxu0 0.0
    %2391 = vmatpush1.msra.mxu0 0.0
    %2392 = vmatprep.subr.mxu0 0.0
    %2393 = vmatpush1.msra.mxu0 0.0
    %2394 = vmatprep.subr.mxu0 0.0
    %2395 = vmatpush1.msra.mxu0 0.0
    %2396 = vmatprep.subr.mxu0 0.0
    %2397 = vmatpush1.msra.mxu0 0.0
    %2398 = vmatprep.mubr.f32.mxu0 0.0
    %2399 = vmatmul.mubr.f32.gmra.mrb[0].mxu0 %v2329
    %v2400 = vpop.f32.mrb[0].mxu0
    %v2401 = vadd.f32 0.0, %v2400
    %v2402 = vpop.f32.mrb[0].mxu0
    %2403 = vmatprep.mubr.f32.mxu0 0.0
    %2404 = vmatmul.mubr.f32.gmra.mrb[0].mxu0 %v2332
    %v2405 = vpop.f32.mrb[0].mxu0
    %v2406 = vadd.f32 0.0, %v2405
    %v2407 = vpop.f32.mrb[0].mxu0
    %2408 = vdwg.mxu0
    %v2410 = vsel %vm1973, %v2145, 0
    %v2413 = vsel %vm1973, %v2146, 0
    %2415 = vmatprep.subr.mxu0 0.0
    %2416 = vmatpush1.msra.mxu0 %v1507
    %2417 = vmatprep.subr.mxu0 0.0
    %2418 = vmatpush1.msra.mxu0 0.0
    %2419 = vmatprep.subr.mxu0 0.0
    %2420 = vmatpush1.msra.mxu0 0.0
    %2421 = vmatprep.subr.mxu0 0.0
    %2422 = vmatpush1.msra.mxu0 0.0
    %2423 = vmatprep.subr.mxu0 0.0
    %2424 = vmatpush1.msra.mxu0 0.0
    %2425 = vmatprep.subr.mxu0 0.0
    %2426 = vmatpush1.msra.mxu0 0.0
    %2427 = vmatprep.subr.mxu0 0.0
    %2428 = vmatpush1.msra.mxu0 0.0
    %2429 = vmatprep.subr.mxu0 0.0
    %2430 = vmatpush1.msra.mxu0 0.0
    %2431 = vmatprep.subr.mxu0 0.0
    %2432 = vmatpush1.msra.mxu0 0.0
    %2433 = vmatprep.subr.mxu0 0.0
    %2434 = vmatpush1.msra.mxu0 0.0
    %2435 = vmatprep.subr.mxu0 0.0
    %2436 = vmatpush1.msra.mxu0 0.0
    %2437 = vmatprep.subr.mxu0 0.0
    %2438 = vmatpush1.msra.mxu0 0.0
    %2439 = vmatprep.subr.mxu0 0.0
    %2440 = vmatpush1.msra.mxu0 0.0
    %2441 = vmatprep.subr.mxu0 0.0
    %2442 = vmatpush1.msra.mxu0 0.0
    %2443 = vmatprep.subr.mxu0 0.0
    %2444 = vmatpush1.msra.mxu0 0.0
    %2445 = vmatprep.subr.mxu0 0.0
    %2446 = vmatpush1.msra.mxu0 0.0
    %2447 = vmatprep.subr.mxu0 0.0
    %2448 = vmatpush1.msra.mxu0 0.0
    %2449 = vmatprep.subr.mxu0 0.0
    %2450 = vmatpush1.msra.mxu0 0.0
    %2451 = vmatprep.subr.mxu0 0.0
    %2452 = vmatpush1.msra.mxu0 0.0
    %2453 = vmatprep.subr.mxu0 0.0
    %2454 = vmatpush1.msra.mxu0 0.0
    %2455 = vmatprep.subr.mxu0 0.0
    %2456 = vmatpush1.msra.mxu0 0.0
    %2457 = vmatprep.subr.mxu0 0.0
    %2458 = vmatpush1.msra.mxu0 0.0
    %2459 = vmatprep.subr.mxu0 0.0
    %2460 = vmatpush1.msra.mxu0 0.0
    %2461 = vmatprep.subr.mxu0 0.0
    %2462 = vmatpush1.msra.mxu0 0.0
    %2463 = vmatprep.subr.mxu0 0.0
    %2464 = vmatpush1.msra.mxu0 0.0
    %2465 = vmatprep.subr.mxu0 0.0
    %2466 = vmatpush1.msra.mxu0 0.0
    %2467 = vmatprep.subr.mxu0 0.0
    %2468 = vmatpush1.msra.mxu0 0.0
    %2469 = vmatprep.subr.mxu0 0.0
    %2470 = vmatpush1.msra.mxu0 0.0
    %2471 = vmatprep.subr.mxu0 0.0
    %2472 = vmatpush1.msra.mxu0 0.0
    %2473 = vmatprep.subr.mxu0 0.0
    %2474 = vmatpush1.msra.mxu0 0.0
    %2475 = vmatprep.subr.mxu0 0.0
    %2476 = vmatpush1.msra.mxu0 0.0
    %2477 = vmatprep.subr.mxu0 0.0
    %2478 = vmatpush1.msra.mxu0 0.0
    %2479 = vmatprep.mubr.f32.mxu0 0.0
    %2480 = vmatmul.mubr.f32.gmra.mrb[0].mxu0 %v2410
    %v2481 = vpop.f32.mrb[0].mxu0
    %v2482 = vadd.f32 0.0, %v2481
    %v2483 = vpop.f32.mrb[0].mxu0
    %2484 = vmatprep.mubr.f32.mxu0 0.0
    %2485 = vmatmul.mubr.f32.gmra.mrb[0].mxu0 %v2413
    %v2486 = vpop.f32.mrb[0].mxu0
    %v2487 = vadd.f32 0.0, %v2486
    %v2488 = vpop.f32.mrb[0].mxu0
    %2489 = vdwg.mxu0
    %v2491 = vsel %vm1973, %v2147, 0
    %v2494 = vsel %vm1973, %v2148, 0
    %2496 = vmatprep.subr.mxu0 0.0
    %2497 = vmatpush1.msra.mxu0 %v1580
    %2498 = vmatprep.subr.mxu0 0.0
    %2499 = vmatpush1.msra.mxu0 0.0
    %2500 = vmatprep.subr.mxu0 0.0
    %2501 = vmatpush1.msra.mxu0 0.0
    %2502 = vmatprep.subr.mxu0 0.0
    %2503 = vmatpush1.msra.mxu0 0.0
    %2504 = vmatprep.subr.mxu0 0.0
    %2505 = vmatpush1.msra.mxu0 0.0
    %2506 = vmatprep.subr.mxu0 0.0
    %2507 = vmatpush1.msra.mxu0 0.0
    %2508 = vmatprep.subr.mxu0 0.0
    %2509 = vmatpush1.msra.mxu0 0.0
    %2510 = vmatprep.subr.mxu0 0.0
    %2511 = vmatpush1.msra.mxu0 0.0
    %2512 = vmatprep.subr.mxu0 0.0
    %2513 = vmatpush1.msra.mxu0 0.0
    %2514 = vmatprep.subr.mxu0 0.0
    %2515 = vmatpush1.msra.mxu0 0.0
    %2516 = vmatprep.subr.mxu0 0.0
    %2517 = vmatpush1.msra.mxu0 0.0
    %2518 = vmatprep.subr.mxu0 0.0
    %2519 = vmatpush1.msra.mxu0 0.0
    %2520 = vmatprep.subr.mxu0 0.0
    %2521 = vmatpush1.msra.mxu0 0.0
    %2522 = vmatprep.subr.mxu0 0.0
    %2523 = vmatpush1.msra.mxu0 0.0
    %2524 = vmatprep.subr.mxu0 0.0
    %2525 = vmatpush1.msra.mxu0 0.0
    %2526 = vmatprep.subr.mxu0 0.0
    %2527 = vmatpush1.msra.mxu0 0.0
    %2528 = vmatprep.subr.mxu0 0.0
    %2529 = vmatpush1.msra.mxu0 0.0
    %2530 = vmatprep.subr.mxu0 0.0
    %2531 = vmatpush1.msra.mxu0 0.0
    %2532 = vmatprep.subr.mxu0 0.0
    %2533 = vmatpush1.msra.mxu0 0.0
    %2534 = vmatprep.subr.mxu0 0.0
    %2535 = vmatpush1.msra.mxu0 0.0
    %2536 = vmatprep.subr.mxu0 0.0
    %2537 = vmatpush1.msra.mxu0 0.0
    %2538 = vmatprep.subr.mxu0 0.0
    %2539 = vmatpush1.msra.mxu0 0.0
    %2540 = vmatprep.subr.mxu0 0.0
    %2541 = vmatpush1.msra.mxu0 0.0
    %2542 = vmatprep.subr.mxu0 0.0
    %2543 = vmatpush1.msra.mxu0 0.0
    %2544 = vmatprep.subr.mxu0 0.0
    %2545 = vmatpush1.msra.mxu0 0.0
    %2546 = vmatprep.subr.mxu0 0.0
    %2547 = vmatpush1.msra.mxu0 0.0
    %2548 = vmatprep.subr.mxu0 0.0
    %2549 = vmatpush1.msra.mxu0 0.0
    %2550 = vmatprep.subr.mxu0 0.0
    %2551 = vmatpush1.msra.mxu0 0.0
    %2552 = vmatprep.subr.mxu0 0.0
    %2553 = vmatpush1.msra.mxu0 0.0
    %2554 = vmatprep.subr.mxu0 0.0
    %2555 = vmatpush1.msra.mxu0 0.0
    %2556 = vmatprep.subr.mxu0 0.0
    %2557 = vmatpush1.msra.mxu0 0.0
    %2558 = vmatprep.subr.mxu0 0.0
    %2559 = vmatpush1.msra.mxu0 0.0
    %2560 = vmatprep.mubr.f32.mxu0 0.0
    %2561 = vmatmul.mubr.f32.gmra.mrb[0].mxu0 %v2491
    %v2562 = vpop.f32.mrb[0].mxu0
    %v2563 = vadd.f32 0.0, %v2562
    %v2564 = vpop.f32.mrb[0].mxu0
    %2565 = vmatprep.mubr.f32.mxu0 0.0
    %2566 = vmatmul.mubr.f32.gmra.mrb[0].mxu0 %v2494
    %v2567 = vpop.f32.mrb[0].mxu0
    %v2568 = vadd.f32 0.0, %v2567
    %v2569 = vpop.f32.mrb[0].mxu0
    %2570 = vdwg.mxu0
    %v2572 = vsel %vm1973, %v2149, 0
    %v2575 = vsel %vm1973, %v2150, 0
    %2577 = vmatprep.subr.mxu0 0.0
    %2578 = vmatpush1.msra.mxu0 %v1653
    %2579 = vmatprep.subr.mxu0 0.0
    %2580 = vmatpush1.msra.mxu0 0.0
    %2581 = vmatprep.subr.mxu0 0.0
    %2582 = vmatpush1.msra.mxu0 0.0
    %2583 = vmatprep.subr.mxu0 0.0
    %2584 = vmatpush1.msra.mxu0 0.0
    %2585 = vmatprep.subr.mxu0 0.0
    %2586 = vmatpush1.msra.mxu0 0.0
    %2587 = vmatprep.subr.mxu0 0.0
    %2588 = vmatpush1.msra.mxu0 0.0
    %2589 = vmatprep.subr.mxu0 0.0
    %2590 = vmatpush1.msra.mxu0 0.0
    %2591 = vmatprep.subr.mxu0 0.0
    %2592 = vmatpush1.msra.mxu0 0.0
    %2593 = vmatprep.subr.mxu0 0.0
    %2594 = vmatpush1.msra.mxu0 0.0
    %2595 = vmatprep.subr.mxu0 0.0
    %2596 = vmatpush1.msra.mxu0 0.0
    %2597 = vmatprep.subr.mxu0 0.0
    %2598 = vmatpush1.msra.mxu0 0.0
    %2599 = vmatprep.subr.mxu0 0.0
    %2600 = vmatpush1.msra.mxu0 0.0
    %2601 = vmatprep.subr.mxu0 0.0
    %2602 = vmatpush1.msra.mxu0 0.0
    %2603 = vmatprep.subr.mxu0 0.0
    %2604 = vmatpush1.msra.mxu0 0.0
    %2605 = vmatprep.subr.mxu0 0.0
    %2606 = vmatpush1.msra.mxu0 0.0
    %2607 = vmatprep.subr.mxu0 0.0
    %2608 = vmatpush1.msra.mxu0 0.0
    %2609 = vmatprep.subr.mxu0 0.0
    %2610 = vmatpush1.msra.mxu0 0.0
    %2611 = vmatprep.subr.mxu0 0.0
    %2612 = vmatpush1.msra.mxu0 0.0
    %2613 = vmatprep.subr.mxu0 0.0
    %2614 = vmatpush1.msra.mxu0 0.0
    %2615 = vmatprep.subr.mxu0 0.0
    %2616 = vmatpush1.msra.mxu0 0.0
    %2617 = vmatprep.subr.mxu0 0.0
    %2618 = vmatpush1.msra.mxu0 0.0
    %2619 = vmatprep.subr.mxu0 0.0
    %2620 = vmatpush1.msra.mxu0 0.0
    %2621 = vmatprep.subr.mxu0 0.0
    %2622 = vmatpush1.msra.mxu0 0.0
    %2623 = vmatprep.subr.mxu0 0.0
    %2624 = vmatpush1.msra.mxu0 0.0
    %2625 = vmatprep.subr.mxu0 0.0
    %2626 = vmatpush1.msra.mxu0 0.0
    %2627 = vmatprep.subr.mxu0 0.0
    %2628 = vmatpush1.msra.mxu0 0.0
    %2629 = vmatprep.subr.mxu0 0.0
    %2630 = vmatpush1.msra.mxu0 0.0
    %2631 = vmatprep.subr.mxu0 0.0
    %2632 = vmatpush1.msra.mxu0 0.0
    %2633 = vmatprep.subr.mxu0 0.0
    %2634 = vmatpush1.msra.mxu0 0.0
    %2635 = vmatprep.subr.mxu0 0.0
    %2636 = vmatpush1.msra.mxu0 0.0
    %2637 = vmatprep.subr.mxu0 0.0
    %2638 = vmatpush1.msra.mxu0 0.0
    %2639 = vmatprep.subr.mxu0 0.0
    %2640 = vmatpush1.msra.mxu0 0.0
    %2641 = vmatprep.mubr.f32.mxu0 0.0
    %2642 = vmatmul.mubr.f32.gmra.mrb[0].mxu0 %v2572
    %v2643 = vpop.f32.mrb[0].mxu0
    %v2644 = vadd.f32 0.0, %v2643
    %v2645 = vpop.f32.mrb[0].mxu0
    %2646 = vmatprep.mubr.f32.mxu0 0.0
    %2647 = vmatmul.mubr.f32.gmra.mrb[0].mxu0 %v2575
    %v2648 = vpop.f32.mrb[0].mxu0
    %v2649 = vadd.f32 0.0, %v2648
    %v2650 = vpop.f32.mrb[0].mxu0
    %2651 = vdwg.mxu0
    %v2653 = vsel %vm1973, %v2320, 0
    %v2656 = vsel %vm1973, %v2321, 0
    %2658 = vmatprep.subr.mxu0 0.0
    %2659 = vmatpush1.msra.mxu0 %v1726
    %2660 = vmatprep.subr.mxu0 0.0
    %2661 = vmatpush1.msra.mxu0 0.0
    %2662 = vmatprep.subr.mxu0 0.0
    %2663 = vmatpush1.msra.mxu0 0.0
    %2664 = vmatprep.subr.mxu0 0.0
    %2665 = vmatpush1.msra.mxu0 0.0
    %2666 = vmatprep.subr.mxu0 0.0
    %2667 = vmatpush1.msra.mxu0 0.0
    %2668 = vmatprep.subr.mxu0 0.0
    %2669 = vmatpush1.msra.mxu0 0.0
    %2670 = vmatprep.subr.mxu0 0.0
    %2671 = vmatpush1.msra.mxu0 0.0
    %2672 = vmatprep.subr.mxu0 0.0
    %2673 = vmatpush1.msra.mxu0 0.0
    %2674 = vmatprep.subr.mxu0 0.0
    %2675 = vmatpush1.msra.mxu0 0.0
    %2676 = vmatprep.subr.mxu0 0.0
    %2677 = vmatpush1.msra.mxu0 0.0
    %2678 = vmatprep.subr.mxu0 0.0
    %2679 = vmatpush1.msra.mxu0 0.0
    %2680 = vmatprep.subr.mxu0 0.0
    %2681 = vmatpush1.msra.mxu0 0.0
    %2682 = vmatprep.subr.mxu0 0.0
    %2683 = vmatpush1.msra.mxu0 0.0
    %2684 = vmatprep.subr.mxu0 0.0
    %2685 = vmatpush1.msra.mxu0 0.0
    %2686 = vmatprep.subr.mxu0 0.0
    %2687 = vmatpush1.msra.mxu0 0.0
    %2688 = vmatprep.subr.mxu0 0.0
    %2689 = vmatpush1.msra.mxu0 0.0
    %2690 = vmatprep.subr.mxu0 0.0
    %2691 = vmatpush1.msra.mxu0 0.0
    %2692 = vmatprep.subr.mxu0 0.0
    %2693 = vmatpush1.msra.mxu0 0.0
    %2694 = vmatprep.subr.mxu0 0.0
    %2695 = vmatpush1.msra.mxu0 0.0
    %2696 = vmatprep.subr.mxu0 0.0
    %2697 = vmatpush1.msra.mxu0 0.0
    %2698 = vmatprep.subr.mxu0 0.0
    %2699 = vmatpush1.msra.mxu0 0.0
    %2700 = vmatprep.subr.mxu0 0.0
    %2701 = vmatpush1.msra.mxu0 0.0
    %2702 = vmatprep.subr.mxu0 0.0
    %2703 = vmatpush1.msra.mxu0 0.0
    %2704 = vmatprep.subr.mxu0 0.0
    %2705 = vmatpush1.msra.mxu0 0.0
    %2706 = vmatprep.subr.mxu0 0.0
    %2707 = vmatpush1.msra.mxu0 0.0
    %2708 = vmatprep.subr.mxu0 0.0
    %2709 = vmatpush1.msra.mxu0 0.0
    %2710 = vmatprep.subr.mxu0 0.0
    %2711 = vmatpush1.msra.mxu0 0.0
    %2712 = vmatprep.subr.mxu0 0.0
    %2713 = vmatpush1.msra.mxu0 0.0
    %2714 = vmatprep.subr.mxu0 0.0
    %2715 = vmatpush1.msra.mxu0 0.0
    %2716 = vmatprep.subr.mxu0 0.0
    %2717 = vmatpush1.msra.mxu0 0.0
    %2718 = vmatprep.subr.mxu0 0.0
    %2719 = vmatpush1.msra.mxu0 0.0
    %2720 = vmatprep.subr.mxu0 0.0
    %2721 = vmatpush1.msra.mxu0 0.0
    %2722 = vmatprep.mubr.f32.mxu0 0.0
    %2723 = vmatmul.mubr.f32.gmra.mrb[0].mxu0 %v2653
    %v2724 = vpop.f32.mrb[0].mxu0
    %v2725 = vadd.f32 0.0, %v2724
    %v2726 = vpop.f32.mrb[0].mxu0
    %2727 = vmatprep.mubr.f32.mxu0 0.0
    %2728 = vmatmul.mubr.f32.gmra.mrb[0].mxu0 %v2656
    %v2729 = vpop.f32.mrb[0].mxu0
    %v2730 = vadd.f32 0.0, %v2729
    %v2731 = vpop.f32.mrb[0].mxu0
    %2732 = vdwg.mxu0
    %v2734 = vsel %vm1973, %v2322, 0
    %v2737 = vsel %vm1973, %v2323, 0
    %2739 = vmatprep.subr.mxu0 0.0
    %2740 = vmatpush1.msra.mxu0 %v1799
    %2741 = vmatprep.subr.mxu0 0.0
    %2742 = vmatpush1.msra.mxu0 0.0
    %2743 = vmatprep.subr.mxu0 0.0
    %2744 = vmatpush1.msra.mxu0 0.0
    %2745 = vmatprep.subr.mxu0 0.0
    %2746 = vmatpush1.msra.mxu0 0.0
    %2747 = vmatprep.subr.mxu0 0.0
    %2748 = vmatpush1.msra.mxu0 0.0
    %2749 = vmatprep.subr.mxu0 0.0
    %2750 = vmatpush1.msra.mxu0 0.0
    %2751 = vmatprep.subr.mxu0 0.0
    %2752 = vmatpush1.msra.mxu0 0.0
    %2753 = vmatprep.subr.mxu0 0.0
    %2754 = vmatpush1.msra.mxu0 0.0
    %2755 = vmatprep.subr.mxu0 0.0
    %2756 = vmatpush1.msra.mxu0 0.0
    %2757 = vmatprep.subr.mxu0 0.0
    %2758 = vmatpush1.msra.mxu0 0.0
    %2759 = vmatprep.subr.mxu0 0.0
    %2760 = vmatpush1.msra.mxu0 0.0
    %2761 = vmatprep.subr.mxu0 0.0
    %2762 = vmatpush1.msra.mxu0 0.0
    %2763 = vmatprep.subr.mxu0 0.0
    %2764 = vmatpush1.msra.mxu0 0.0
    %2765 = vmatprep.subr.mxu0 0.0
    %2766 = vmatpush1.msra.mxu0 0.0
    %2767 = vmatprep.subr.mxu0 0.0
    %2768 = vmatpush1.msra.mxu0 0.0
    %2769 = vmatprep.subr.mxu0 0.0
    %2770 = vmatpush1.msra.mxu0 0.0
    %2771 = vmatprep.subr.mxu0 0.0
    %2772 = vmatpush1.msra.mxu0 0.0
    %2773 = vmatprep.subr.mxu0 0.0
    %2774 = vmatpush1.msra.mxu0 0.0
    %2775 = vmatprep.subr.mxu0 0.0
    %2776 = vmatpush1.msra.mxu0 0.0
    %2777 = vmatprep.subr.mxu0 0.0
    %2778 = vmatpush1.msra.mxu0 0.0
    %2779 = vmatprep.subr.mxu0 0.0
    %2780 = vmatpush1.msra.mxu0 0.0
    %2781 = vmatprep.subr.mxu0 0.0
    %2782 = vmatpush1.msra.mxu0 0.0
    %2783 = vmatprep.subr.mxu0 0.0
    %2784 = vmatpush1.msra.mxu0 0.0
    %2785 = vmatprep.subr.mxu0 0.0
    %2786 = vmatpush1.msra.mxu0 0.0
    %2787 = vmatprep.subr.mxu0 0.0
    %2788 = vmatpush1.msra.mxu0 0.0
    %2789 = vmatprep.subr.mxu0 0.0
    %2790 = vmatpush1.msra.mxu0 0.0
    %2791 = vmatprep.subr.mxu0 0.0
    %2792 = vmatpush1.msra.mxu0 0.0
    %2793 = vmatprep.subr.mxu0 0.0
    %2794 = vmatpush1.msra.mxu0 0.0
    %2795 = vmatprep.subr.mxu0 0.0
    %2796 = vmatpush1.msra.mxu0 0.0
    %2797 = vmatprep.subr.mxu0 0.0
    %2798 = vmatpush1.msra.mxu0 0.0
    %2799 = vmatprep.subr.mxu0 0.0
    %2800 = vmatpush1.msra.mxu0 0.0
    %2801 = vmatprep.subr.mxu0 0.0
    %2802 = vmatpush1.msra.mxu0 0.0
    %2803 = vmatprep.mubr.f32.mxu0 0.0
    %2804 = vmatmul.mubr.f32.gmra.mrb[0].mxu0 %v2734
    %v2805 = vpop.f32.mrb[0].mxu0
    %v2806 = vadd.f32 0.0, %v2805
    %v2807 = vpop.f32.mrb[0].mxu0
    %2808 = vmatprep.mubr.f32.mxu0 0.0
    %2809 = vmatmul.mubr.f32.gmra.mrb[0].mxu0 %v2737
    %v2810 = vpop.f32.mrb[0].mxu0
    %v2811 = vadd.f32 0.0, %v2810
    %v2812 = vpop.f32.mrb[0].mxu0
    %2813 = vdwg.mxu0
    %v2815 = vsel %vm1973, %v2324, 0
    %v2818 = vsel %vm1973, %v2325, 0
    %2820 = vmatprep.subr.mxu0 0.0
    %2821 = vmatpush1.msra.mxu0 %v1872
    %2822 = vmatprep.subr.mxu0 0.0
    %2823 = vmatpush1.msra.mxu0 0.0
    %2824 = vmatprep.subr.mxu0 0.0
    %2825 = vmatpush1.msra.mxu0 0.0
    %2826 = vmatprep.subr.mxu0 0.0
    %2827 = vmatpush1.msra.mxu0 0.0
    %2828 = vmatprep.subr.mxu0 0.0
    %2829 = vmatpush1.msra.mxu0 0.0
    %2830 = vmatprep.subr.mxu0 0.0
    %2831 = vmatpush1.msra.mxu0 0.0
    %2832 = vmatprep.subr.mxu0 0.0
    %2833 = vmatpush1.msra.mxu0 0.0
    %2834 = vmatprep.subr.mxu0 0.0
    %2835 = vmatpush1.msra.mxu0 0.0
    %2836 = vmatprep.subr.mxu0 0.0
    %2837 = vmatpush1.msra.mxu0 0.0
    %2838 = vmatprep.subr.mxu0 0.0
    %2839 = vmatpush1.msra.mxu0 0.0
    %2840 = vmatprep.subr.mxu0 0.0
    %2841 = vmatpush1.msra.mxu0 0.0
    %2842 = vmatprep.subr.mxu0 0.0
    %2843 = vmatpush1.msra.mxu0 0.0
    %2844 = vmatprep.subr.mxu0 0.0
    %2845 = vmatpush1.msra.mxu0 0.0
    %2846 = vmatprep.subr.mxu0 0.0
    %2847 = vmatpush1.msra.mxu0 0.0
    %2848 = vmatprep.subr.mxu0 0.0
    %2849 = vmatpush1.msra.mxu0 0.0
    %2850 = vmatprep.subr.mxu0 0.0
    %2851 = vmatpush1.msra.mxu0 0.0
    %2852 = vmatprep.subr.mxu0 0.0
    %2853 = vmatpush1.msra.mxu0 0.0
    %2854 = vmatprep.subr.mxu0 0.0
    %2855 = vmatpush1.msra.mxu0 0.0
    %2856 = vmatprep.subr.mxu0 0.0
    %2857 = vmatpush1.msra.mxu0 0.0
    %2858 = vmatprep.subr.mxu0 0.0
    %2859 = vmatpush1.msra.mxu0 0.0
    %2860 = vmatprep.subr.mxu0 0.0
    %2861 = vmatpush1.msra.mxu0 0.0
    %2862 = vmatprep.subr.mxu0 0.0
    %2863 = vmatpush1.msra.mxu0 0.0
    %2864 = vmatprep.subr.mxu0 0.0
    %2865 = vmatpush1.msra.mxu0 0.0
    %2866 = vmatprep.subr.mxu0 0.0
    %2867 = vmatpush1.msra.mxu0 0.0
    %2868 = vmatprep.subr.mxu0 0.0
    %2869 = vmatpush1.msra.mxu0 0.0
    %2870 = vmatprep.subr.mxu0 0.0
    %2871 = vmatpush1.msra.mxu0 0.0
    %2872 = vmatprep.subr.mxu0 0.0
    %2873 = vmatpush1.msra.mxu0 0.0
    %2874 = vmatprep.subr.mxu0 0.0
    %2875 = vmatpush1.msra.mxu0 0.0
    %2876 = vmatprep.subr.mxu0 0.0
    %2877 = vmatpush1.msra.mxu0 0.0
    %2878 = vmatprep.subr.mxu0 0.0
    %2879 = vmatpush1.msra.mxu0 0.0
    %2880 = vmatprep.subr.mxu0 0.0
    %2881 = vmatpush1.msra.mxu0 0.0
    %2882 = vmatprep.subr.mxu0 0.0
    %2883 = vmatpush1.msra.mxu0 0.0
    %2884 = vmatprep.mubr.f32.mxu0 0.0
    %2885 = vmatmul.mubr.f32.gmra.mrb[0].mxu0 %v2815
    %v2886 = vpop.f32.mrb[0].mxu0
    %v2887 = vadd.f32 0.0, %v2886
    %v2888 = vpop.f32.mrb[0].mxu0
    %2889 = vmatprep.mubr.f32.mxu0 0.0
    %2890 = vmatmul.mubr.f32.gmra.mrb[0].mxu0 %v2818
    %v2891 = vpop.f32.mrb[0].mxu0
    %v2892 = vadd.f32 0.0, %v2891
    %v2893 = vpop.f32.mrb[0].mxu0
    %2894 = vdwg.mxu0
    %v2896 = vsel %vm1973, %v2326, 0
    %v2899 = vsel %vm1973, %v2327, 0
    %2901 = vmatprep.subr.mxu0 0.0
    %2902 = vmatpush1.msra.mxu0 %v1945
    %2903 = vmatprep.subr.mxu0 0.0
    %2904 = vmatpush1.msra.mxu0 0.0
    %2905 = vmatprep.subr.mxu0 0.0
    %2906 = vmatpush1.msra.mxu0 0.0
    %2907 = vmatprep.subr.mxu0 0.0
    %2908 = vmatpush1.msra.mxu0 0.0
    %2909 = vmatprep.subr.mxu0 0.0
    %2910 = vmatpush1.msra.mxu0 0.0
    %2911 = vmatprep.subr.mxu0 0.0
    %2912 = vmatpush1.msra.mxu0 0.0
    %2913 = vmatprep.subr.mxu0 0.0
    %2914 = vmatpush1.msra.mxu0 0.0
    %2915 = vmatprep.subr.mxu0 0.0
    %2916 = vmatpush1.msra.mxu0 0.0
    %2917 = vmatprep.subr.mxu0 0.0
    %2918 = vmatpush1.msra.mxu0 0.0
    %2919 = vmatprep.subr.mxu0 0.0
    %2920 = vmatpush1.msra.mxu0 0.0
    %2921 = vmatprep.subr.mxu0 0.0
    %2922 = vmatpush1.msra.mxu0 0.0
    %2923 = vmatprep.subr.mxu0 0.0
    %2924 = vmatpush1.msra.mxu0 0.0
    %2925 = vmatprep.subr.mxu0 0.0
    %2926 = vmatpush1.msra.mxu0 0.0
    %2927 = vmatprep.subr.mxu0 0.0
    %2928 = vmatpush1.msra.mxu0 0.0
    %2929 = vmatprep.subr.mxu0 0.0
    %2930 = vmatpush1.msra.mxu0 0.0
    %2931 = vmatprep.subr.mxu0 0.0
    %2932 = vmatpush1.msra.mxu0 0.0
    %2933 = vmatprep.subr.mxu0 0.0
    %2934 = vmatpush1.msra.mxu0 0.0
    %2935 = vmatprep.subr.mxu0 0.0
    %2936 = vmatpush1.msra.mxu0 0.0
    %2937 = vmatprep.subr.mxu0 0.0
    %2938 = vmatpush1.msra.mxu0 0.0
    %2939 = vmatprep.subr.mxu0 0.0
    %2940 = vmatpush1.msra.mxu0 0.0
    %2941 = vmatprep.subr.mxu0 0.0
    %2942 = vmatpush1.msra.mxu0 0.0
    %2943 = vmatprep.subr.mxu0 0.0
    %2944 = vmatpush1.msra.mxu0 0.0
    %2945 = vmatprep.subr.mxu0 0.0
    %2946 = vmatpush1.msra.mxu0 0.0
    %2947 = vmatprep.subr.mxu0 0.0
    %2948 = vmatpush1.msra.mxu0 0.0
    %2949 = vmatprep.subr.mxu0 0.0
    %2950 = vmatpush1.msra.mxu0 0.0
    %2951 = vmatprep.subr.mxu0 0.0
    %2952 = vmatpush1.msra.mxu0 0.0
    %2953 = vmatprep.subr.mxu0 0.0
    %2954 = vmatpush1.msra.mxu0 0.0
    %2955 = vmatprep.subr.mxu0 0.0
    %2956 = vmatpush1.msra.mxu0 0.0
    %2957 = vmatprep.subr.mxu0 0.0
    %2958 = vmatpush1.msra.mxu0 0.0
    %2959 = vmatprep.subr.mxu0 0.0
    %2960 = vmatpush1.msra.mxu0 0.0
    %2961 = vmatprep.subr.mxu0 0.0
    %2962 = vmatpush1.msra.mxu0 0.0
    %2963 = vmatprep.subr.mxu0 0.0
    %2964 = vmatpush1.msra.mxu0 0.0
    %2965 = vmatprep.mubr.f32.mxu0 0.0
    %2966 = vmatmul.mubr.f32.gmra.mrb[0].mxu0 %v2896
    %v2967 = vpop.f32.mrb[0].mxu0
    %v2968 = vadd.f32 0.0, %v2967
    %v2969 = vpop.f32.mrb[0].mxu0
    %2970 = vmatprep.mubr.f32.mxu0 0.0
    %2971 = vmatmul.mubr.f32.gmra.mrb[0].mxu0 %v2899
    %v2972 = vpop.f32.mrb[0].mxu0
    %v2973 = vadd.f32 0.0, %v2972
    %v2974 = vpop.f32.mrb[0].mxu0
    %2975 = vdwg.mxu0
    %v2976 = vmul.f32 %v616, %v2401
    %v2977 = vmul.f32 %v618, %v2406
    %v2978 = vmul.f32 %v620, %v2482
    %v2979 = vmul.f32 %v622, %v2487
    %v2980 = vmul.f32 %v624, %v2563
    %v2981 = vmul.f32 %v626, %v2568
    %v2982 = vmul.f32 %v628, %v2644
    %v2983 = vmul.f32 %v630, %v2649
    %v2984 = vadd.f32 %v144, %v2976
    %v2985 = vadd.f32 %v145, %v2977
    %v2986 = vadd.f32 %v146, %v2978
    %v2987 = vadd.f32 %v147, %v2979
    %v2988 = vadd.f32 %v148, %v2980
    %v2989 = vadd.f32 %v149, %v2981
    %v2990 = vadd.f32 %v150, %v2982
    %v2991 = vadd.f32 %v151, %v2983
    %v2992 = vsub.f32 1.0, %v616
    %v2993 = vsub.f32 1.0, %v618
    %v2994 = vsub.f32 1.0, %v620
    %v2995 = vsub.f32 1.0, %v622
    %v2996 = vsub.f32 1.0, %v624
    %v2997 = vsub.f32 1.0, %v626
    %v2998 = vsub.f32 1.0, %v628
    %v2999 = vsub.f32 1.0, %v630
    %v3000 = vmul.f32 %v2992, %v2725
    %v3001 = vmul.f32 %v2993, %v2730
    %v3002 = vmul.f32 %v2994, %v2806
    %v3003 = vmul.f32 %v2995, %v2811
    %v3004 = vmul.f32 %v2996, %v2887
    %v3005 = vmul.f32 %v2997, %v2892
    %v3006 = vmul.f32 %v2998, %v2968
    %v3007 = vmul.f32 %v2999, %v2973
    %v3008 = vadd.f32 %v2984, %v3000
    %v3009 = vadd.f32 %v2985, %v3001
    %v3010 = vadd.f32 %v2986, %v3002
    %v3011 = vadd.f32 %v2987, %v3003
    %v3012 = vadd.f32 %v2988, %v3004
    %v3013 = vadd.f32 %v2989, %v3005
    %v3014 = vadd.f32 %v2990, %v3006
    %v3015 = vadd.f32 %v2991, %v3007
    %v3016 = vld [vmem:[%s7] sm:$0x1]
    %v3017 = vld [vmem:[%s8] sm:$0x1]
    %3018 = vadd.xlane.f32.xlu0 %v3008
    %v3019 = vpop.xlane.xlu0 %3018
    %3020 = vadd.xlane.f32.xlu0 %v3009
    %v3021 = vpop.xlane.xlu0 %3020
    %3022 = vadd.xlane.f32.xlu0 %v3010
    %v3023 = vpop.xlane.xlu0 %3022
    %3024 = vadd.xlane.f32.xlu0 %v3011
    %v3025 = vpop.xlane.xlu0 %3024
    %3026 = vadd.xlane.f32.xlu0 %v3012
    %v3027 = vpop.xlane.xlu0 %3026
    %3028 = vadd.xlane.f32.xlu0 %v3013
    %v3029 = vpop.xlane.xlu0 %3028
    %3030 = vadd.xlane.f32.xlu0 %v3014
    %v3031 = vpop.xlane.xlu0 %3030
    %3032 = vadd.xlane.f32.xlu0 %v3015
    %v3033 = vpop.xlane.xlu0 %3032
    %v3034 = vmul.f32 %v3019, %v170
    %v3035 = vmul.f32 %v3021, %v170
    %v3036 = vmul.f32 %v3023, %v170
    %v3037 = vmul.f32 %v3025, %v170
    %v3038 = vmul.f32 %v3027, %v170
    %v3039 = vmul.f32 %v3029, %v170
    %v3040 = vmul.f32 %v3031, %v170
    %v3041 = vmul.f32 %v3033, %v170
    %v3042 = vsub.f32 %v3008, %v3034
    %v3043 = vsub.f32 %v3009, %v3035
    %v3044 = vsub.f32 %v3010, %v3036
    %v3045 = vsub.f32 %v3011, %v3037
    %v3046 = vsub.f32 %v3012, %v3038
    %v3047 = vsub.f32 %v3013, %v3039
    %v3048 = vsub.f32 %v3014, %v3040
    %v3049 = vsub.f32 %v3015, %v3041
    %v3050 = vmul.f32 %v3042, %v3042
    %v3051 = vmul.f32 %v3043, %v3043
    %v3052 = vmul.f32 %v3044, %v3044
    %v3053 = vmul.f32 %v3045, %v3045
    %v3054 = vmul.f32 %v3046, %v3046
    %v3055 = vmul.f32 %v3047, %v3047
    %v3056 = vmul.f32 %v3048, %v3048
    %v3057 = vmul.f32 %v3049, %v3049
    %3058 = vadd.xlane.f32.xlu0 %v3050
    %v3059 = vpop.xlane.xlu0 %3058
    %3060 = vadd.xlane.f32.xlu0 %v3051
    %v3061 = vpop.xlane.xlu0 %3060
    %3062 = vadd.xlane.f32.xlu0 %v3052
    %v3063 = vpop.xlane.xlu0 %3062
    %3064 = vadd.xlane.f32.xlu0 %v3053
    %v3065 = vpop.xlane.xlu0 %3064
    %3066 = vadd.xlane.f32.xlu0 %v3054
    %v3067 = vpop.xlane.xlu0 %3066
    %3068 = vadd.xlane.f32.xlu0 %v3055
    %v3069 = vpop.xlane.xlu0 %3068
    %3070 = vadd.xlane.f32.xlu0 %v3056
    %v3071 = vpop.xlane.xlu0 %3070
    %3072 = vadd.xlane.f32.xlu0 %v3057
    %v3073 = vpop.xlane.xlu0 %3072
    %v3074 = vmul.f32 %v3059, %v170
    %v3075 = vmul.f32 %v3061, %v170
    %v3076 = vmul.f32 %v3063, %v170
    %v3077 = vmul.f32 %v3065, %v170
    %v3078 = vmul.f32 %v3067, %v170
    %v3079 = vmul.f32 %v3069, %v170
    %v3080 = vmul.f32 %v3071, %v170
    %v3081 = vmul.f32 %v3073, %v170
    %v3082 = vadd.f32 %v3074, 0.0001
    %v3083 = vadd.f32 %v3075, 0.0001
    %v3084 = vadd.f32 %v3076, 0.0001
    %v3085 = vadd.f32 %v3077, 0.0001
    %v3086 = vadd.f32 %v3078, 0.0001
    %v3087 = vadd.f32 %v3079, 0.0001
    %v3088 = vadd.f32 %v3080, 0.0001
    %v3089 = vadd.f32 %v3081, 0.0001
    %v3090 = vrsqrt.pop %v3082
    %v3091 = vrsqrt.pop %v3083
    %v3092 = vrsqrt.pop %v3084
    %v3093 = vrsqrt.pop %v3085
    %v3094 = vrsqrt.pop %v3086
    %v3095 = vrsqrt.pop %v3087
    %v3096 = vrsqrt.pop %v3088
    %v3097 = vrsqrt.pop %v3089
    %v3098 = vmul.f32 %v3042, %v3090
    %v3099 = vmul.f32 %v3043, %v3091
    %v3100 = vmul.f32 %v3044, %v3092
    %v3101 = vmul.f32 %v3045, %v3093
    %v3102 = vmul.f32 %v3046, %v3094
    %v3103 = vmul.f32 %v3047, %v3095
    %v3104 = vmul.f32 %v3048, %v3096
    %v3105 = vmul.f32 %v3049, %v3097
    %v3107 = vlaneseq
    %v3108 = vshrl.u32 %v3107, 7
    %v3109 = vsub.s32 0, %v3108
    %v3110 = vrot.slane %v3016, %v3109
    %v3112 = vmul.f32 %v3098, %v3110
    %v3113 = vmul.f32 %v3099, %v3110
    %v3114 = vmul.f32 %v3100, %v3110
    %v3115 = vmul.f32 %v3101, %v3110
    %v3116 = vmul.f32 %v3102, %v3110
    %v3117 = vmul.f32 %v3103, %v3110
    %v3118 = vmul.f32 %v3104, %v3110
    %v3119 = vmul.f32 %v3105, %v3110
    %v3121 = vlaneseq
    %v3122 = vshrl.u32 %v3121, 7
    %v3123 = vsub.s32 0, %v3122
    %v3124 = vrot.slane %v3017, %v3123
    %v3126 = vadd.f32 %v3112, %v3124
    %v3127 = vadd.f32 %v3113, %v3124
    %v3128 = vadd.f32 %v3114, %v3124
    %v3129 = vadd.f32 %v3115, %v3124
    %v3130 = vadd.f32 %v3116, %v3124
    %v3131 = vadd.f32 %v3117, %v3124
    %v3132 = vadd.f32 %v3118, %v3124
    %v3133 = vadd.f32 %v3119, %v3124
    %v3134 = vld [vmem:[#allocation11] sm:$0xff]
    %v3135 = vld [vmem:[#allocation11 + $0x8] sm:$0xff]
    %v3136 = vld [vmem:[#allocation11 + $0x10] sm:$0xff]
    %v3137 = vld [vmem:[#allocation11 + $0x18] sm:$0xff]
    %v3138 = vld [vmem:[#allocation11 + $0x20] sm:$0xff]
    %v3139 = vld [vmem:[#allocation11 + $0x28] sm:$0xff]
    %v3140 = vld [vmem:[#allocation11 + $0x30] sm:$0xff]
    %v3141 = vld [vmem:[#allocation11 + $0x38] sm:$0xff]
    %v3142 = vld [vmem:[#allocation11 + $0x40] sm:$0xff]
    %v3143 = vld [vmem:[#allocation11 + $0x48] sm:$0xff]
    %v3144 = vld [vmem:[#allocation11 + $0x50] sm:$0xff]
    %v3145 = vld [vmem:[#allocation11 + $0x58] sm:$0xff]
    %v3146 = vld [vmem:[#allocation11 + $0x60] sm:$0xff]
    %v3147 = vld [vmem:[#allocation11 + $0x68] sm:$0xff]
    %v3148 = vld [vmem:[#allocation11 + $0x70] sm:$0xff]
    %v3149 = vld [vmem:[#allocation11 + $0x78] sm:$0xff]
    %v3150 = vld [vmem:[#allocation11 + $0x80] sm:$0xff]
    %v3151 = vld [vmem:[#allocation11 + $0x88] sm:$0xff]
    %v3152 = vld [vmem:[#allocation11 + $0x90] sm:$0xff]
    %v3153 = vld [vmem:[#allocation11 + $0x98] sm:$0xff]
    %v3154 = vld [vmem:[#allocation11 + $0xa0] sm:$0xff]
    %v3155 = vld [vmem:[#allocation11 + $0xa8] sm:$0xff]
    %v3156 = vld [vmem:[#allocation11 + $0xb0] sm:$0xff]
    %v3157 = vld [vmem:[#allocation11 + $0xb8] sm:$0xff]
    %v3158 = vld [vmem:[#allocation11 + $0xc0] sm:$0xff]
    %v3159 = vld [vmem:[#allocation11 + $0xc8] sm:$0xff]
    %v3160 = vld [vmem:[#allocation11 + $0xd0] sm:$0xff]
    %v3161 = vld [vmem:[#allocation11 + $0xd8] sm:$0xff]
    %v3162 = vld [vmem:[#allocation11 + $0xe0] sm:$0xff]
    %v3163 = vld [vmem:[#allocation11 + $0xe8] sm:$0xff]
    %v3164 = vld [vmem:[#allocation11 + $0xf0] sm:$0xff]
    %v3165 = vld [vmem:[#allocation11 + $0xf8] sm:$0xff]
    %v3166 = vld [vmem:[%s12] sm:$0x3]
    %v3168 = vlaneseq
    %v3169 = vshrl.u32 %v3168, 7
    %v3170 = vsub.s32 0, %v3169
    %v3171 = vrot.slane %v3166, %v3170
    %v3172 = vlaneseq
    %v3173 = vshrl.u32 %v3172, 7
    %v3174 = vsub.s32 1, %v3173
    %v3175 = vrot.slane %v3166, %v3174
    %3178 = vmatprep.subr.mxu0 %v3135
    %3179 = vmatpush1.msra.mxu0 %v3134
    %3180 = vmatprep.subr.mxu0 %v3137
    %3181 = vmatpush1.msra.mxu0 %v3136
    %3182 = vmatprep.subr.mxu0 %v3139
    %3183 = vmatpush1.msra.mxu0 %v3138
    %3184 = vmatprep.subr.mxu0 %v3141
    %3185 = vmatpush1.msra.mxu0 %v3140
    %3186 = vmatprep.subr.mxu0 %v3143
    %3187 = vmatpush1.msra.mxu0 %v3142
    %3188 = vmatprep.subr.mxu0 %v3145
    %3189 = vmatpush1.msra.mxu0 %v3144
    %3190 = vmatprep.subr.mxu0 %v3147
    %3191 = vmatpush1.msra.mxu0 %v3146
    %3192 = vmatprep.subr.mxu0 %v3149
    %3193 = vmatpush1.msra.mxu0 %v3148
    %3194 = vmatprep.subr.mxu0 %v3151
    %3195 = vmatpush1.msra.mxu0 %v3150
    %3196 = vmatprep.subr.mxu0 %v3153
    %3197 = vmatpush1.msra.mxu0 %v3152
    %3198 = vmatprep.subr.mxu0 %v3155
    %3199 = vmatpush1.msra.mxu0 %v3154
    %3200 = vmatprep.subr.mxu0 %v3157
    %3201 = vmatpush1.msra.mxu0 %v3156
    %3202 = vmatprep.subr.mxu0 %v3159
    %3203 = vmatpush1.msra.mxu0 %v3158
    %3204 = vmatprep.subr.mxu0 %v3161
    %3205 = vmatpush1.msra.mxu0 %v3160
    %3206 = vmatprep.subr.mxu0 %v3163
    %3207 = vmatpush1.msra.mxu0 %v3162
    %3208 = vmatprep.subr.mxu0 %v3165
    %3209 = vmatpush1.msra.mxu0 %v3164
    %3210 = vmatprep.subr.mxu0 0.0
    %3211 = vmatpush1.msra.mxu0 0.0
    %3212 = vmatprep.subr.mxu0 0.0
    %3213 = vmatpush1.msra.mxu0 0.0
    %3214 = vmatprep.subr.mxu0 0.0
    %3215 = vmatpush1.msra.mxu0 0.0
    %3216 = vmatprep.subr.mxu0 0.0
    %3217 = vmatpush1.msra.mxu0 0.0
    %3218 = vmatprep.subr.mxu0 0.0
    %3219 = vmatpush1.msra.mxu0 0.0
    %3220 = vmatprep.subr.mxu0 0.0
    %3221 = vmatpush1.msra.mxu0 0.0
    %3222 = vmatprep.subr.mxu0 0.0
    %3223 = vmatpush1.msra.mxu0 0.0
    %3224 = vmatprep.subr.mxu0 0.0
    %3225 = vmatpush1.msra.mxu0 0.0
    %3226 = vmatprep.subr.mxu0 0.0
    %3227 = vmatpush1.msra.mxu0 0.0
    %3228 = vmatprep.subr.mxu0 0.0
    %3229 = vmatpush1.msra.mxu0 0.0
    %3230 = vmatprep.subr.mxu0 0.0
    %3231 = vmatpush1.msra.mxu0 0.0
    %3232 = vmatprep.subr.mxu0 0.0
    %3233 = vmatpush1.msra.mxu0 0.0
    %3234 = vmatprep.subr.mxu0 0.0
    %3235 = vmatpush1.msra.mxu0 0.0
    %3236 = vmatprep.subr.mxu0 0.0
    %3237 = vmatpush1.msra.mxu0 0.0
    %3238 = vmatprep.subr.mxu0 0.0
    %3239 = vmatpush1.msra.mxu0 0.0
    %3240 = vmatprep.subr.mxu0 0.0
    %3241 = vmatpush1.msra.mxu0 0.0
    %3242 = vmatprep.mubr.f32.mxu0 0.0
    %3243 = vmatmul.mubr.f32.gmra.mrb[0].mxu0 %v3126
    %v3244 = vpop.f32.mrb[0].mxu0
    %v3245 = vadd.f32 %v3171, %v3244
    %v3246 = vpop.f32.mrb[0].mxu0
    %v3247 = vadd.f32 %v3175, %v3246
    %3248 = vmatprep.mubr.f32.mxu0 0.0
    %3249 = vmatmul.mubr.f32.gmra.mrb[0].mxu0 %v3127
    %v3250 = vpop.f32.mrb[0].mxu0
    %v3251 = vadd.f32 %v3171, %v3250
    %v3252 = vpop.f32.mrb[0].mxu0
    %v3253 = vadd.f32 %v3175, %v3252
    %3254 = vmatprep.mubr.f32.mxu0 0.0
    %3255 = vmatmul.mubr.f32.gmra.mrb[0].mxu0 %v3128
    %v3256 = vpop.f32.mrb[0].mxu0
    %v3257 = vadd.f32 %v3171, %v3256
    %v3258 = vpop.f32.mrb[0].mxu0
    %v3259 = vadd.f32 %v3175, %v3258
    %3260 = vmatprep.mubr.f32.mxu0 0.0
    %3261 = vmatmul.mubr.f32.gmra.mrb[0].mxu0 %v3129
    %v3262 = vpop.f32.mrb[0].mxu0
    %v3263 = vadd.f32 %v3171, %v3262
    %v3264 = vpop.f32.mrb[0].mxu0
    %v3265 = vadd.f32 %v3175, %v3264
    %3266 = vmatprep.mubr.f32.mxu0 0.0
    %3267 = vmatmul.mubr.f32.gmra.mrb[0].mxu0 %v3130
    %v3268 = vpop.f32.mrb[0].mxu0
    %v3269 = vadd.f32 %v3171, %v3268
    %v3270 = vpop.f32.mrb[0].mxu0
    %v3271 = vadd.f32 %v3175, %v3270
    %3272 = vmatprep.mubr.f32.mxu0 0.0
    %3273 = vmatmul.mubr.f32.gmra.mrb[0].mxu0 %v3131
    %v3274 = vpop.f32.mrb[0].mxu0
    %v3275 = vadd.f32 %v3171, %v3274
    %v3276 = vpop.f32.mrb[0].mxu0
    %v3277 = vadd.f32 %v3175, %v3276
    %3278 = vmatprep.mubr.f32.mxu0 0.0
    %3279 = vmatmul.mubr.f32.gmra.mrb[0].mxu0 %v3132
    %v3280 = vpop.f32.mrb[0].mxu0
    %v3281 = vadd.f32 %v3171, %v3280
    %v3282 = vpop.f32.mrb[0].mxu0
    %v3283 = vadd.f32 %v3175, %v3282
    %3284 = vmatprep.mubr.f32.mxu0 0.0
    %3285 = vmatmul.mubr.f32.gmra.mrb[0].mxu0 %v3133
    %v3286 = vpop.f32.mrb[0].mxu0
    %v3287 = vadd.f32 %v3171, %v3286
    %v3288 = vpop.f32.mrb[0].mxu0
    %v3289 = vadd.f32 %v3175, %v3288
    %3290 = vdwg.mxu0
    %v3291 = vmax.f32 %v3245, 0.0
    %v3292 = vmax.f32 %v3247, 0.0
    %v3293 = vmax.f32 %v3251, 0.0
    %v3294 = vmax.f32 %v3253, 0.0
    %v3295 = vmax.f32 %v3257, 0.0
    %v3296 = vmax.f32 %v3259, 0.0
    %v3297 = vmax.f32 %v3263, 0.0
    %v3298 = vmax.f32 %v3265, 0.0
    %v3299 = vmax.f32 %v3269, 0.0
    %v3300 = vmax.f32 %v3271, 0.0
    %v3301 = vmax.f32 %v3275, 0.0
    %v3302 = vmax.f32 %v3277, 0.0
    %v3303 = vmax.f32 %v3281, 0.0
    %v3304 = vmax.f32 %v3283, 0.0
    %v3305 = vmax.f32 %v3287, 0.0
    %v3306 = vmax.f32 %v3289, 0.0
    %v3307 = vld [vmem:[#allocation13] sm:$0xff]
    %v3308 = vld [vmem:[#allocation13 + $0x8] sm:$0xff]
    %v3309 = vld [vmem:[#allocation13 + $0x10] sm:$0xff]
    %v3310 = vld [vmem:[#allocation13 + $0x18] sm:$0xff]
    %v3311 = vld [vmem:[#allocation13 + $0x20] sm:$0xff]
    %v3312 = vld [vmem:[#allocation13 + $0x28] sm:$0xff]
    %v3313 = vld [vmem:[#allocation13 + $0x30] sm:$0xff]
    %v3314 = vld [vmem:[#allocation13 + $0x38] sm:$0xff]
    %v3315 = vld [vmem:[#allocation13 + $0x40] sm:$0xff]
    %v3316 = vld [vmem:[#allocation13 + $0x48] sm:$0xff]
    %v3317 = vld [vmem:[#allocation13 + $0x50] sm:$0xff]
    %v3318 = vld [vmem:[#allocation13 + $0x58] sm:$0xff]
    %v3319 = vld [vmem:[#allocation13 + $0x60] sm:$0xff]
    %v3320 = vld [vmem:[#allocation13 + $0x68] sm:$0xff]
    %v3321 = vld [vmem:[#allocation13 + $0x70] sm:$0xff]
    %v3322 = vld [vmem:[#allocation13 + $0x78] sm:$0xff]
    %v3323 = vld [vmem:[#allocation13 + $0x80] sm:$0xff]
    %v3324 = vld [vmem:[#allocation13 + $0x88] sm:$0xff]
    %v3325 = vld [vmem:[#allocation13 + $0x90] sm:$0xff]
    %v3326 = vld [vmem:[#allocation13 + $0x98] sm:$0xff]
    %v3327 = vld [vmem:[#allocation13 + $0xa0] sm:$0xff]
    %v3328 = vld [vmem:[#allocation13 + $0xa8] sm:$0xff]
    %v3329 = vld [vmem:[#allocation13 + $0xb0] sm:$0xff]
    %v3330 = vld [vmem:[#allocation13 + $0xb8] sm:$0xff]
    %v3331 = vld [vmem:[#allocation13 + $0xc0] sm:$0xff]
    %v3332 = vld [vmem:[#allocation13 + $0xc8] sm:$0xff]
    %v3333 = vld [vmem:[#allocation13 + $0xd0] sm:$0xff]
    %v3334 = vld [vmem:[#allocation13 + $0xd8] sm:$0xff]
    %v3335 = vld [vmem:[#allocation13 + $0xe0] sm:$0xff]
    %v3336 = vld [vmem:[#allocation13 + $0xe8] sm:$0xff]
    %v3337 = vld [vmem:[#allocation13 + $0xf0] sm:$0xff]
    %v3338 = vld [vmem:[#allocation13 + $0xf8] sm:$0xff]
    %v3339 = vld [vmem:[%s14] sm:$0x1]
    %v3341 = vlaneseq
    %v3342 = vshrl.u32 %v3341, 7
    %v3343 = vsub.s32 0, %v3342
    %v3344 = vrot.slane %v3339, %v3343
    %3346 = vmatprep.subr.mxu0 0.0
    %3347 = vmatpush1.msra.mxu0 %v3307
    %3348 = vmatprep.subr.mxu0 0.0
    %3349 = vmatpush1.msra.mxu0 %v3308
    %3350 = vmatprep.subr.mxu0 0.0
    %3351 = vmatpush1.msra.mxu0 %v3309
    %3352 = vmatprep.subr.mxu0 0.0
    %3353 = vmatpush1.msra.mxu0 %v3310
    %3354 = vmatprep.subr.mxu0 0.0
    %3355 = vmatpush1.msra.mxu0 %v3311
    %3356 = vmatprep.subr.mxu0 0.0
    %3357 = vmatpush1.msra.mxu0 %v3312
    %3358 = vmatprep.subr.mxu0 0.0
    %3359 = vmatpush1.msra.mxu0 %v3313
    %3360 = vmatprep.subr.mxu0 0.0
    %3361 = vmatpush1.msra.mxu0 %v3314
    %3362 = vmatprep.subr.mxu0 0.0
    %3363 = vmatpush1.msra.mxu0 %v3315
    %3364 = vmatprep.subr.mxu0 0.0
    %3365 = vmatpush1.msra.mxu0 %v3316
    %3366 = vmatprep.subr.mxu0 0.0
    %3367 = vmatpush1.msra.mxu0 %v3317
    %3368 = vmatprep.subr.mxu0 0.0
    %3369 = vmatpush1.msra.mxu0 %v3318
    %3370 = vmatprep.subr.mxu0 0.0
    %3371 = vmatpush1.msra.mxu0 %v3319
    %3372 = vmatprep.subr.mxu0 0.0
    %3373 = vmatpush1.msra.mxu0 %v3320
    %3374 = vmatprep.subr.mxu0 0.0
    %3375 = vmatpush1.msra.mxu0 %v3321
    %3376 = vmatprep.subr.mxu0 0.0
    %3377 = vmatpush1.msra.mxu0 %v3322
    %3378 = vmatprep.subr.mxu0 0.0
    %3379 = vmatpush1.msra.mxu0 %v3323
    %3380 = vmatprep.subr.mxu0 0.0
    %3381 = vmatpush1.msra.mxu0 %v3324
    %3382 = vmatprep.subr.mxu0 0.0
    %3383 = vmatpush1.msra.mxu0 %v3325
    %3384 = vmatprep.subr.mxu0 0.0
    %3385 = vmatpush1.msra.mxu0 %v3326
    %3386 = vmatprep.subr.mxu0 0.0
    %3387 = vmatpush1.msra.mxu0 %v3327
    %3388 = vmatprep.subr.mxu0 0.0
    %3389 = vmatpush1.msra.mxu0 %v3328
    %3390 = vmatprep.subr.mxu0 0.0
    %3391 = vmatpush1.msra.mxu0 %v3329
    %3392 = vmatprep.subr.mxu0 0.0
    %3393 = vmatpush1.msra.mxu0 %v3330
    %3394 = vmatprep.subr.mxu0 0.0
    %3395 = vmatpush1.msra.mxu0 %v3331
    %3396 = vmatprep.subr.mxu0 0.0
    %3397 = vmatpush1.msra.mxu0 %v3332
    %3398 = vmatprep.subr.mxu0 0.0
    %3399 = vmatpush1.msra.mxu0 %v3333
    %3400 = vmatprep.subr.mxu0 0.0
    %3401 = vmatpush1.msra.mxu0 %v3334
    %3402 = vmatprep.subr.mxu0 0.0
    %3403 = vmatpush1.msra.mxu0 %v3335
    %3404 = vmatprep.subr.mxu0 0.0
    %3405 = vmatpush1.msra.mxu0 %v3336
    %3406 = vmatprep.subr.mxu0 0.0
    %3407 = vmatpush1.msra.mxu0 %v3337
    %3408 = vmatprep.subr.mxu0 0.0
    %3409 = vmatpush1.msra.mxu0 %v3338
    %3410 = vmatprep.mubr.f32.mxu0 %v3292
    %3411 = vmatmul.mubr.f32.gmra.mrb[0].mxu0 %v3291
    %v3412 = vpop.f32.mrb[0].mxu0
    %v3413 = vadd.f32 %v3344, %v3412
    %v3414 = vpop.f32.mrb[0].mxu0
    %3415 = vmatprep.mubr.f32.mxu0 %v3294
    %3416 = vmatmul.mubr.f32.gmra.mrb[0].mxu0 %v3293
    %v3417 = vpop.f32.mrb[0].mxu0
    %v3418 = vadd.f32 %v3344, %v3417
    %v3419 = vpop.f32.mrb[0].mxu0
    %3420 = vmatprep.mubr.f32.mxu0 %v3296
    %3421 = vmatmul.mubr.f32.gmra.mrb[0].mxu0 %v3295
    %v3422 = vpop.f32.mrb[0].mxu0
    %v3423 = vadd.f32 %v3344, %v3422
    %v3424 = vpop.f32.mrb[0].mxu0
    %3425 = vmatprep.mubr.f32.mxu0 %v3298
    %3426 = vmatmul.mubr.f32.gmra.mrb[0].mxu0 %v3297
    %v3427 = vpop.f32.mrb[0].mxu0
    %v3428 = vadd.f32 %v3344, %v3427
    %v3429 = vpop.f32.mrb[0].mxu0
    %3430 = vmatprep.mubr.f32.mxu0 %v3300
    %3431 = vmatmul.mubr.f32.gmra.mrb[0].mxu0 %v3299
    %v3432 = vpop.f32.mrb[0].mxu0
    %v3433 = vadd.f32 %v3344, %v3432
    %v3434 = vpop.f32.mrb[0].mxu0
    %3435 = vmatprep.mubr.f32.mxu0 %v3302
    %3436 = vmatmul.mubr.f32.gmra.mrb[0].mxu0 %v3301
    %v3437 = vpop.f32.mrb[0].mxu0
    %v3438 = vadd.f32 %v3344, %v3437
    %v3439 = vpop.f32.mrb[0].mxu0
    %3440 = vmatprep.mubr.f32.mxu0 %v3304
    %3441 = vmatmul.mubr.f32.gmra.mrb[0].mxu0 %v3303
    %v3442 = vpop.f32.mrb[0].mxu0
    %v3443 = vadd.f32 %v3344, %v3442
    %v3444 = vpop.f32.mrb[0].mxu0
    %3445 = vmatprep.mubr.f32.mxu0 %v3306
    %3446 = vmatmul.mubr.f32.gmra.mrb[0].mxu0 %v3305
    %v3447 = vpop.f32.mrb[0].mxu0
    %v3448 = vadd.f32 %v3344, %v3447
    %v3449 = vpop.f32.mrb[0].mxu0
    %3450 = vdwg.mxu0
    %v3451 = vadd.f32 %v3008, %v3413
    %v3452 = vadd.f32 %v3009, %v3418
    %v3453 = vadd.f32 %v3010, %v3423
    %v3454 = vadd.f32 %v3011, %v3428
    %v3455 = vadd.f32 %v3012, %v3433
    %v3456 = vadd.f32 %v3013, %v3438
    %v3457 = vadd.f32 %v3014, %v3443
    %v3458 = vadd.f32 %v3015, %v3448
    %3459 = vst [vmem:[#allocation14] sm:$0xff] %v3451
    %3460 = vst [vmem:[#allocation14 + $0x8] sm:$0xff] %v3452
    %3461 = vst [vmem:[#allocation14 + $0x10] sm:$0xff] %v3453
    %3462 = vst [vmem:[#allocation14 + $0x18] sm:$0xff] %v3454
    %3463 = vst [vmem:[#allocation14 + $0x20] sm:$0xff] %v3455
    %3464 = vst [vmem:[#allocation14 + $0x28] sm:$0xff] %v3456
    %3465 = vst [vmem:[#allocation14 + $0x30] sm:$0xff] %v3457
    %3466 = vst [vmem:[#allocation14 + $0x38] sm:$0xff] %v3458
    // Predicated region
    $region90: #{tpu_custom_call.1} parent=1 // pred_check
      _
    $region91: #{tpu_custom_call.1} parent=1 // pred_check_branch
      %3468 = sbr.rel (0) target = $region93
    $region92: #{tpu_custom_call.1} parent=1 // pred_region
      %s3470 = ssub.s32 1024, 1024
      %3471 = vsyncadd [#allocation4], %s3470
      %s3472 = sshll.u32 [#allocation14], 4
      %s3473 = int_to_ptr.vmem [resolvable:$true] %s3472
      %3478 = dma.vmem_to_hbm [thread:$0]  %s3473, 1024, %s15, [#allocation4], 128, 128, 8
    $region93: #{tpu_custom_call.1} parent=1 // pred_fallthru
      _
    // Predicated region
    $region94: #{tpu_custom_call.1} parent=1 // pred_check
      _
    $region95: #{tpu_custom_call.1} parent=1 // pred_check_branch
      %3480 = sbr.rel (0) target = $region97
    $region96: #{tpu_custom_call.1} parent=1 // pred_region
      %3481 = dma.done [#allocation4], 1024
    $region97: #{tpu_custom_call.1} parent=1 // pred_fallthru
      _
    %3482 = vsyncpa [#allocation3], 1
    %3483 = vsyncpa [#allocation6], 1
    %3484 = vsyncpa [#allocation9], 1
    %3485 = vsyncpa [#allocation12], 1
    %3486 = vsyncpa [#allocation4], 1

</llo_original>
